<compile_context>
chip_gen: v7x
topology: tpu7x:2x2x1
jax: 0.10.0
libtpu: 0.0.40
codegen_flags: <defaults>
</compile_context>

<pallas_src>
import functools
import math

import numpy as np
import jax
import jax.numpy as jnp
from jax.experimental import pallas as pl
from jax.experimental.pallas import tpu as pltpu

# ----------------------------- model hyper-parameters -----------------------------
D_MODEL = 32
N_HEADS = 4
HEAD_DIM = D_MODEL // N_HEADS
N_LEVELS = 2
N_POINTS = 4
D_FFN = 64
NUM_LAYERS = 2
LN_EPS = 1e-5
ATTN_SCALE = 1.0 / math.sqrt(HEAD_DIM)

B = 2          # batch
LQ = 8         # number of queries
SPATIAL_SHAPES = [(8, 8), (4, 4)]
LEN_SRC = sum(h * w for h, w in SPATIAL_SHAPES)   # 80

LP = N_LEVELS * N_POINTS          # 8  (levels*points)
HLP = N_HEADS * LP                # 32


# ----------------------------- shared math helpers (jnp only) -----------------------------
def _layer_norm(x, g, b):
    mu = jnp.mean(x, axis=-1, keepdims=True)
    var = jnp.mean((x - mu) ** 2, axis=-1, keepdims=True)
    return (x - mu) * jax.lax.rsqrt(var + LN_EPS) * g + b


def _softmax_last(x):
    m = jnp.max(x, axis=-1, keepdims=True)
    e = jnp.exp(x - m)
    return e / jnp.sum(e, axis=-1, keepdims=True)


# ----------------------------- fused decoder kernel -----------------------------
def _decoder_kernel(
    # invariant activations / geometry
    tgt0_ref, pos_ref, src_ref, keep_ref, refx_ref, refy_ref, geomf_ref, geomi_ref,
    # per-layer weights (leading axis selected by grid index)
    wqk_ref, bqk_ref, wv_ref, bv_ref, wo_ref, bo_ref, ln2g_ref, ln2b_ref,
    wvp_ref, bvp_ref, woa_ref, boa_ref, wop_ref, bop_ref, ln1g_ref, ln1b_ref,
    w1_ref, b1_ref, w2_ref, b2_ref, ln3g_ref, ln3b_ref,
    # output + VMEM carry
    out_ref, acc_ref,
    *, Bsz, Lq, Ls):
    layer = pl.program_id(0)

    @pl.when(layer == 0)
    def _init():
        acc_ref[...] = tgt0_ref[...]

    tgt = acc_ref[...]                       # (B*Lq, C)   running activation
    pos = pos_ref[...]

    # layer weights (already VMEM resident, chosen by the grid index_map)
    wqk, bqk = wqk_ref[0], bqk_ref[0]
    wv, bv = wv_ref[0], bv_ref[0]
    wo, bo = wo_ref[0], bo_ref[0]
    ln2g, ln2b = ln2g_ref[0], ln2b_ref[0]
    wvp, bvp = wvp_ref[0], bvp_ref[0]
    woa, boa = woa_ref[0], boa_ref[0]
    wop, bop = wop_ref[0], bop_ref[0]
    ln1g, ln1b = ln1g_ref[0], ln1b_ref[0]
    w1, b1 = w1_ref[0], b1_ref[0]
    w2, b2 = w2_ref[0], b2_ref[0]
    ln3g, ln3b = ln3g_ref[0], ln3b_ref[0]

    # per (level, point) column geometry
    inv_wx = geomf_ref[0:1, :]               # (1, LP) 1/W_l
    inv_wy = geomf_ref[1:2, :]               # (1, LP) 1/H_l
    wf = geomf_ref[2:3, :]                   # (1, LP) W_l  (float)
    hf = geomf_ref[3:4, :]                   # (1, LP) H_l  (float)
    wi = geomi_ref[0:1, :]                   # (1, LP) W_l  (int32)
    start = geomi_ref[1:2, :]                # (1, LP) level start offset

    # ---------------- self attention (all batches & heads, one QK and one V matmul) ----------------
    qk_in = tgt + pos
    qk = jnp.dot(qk_in, wqk, preferred_element_type=jnp.float32) + bqk     # (M, 2C)  [Q | K]
    v = jnp.dot(tgt, wv, preferred_element_type=jnp.float32) + bv          # (M, C)

    attn_rows = []
    for b in range(Bsz):
        r0 = b * Lq
        head_outs = []
        for h in range(N_HEADS):
            c0 = h * HEAD_DIM
            q_bh = qk[r0:r0 + Lq, c0:c0 + HEAD_DIM]
            k_bh = qk[r0:r0 + Lq, D_MODEL + c0:D_MODEL + c0 + HEAD_DIM]
            v_bh = v[r0:r0 + Lq, c0:c0 + HEAD_DIM]
            s = jnp.dot(q_bh, k_bh.T, preferred_element_type=jnp.float32) * ATTN_SCALE
            p = _softmax_last(s)
            head_outs.append(jnp.dot(p, v_bh, preferred_element_type=jnp.float32))
        attn_rows.append(jnp.concatenate(head_outs, axis=1))
    attn = jnp.concatenate(attn_rows, axis=0)                              # (M, C)
    tgt2 = jnp.dot(attn, wo, preferred_element_type=jnp.float32) + bo
    tgt = _layer_norm(tgt + tgt2, ln2g, ln2b)

    # ---------------- MSDeformAttn cross attention ----------------
    q_cross = tgt + pos
    # one lane-concatenated projection: [x-offsets | y-offsets | attention logits]
    oa = jnp.dot(q_cross, woa, preferred_element_type=jnp.float32) + boa   # (M, 3*HLP)
    offx = oa[:, 0:HLP]
    offy = oa[:, HLP:2 * HLP]
    logit = oa[:, 2 * HLP:3 * HLP]

    HQ = N_HEADS * Lq
    iota_s = jax.lax.broadcasted_iota(jnp.int32, (HQ, Ls), 1)

    cross_rows = []
    for b in range(Bsz):
        r0 = b * Lq
        s0 = b * Ls
        src_b = src_ref[s0:s0 + Ls, :]                                     # (Ls, C)
        value_b = jnp.dot(src_b, wvp, preferred_element_type=jnp.float32) + bvp
        value_b = value_b * keep_ref[s0:s0 + Ls, :]                        # padding mask -> 0

        # rearrange to head-major rows: row = h*Lq + q, columns = (level, point)
        def _head_major(x):
            return jnp.concatenate(
                [x[r0:r0 + Lq, h * LP:(h + 1) * LP] for h in range(N_HEADS)], axis=0)

        ox = _head_major(offx)                                             # (HQ, LP)
        oy = _head_major(offy)
        aw = _softmax_last(_head_major(logit))                             # softmax over L*P per (q,h)

        rx = jnp.concatenate([refx_ref[r0:r0 + Lq, :]] * N_HEADS, axis=0)  # (HQ, LP)
        ry = jnp.concatenate([refy_ref[r0:r0 + Lq, :]] * N_HEADS, axis=0)

        # grid_sample pixel coords, align_corners=False:  px = loc_x * W - 0.5
        px = (rx + ox * inv_wx) * wf - 0.5
        py = (ry + oy * inv_wy) * hf - 0.5
        x0 = jnp.floor(px)
        y0 = jnp.floor(py)
        dx = px - x0
        dy = py - y0

        # dense interpolation matrix (attention weights folded in), head-major rows
        p_mat = jnp.zeros((HQ, Ls), jnp.float32)
        corners = [(x0, y0, (1.0 - dx) * (1.0 - dy)),
                   (x0 + 1.0, y0, dx * (1.0 - dy)),
                   (x0, y0 + 1.0, (1.0 - dx) * dy),
                   (x0 + 1.0, y0 + 1.0, dx * dy)]
        for cx, cy, cw in corners:
            valid = ((cx >= 0.0) & (cx < wf) & (cy >= 0.0) & (cy < hf)).astype(jnp.float32)
            cxi = jnp.clip(cx, 0.0, wf - 1.0).astype(jnp.int32)
            cyi = jnp.clip(cy, 0.0, hf - 1.0).astype(jnp.int32)
            flat = start + cyi * wi + cxi                                  # (HQ, LP) int32
            wgt = cw * valid * aw                                          # (HQ, LP)
            for c in range(LP):                                            # keep everything 2-D
                onehot = (flat[:, c:c + 1] == iota_s).astype(jnp.float32)  # (HQ, Ls)
                p_mat = p_mat + wgt[:, c:c + 1] * onehot

        # single MXU matmul gathers & mixes the value rows for every head at once
        sampled = jnp.dot(p_mat, value_b, preferred_element_type=jnp.float32)   # (HQ, C)
        cross_rows.append(jnp.concatenate(
            [sampled[h * Lq:(h + 1) * Lq, h * HEAD_DIM:(h + 1) * HEAD_DIM]
             for h in range(N_HEADS)], axis=1))                            # (Lq, C)

    d_out = jnp.concatenate(cross_rows, axis=0)                            # (M, C)
    tgt2 = jnp.dot(d_out, wop, preferred_element_type=jnp.float32) + bop
    tgt = _layer_norm(tgt + tgt2, ln1g, ln1b)

    # ---------------- FFN ----------------
    h1 = jnp.maximum(jnp.dot(tgt, w1, preferred_element_type=jnp.float32) + b1, 0.0)
    tgt2 = jnp.dot(h1, w2, preferred_element_type=jnp.float32) + b2
    tgt = _layer_norm(tgt + tgt2, ln3g, ln3b)

    acc_ref[...] = tgt       # carry to next layer (next grid step)
    out_ref[...] = tgt       # VMEM-resident output, written back to HBM once at grid end


# ----------------------------- wrapper -----------------------------
def deformable_transformer_decoder(layer_params, pre_tgt, src_spatial_shapes,
                                   src_level_start_index, pre_query_pos,
                                   src_padding_mask, src, pre_ref_pts):
    Bsz, Lq, C = pre_tgt.shape
    Ls = src.shape[1]
    M = Bsz * Lq
    num_layers = len(layer_params)

    # static geometry expanded per (level, point) column
    sp = np.asarray(jax.device_get(src_spatial_shapes)).astype(np.int64)       # (L, 2) = (H, W)
    lsi = np.asarray(jax.device_get(src_level_start_index)).astype(np.int64)   # (L,)
    Wl = sp[:, 1].astype(np.float32)
    Hl = sp[:, 0].astype(np.float32)
    wf = np.repeat(Wl, N_POINTS)[None, :]
    hf = np.repeat(Hl, N_POINTS)[None, :]
    geom_f = np.concatenate([1.0 / wf, 1.0 / hf, wf, hf], axis=0).astype(np.float32)   # (4, LP)
    geom_i = np.concatenate([np.repeat(sp[:, 1], N_POINTS)[None, :],
                             np.repeat(lsi, N_POINTS)[None, :]], axis=0).astype(np.int32)  # (2, LP)

    # flatten activations: rows = batch*query (b-major), lanes = channels
    tgt0 = pre_tgt.reshape(M, C).astype(jnp.float32)
    pos = pre_query_pos.reshape(M, C).astype(jnp.float32)
    srcf = src.reshape(Bsz * Ls, C).astype(jnp.float32)
    keep = 1.0 - src_padding_mask.reshape(Bsz * Ls, 1).astype(jnp.float32)
    refx = jnp.repeat(pre_ref_pts[..., 0], N_POINTS, axis=-1).reshape(M, LP).astype(jnp.float32)
    refy = jnp.repeat(pre_ref_pts[..., 1], N_POINTS, axis=-1).reshape(M, LP).astype(jnp.float32)

    # stack per-layer weights along a leading "layer" axis: one grid step per layer
    stacked = {k: jnp.stack([p[k] for p in layer_params]) for k in layer_params[0]}
    weight_order = ["Wqk", "bqk", "Wv", "bv", "Wo", "bo", "ln2_g", "ln2_b",
                    "Wvp", "bvp", "Woa", "boa", "Wop", "bop", "ln1_g", "ln1_b",
                    "W1", "b1", "W2", "b2", "ln3_g", "ln3_b"]
    weights = [stacked[k] for k in weight_order]

    def _full(shape):
        return pl.BlockSpec(shape, lambda l: (0, 0))

    def _per_layer(shape):
        return pl.BlockSpec((1,) + shape[1:], lambda l: (l, 0, 0))

    in_specs = [_full((M, C)), _full((M, C)), _full((Bsz * Ls, C)), _full((Bsz * Ls, 1)),
                _full((M, LP)), _full((M, LP)), _full((4, LP)), _full((2, LP))]
    in_specs += [_per_layer(w.shape) for w in weights]

    kernel = functools.partial(_decoder_kernel, Bsz=Bsz, Lq=Lq, Ls=Ls)

    out = pl.pallas_call(
        kernel,
        out_shape=jax.ShapeDtypeStruct((M, C), jnp.float32),
        grid=(num_layers,),
        in_specs=in_specs,
        out_specs=pl.BlockSpec((M, C), lambda l: (0, 0)),
        scratch_shapes=[pltpu.VMEM((M, C), jnp.float32)],
        input_output_aliases={0: 0},            # reuse the tgt buffer for the output
        compiler_params=pltpu.CompilerParams(dimension_semantics=("arbitrary",)),
    )(tgt0, pos, srcf, keep, refx, refy, jnp.asarray(geom_f), jnp.asarray(geom_i), *weights)

    return out.reshape(Bsz, Lq, C)


# ----------------------------- pure-JAX reference (correctness check) -----------------------------
def _reference_layer(p, tgt, query_pos, src, spatial_shapes, level_start_index,
                     ref_pts, padding_mask):
    Bsz, Lq, C = tgt.shape
    Ls = src.shape[1]
    H, L, P, Dh = N_HEADS, N_LEVELS, N_POINTS, HEAD_DIM

    # self attention
    qk_in = (tgt + query_pos).reshape(Bsz * Lq, C)
    qk = qk_in @ p["Wqk"] + p["bqk"]
    q = qk[:, :C].reshape(Bsz, Lq, H, Dh)
    k = qk[:, C:].reshape(Bsz, Lq, H, Dh)
    v = (tgt.reshape(Bsz * Lq, C) @ p["Wv"] + p["bv"]).reshape(Bsz, Lq, H, Dh)
    s = jnp.einsum("bqhd,bkhd->bhqk", q, k) * ATTN_SCALE
    a = jax.nn.softmax(s, axis=-1)
    o = jnp.einsum("bhqk,bkhd->bqhd", a, v).reshape(Bsz * Lq, C)
    tgt2 = o @ p["Wo"] + p["bo"]
    tgt = _layer_norm(tgt.reshape(Bsz * Lq, C) + tgt2, p["ln2_g"], p["ln2_b"]).reshape(Bsz, Lq, C)

    # cross attention (MSDeformAttn)
    q_cross = (tgt + query_pos).reshape(Bsz * Lq, C)
    value = (src.reshape(Bsz * Ls, C) @ p["Wvp"] + p["bvp"]).reshape(Bsz, Ls, C)
    value = value * (1.0 - padding_mask[..., None].astype(jnp.float32))
    value_h = value.reshape(Bsz, Ls, H, Dh)

    oa = q_cross @ p["Woa"] + p["boa"]
    offx = oa[:, 0:HLP].reshape(Bsz, Lq, H, L, P)
    offy = oa[:, HLP:2 * HLP].reshape(Bsz, Lq, H, L, P)
    logit = oa[:, 2 * HLP:3 * HLP].reshape(Bsz, Lq, H, L * P)
    aw = jax.nn.softmax(logit, axis=-1).reshape(Bsz, Lq, H, L, P)

    Wf = spatial_shapes[:, 1].astype(jnp.float32)[None, None, None, :, None]
    Hf = spatial_shapes[:, 0].astype(jnp.float32)[None, None, None, :, None]
    Wi = spatial_shapes[:, 1].astype(jnp.int32)[None, None, None, :, None]
    lvl0 = level_start_index.astype(jnp.int32)[None, None, None, :, None]
    ref_x = ref_pts[:, :, None, :, None, 0]
    ref_y = ref_pts[:, :, None, :, None, 1]

    px = (ref_x + offx / Wf) * Wf - 0.5
    py = (ref_y + offy / Hf) * Hf - 0.5
    x0 = jnp.floor(px)
    y0 = jnp.floor(py)
    dx = px - x0
    dy = py - y0

    s_idx = jnp.arange(Ls, dtype=jnp.int32)
    Wa = jnp.zeros((Bsz, Lq, H, Ls), jnp.float32)
    for cx, cy, cw in [(x0, y0, (1 - dx) * (1 - dy)), (x0 + 1, y0, dx * (1 - dy)),
                       (x0, y0 + 1, (1 - dx) * dy), (x0 + 1, y0 + 1, dx * dy)]:
        valid = (cx >= 0) & (cx < Wf) & (cy >= 0) & (cy < Hf)
        cxi = jnp.clip(cx, 0.0, Wf - 1.0).astype(jnp.int32)
        cyi = jnp.clip(cy, 0.0, Hf - 1.0).astype(jnp.int32)
        flat = lvl0 + cyi * Wi + cxi
        w = cw * valid.astype(jnp.float32) * aw
        onehot = (flat[..., None] == s_idx).astype(jnp.float32)
        Wa = Wa + jnp.sum(w[..., None] * onehot, axis=(3, 4))
    d_out = jnp.einsum("bqhs,bshd->bqhd", Wa, value_h).reshape(Bsz * Lq, C)
    tgt2 = d_out @ p["Wop"] + p["bop"]
    tgt = _layer_norm(tgt.reshape(Bsz * Lq, C) + tgt2, p["ln1_g"], p["ln1_b"]).reshape(Bsz, Lq, C)

    # FFN
    x = tgt.reshape(Bsz * Lq, C)
    h1 = jnp.maximum(x @ p["W1"] + p["b1"], 0.0)
    tgt2 = h1 @ p["W2"] + p["b2"]
    return _layer_norm(x + tgt2, p["ln3_g"], p["ln3_b"]).reshape(Bsz, Lq, C)


def decoder_reference(layer_params, pre_tgt, src_spatial_shapes, src_level_start_index,
                      pre_query_pos, src_padding_mask, src, pre_ref_pts):
    out = pre_tgt
    for p in layer_params:
        out = _reference_layer(p, out, pre_query_pos, src, src_spatial_shapes,
                               src_level_start_index, pre_ref_pts, src_padding_mask)
    return out


# ----------------------------- deterministic parameter init -----------------------------
def _w(key, fan_in, fan_out, scale):
    return jax.random.normal(key, (fan_in, fan_out), jnp.float32) * scale


def init_layer_params(key):
    ks = jax.random.split(key, 8)
    p = {}
    p["Wqk"] = _w(ks[0], D_MODEL, 2 * D_MODEL, 0.05)          # [Wq | Wk]
    p["bqk"] = jnp.zeros((1, 2 * D_MODEL), jnp.float32)
    p["Wv"] = _w(ks[1], D_MODEL, D_MODEL, 0.05)
    p["bv"] = jnp.zeros((1, D_MODEL), jnp.float32)
    p["Wo"] = _w(ks[2], D_MODEL, D_MODEL, 0.05)
    p["bo"] = jnp.zeros((1, D_MODEL), jnp.float32)
    p["Wvp"] = _w(ks[3], D_MODEL, D_MODEL, 0.05)              # value_proj
    p["bvp"] = jnp.zeros((1, D_MODEL), jnp.float32)
    p["Woa"] = _w(ks[4], D_MODEL, 3 * HLP, 0.02)              # [x-offsets | y-offsets | attn logits]
    p["boa"] = jnp.zeros((1, 3 * HLP), jnp.float32)
    p["Wop"] = _w(ks[5], D_MODEL, D_MODEL, 0.05)              # output_proj
    p["bop"] = jnp.zeros((1, D_MODEL), jnp.float32)
    p["W1"] = _w(ks[6], D_MODEL, D_FFN, 0.05)
    p["b1"] = jnp.zeros((1, D_FFN), jnp.float32)
    p["W2"] = _w(ks[7], D_FFN, D_MODEL, 0.05)
    p["b2"] = jnp.zeros((1, D_MODEL), jnp.float32)
    for n in ("ln1", "ln2", "ln3"):
        p[n + "_g"] = jnp.ones((1, D_MODEL), jnp.float32)
        p[n + "_b"] = jnp.zeros((1, D_MODEL), jnp.float32)
    return p


# ----------------------------- main -----------------------------
if __name__ == "__main__":
    key = jax.random.PRNGKey(0)
    k_tgt, k_pos, k_src, k_ref, k_par = jax.random.split(key, 5)

    pre_tgt = jax.random.normal(k_tgt, (B, LQ, D_MODEL), jnp.float32)
    pre_query_pos = jax.random.normal(k_pos, (B, LQ, D_MODEL), jnp.float32)
    src = jax.random.normal(k_src, (B, LEN_SRC, D_MODEL), jnp.float32)
    pre_ref_pts = jax.random.uniform(k_ref, (B, LQ, N_LEVELS, 2), jnp.float32, 0.1, 0.9)
    src_spatial_shapes = jnp.array(SPATIAL_SHAPES, jnp.int32)                 # (L, 2) = (H, W)
    src_level_start_index = jnp.array(
        [0] + list(np.cumsum([h * w for h, w in SPATIAL_SHAPES])[:-1]), jnp.int32)
    src_padding_mask = jnp.zeros((B, LEN_SRC), jnp.bool_)

    layer_keys = jax.random.split(k_par, NUM_LAYERS)
    layer_params = [init_layer_params(lk) for lk in layer_keys]

    out = deformable_transformer_decoder(
        layer_params, pre_tgt, src_spatial_shapes, src_level_start_index,
        pre_query_pos, src_padding_mask, src, pre_ref_pts)
    out = jax.block_until_ready(out)

    assert out.shape == (B, LQ, D_MODEL)
    assert bool(jnp.all(jnp.isfinite(out)))

    with jax.default_matmul_precision("highest"):
        ref = decoder_reference(
            layer_params, pre_tgt, src_spatial_shapes, src_level_start_index,
            pre_query_pos, src_padding_mask, src, pre_ref_pts)
    err = float(jnp.max(jnp.abs(out - ref)))
    assert err < 1e-2, f"mismatch vs pure-JAX reference: {err}"

    print("KERNEL_OK")
</pallas_src>

<mosaic_0001>
module attributes {stable_mosaic.version = 11 : i64} {
  func.func @_decoder_kernel(%arg0: i32, %arg1: memref<16x32xf32, #tpu.memory_space<vmem>>, %arg2: memref<16x32xf32, #tpu.memory_space<vmem>>, %arg3: memref<160x32xf32, #tpu.memory_space<vmem>>, %arg4: memref<160x1xf32, #tpu.memory_space<vmem>>, %arg5: memref<16x8xf32, #tpu.memory_space<vmem>>, %arg6: memref<16x8xf32, #tpu.memory_space<vmem>>, %arg7: memref<4x8xf32, #tpu.memory_space<vmem>>, %arg8: memref<2x8xi32, #tpu.memory_space<vmem>>, %arg9: memref<1x32x64xf32, #tpu.memory_space<vmem>>, %arg10: memref<1x1x64xf32, #tpu.memory_space<vmem>>, %arg11: memref<1x32x32xf32, #tpu.memory_space<vmem>>, %arg12: memref<1x1x32xf32, #tpu.memory_space<vmem>>, %arg13: memref<1x32x32xf32, #tpu.memory_space<vmem>>, %arg14: memref<1x1x32xf32, #tpu.memory_space<vmem>>, %arg15: memref<1x1x32xf32, #tpu.memory_space<vmem>>, %arg16: memref<1x1x32xf32, #tpu.memory_space<vmem>>, %arg17: memref<1x32x32xf32, #tpu.memory_space<vmem>>, %arg18: memref<1x1x32xf32, #tpu.memory_space<vmem>>, %arg19: memref<1x32x96xf32, #tpu.memory_space<vmem>>, %arg20: memref<1x1x96xf32, #tpu.memory_space<vmem>>, %arg21: memref<1x32x32xf32, #tpu.memory_space<vmem>>, %arg22: memref<1x1x32xf32, #tpu.memory_space<vmem>>, %arg23: memref<1x1x32xf32, #tpu.memory_space<vmem>>, %arg24: memref<1x1x32xf32, #tpu.memory_space<vmem>>, %arg25: memref<1x32x64xf32, #tpu.memory_space<vmem>>, %arg26: memref<1x1x64xf32, #tpu.memory_space<vmem>>, %arg27: memref<1x64x32xf32, #tpu.memory_space<vmem>>, %arg28: memref<1x1x32xf32, #tpu.memory_space<vmem>>, %arg29: memref<1x1x32xf32, #tpu.memory_space<vmem>>, %arg30: memref<1x1x32xf32, #tpu.memory_space<vmem>>, %arg31: memref<16x32xf32, #tpu.memory_space<vmem>>, %arg32: memref<16x32xf32, #tpu.memory_space<vmem>>) attributes {dimension_semantics = [#tpu.dimension_semantics<arbitrary>], iteration_bounds = array<i64: 2>, scalar_prefetch = 0 : i64, scratch_operands = 1 : i64, tpu.core_type = #tpu.core_type<tc>, window_params = [{pipeline_mode = #tpu.pipeline_mode<synchronous>, transform_indices = @transform_0, window_bounds = array<i64: 16, 32>}, {pipeline_mode = #tpu.pipeline_mode<synchronous>, transform_indices = @transform_1, window_bounds = array<i64: 16, 32>}, {pipeline_mode = #tpu.pipeline_mode<synchronous>, transform_indices = @transform_2, window_bounds = array<i64: 160, 32>}, {pipeline_mode = #tpu.pipeline_mode<synchronous>, transform_indices = @transform_3, window_bounds = array<i64: 160, 1>}, {pipeline_mode = #tpu.pipeline_mode<synchronous>, transform_indices = @transform_4, window_bounds = array<i64: 16, 8>}, {pipeline_mode = #tpu.pipeline_mode<synchronous>, transform_indices = @transform_5, window_bounds = array<i64: 16, 8>}, {pipeline_mode = #tpu.pipeline_mode<synchronous>, transform_indices = @transform_6, window_bounds = array<i64: 4, 8>}, {pipeline_mode = #tpu.pipeline_mode<synchronous>, transform_indices = @transform_7, window_bounds = array<i64: 2, 8>}, {transform_indices = @transform_8, window_bounds = array<i64: 1, 32, 64>}, {transform_indices = @transform_9, window_bounds = array<i64: 1, 1, 64>}, {transform_indices = @transform_10, window_bounds = array<i64: 1, 32, 32>}, {transform_indices = @transform_11, window_bounds = array<i64: 1, 1, 32>}, {transform_indices = @transform_12, window_bounds = array<i64: 1, 32, 32>}, {transform_indices = @transform_13, window_bounds = array<i64: 1, 1, 32>}, {transform_indices = @transform_14, window_bounds = array<i64: 1, 1, 32>}, {transform_indices = @transform_15, window_bounds = array<i64: 1, 1, 32>}, {transform_indices = @transform_16, window_bounds = array<i64: 1, 32, 32>}, {transform_indices = @transform_17, window_bounds = array<i64: 1, 1, 32>}, {transform_indices = @transform_18, window_bounds = array<i64: 1, 32, 96>}, {transform_indices = @transform_19, window_bounds = array<i64: 1, 1, 96>}, {transform_indices = @transform_20, window_bounds = array<i64: 1, 32, 32>}, {transform_indices = @transform_21, window_bounds = array<i64: 1, 1, 32>}, {transform_indices = @transform_22, window_bounds = array<i64: 1, 1, 32>}, {transform_indices = @transform_23, window_bounds = array<i64: 1, 1, 32>}, {transform_indices = @transform_24, window_bounds = array<i64: 1, 32, 64>}, {transform_indices = @transform_25, window_bounds = array<i64: 1, 1, 64>}, {transform_indices = @transform_26, window_bounds = array<i64: 1, 64, 32>}, {transform_indices = @transform_27, window_bounds = array<i64: 1, 1, 32>}, {transform_indices = @transform_28, window_bounds = array<i64: 1, 1, 32>}, {transform_indices = @transform_29, window_bounds = array<i64: 1, 1, 32>}, {pipeline_mode = #tpu.pipeline_mode<synchronous>, transform_indices = @transform_30, window_bounds = array<i64: 16, 32>}]} {
    %c0_i32 = arith.constant 0 : i32
    %0 = arith.cmpi eq, %arg0, %c0_i32 : i32
    %1 = arith.extui %0 : i1 to i32
    %c0_i32_0 = arith.constant 0 : i32
    %2 = arith.cmpi ne, %1, %c0_i32_0 : i32
    scf.if %2 {
      %c0_237 = arith.constant 0 : index
      %c0_238 = arith.constant 0 : index
      %1303 = vector.load %arg1[%c0_237, %c0_238] : memref<16x32xf32, #tpu.memory_space<vmem>>, vector<16x32xf32>
      %c0_239 = arith.constant 0 : index
      %c0_240 = arith.constant 0 : index
      %1304 = vector.load %arg32[%c0_239, %c0_240] : memref<16x32xf32, #tpu.memory_space<vmem>>, vector<16x32xf32>
      tpu.vector_store %arg32[%c0_239, %c0_240], %1303 {strides = array<i32>} : memref<16x32xf32, #tpu.memory_space<vmem>>, vector<16x32xf32>,
    } else {
    }
    %c0 = arith.constant 0 : index
    %c0_1 = arith.constant 0 : index
    %3 = vector.load %arg32[%c0, %c0_1] : memref<16x32xf32, #tpu.memory_space<vmem>>, vector<16x32xf32>
    %c0_2 = arith.constant 0 : index
    %c0_3 = arith.constant 0 : index
    %4 = vector.load %arg2[%c0_2, %c0_3] : memref<16x32xf32, #tpu.memory_space<vmem>>, vector<16x32xf32>
    %c0_4 = arith.constant 0 : index
    %c0_5 = arith.constant 0 : index
    %c0_6 = arith.constant 0 : index
    %5 = vector.load %arg9[%c0_4, %c0_5, %c0_6] : memref<1x32x64xf32, #tpu.memory_space<vmem>>, vector<1x32x64xf32>
    %6 = vector.shape_cast %5 : vector<1x32x64xf32> to vector<32x64xf32>
    %c0_7 = arith.constant 0 : index
    %c0_8 = arith.constant 0 : index
    %c0_9 = arith.constant 0 : index
    %7 = vector.load %arg10[%c0_7, %c0_8, %c0_9] : memref<1x1x64xf32, #tpu.memory_space<vmem>>, vector<1x1x64xf32>
    %8 = vector.shape_cast %7 : vector<1x1x64xf32> to vector<1x64xf32>
    %c0_10 = arith.constant 0 : index
    %c0_11 = arith.constant 0 : index
    %c0_12 = arith.constant 0 : index
    %9 = vector.load %arg11[%c0_10, %c0_11, %c0_12] : memref<1x32x32xf32, #tpu.memory_space<vmem>>, vector<1x32x32xf32>
    %10 = vector.shape_cast %9 : vector<1x32x32xf32> to vector<32x32xf32>
    %c0_13 = arith.constant 0 : index
    %c0_14 = arith.constant 0 : index
    %c0_15 = arith.constant 0 : index
    %11 = vector.load %arg12[%c0_13, %c0_14, %c0_15] : memref<1x1x32xf32, #tpu.memory_space<vmem>>, vector<1x1x32xf32>
    %12 = vector.shape_cast %11 : vector<1x1x32xf32> to vector<1x32xf32>
    %c0_16 = arith.constant 0 : index
    %c0_17 = arith.constant 0 : index
    %c0_18 = arith.constant 0 : index
    %13 = vector.load %arg13[%c0_16, %c0_17, %c0_18] : memref<1x32x32xf32, #tpu.memory_space<vmem>>, vector<1x32x32xf32>
    %14 = vector.shape_cast %13 : vector<1x32x32xf32> to vector<32x32xf32>
    %c0_19 = arith.constant 0 : index
    %c0_20 = arith.constant 0 : index
    %c0_21 = arith.constant 0 : index
    %15 = vector.load %arg14[%c0_19, %c0_20, %c0_21] : memref<1x1x32xf32, #tpu.memory_space<vmem>>, vector<1x1x32xf32>
    %16 = vector.shape_cast %15 : vector<1x1x32xf32> to vector<1x32xf32>
    %c0_22 = arith.constant 0 : index
    %c0_23 = arith.constant 0 : index
    %c0_24 = arith.constant 0 : index
    %17 = vector.load %arg15[%c0_22, %c0_23, %c0_24] : memref<1x1x32xf32, #tpu.memory_space<vmem>>, vector<1x1x32xf32>
    %18 = vector.shape_cast %17 : vector<1x1x32xf32> to vector<1x32xf32>
    %c0_25 = arith.constant 0 : index
    %c0_26 = arith.constant 0 : index
    %c0_27 = arith.constant 0 : index
    %19 = vector.load %arg16[%c0_25, %c0_26, %c0_27] : memref<1x1x32xf32, #tpu.memory_space<vmem>>, vector<1x1x32xf32>
    %20 = vector.shape_cast %19 : vector<1x1x32xf32> to vector<1x32xf32>
    %c0_28 = arith.constant 0 : index
    %c0_29 = arith.constant 0 : index
    %c0_30 = arith.constant 0 : index
    %21 = vector.load %arg17[%c0_28, %c0_29, %c0_30] : memref<1x32x32xf32, #tpu.memory_space<vmem>>, vector<1x32x32xf32>
    %22 = vector.shape_cast %21 : vector<1x32x32xf32> to vector<32x32xf32>
    %c0_31 = arith.constant 0 : index
    %c0_32 = arith.constant 0 : index
    %c0_33 = arith.constant 0 : index
    %23 = vector.load %arg18[%c0_31, %c0_32, %c0_33] : memref<1x1x32xf32, #tpu.memory_space<vmem>>, vector<1x1x32xf32>
    %24 = vector.shape_cast %23 : vector<1x1x32xf32> to vector<1x32xf32>
    %c0_34 = arith.constant 0 : index
    %c0_35 = arith.constant 0 : index
    %c0_36 = arith.constant 0 : index
    %25 = vector.load %arg19[%c0_34, %c0_35, %c0_36] : memref<1x32x96xf32, #tpu.memory_space<vmem>>, vector<1x32x96xf32>
    %26 = vector.shape_cast %25 : vector<1x32x96xf32> to vector<32x96xf32>
    %c0_37 = arith.constant 0 : index
    %c0_38 = arith.constant 0 : index
    %c0_39 = arith.constant 0 : index
    %27 = vector.load %arg20[%c0_37, %c0_38, %c0_39] : memref<1x1x96xf32, #tpu.memory_space<vmem>>, vector<1x1x96xf32>
    %28 = vector.shape_cast %27 : vector<1x1x96xf32> to vector<1x96xf32>
    %c0_40 = arith.constant 0 : index
    %c0_41 = arith.constant 0 : index
    %c0_42 = arith.constant 0 : index
    %29 = vector.load %arg21[%c0_40, %c0_41, %c0_42] : memref<1x32x32xf32, #tpu.memory_space<vmem>>, vector<1x32x32xf32>
    %30 = vector.shape_cast %29 : vector<1x32x32xf32> to vector<32x32xf32>
    %c0_43 = arith.constant 0 : index
    %c0_44 = arith.constant 0 : index
    %c0_45 = arith.constant 0 : index
    %31 = vector.load %arg22[%c0_43, %c0_44, %c0_45] : memref<1x1x32xf32, #tpu.memory_space<vmem>>, vector<1x1x32xf32>
    %32 = vector.shape_cast %31 : vector<1x1x32xf32> to vector<1x32xf32>
    %c0_46 = arith.constant 0 : index
    %c0_47 = arith.constant 0 : index
    %c0_48 = arith.constant 0 : index
    %33 = vector.load %arg23[%c0_46, %c0_47, %c0_48] : memref<1x1x32xf32, #tpu.memory_space<vmem>>, vector<1x1x32xf32>
    %34 = vector.shape_cast %33 : vector<1x1x32xf32> to vector<1x32xf32>
    %c0_49 = arith.constant 0 : index
    %c0_50 = arith.constant 0 : index
    %c0_51 = arith.constant 0 : index
    %35 = vector.load %arg24[%c0_49, %c0_50, %c0_51] : memref<1x1x32xf32, #tpu.memory_space<vmem>>, vector<1x1x32xf32>
    %36 = vector.shape_cast %35 : vector<1x1x32xf32> to vector<1x32xf32>
    %c0_52 = arith.constant 0 : index
    %c0_53 = arith.constant 0 : index
    %c0_54 = arith.constant 0 : index
    %37 = vector.load %arg25[%c0_52, %c0_53, %c0_54] : memref<1x32x64xf32, #tpu.memory_space<vmem>>, vector<1x32x64xf32>
    %38 = vector.shape_cast %37 : vector<1x32x64xf32> to vector<32x64xf32>
    %c0_55 = arith.constant 0 : index
    %c0_56 = arith.constant 0 : index
    %c0_57 = arith.constant 0 : index
    %39 = vector.load %arg26[%c0_55, %c0_56, %c0_57] : memref<1x1x64xf32, #tpu.memory_space<vmem>>, vector<1x1x64xf32>
    %40 = vector.shape_cast %39 : vector<1x1x64xf32> to vector<1x64xf32>
    %c0_58 = arith.constant 0 : index
    %c0_59 = arith.constant 0 : index
    %c0_60 = arith.constant 0 : index
    %41 = vector.load %arg27[%c0_58, %c0_59, %c0_60] : memref<1x64x32xf32, #tpu.memory_space<vmem>>, vector<1x64x32xf32>
    %42 = vector.shape_cast %41 : vector<1x64x32xf32> to vector<64x32xf32>
    %c0_61 = arith.constant 0 : index
    %c0_62 = arith.constant 0 : index
    %c0_63 = arith.constant 0 : index
    %43 = vector.load %arg28[%c0_61, %c0_62, %c0_63] : memref<1x1x32xf32, #tpu.memory_space<vmem>>, vector<1x1x32xf32>
    %44 = vector.shape_cast %43 : vector<1x1x32xf32> to vector<1x32xf32>
    %c0_64 = arith.constant 0 : index
    %c0_65 = arith.constant 0 : index
    %c0_66 = arith.constant 0 : index
    %45 = vector.load %arg29[%c0_64, %c0_65, %c0_66] : memref<1x1x32xf32, #tpu.memory_space<vmem>>, vector<1x1x32xf32>
    %46 = vector.shape_cast %45 : vector<1x1x32xf32> to vector<1x32xf32>
    %c0_67 = arith.constant 0 : index
    %c0_68 = arith.constant 0 : index
    %c0_69 = arith.constant 0 : index
    %47 = vector.load %arg30[%c0_67, %c0_68, %c0_69] : memref<1x1x32xf32, #tpu.memory_space<vmem>>, vector<1x1x32xf32>
    %48 = vector.shape_cast %47 : vector<1x1x32xf32> to vector<1x32xf32>
    %c0_70 = arith.constant 0 : index
    %c0_71 = arith.constant 0 : index
    %49 = vector.load %arg7[%c0_70, %c0_71] : memref<4x8xf32, #tpu.memory_space<vmem>>, vector<1x8xf32>
    %c1 = arith.constant 1 : index
    %c0_72 = arith.constant 0 : index
    %50 = vector.load %arg7[%c1, %c0_72] : memref<4x8xf32, #tpu.memory_space<vmem>>, vector<1x8xf32>
    %c2 = arith.constant 2 : index
    %c0_73 = arith.constant 0 : index
    %51 = vector.load %arg7[%c2, %c0_73] : memref<4x8xf32, #tpu.memory_space<vmem>>, vector<1x8xf32>
    %c3 = arith.constant 3 : index
    %c0_74 = arith.constant 0 : index
    %52 = vector.load %arg7[%c3, %c0_74] : memref<4x8xf32, #tpu.memory_space<vmem>>, vector<1x8xf32>
    %c0_75 = arith.constant 0 : index
    %c0_76 = arith.constant 0 : index
    %53 = vector.load %arg8[%c0_75, %c0_76] : memref<2x8xi32, #tpu.memory_space<vmem>>, vector<1x8xi32>
    %c1_77 = arith.constant 1 : index
    %c0_78 = arith.constant 0 : index
    %54 = vector.load %arg8[%c1_77, %c0_78] : memref<2x8xi32, #tpu.memory_space<vmem>>, vector<1x8xi32>
    %55 = arith.addf %3, %4 : vector<16x32xf32>
    %cst = arith.constant dense<0.000000e+00> : vector<16x64xf32>
    %56 = tpu.matmul %55, %6, %cst {dimension_numbers = #tpu.dot_dimension_numbers<[1], [0], [0], [1], [0, 0, 1, 1], [], []>} : vector<16x32xf32>, vector<32x64xf32>, vector<16x64xf32> -> vector<16x64xf32>
    %57 = vector.broadcast %8 : vector<1x64xf32> to vector<16x64xf32>
    %58 = arith.addf %56, %57 : vector<16x64xf32>
    %cst_79 = arith.constant dense<0.000000e+00> : vector<16x32xf32>
    %59 = tpu.matmul %3, %10, %cst_79 {dimension_numbers = #tpu.dot_dimension_numbers<[1], [0], [0], [1], [0, 0, 1, 1], [], []>} : vector<16x32xf32>, vector<32x32xf32>, vector<16x32xf32> -> vector<16x32xf32>
    %60 = vector.broadcast %12 : vector<1x32xf32> to vector<16x32xf32>
    %61 = arith.addf %59, %60 : vector<16x32xf32>
    %62 = vector.extract_strided_slice %58 {offsets = [0, 0], sizes = [8, 8], strides = [1, 1]} : vector<16x64xf32> to vector<8x8xf32>
    %63 = vector.extract_strided_slice %58 {offsets = [0, 32], sizes = [8, 8], strides = [1, 1]} : vector<16x64xf32> to vector<8x8xf32>
    %64 = vector.extract_strided_slice %61 {offsets = [0, 0], sizes = [8, 8], strides = [1, 1]} : vector<16x32xf32> to vector<8x8xf32>
    %65 = tpu.transpose %63, [1, 0] : vector<8x8xf32> -> vector<8x8xf32>
    %cst_80 = arith.constant dense<0.000000e+00> : vector<8x8xf32>
    %66 = tpu.matmul %62, %65, %cst_80 {dimension_numbers = #tpu.dot_dimension_numbers<[1], [0], [0], [1], [0, 0, 1, 1], [], []>} : vector<8x8xf32>, vector<8x8xf32>, vector<8x8xf32> -> vector<8x8xf32>
    %cst_81 = arith.constant 0.353553385 : f32
    %67 = vector.broadcast %cst_81 : f32 to vector<8x8xf32>
    %68 = arith.mulf %66, %67 : vector<8x8xf32>
    %cst_82 = arith.constant dense<0xFF800000> : vector<8xf32>
    %69 = vector.multi_reduction <maximumf>, %68, %cst_82 [1] : vector<8x8xf32> to vector<8xf32>
    %70 = vector.shape_cast %69 : vector<8xf32> to vector<8x1xf32>
    %71 = vector.broadcast %70 : vector<8x1xf32> to vector<8x8xf32>
    %72 = arith.subf %68, %71 : vector<8x8xf32>
    %73 = math.exp %72 : vector<8x8xf32>
    %cst_83 = arith.constant dense<0.000000e+00> : vector<8xf32>
    %74 = vector.multi_reduction <add>, %73, %cst_83 [1] : vector<8x8xf32> to vector<8xf32>
    %75 = vector.shape_cast %74 : vector<8xf32> to vector<8x1xf32>
    %76 = vector.broadcast %75 : vector<8x1xf32> to vector<8x8xf32>
    %77 = arith.divf %73, %76 : vector<8x8xf32>
    %cst_84 = arith.constant dense<0.000000e+00> : vector<8x8xf32>
    %78 = tpu.matmul %77, %64, %cst_84 {dimension_numbers = #tpu.dot_dimension_numbers<[1], [0], [0], [1], [0, 0, 1, 1], [], []>} : vector<8x8xf32>, vector<8x8xf32>, vector<8x8xf32> -> vector<8x8xf32>
    %79 = vector.extract_strided_slice %58 {offsets = [0, 8], sizes = [8, 8], strides = [1, 1]} : vector<16x64xf32> to vector<8x8xf32>
    %80 = vector.extract_strided_slice %58 {offsets = [0, 40], sizes = [8, 8], strides = [1, 1]} : vector<16x64xf32> to vector<8x8xf32>
    %81 = vector.extract_strided_slice %61 {offsets = [0, 8], sizes = [8, 8], strides = [1, 1]} : vector<16x32xf32> to vector<8x8xf32>
    %82 = tpu.transpose %80, [1, 0] : vector<8x8xf32> -> vector<8x8xf32>
    %cst_85 = arith.constant dense<0.000000e+00> : vector<8x8xf32>
    %83 = tpu.matmul %79, %82, %cst_85 {dimension_numbers = #tpu.dot_dimension_numbers<[1], [0], [0], [1], [0, 0, 1, 1], [], []>} : vector<8x8xf32>, vector<8x8xf32>, vector<8x8xf32> -> vector<8x8xf32>
    %cst_86 = arith.constant 0.353553385 : f32
    %84 = vector.broadcast %cst_86 : f32 to vector<8x8xf32>
    %85 = arith.mulf %83, %84 : vector<8x8xf32>
    %cst_87 = arith.constant dense<0xFF800000> : vector<8xf32>
    %86 = vector.multi_reduction <maximumf>, %85, %cst_87 [1] : vector<8x8xf32> to vector<8xf32>
    %87 = vector.shape_cast %86 : vector<8xf32> to vector<8x1xf32>
    %88 = vector.broadcast %87 : vector<8x1xf32> to vector<8x8xf32>
    %89 = arith.subf %85, %88 : vector<8x8xf32>
    %90 = math.exp %89 : vector<8x8xf32>
    %cst_88 = arith.constant dense<0.000000e+00> : vector<8xf32>
    %91 = vector.multi_reduction <add>, %90, %cst_88 [1] : vector<8x8xf32> to vector<8xf32>
    %92 = vector.shape_cast %91 : vector<8xf32> to vector<8x1xf32>
    %93 = vector.broadcast %92 : vector<8x1xf32> to vector<8x8xf32>
    %94 = arith.divf %90, %93 : vector<8x8xf32>
    %cst_89 = arith.constant dense<0.000000e+00> : vector<8x8xf32>
    %95 = tpu.matmul %94, %81, %cst_89 {dimension_numbers = #tpu.dot_dimension_numbers<[1], [0], [0], [1], [0, 0, 1, 1], [], []>} : vector<8x8xf32>, vector<8x8xf32>, vector<8x8xf32> -> vector<8x8xf32>
    %96 = vector.extract_strided_slice %58 {offsets = [0, 16], sizes = [8, 8], strides = [1, 1]} : vector<16x64xf32> to vector<8x8xf32>
    %97 = vector.extract_strided_slice %58 {offsets = [0, 48], sizes = [8, 8], strides = [1, 1]} : vector<16x64xf32> to vector<8x8xf32>
    %98 = vector.extract_strided_slice %61 {offsets = [0, 16], sizes = [8, 8], strides = [1, 1]} : vector<16x32xf32> to vector<8x8xf32>
    %99 = tpu.transpose %97, [1, 0] : vector<8x8xf32> -> vector<8x8xf32>
    %cst_90 = arith.constant dense<0.000000e+00> : vector<8x8xf32>
    %100 = tpu.matmul %96, %99, %cst_90 {dimension_numbers = #tpu.dot_dimension_numbers<[1], [0], [0], [1], [0, 0, 1, 1], [], []>} : vector<8x8xf32>, vector<8x8xf32>, vector<8x8xf32> -> vector<8x8xf32>
    %cst_91 = arith.constant 0.353553385 : f32
    %101 = vector.broadcast %cst_91 : f32 to vector<8x8xf32>
    %102 = arith.mulf %100, %101 : vector<8x8xf32>
    %cst_92 = arith.constant dense<0xFF800000> : vector<8xf32>
    %103 = vector.multi_reduction <maximumf>, %102, %cst_92 [1] : vector<8x8xf32> to vector<8xf32>
    %104 = vector.shape_cast %103 : vector<8xf32> to vector<8x1xf32>
    %105 = vector.broadcast %104 : vector<8x1xf32> to vector<8x8xf32>
    %106 = arith.subf %102, %105 : vector<8x8xf32>
    %107 = math.exp %106 : vector<8x8xf32>
    %cst_93 = arith.constant dense<0.000000e+00> : vector<8xf32>
    %108 = vector.multi_reduction <add>, %107, %cst_93 [1] : vector<8x8xf32> to vector<8xf32>
    %109 = vector.shape_cast %108 : vector<8xf32> to vector<8x1xf32>
    %110 = vector.broadcast %109 : vector<8x1xf32> to vector<8x8xf32>
    %111 = arith.divf %107, %110 : vector<8x8xf32>
    %cst_94 = arith.constant dense<0.000000e+00> : vector<8x8xf32>
    %112 = tpu.matmul %111, %98, %cst_94 {dimension_numbers = #tpu.dot_dimension_numbers<[1], [0], [0], [1], [0, 0, 1, 1], [], []>} : vector<8x8xf32>, vector<8x8xf32>, vector<8x8xf32> -> vector<8x8xf32>
    %113 = vector.extract_strided_slice %58 {offsets = [0, 24], sizes = [8, 8], strides = [1, 1]} : vector<16x64xf32> to vector<8x8xf32>
    %114 = vector.extract_strided_slice %58 {offsets = [0, 56], sizes = [8, 8], strides = [1, 1]} : vector<16x64xf32> to vector<8x8xf32>
    %115 = vector.extract_strided_slice %61 {offsets = [0, 24], sizes = [8, 8], strides = [1, 1]} : vector<16x32xf32> to vector<8x8xf32>
    %116 = tpu.transpose %114, [1, 0] : vector<8x8xf32> -> vector<8x8xf32>
    %cst_95 = arith.constant dense<0.000000e+00> : vector<8x8xf32>
    %117 = tpu.matmul %113, %116, %cst_95 {dimension_numbers = #tpu.dot_dimension_numbers<[1], [0], [0], [1], [0, 0, 1, 1], [], []>} : vector<8x8xf32>, vector<8x8xf32>, vector<8x8xf32> -> vector<8x8xf32>
    %cst_96 = arith.constant 0.353553385 : f32
    %118 = vector.broadcast %cst_96 : f32 to vector<8x8xf32>
    %119 = arith.mulf %117, %118 : vector<8x8xf32>
    %cst_97 = arith.constant dense<0xFF800000> : vector<8xf32>
    %120 = vector.multi_reduction <maximumf>, %119, %cst_97 [1] : vector<8x8xf32> to vector<8xf32>
    %121 = vector.shape_cast %120 : vector<8xf32> to vector<8x1xf32>
    %122 = vector.broadcast %121 : vector<8x1xf32> to vector<8x8xf32>
    %123 = arith.subf %119, %122 : vector<8x8xf32>
    %124 = math.exp %123 : vector<8x8xf32>
    %cst_98 = arith.constant dense<0.000000e+00> : vector<8xf32>
    %125 = vector.multi_reduction <add>, %124, %cst_98 [1] : vector<8x8xf32> to vector<8xf32>
    %126 = vector.shape_cast %125 : vector<8xf32> to vector<8x1xf32>
    %127 = vector.broadcast %126 : vector<8x1xf32> to vector<8x8xf32>
    %128 = arith.divf %124, %127 : vector<8x8xf32>
    %cst_99 = arith.constant dense<0.000000e+00> : vector<8x8xf32>
    %129 = tpu.matmul %128, %115, %cst_99 {dimension_numbers = #tpu.dot_dimension_numbers<[1], [0], [0], [1], [0, 0, 1, 1], [], []>} : vector<8x8xf32>, vector<8x8xf32>, vector<8x8xf32> -> vector<8x8xf32>
    %130 = tpu.concatenate %78, %95, %112, %129 in 1 : vector<8x8xf32>, vector<8x8xf32>, vector<8x8xf32>, vector<8x8xf32> -> vector<8x32xf32>
    %131 = vector.extract_strided_slice %58 {offsets = [8, 0], sizes = [8, 8], strides = [1, 1]} : vector<16x64xf32> to vector<8x8xf32>
    %132 = vector.extract_strided_slice %58 {offsets = [8, 32], sizes = [8, 8], strides = [1, 1]} : vector<16x64xf32> to vector<8x8xf32>
    %133 = vector.extract_strided_slice %61 {offsets = [8, 0], sizes = [8, 8], strides = [1, 1]} : vector<16x32xf32> to vector<8x8xf32>
    %134 = tpu.transpose %132, [1, 0] : vector<8x8xf32> -> vector<8x8xf32>
    %cst_100 = arith.constant dense<0.000000e+00> : vector<8x8xf32>
    %135 = tpu.matmul %131, %134, %cst_100 {dimension_numbers = #tpu.dot_dimension_numbers<[1], [0], [0], [1], [0, 0, 1, 1], [], []>} : vector<8x8xf32>, vector<8x8xf32>, vector<8x8xf32> -> vector<8x8xf32>
    %cst_101 = arith.constant 0.353553385 : f32
    %136 = vector.broadcast %cst_101 : f32 to vector<8x8xf32>
    %137 = arith.mulf %135, %136 : vector<8x8xf32>
    %cst_102 = arith.constant dense<0xFF800000> : vector<8xf32>
    %138 = vector.multi_reduction <maximumf>, %137, %cst_102 [1] : vector<8x8xf32> to vector<8xf32>
    %139 = vector.shape_cast %138 : vector<8xf32> to vector<8x1xf32>
    %140 = vector.broadcast %139 : vector<8x1xf32> to vector<8x8xf32>
    %141 = arith.subf %137, %140 : vector<8x8xf32>
    %142 = math.exp %141 : vector<8x8xf32>
    %cst_103 = arith.constant dense<0.000000e+00> : vector<8xf32>
    %143 = vector.multi_reduction <add>, %142, %cst_103 [1] : vector<8x8xf32> to vector<8xf32>
    %144 = vector.shape_cast %143 : vector<8xf32> to vector<8x1xf32>
    %145 = vector.broadcast %144 : vector<8x1xf32> to vector<8x8xf32>
    %146 = arith.divf %142, %145 : vector<8x8xf32>
    %cst_104 = arith.constant dense<0.000000e+00> : vector<8x8xf32>
    %147 = tpu.matmul %146, %133, %cst_104 {dimension_numbers = #tpu.dot_dimension_numbers<[1], [0], [0], [1], [0, 0, 1, 1], [], []>} : vector<8x8xf32>, vector<8x8xf32>, vector<8x8xf32> -> vector<8x8xf32>
    %148 = vector.extract_strided_slice %58 {offsets = [8, 8], sizes = [8, 8], strides = [1, 1]} : vector<16x64xf32> to vector<8x8xf32>
    %149 = vector.extract_strided_slice %58 {offsets = [8, 40], sizes = [8, 8], strides = [1, 1]} : vector<16x64xf32> to vector<8x8xf32>
    %150 = vector.extract_strided_slice %61 {offsets = [8, 8], sizes = [8, 8], strides = [1, 1]} : vector<16x32xf32> to vector<8x8xf32>
    %151 = tpu.transpose %149, [1, 0] : vector<8x8xf32> -> vector<8x8xf32>
    %cst_105 = arith.constant dense<0.000000e+00> : vector<8x8xf32>
    %152 = tpu.matmul %148, %151, %cst_105 {dimension_numbers = #tpu.dot_dimension_numbers<[1], [0], [0], [1], [0, 0, 1, 1], [], []>} : vector<8x8xf32>, vector<8x8xf32>, vector<8x8xf32> -> vector<8x8xf32>
    %cst_106 = arith.constant 0.353553385 : f32
    %153 = vector.broadcast %cst_106 : f32 to vector<8x8xf32>
    %154 = arith.mulf %152, %153 : vector<8x8xf32>
    %cst_107 = arith.constant dense<0xFF800000> : vector<8xf32>
    %155 = vector.multi_reduction <maximumf>, %154, %cst_107 [1] : vector<8x8xf32> to vector<8xf32>
    %156 = vector.shape_cast %155 : vector<8xf32> to vector<8x1xf32>
    %157 = vector.broadcast %156 : vector<8x1xf32> to vector<8x8xf32>
    %158 = arith.subf %154, %157 : vector<8x8xf32>
    %159 = math.exp %158 : vector<8x8xf32>
    %cst_108 = arith.constant dense<0.000000e+00> : vector<8xf32>
    %160 = vector.multi_reduction <add>, %159, %cst_108 [1] : vector<8x8xf32> to vector<8xf32>
    %161 = vector.shape_cast %160 : vector<8xf32> to vector<8x1xf32>
    %162 = vector.broadcast %161 : vector<8x1xf32> to vector<8x8xf32>
    %163 = arith.divf %159, %162 : vector<8x8xf32>
    %cst_109 = arith.constant dense<0.000000e+00> : vector<8x8xf32>
    %164 = tpu.matmul %163, %150, %cst_109 {dimension_numbers = #tpu.dot_dimension_numbers<[1], [0], [0], [1], [0, 0, 1, 1], [], []>} : vector<8x8xf32>, vector<8x8xf32>, vector<8x8xf32> -> vector<8x8xf32>
    %165 = vector.extract_strided_slice %58 {offsets = [8, 16], sizes = [8, 8], strides = [1, 1]} : vector<16x64xf32> to vector<8x8xf32>
    %166 = vector.extract_strided_slice %58 {offsets = [8, 48], sizes = [8, 8], strides = [1, 1]} : vector<16x64xf32> to vector<8x8xf32>
    %167 = vector.extract_strided_slice %61 {offsets = [8, 16], sizes = [8, 8], strides = [1, 1]} : vector<16x32xf32> to vector<8x8xf32>
    %168 = tpu.transpose %166, [1, 0] : vector<8x8xf32> -> vector<8x8xf32>
    %cst_110 = arith.constant dense<0.000000e+00> : vector<8x8xf32>
    %169 = tpu.matmul %165, %168, %cst_110 {dimension_numbers = #tpu.dot_dimension_numbers<[1], [0], [0], [1], [0, 0, 1, 1], [], []>} : vector<8x8xf32>, vector<8x8xf32>, vector<8x8xf32> -> vector<8x8xf32>
    %cst_111 = arith.constant 0.353553385 : f32
    %170 = vector.broadcast %cst_111 : f32 to vector<8x8xf32>
    %171 = arith.mulf %169, %170 : vector<8x8xf32>
    %cst_112 = arith.constant dense<0xFF800000> : vector<8xf32>
    %172 = vector.multi_reduction <maximumf>, %171, %cst_112 [1] : vector<8x8xf32> to vector<8xf32>
    %173 = vector.shape_cast %172 : vector<8xf32> to vector<8x1xf32>
    %174 = vector.broadcast %173 : vector<8x1xf32> to vector<8x8xf32>
    %175 = arith.subf %171, %174 : vector<8x8xf32>
    %176 = math.exp %175 : vector<8x8xf32>
    %cst_113 = arith.constant dense<0.000000e+00> : vector<8xf32>
    %177 = vector.multi_reduction <add>, %176, %cst_113 [1] : vector<8x8xf32> to vector<8xf32>
    %178 = vector.shape_cast %177 : vector<8xf32> to vector<8x1xf32>
    %179 = vector.broadcast %178 : vector<8x1xf32> to vector<8x8xf32>
    %180 = arith.divf %176, %179 : vector<8x8xf32>
    %cst_114 = arith.constant dense<0.000000e+00> : vector<8x8xf32>
    %181 = tpu.matmul %180, %167, %cst_114 {dimension_numbers = #tpu.dot_dimension_numbers<[1], [0], [0], [1], [0, 0, 1, 1], [], []>} : vector<8x8xf32>, vector<8x8xf32>, vector<8x8xf32> -> vector<8x8xf32>
    %182 = vector.extract_strided_slice %58 {offsets = [8, 24], sizes = [8, 8], strides = [1, 1]} : vector<16x64xf32> to vector<8x8xf32>
    %183 = vector.extract_strided_slice %58 {offsets = [8, 56], sizes = [8, 8], strides = [1, 1]} : vector<16x64xf32> to vector<8x8xf32>
    %184 = vector.extract_strided_slice %61 {offsets = [8, 24], sizes = [8, 8], strides = [1, 1]} : vector<16x32xf32> to vector<8x8xf32>
    %185 = tpu.transpose %183, [1, 0] : vector<8x8xf32> -> vector<8x8xf32>
    %cst_115 = arith.constant dense<0.000000e+00> : vector<8x8xf32>
    %186 = tpu.matmul %182, %185, %cst_115 {dimension_numbers = #tpu.dot_dimension_numbers<[1], [0], [0], [1], [0, 0, 1, 1], [], []>} : vector<8x8xf32>, vector<8x8xf32>, vector<8x8xf32> -> vector<8x8xf32>
    %cst_116 = arith.constant 0.353553385 : f32
    %187 = vector.broadcast %cst_116 : f32 to vector<8x8xf32>
    %188 = arith.mulf %186, %187 : vector<8x8xf32>
    %cst_117 = arith.constant dense<0xFF800000> : vector<8xf32>
    %189 = vector.multi_reduction <maximumf>, %188, %cst_117 [1] : vector<8x8xf32> to vector<8xf32>
    %190 = vector.shape_cast %189 : vector<8xf32> to vector<8x1xf32>
    %191 = vector.broadcast %190 : vector<8x1xf32> to vector<8x8xf32>
    %192 = arith.subf %188, %191 : vector<8x8xf32>
    %193 = math.exp %192 : vector<8x8xf32>
    %cst_118 = arith.constant dense<0.000000e+00> : vector<8xf32>
    %194 = vector.multi_reduction <add>, %193, %cst_118 [1] : vector<8x8xf32> to vector<8xf32>
    %195 = vector.shape_cast %194 : vector<8xf32> to vector<8x1xf32>
    %196 = vector.broadcast %195 : vector<8x1xf32> to vector<8x8xf32>
    %197 = arith.divf %193, %196 : vector<8x8xf32>
    %cst_119 = arith.constant dense<0.000000e+00> : vector<8x8xf32>
    %198 = tpu.matmul %197, %184, %cst_119 {dimension_numbers = #tpu.dot_dimension_numbers<[1], [0], [0], [1], [0, 0, 1, 1], [], []>} : vector<8x8xf32>, vector<8x8xf32>, vector<8x8xf32> -> vector<8x8xf32>
    %199 = tpu.concatenate %147, %164, %181, %198 in 1 : vector<8x8xf32>, vector<8x8xf32>, vector<8x8xf32>, vector<8x8xf32> -> vector<8x32xf32>
    %200 = tpu.concatenate %130, %199 in 0 : vector<8x32xf32>, vector<8x32xf32> -> vector<16x32xf32>
    %cst_120 = arith.constant dense<0.000000e+00> : vector<16x32xf32>
    %201 = tpu.matmul %200, %14, %cst_120 {dimension_numbers = #tpu.dot_dimension_numbers<[1], [0], [0], [1], [0, 0, 1, 1], [], []>} : vector<16x32xf32>, vector<32x32xf32>, vector<16x32xf32> -> vector<16x32xf32>
    %202 = vector.broadcast %16 : vector<1x32xf32> to vector<16x32xf32>
    %203 = arith.addf %201, %202 : vector<16x32xf32>
    %204 = arith.addf %3, %203 : vector<16x32xf32>
    %cst_121 = arith.constant dense<0.000000e+00> : vector<16xf32>
    %205 = vector.multi_reduction <add>, %204, %cst_121 [1] : vector<16x32xf32> to vector<16xf32>
    %206 = vector.shape_cast %205 : vector<16xf32> to vector<16x1xf32>
    %cst_122 = arith.constant 3.200000e+01 : f32
    %207 = vector.broadcast %cst_122 : f32 to vector<16x1xf32>
    %208 = arith.divf %206, %207 : vector<16x1xf32>
    %209 = vector.broadcast %208 : vector<16x1xf32> to vector<16x32xf32>
    %210 = arith.subf %204, %209 : vector<16x32xf32>
    %211 = arith.mulf %210, %210 : vector<16x32xf32>
    %cst_123 = arith.constant dense<0.000000e+00> : vector<16xf32>
    %212 = vector.multi_reduction <add>, %211, %cst_123 [1] : vector<16x32xf32> to vector<16xf32>
    %213 = vector.shape_cast %212 : vector<16xf32> to vector<16x1xf32>
    %cst_124 = arith.constant 3.200000e+01 : f32
    %214 = vector.broadcast %cst_124 : f32 to vector<16x1xf32>
    %215 = arith.divf %213, %214 : vector<16x1xf32>
    %216 = vector.broadcast %208 : vector<16x1xf32> to vector<16x32xf32>
    %217 = arith.subf %204, %216 : vector<16x32xf32>
    %cst_125 = arith.constant 9.99999974E-6 : f32
    %218 = vector.broadcast %cst_125 : f32 to vector<16x1xf32>
    %219 = arith.addf %215, %218 : vector<16x1xf32>
    %220 = math.rsqrt %219 : vector<16x1xf32>
    %221 = vector.broadcast %220 : vector<16x1xf32> to vector<16x32xf32>
    %222 = arith.mulf %217, %221 : vector<16x32xf32>
    %223 = vector.broadcast %18 : vector<1x32xf32> to vector<16x32xf32>
    %224 = arith.mulf %222, %223 : vector<16x32xf32>
    %225 = vector.broadcast %20 : vector<1x32xf32> to vector<16x32xf32>
    %226 = arith.addf %224, %225 : vector<16x32xf32>
    %227 = arith.addf %226, %4 : vector<16x32xf32>
    %cst_126 = arith.constant dense<0.000000e+00> : vector<16x96xf32>
    %228 = tpu.matmul %227, %26, %cst_126 {dimension_numbers = #tpu.dot_dimension_numbers<[1], [0], [0], [1], [0, 0, 1, 1], [], []>} : vector<16x32xf32>, vector<32x96xf32>, vector<16x96xf32> -> vector<16x96xf32>
    %229 = vector.broadcast %28 : vector<1x96xf32> to vector<16x96xf32>
    %230 = arith.addf %228, %229 : vector<16x96xf32>
    %231 = vector.extract_strided_slice %230 {offsets = [0, 0], sizes = [16, 32], strides = [1, 1]} : vector<16x96xf32> to vector<16x32xf32>
    %232 = vector.extract_strided_slice %230 {offsets = [0, 32], sizes = [16, 32], strides = [1, 1]} : vector<16x96xf32> to vector<16x32xf32>
    %233 = vector.extract_strided_slice %230 {offsets = [0, 64], sizes = [16, 32], strides = [1, 1]} : vector<16x96xf32> to vector<16x32xf32>
    %234 = tpu.iota {dimensions = array<i32: 1>} : vector<32x80xi32>
    %c0_127 = arith.constant 0 : index
    %c0_128 = arith.constant 0 : index
    %235 = vector.load %arg3[%c0_127, %c0_128] : memref<160x32xf32, #tpu.memory_space<vmem>>, vector<80x32xf32>
    %cst_129 = arith.constant dense<0.000000e+00> : vector<80x32xf32>
    %236 = tpu.matmul %235, %22, %cst_129 {dimension_numbers = #tpu.dot_dimension_numbers<[1], [0], [0], [1], [0, 0, 1, 1], [], []>} : vector<80x32xf32>, vector<32x32xf32>, vector<80x32xf32> -> vector<80x32xf32>
    %237 = vector.broadcast %24 : vector<1x32xf32> to vector<80x32xf32>
    %238 = arith.addf %236, %237 : vector<80x32xf32>
    %c0_130 = arith.constant 0 : index
    %c0_131 = arith.constant 0 : index
    %239 = vector.load %arg4[%c0_130, %c0_131] : memref<160x1xf32, #tpu.memory_space<vmem>>, vector<80x1xf32>
    %240 = vector.broadcast %239 : vector<80x1xf32> to vector<80x32xf32>
    %241 = arith.mulf %238, %240 : vector<80x32xf32>
    %242 = vector.extract_strided_slice %231 {offsets = [0, 0], sizes = [8, 8], strides = [1, 1]} : vector<16x32xf32> to vector<8x8xf32>
    %243 = vector.extract_strided_slice %231 {offsets = [0, 8], sizes = [8, 8], strides = [1, 1]} : vector<16x32xf32> to vector<8x8xf32>
    %244 = vector.extract_strided_slice %231 {offsets = [0, 16], sizes = [8, 8], strides = [1, 1]} : vector<16x32xf32> to vector<8x8xf32>
    %245 = vector.extract_strided_slice %231 {offsets = [0, 24], sizes = [8, 8], strides = [1, 1]} : vector<16x32xf32> to vector<8x8xf32>
    %246 = tpu.concatenate %242, %243, %244, %245 in 0 : vector<8x8xf32>, vector<8x8xf32>, vector<8x8xf32>, vector<8x8xf32> -> vector<32x8xf32>
    %247 = vector.extract_strided_slice %232 {offsets = [0, 0], sizes = [8, 8], strides = [1, 1]} : vector<16x32xf32> to vector<8x8xf32>
    %248 = vector.extract_strided_slice %232 {offsets = [0, 8], sizes = [8, 8], strides = [1, 1]} : vector<16x32xf32> to vector<8x8xf32>
    %249 = vector.extract_strided_slice %232 {offsets = [0, 16], sizes = [8, 8], strides = [1, 1]} : vector<16x32xf32> to vector<8x8xf32>
    %250 = vector.extract_strided_slice %232 {offsets = [0, 24], sizes = [8, 8], strides = [1, 1]} : vector<16x32xf32> to vector<8x8xf32>
    %251 = tpu.concatenate %247, %248, %249, %250 in 0 : vector<8x8xf32>, vector<8x8xf32>, vector<8x8xf32>, vector<8x8xf32> -> vector<32x8xf32>
    %252 = vector.extract_strided_slice %233 {offsets = [0, 0], sizes = [8, 8], strides = [1, 1]} : vector<16x32xf32> to vector<8x8xf32>
    %253 = vector.extract_strided_slice %233 {offsets = [0, 8], sizes = [8, 8], strides = [1, 1]} : vector<16x32xf32> to vector<8x8xf32>
    %254 = vector.extract_strided_slice %233 {offsets = [0, 16], sizes = [8, 8], strides = [1, 1]} : vector<16x32xf32> to vector<8x8xf32>
    %255 = vector.extract_strided_slice %233 {offsets = [0, 24], sizes = [8, 8], strides = [1, 1]} : vector<16x32xf32> to vector<8x8xf32>
    %256 = tpu.concatenate %252, %253, %254, %255 in 0 : vector<8x8xf32>, vector<8x8xf32>, vector<8x8xf32>, vector<8x8xf32> -> vector<32x8xf32>
    %cst_132 = arith.constant dense<0xFF800000> : vector<32xf32>
    %257 = vector.multi_reduction <maximumf>, %256, %cst_132 [1] : vector<32x8xf32> to vector<32xf32>
    %258 = vector.shape_cast %257 : vector<32xf32> to vector<32x1xf32>
    %259 = vector.broadcast %258 : vector<32x1xf32> to vector<32x8xf32>
    %260 = arith.subf %256, %259 : vector<32x8xf32>
    %261 = math.exp %260 : vector<32x8xf32>
    %cst_133 = arith.constant dense<0.000000e+00> : vector<32xf32>
    %262 = vector.multi_reduction <add>, %261, %cst_133 [1] : vector<32x8xf32> to vector<32xf32>
    %263 = vector.shape_cast %262 : vector<32xf32> to vector<32x1xf32>
    %264 = vector.broadcast %263 : vector<32x1xf32> to vector<32x8xf32>
    %265 = arith.divf %261, %264 : vector<32x8xf32>
    %c0_134 = arith.constant 0 : index
    %c0_135 = arith.constant 0 : index
    %266 = vector.load %arg5[%c0_134, %c0_135] : memref<16x8xf32, #tpu.memory_space<vmem>>, vector<8x8xf32>
    %267 = tpu.concatenate %266, %266, %266, %266 in 0 : vector<8x8xf32>, vector<8x8xf32>, vector<8x8xf32>, vector<8x8xf32> -> vector<32x8xf32>
    %c0_136 = arith.constant 0 : index
    %c0_137 = arith.constant 0 : index
    %268 = vector.load %arg6[%c0_136, %c0_137] : memref<16x8xf32, #tpu.memory_space<vmem>>, vector<8x8xf32>
    %269 = tpu.concatenate %268, %268, %268, %268 in 0 : vector<8x8xf32>, vector<8x8xf32>, vector<8x8xf32>, vector<8x8xf32> -> vector<32x8xf32>
    %270 = vector.broadcast %49 : vector<1x8xf32> to vector<32x8xf32>
    %271 = arith.mulf %246, %270 : vector<32x8xf32>
    %272 = arith.addf %267, %271 : vector<32x8xf32>
    %273 = vector.broadcast %51 : vector<1x8xf32> to vector<32x8xf32>
    %274 = arith.mulf %272, %273 : vector<32x8xf32>
    %cst_138 = arith.constant 5.000000e-01 : f32
    %275 = vector.broadcast %cst_138 : f32 to vector<32x8xf32>
    %276 = arith.subf %274, %275 : vector<32x8xf32>
    %277 = vector.broadcast %50 : vector<1x8xf32> to vector<32x8xf32>
    %278 = arith.mulf %251, %277 : vector<32x8xf32>
    %279 = arith.addf %269, %278 : vector<32x8xf32>
    %280 = vector.broadcast %52 : vector<1x8xf32> to vector<32x8xf32>
    %281 = arith.mulf %279, %280 : vector<32x8xf32>
    %cst_139 = arith.constant 5.000000e-01 : f32
    %282 = vector.broadcast %cst_139 : f32 to vector<32x8xf32>
    %283 = arith.subf %281, %282 : vector<32x8xf32>
    %284 = math.floor %276 : vector<32x8xf32>
    %285 = math.floor %283 : vector<32x8xf32>
    %286 = arith.subf %276, %284 : vector<32x8xf32>
    %287 = arith.subf %283, %285 : vector<32x8xf32>
    %cst_140 = arith.constant 0.000000e+00 : f32
    %288 = vector.broadcast %cst_140 : f32 to vector<32x80xf32>
    %cst_141 = arith.constant 1.000000e+00 : f32
    %289 = vector.broadcast %cst_141 : f32 to vector<32x8xf32>
    %290 = arith.subf %289, %286 : vector<32x8xf32>
    %cst_142 = arith.constant 1.000000e+00 : f32
    %291 = vector.broadcast %cst_142 : f32 to vector<32x8xf32>
    %292 = arith.subf %291, %287 : vector<32x8xf32>
    %293 = arith.mulf %290, %292 : vector<32x8xf32>
    %cst_143 = arith.constant 1.000000e+00 : f32
    %294 = vector.broadcast %cst_143 : f32 to vector<32x8xf32>
    %295 = arith.addf %284, %294 : vector<32x8xf32>
    %cst_144 = arith.constant 1.000000e+00 : f32
    %296 = vector.broadcast %cst_144 : f32 to vector<32x8xf32>
    %297 = arith.subf %296, %287 : vector<32x8xf32>
    %298 = arith.mulf %286, %297 : vector<32x8xf32>
    %cst_145 = arith.constant 1.000000e+00 : f32
    %299 = vector.broadcast %cst_145 : f32 to vector<32x8xf32>
    %300 = arith.addf %285, %299 : vector<32x8xf32>
    %cst_146 = arith.constant 1.000000e+00 : f32
    %301 = vector.broadcast %cst_146 : f32 to vector<32x8xf32>
    %302 = arith.subf %301, %286 : vector<32x8xf32>
    %303 = arith.mulf %302, %287 : vector<32x8xf32>
    %cst_147 = arith.constant 1.000000e+00 : f32
    %304 = vector.broadcast %cst_147 : f32 to vector<32x8xf32>
    %305 = arith.addf %284, %304 : vector<32x8xf32>
    %cst_148 = arith.constant 1.000000e+00 : f32
    %306 = vector.broadcast %cst_148 : f32 to vector<32x8xf32>
    %307 = arith.addf %285, %306 : vector<32x8xf32>
    %308 = arith.mulf %286, %287 : vector<32x8xf32>
    %cst_149 = arith.constant 0.000000e+00 : f32
    %309 = vector.broadcast %cst_149 : f32 to vector<32x8xf32>
    %310 = arith.cmpf oge, %284, %309 : vector<32x8xf32>
    %311 = vector.broadcast %51 : vector<1x8xf32> to vector<32x8xf32>
    %312 = arith.cmpf olt, %284, %311 : vector<32x8xf32>
    %313 = arith.andi %310, %312 : vector<32x8xi1>
    %cst_150 = arith.constant 0.000000e+00 : f32
    %314 = vector.broadcast %cst_150 : f32 to vector<32x8xf32>
    %315 = arith.cmpf oge, %285, %314 : vector<32x8xf32>
    %316 = arith.andi %313, %315 : vector<32x8xi1>
    %317 = vector.broadcast %52 : vector<1x8xf32> to vector<32x8xf32>
    %318 = arith.cmpf olt, %285, %317 : vector<32x8xf32>
    %319 = arith.andi %316, %318 : vector<32x8xi1>
    %320 = arith.extui %319 : vector<32x8xi1> to vector<32x8xi32>
    %321 = arith.sitofp %320 : vector<32x8xi32> to vector<32x8xf32>
    %cst_151 = arith.constant 1.000000e+00 : f32
    %322 = vector.broadcast %cst_151 : f32 to vector<1x8xf32>
    %323 = arith.subf %51, %322 : vector<1x8xf32>
    %cst_152 = arith.constant 0.000000e+00 : f32
    %324 = vector.broadcast %cst_152 : f32 to vector<32x8xf32>
    %325 = arith.maximumf %324, %284 : vector<32x8xf32>
    %326 = vector.broadcast %323 : vector<1x8xf32> to vector<32x8xf32>
    %327 = arith.minimumf %326, %325 : vector<32x8xf32>
    %328 = arith.fptosi %327 : vector<32x8xf32> to vector<32x8xi32>
    %cst_153 = arith.constant 1.000000e+00 : f32
    %329 = vector.broadcast %cst_153 : f32 to vector<1x8xf32>
    %330 = arith.subf %52, %329 : vector<1x8xf32>
    %cst_154 = arith.constant 0.000000e+00 : f32
    %331 = vector.broadcast %cst_154 : f32 to vector<32x8xf32>
    %332 = arith.maximumf %331, %285 : vector<32x8xf32>
    %333 = vector.broadcast %330 : vector<1x8xf32> to vector<32x8xf32>
    %334 = arith.minimumf %333, %332 : vector<32x8xf32>
    %335 = arith.fptosi %334 : vector<32x8xf32> to vector<32x8xi32>
    %336 = vector.broadcast %53 : vector<1x8xi32> to vector<32x8xi32>
    %337 = arith.muli %335, %336 : vector<32x8xi32>
    %338 = vector.broadcast %54 : vector<1x8xi32> to vector<32x8xi32>
    %339 = arith.addi %338, %337 : vector<32x8xi32>
    %340 = arith.addi %339, %328 : vector<32x8xi32>
    %341 = arith.mulf %293, %321 : vector<32x8xf32>
    %342 = arith.mulf %341, %265 : vector<32x8xf32>
    %343 = vector.extract_strided_slice %340 {offsets = [0, 0], sizes = [32, 1], strides = [1, 1]} : vector<32x8xi32> to vector<32x1xi32>
    %344 = vector.broadcast %343 : vector<32x1xi32> to vector<32x80xi32>
    %345 = arith.cmpi eq, %344, %234 : vector<32x80xi32>
    %346 = arith.extui %345 : vector<32x80xi1> to vector<32x80xi32>
    %347 = arith.sitofp %346 : vector<32x80xi32> to vector<32x80xf32>
    %348 = vector.extract_strided_slice %342 {offsets = [0, 0], sizes = [32, 1], strides = [1, 1]} : vector<32x8xf32> to vector<32x1xf32>
    %349 = vector.broadcast %348 : vector<32x1xf32> to vector<32x80xf32>
    %350 = arith.mulf %349, %347 : vector<32x80xf32>
    %351 = arith.addf %288, %350 : vector<32x80xf32>
    %352 = vector.extract_strided_slice %340 {offsets = [0, 1], sizes = [32, 1], strides = [1, 1]} : vector<32x8xi32> to vector<32x1xi32>
    %353 = vector.broadcast %352 : vector<32x1xi32> to vector<32x80xi32>
    %354 = arith.cmpi eq, %353, %234 : vector<32x80xi32>
    %355 = arith.extui %354 : vector<32x80xi1> to vector<32x80xi32>
    %356 = arith.sitofp %355 : vector<32x80xi32> to vector<32x80xf32>
    %357 = vector.extract_strided_slice %342 {offsets = [0, 1], sizes = [32, 1], strides = [1, 1]} : vector<32x8xf32> to vector<32x1xf32>
    %358 = vector.broadcast %357 : vector<32x1xf32> to vector<32x80xf32>
    %359 = arith.mulf %358, %356 : vector<32x80xf32>
    %360 = arith.addf %351, %359 : vector<32x80xf32>
    %361 = vector.extract_strided_slice %340 {offsets = [0, 2], sizes = [32, 1], strides = [1, 1]} : vector<32x8xi32> to vector<32x1xi32>
    %362 = vector.broadcast %361 : vector<32x1xi32> to vector<32x80xi32>
    %363 = arith.cmpi eq, %362, %234 : vector<32x80xi32>
    %364 = arith.extui %363 : vector<32x80xi1> to vector<32x80xi32>
    %365 = arith.sitofp %364 : vector<32x80xi32> to vector<32x80xf32>
    %366 = vector.extract_strided_slice %342 {offsets = [0, 2], sizes = [32, 1], strides = [1, 1]} : vector<32x8xf32> to vector<32x1xf32>
    %367 = vector.broadcast %366 : vector<32x1xf32> to vector<32x80xf32>
    %368 = arith.mulf %367, %365 : vector<32x80xf32>
    %369 = arith.addf %360, %368 : vector<32x80xf32>
    %370 = vector.extract_strided_slice %340 {offsets = [0, 3], sizes = [32, 1], strides = [1, 1]} : vector<32x8xi32> to vector<32x1xi32>
    %371 = vector.broadcast %370 : vector<32x1xi32> to vector<32x80xi32>
    %372 = arith.cmpi eq, %371, %234 : vector<32x80xi32>
    %373 = arith.extui %372 : vector<32x80xi1> to vector<32x80xi32>
    %374 = arith.sitofp %373 : vector<32x80xi32> to vector<32x80xf32>
    %375 = vector.extract_strided_slice %342 {offsets = [0, 3], sizes = [32, 1], strides = [1, 1]} : vector<32x8xf32> to vector<32x1xf32>
    %376 = vector.broadcast %375 : vector<32x1xf32> to vector<32x80xf32>
    %377 = arith.mulf %376, %374 : vector<32x80xf32>
    %378 = arith.addf %369, %377 : vector<32x80xf32>
    %379 = vector.extract_strided_slice %340 {offsets = [0, 4], sizes = [32, 1], strides = [1, 1]} : vector<32x8xi32> to vector<32x1xi32>
    %380 = vector.broadcast %379 : vector<32x1xi32> to vector<32x80xi32>
    %381 = arith.cmpi eq, %380, %234 : vector<32x80xi32>
    %382 = arith.extui %381 : vector<32x80xi1> to vector<32x80xi32>
    %383 = arith.sitofp %382 : vector<32x80xi32> to vector<32x80xf32>
    %384 = vector.extract_strided_slice %342 {offsets = [0, 4], sizes = [32, 1], strides = [1, 1]} : vector<32x8xf32> to vector<32x1xf32>
    %385 = vector.broadcast %384 : vector<32x1xf32> to vector<32x80xf32>
    %386 = arith.mulf %385, %383 : vector<32x80xf32>
    %387 = arith.addf %378, %386 : vector<32x80xf32>
    %388 = vector.extract_strided_slice %340 {offsets = [0, 5], sizes = [32, 1], strides = [1, 1]} : vector<32x8xi32> to vector<32x1xi32>
    %389 = vector.broadcast %388 : vector<32x1xi32> to vector<32x80xi32>
    %390 = arith.cmpi eq, %389, %234 : vector<32x80xi32>
    %391 = arith.extui %390 : vector<32x80xi1> to vector<32x80xi32>
    %392 = arith.sitofp %391 : vector<32x80xi32> to vector<32x80xf32>
    %393 = vector.extract_strided_slice %342 {offsets = [0, 5], sizes = [32, 1], strides = [1, 1]} : vector<32x8xf32> to vector<32x1xf32>
    %394 = vector.broadcast %393 : vector<32x1xf32> to vector<32x80xf32>
    %395 = arith.mulf %394, %392 : vector<32x80xf32>
    %396 = arith.addf %387, %395 : vector<32x80xf32>
    %397 = vector.extract_strided_slice %340 {offsets = [0, 6], sizes = [32, 1], strides = [1, 1]} : vector<32x8xi32> to vector<32x1xi32>
    %398 = vector.broadcast %397 : vector<32x1xi32> to vector<32x80xi32>
    %399 = arith.cmpi eq, %398, %234 : vector<32x80xi32>
    %400 = arith.extui %399 : vector<32x80xi1> to vector<32x80xi32>
    %401 = arith.sitofp %400 : vector<32x80xi32> to vector<32x80xf32>
    %402 = vector.extract_strided_slice %342 {offsets = [0, 6], sizes = [32, 1], strides = [1, 1]} : vector<32x8xf32> to vector<32x1xf32>
    %403 = vector.broadcast %402 : vector<32x1xf32> to vector<32x80xf32>
    %404 = arith.mulf %403, %401 : vector<32x80xf32>
    %405 = arith.addf %396, %404 : vector<32x80xf32>
    %406 = vector.extract_strided_slice %340 {offsets = [0, 7], sizes = [32, 1], strides = [1, 1]} : vector<32x8xi32> to vector<32x1xi32>
    %407 = vector.broadcast %406 : vector<32x1xi32> to vector<32x80xi32>
    %408 = arith.cmpi eq, %407, %234 : vector<32x80xi32>
    %409 = arith.extui %408 : vector<32x80xi1> to vector<32x80xi32>
    %410 = arith.sitofp %409 : vector<32x80xi32> to vector<32x80xf32>
    %411 = vector.extract_strided_slice %342 {offsets = [0, 7], sizes = [32, 1], strides = [1, 1]} : vector<32x8xf32> to vector<32x1xf32>
    %412 = vector.broadcast %411 : vector<32x1xf32> to vector<32x80xf32>
    %413 = arith.mulf %412, %410 : vector<32x80xf32>
    %414 = arith.addf %405, %413 : vector<32x80xf32>
    %cst_155 = arith.constant 0.000000e+00 : f32
    %415 = vector.broadcast %cst_155 : f32 to vector<32x8xf32>
    %416 = arith.cmpf oge, %295, %415 : vector<32x8xf32>
    %417 = vector.broadcast %51 : vector<1x8xf32> to vector<32x8xf32>
    %418 = arith.cmpf olt, %295, %417 : vector<32x8xf32>
    %419 = arith.andi %416, %418 : vector<32x8xi1>
    %cst_156 = arith.constant 0.000000e+00 : f32
    %420 = vector.broadcast %cst_156 : f32 to vector<32x8xf32>
    %421 = arith.cmpf oge, %285, %420 : vector<32x8xf32>
    %422 = arith.andi %419, %421 : vector<32x8xi1>
    %423 = vector.broadcast %52 : vector<1x8xf32> to vector<32x8xf32>
    %424 = arith.cmpf olt, %285, %423 : vector<32x8xf32>
    %425 = arith.andi %422, %424 : vector<32x8xi1>
    %426 = arith.extui %425 : vector<32x8xi1> to vector<32x8xi32>
    %427 = arith.sitofp %426 : vector<32x8xi32> to vector<32x8xf32>
    %cst_157 = arith.constant 1.000000e+00 : f32
    %428 = vector.broadcast %cst_157 : f32 to vector<1x8xf32>
    %429 = arith.subf %51, %428 : vector<1x8xf32>
    %cst_158 = arith.constant 0.000000e+00 : f32
    %430 = vector.broadcast %cst_158 : f32 to vector<32x8xf32>
    %431 = arith.maximumf %430, %295 : vector<32x8xf32>
    %432 = vector.broadcast %429 : vector<1x8xf32> to vector<32x8xf32>
    %433 = arith.minimumf %432, %431 : vector<32x8xf32>
    %434 = arith.fptosi %433 : vector<32x8xf32> to vector<32x8xi32>
    %cst_159 = arith.constant 1.000000e+00 : f32
    %435 = vector.broadcast %cst_159 : f32 to vector<1x8xf32>
    %436 = arith.subf %52, %435 : vector<1x8xf32>
    %cst_160 = arith.constant 0.000000e+00 : f32
    %437 = vector.broadcast %cst_160 : f32 to vector<32x8xf32>
    %438 = arith.maximumf %437, %285 : vector<32x8xf32>
    %439 = vector.broadcast %436 : vector<1x8xf32> to vector<32x8xf32>
    %440 = arith.minimumf %439, %438 : vector<32x8xf32>
    %441 = arith.fptosi %440 : vector<32x8xf32> to vector<32x8xi32>
    %442 = vector.broadcast %53 : vector<1x8xi32> to vector<32x8xi32>
    %443 = arith.muli %441, %442 : vector<32x8xi32>
    %444 = vector.broadcast %54 : vector<1x8xi32> to vector<32x8xi32>
    %445 = arith.addi %444, %443 : vector<32x8xi32>
    %446 = arith.addi %445, %434 : vector<32x8xi32>
    %447 = arith.mulf %298, %427 : vector<32x8xf32>
    %448 = arith.mulf %447, %265 : vector<32x8xf32>
    %449 = vector.extract_strided_slice %446 {offsets = [0, 0], sizes = [32, 1], strides = [1, 1]} : vector<32x8xi32> to vector<32x1xi32>
    %450 = vector.broadcast %449 : vector<32x1xi32> to vector<32x80xi32>
    %451 = arith.cmpi eq, %450, %234 : vector<32x80xi32>
    %452 = arith.extui %451 : vector<32x80xi1> to vector<32x80xi32>
    %453 = arith.sitofp %452 : vector<32x80xi32> to vector<32x80xf32>
    %454 = vector.extract_strided_slice %448 {offsets = [0, 0], sizes = [32, 1], strides = [1, 1]} : vector<32x8xf32> to vector<32x1xf32>
    %455 = vector.broadcast %454 : vector<32x1xf32> to vector<32x80xf32>
    %456 = arith.mulf %455, %453 : vector<32x80xf32>
    %457 = arith.addf %414, %456 : vector<32x80xf32>
    %458 = vector.extract_strided_slice %446 {offsets = [0, 1], sizes = [32, 1], strides = [1, 1]} : vector<32x8xi32> to vector<32x1xi32>
    %459 = vector.broadcast %458 : vector<32x1xi32> to vector<32x80xi32>
    %460 = arith.cmpi eq, %459, %234 : vector<32x80xi32>
    %461 = arith.extui %460 : vector<32x80xi1> to vector<32x80xi32>
    %462 = arith.sitofp %461 : vector<32x80xi32> to vector<32x80xf32>
    %463 = vector.extract_strided_slice %448 {offsets = [0, 1], sizes = [32, 1], strides = [1, 1]} : vector<32x8xf32> to vector<32x1xf32>
    %464 = vector.broadcast %463 : vector<32x1xf32> to vector<32x80xf32>
    %465 = arith.mulf %464, %462 : vector<32x80xf32>
    %466 = arith.addf %457, %465 : vector<32x80xf32>
    %467 = vector.extract_strided_slice %446 {offsets = [0, 2], sizes = [32, 1], strides = [1, 1]} : vector<32x8xi32> to vector<32x1xi32>
    %468 = vector.broadcast %467 : vector<32x1xi32> to vector<32x80xi32>
    %469 = arith.cmpi eq, %468, %234 : vector<32x80xi32>
    %470 = arith.extui %469 : vector<32x80xi1> to vector<32x80xi32>
    %471 = arith.sitofp %470 : vector<32x80xi32> to vector<32x80xf32>
    %472 = vector.extract_strided_slice %448 {offsets = [0, 2], sizes = [32, 1], strides = [1, 1]} : vector<32x8xf32> to vector<32x1xf32>
    %473 = vector.broadcast %472 : vector<32x1xf32> to vector<32x80xf32>
    %474 = arith.mulf %473, %471 : vector<32x80xf32>
    %475 = arith.addf %466, %474 : vector<32x80xf32>
    %476 = vector.extract_strided_slice %446 {offsets = [0, 3], sizes = [32, 1], strides = [1, 1]} : vector<32x8xi32> to vector<32x1xi32>
    %477 = vector.broadcast %476 : vector<32x1xi32> to vector<32x80xi32>
    %478 = arith.cmpi eq, %477, %234 : vector<32x80xi32>
    %479 = arith.extui %478 : vector<32x80xi1> to vector<32x80xi32>
    %480 = arith.sitofp %479 : vector<32x80xi32> to vector<32x80xf32>
    %481 = vector.extract_strided_slice %448 {offsets = [0, 3], sizes = [32, 1], strides = [1, 1]} : vector<32x8xf32> to vector<32x1xf32>
    %482 = vector.broadcast %481 : vector<32x1xf32> to vector<32x80xf32>
    %483 = arith.mulf %482, %480 : vector<32x80xf32>
    %484 = arith.addf %475, %483 : vector<32x80xf32>
    %485 = vector.extract_strided_slice %446 {offsets = [0, 4], sizes = [32, 1], strides = [1, 1]} : vector<32x8xi32> to vector<32x1xi32>
    %486 = vector.broadcast %485 : vector<32x1xi32> to vector<32x80xi32>
    %487 = arith.cmpi eq, %486, %234 : vector<32x80xi32>
    %488 = arith.extui %487 : vector<32x80xi1> to vector<32x80xi32>
    %489 = arith.sitofp %488 : vector<32x80xi32> to vector<32x80xf32>
    %490 = vector.extract_strided_slice %448 {offsets = [0, 4], sizes = [32, 1], strides = [1, 1]} : vector<32x8xf32> to vector<32x1xf32>
    %491 = vector.broadcast %490 : vector<32x1xf32> to vector<32x80xf32>
    %492 = arith.mulf %491, %489 : vector<32x80xf32>
    %493 = arith.addf %484, %492 : vector<32x80xf32>
    %494 = vector.extract_strided_slice %446 {offsets = [0, 5], sizes = [32, 1], strides = [1, 1]} : vector<32x8xi32> to vector<32x1xi32>
    %495 = vector.broadcast %494 : vector<32x1xi32> to vector<32x80xi32>
    %496 = arith.cmpi eq, %495, %234 : vector<32x80xi32>
    %497 = arith.extui %496 : vector<32x80xi1> to vector<32x80xi32>
    %498 = arith.sitofp %497 : vector<32x80xi32> to vector<32x80xf32>
    %499 = vector.extract_strided_slice %448 {offsets = [0, 5], sizes = [32, 1], strides = [1, 1]} : vector<32x8xf32> to vector<32x1xf32>
    %500 = vector.broadcast %499 : vector<32x1xf32> to vector<32x80xf32>
    %501 = arith.mulf %500, %498 : vector<32x80xf32>
    %502 = arith.addf %493, %501 : vector<32x80xf32>
    %503 = vector.extract_strided_slice %446 {offsets = [0, 6], sizes = [32, 1], strides = [1, 1]} : vector<32x8xi32> to vector<32x1xi32>
    %504 = vector.broadcast %503 : vector<32x1xi32> to vector<32x80xi32>
    %505 = arith.cmpi eq, %504, %234 : vector<32x80xi32>
    %506 = arith.extui %505 : vector<32x80xi1> to vector<32x80xi32>
    %507 = arith.sitofp %506 : vector<32x80xi32> to vector<32x80xf32>
    %508 = vector.extract_strided_slice %448 {offsets = [0, 6], sizes = [32, 1], strides = [1, 1]} : vector<32x8xf32> to vector<32x1xf32>
    %509 = vector.broadcast %508 : vector<32x1xf32> to vector<32x80xf32>
    %510 = arith.mulf %509, %507 : vector<32x80xf32>
    %511 = arith.addf %502, %510 : vector<32x80xf32>
    %512 = vector.extract_strided_slice %446 {offsets = [0, 7], sizes = [32, 1], strides = [1, 1]} : vector<32x8xi32> to vector<32x1xi32>
    %513 = vector.broadcast %512 : vector<32x1xi32> to vector<32x80xi32>
    %514 = arith.cmpi eq, %513, %234 : vector<32x80xi32>
    %515 = arith.extui %514 : vector<32x80xi1> to vector<32x80xi32>
    %516 = arith.sitofp %515 : vector<32x80xi32> to vector<32x80xf32>
    %517 = vector.extract_strided_slice %448 {offsets = [0, 7], sizes = [32, 1], strides = [1, 1]} : vector<32x8xf32> to vector<32x1xf32>
    %518 = vector.broadcast %517 : vector<32x1xf32> to vector<32x80xf32>
    %519 = arith.mulf %518, %516 : vector<32x80xf32>
    %520 = arith.addf %511, %519 : vector<32x80xf32>
    %cst_161 = arith.constant 0.000000e+00 : f32
    %521 = vector.broadcast %cst_161 : f32 to vector<32x8xf32>
    %522 = arith.cmpf oge, %284, %521 : vector<32x8xf32>
    %523 = vector.broadcast %51 : vector<1x8xf32> to vector<32x8xf32>
    %524 = arith.cmpf olt, %284, %523 : vector<32x8xf32>
    %525 = arith.andi %522, %524 : vector<32x8xi1>
    %cst_162 = arith.constant 0.000000e+00 : f32
    %526 = vector.broadcast %cst_162 : f32 to vector<32x8xf32>
    %527 = arith.cmpf oge, %300, %526 : vector<32x8xf32>
    %528 = arith.andi %525, %527 : vector<32x8xi1>
    %529 = vector.broadcast %52 : vector<1x8xf32> to vector<32x8xf32>
    %530 = arith.cmpf olt, %300, %529 : vector<32x8xf32>
    %531 = arith.andi %528, %530 : vector<32x8xi1>
    %532 = arith.extui %531 : vector<32x8xi1> to vector<32x8xi32>
    %533 = arith.sitofp %532 : vector<32x8xi32> to vector<32x8xf32>
    %cst_163 = arith.constant 1.000000e+00 : f32
    %534 = vector.broadcast %cst_163 : f32 to vector<1x8xf32>
    %535 = arith.subf %51, %534 : vector<1x8xf32>
    %cst_164 = arith.constant 0.000000e+00 : f32
    %536 = vector.broadcast %cst_164 : f32 to vector<32x8xf32>
    %537 = arith.maximumf %536, %284 : vector<32x8xf32>
    %538 = vector.broadcast %535 : vector<1x8xf32> to vector<32x8xf32>
    %539 = arith.minimumf %538, %537 : vector<32x8xf32>
    %540 = arith.fptosi %539 : vector<32x8xf32> to vector<32x8xi32>
    %cst_165 = arith.constant 1.000000e+00 : f32
    %541 = vector.broadcast %cst_165 : f32 to vector<1x8xf32>
    %542 = arith.subf %52, %541 : vector<1x8xf32>
    %cst_166 = arith.constant 0.000000e+00 : f32
    %543 = vector.broadcast %cst_166 : f32 to vector<32x8xf32>
    %544 = arith.maximumf %543, %300 : vector<32x8xf32>
    %545 = vector.broadcast %542 : vector<1x8xf32> to vector<32x8xf32>
    %546 = arith.minimumf %545, %544 : vector<32x8xf32>
    %547 = arith.fptosi %546 : vector<32x8xf32> to vector<32x8xi32>
    %548 = vector.broadcast %53 : vector<1x8xi32> to vector<32x8xi32>
    %549 = arith.muli %547, %548 : vector<32x8xi32>
    %550 = vector.broadcast %54 : vector<1x8xi32> to vector<32x8xi32>
    %551 = arith.addi %550, %549 : vector<32x8xi32>
    %552 = arith.addi %551, %540 : vector<32x8xi32>
    %553 = arith.mulf %303, %533 : vector<32x8xf32>
    %554 = arith.mulf %553, %265 : vector<32x8xf32>
    %555 = vector.extract_strided_slice %552 {offsets = [0, 0], sizes = [32, 1], strides = [1, 1]} : vector<32x8xi32> to vector<32x1xi32>
    %556 = vector.broadcast %555 : vector<32x1xi32> to vector<32x80xi32>
    %557 = arith.cmpi eq, %556, %234 : vector<32x80xi32>
    %558 = arith.extui %557 : vector<32x80xi1> to vector<32x80xi32>
    %559 = arith.sitofp %558 : vector<32x80xi32> to vector<32x80xf32>
    %560 = vector.extract_strided_slice %554 {offsets = [0, 0], sizes = [32, 1], strides = [1, 1]} : vector<32x8xf32> to vector<32x1xf32>
    %561 = vector.broadcast %560 : vector<32x1xf32> to vector<32x80xf32>
    %562 = arith.mulf %561, %559 : vector<32x80xf32>
    %563 = arith.addf %520, %562 : vector<32x80xf32>
    %564 = vector.extract_strided_slice %552 {offsets = [0, 1], sizes = [32, 1], strides = [1, 1]} : vector<32x8xi32> to vector<32x1xi32>
    %565 = vector.broadcast %564 : vector<32x1xi32> to vector<32x80xi32>
    %566 = arith.cmpi eq, %565, %234 : vector<32x80xi32>
    %567 = arith.extui %566 : vector<32x80xi1> to vector<32x80xi32>
    %568 = arith.sitofp %567 : vector<32x80xi32> to vector<32x80xf32>
    %569 = vector.extract_strided_slice %554 {offsets = [0, 1], sizes = [32, 1], strides = [1, 1]} : vector<32x8xf32> to vector<32x1xf32>
    %570 = vector.broadcast %569 : vector<32x1xf32> to vector<32x80xf32>
    %571 = arith.mulf %570, %568 : vector<32x80xf32>
    %572 = arith.addf %563, %571 : vector<32x80xf32>
    %573 = vector.extract_strided_slice %552 {offsets = [0, 2], sizes = [32, 1], strides = [1, 1]} : vector<32x8xi32> to vector<32x1xi32>
    %574 = vector.broadcast %573 : vector<32x1xi32> to vector<32x80xi32>
    %575 = arith.cmpi eq, %574, %234 : vector<32x80xi32>
    %576 = arith.extui %575 : vector<32x80xi1> to vector<32x80xi32>
    %577 = arith.sitofp %576 : vector<32x80xi32> to vector<32x80xf32>
    %578 = vector.extract_strided_slice %554 {offsets = [0, 2], sizes = [32, 1], strides = [1, 1]} : vector<32x8xf32> to vector<32x1xf32>
    %579 = vector.broadcast %578 : vector<32x1xf32> to vector<32x80xf32>
    %580 = arith.mulf %579, %577 : vector<32x80xf32>
    %581 = arith.addf %572, %580 : vector<32x80xf32>
    %582 = vector.extract_strided_slice %552 {offsets = [0, 3], sizes = [32, 1], strides = [1, 1]} : vector<32x8xi32> to vector<32x1xi32>
    %583 = vector.broadcast %582 : vector<32x1xi32> to vector<32x80xi32>
    %584 = arith.cmpi eq, %583, %234 : vector<32x80xi32>
    %585 = arith.extui %584 : vector<32x80xi1> to vector<32x80xi32>
    %586 = arith.sitofp %585 : vector<32x80xi32> to vector<32x80xf32>
    %587 = vector.extract_strided_slice %554 {offsets = [0, 3], sizes = [32, 1], strides = [1, 1]} : vector<32x8xf32> to vector<32x1xf32>
    %588 = vector.broadcast %587 : vector<32x1xf32> to vector<32x80xf32>
    %589 = arith.mulf %588, %586 : vector<32x80xf32>
    %590 = arith.addf %581, %589 : vector<32x80xf32>
    %591 = vector.extract_strided_slice %552 {offsets = [0, 4], sizes = [32, 1], strides = [1, 1]} : vector<32x8xi32> to vector<32x1xi32>
    %592 = vector.broadcast %591 : vector<32x1xi32> to vector<32x80xi32>
    %593 = arith.cmpi eq, %592, %234 : vector<32x80xi32>
    %594 = arith.extui %593 : vector<32x80xi1> to vector<32x80xi32>
    %595 = arith.sitofp %594 : vector<32x80xi32> to vector<32x80xf32>
    %596 = vector.extract_strided_slice %554 {offsets = [0, 4], sizes = [32, 1], strides = [1, 1]} : vector<32x8xf32> to vector<32x1xf32>
    %597 = vector.broadcast %596 : vector<32x1xf32> to vector<32x80xf32>
    %598 = arith.mulf %597, %595 : vector<32x80xf32>
    %599 = arith.addf %590, %598 : vector<32x80xf32>
    %600 = vector.extract_strided_slice %552 {offsets = [0, 5], sizes = [32, 1], strides = [1, 1]} : vector<32x8xi32> to vector<32x1xi32>
    %601 = vector.broadcast %600 : vector<32x1xi32> to vector<32x80xi32>
    %602 = arith.cmpi eq, %601, %234 : vector<32x80xi32>
    %603 = arith.extui %602 : vector<32x80xi1> to vector<32x80xi32>
    %604 = arith.sitofp %603 : vector<32x80xi32> to vector<32x80xf32>
    %605 = vector.extract_strided_slice %554 {offsets = [0, 5], sizes = [32, 1], strides = [1, 1]} : vector<32x8xf32> to vector<32x1xf32>
    %606 = vector.broadcast %605 : vector<32x1xf32> to vector<32x80xf32>
    %607 = arith.mulf %606, %604 : vector<32x80xf32>
    %608 = arith.addf %599, %607 : vector<32x80xf32>
    %609 = vector.extract_strided_slice %552 {offsets = [0, 6], sizes = [32, 1], strides = [1, 1]} : vector<32x8xi32> to vector<32x1xi32>
    %610 = vector.broadcast %609 : vector<32x1xi32> to vector<32x80xi32>
    %611 = arith.cmpi eq, %610, %234 : vector<32x80xi32>
    %612 = arith.extui %611 : vector<32x80xi1> to vector<32x80xi32>
    %613 = arith.sitofp %612 : vector<32x80xi32> to vector<32x80xf32>
    %614 = vector.extract_strided_slice %554 {offsets = [0, 6], sizes = [32, 1], strides = [1, 1]} : vector<32x8xf32> to vector<32x1xf32>
    %615 = vector.broadcast %614 : vector<32x1xf32> to vector<32x80xf32>
    %616 = arith.mulf %615, %613 : vector<32x80xf32>
    %617 = arith.addf %608, %616 : vector<32x80xf32>
    %618 = vector.extract_strided_slice %552 {offsets = [0, 7], sizes = [32, 1], strides = [1, 1]} : vector<32x8xi32> to vector<32x1xi32>
    %619 = vector.broadcast %618 : vector<32x1xi32> to vector<32x80xi32>
    %620 = arith.cmpi eq, %619, %234 : vector<32x80xi32>
    %621 = arith.extui %620 : vector<32x80xi1> to vector<32x80xi32>
    %622 = arith.sitofp %621 : vector<32x80xi32> to vector<32x80xf32>
    %623 = vector.extract_strided_slice %554 {offsets = [0, 7], sizes = [32, 1], strides = [1, 1]} : vector<32x8xf32> to vector<32x1xf32>
    %624 = vector.broadcast %623 : vector<32x1xf32> to vector<32x80xf32>
    %625 = arith.mulf %624, %622 : vector<32x80xf32>
    %626 = arith.addf %617, %625 : vector<32x80xf32>
    %cst_167 = arith.constant 0.000000e+00 : f32
    %627 = vector.broadcast %cst_167 : f32 to vector<32x8xf32>
    %628 = arith.cmpf oge, %305, %627 : vector<32x8xf32>
    %629 = vector.broadcast %51 : vector<1x8xf32> to vector<32x8xf32>
    %630 = arith.cmpf olt, %305, %629 : vector<32x8xf32>
    %631 = arith.andi %628, %630 : vector<32x8xi1>
    %cst_168 = arith.constant 0.000000e+00 : f32
    %632 = vector.broadcast %cst_168 : f32 to vector<32x8xf32>
    %633 = arith.cmpf oge, %307, %632 : vector<32x8xf32>
    %634 = arith.andi %631, %633 : vector<32x8xi1>
    %635 = vector.broadcast %52 : vector<1x8xf32> to vector<32x8xf32>
    %636 = arith.cmpf olt, %307, %635 : vector<32x8xf32>
    %637 = arith.andi %634, %636 : vector<32x8xi1>
    %638 = arith.extui %637 : vector<32x8xi1> to vector<32x8xi32>
    %639 = arith.sitofp %638 : vector<32x8xi32> to vector<32x8xf32>
    %cst_169 = arith.constant 1.000000e+00 : f32
    %640 = vector.broadcast %cst_169 : f32 to vector<1x8xf32>
    %641 = arith.subf %51, %640 : vector<1x8xf32>
    %cst_170 = arith.constant 0.000000e+00 : f32
    %642 = vector.broadcast %cst_170 : f32 to vector<32x8xf32>
    %643 = arith.maximumf %642, %305 : vector<32x8xf32>
    %644 = vector.broadcast %641 : vector<1x8xf32> to vector<32x8xf32>
    %645 = arith.minimumf %644, %643 : vector<32x8xf32>
    %646 = arith.fptosi %645 : vector<32x8xf32> to vector<32x8xi32>
    %cst_171 = arith.constant 1.000000e+00 : f32
    %647 = vector.broadcast %cst_171 : f32 to vector<1x8xf32>
    %648 = arith.subf %52, %647 : vector<1x8xf32>
    %cst_172 = arith.constant 0.000000e+00 : f32
    %649 = vector.broadcast %cst_172 : f32 to vector<32x8xf32>
    %650 = arith.maximumf %649, %307 : vector<32x8xf32>
    %651 = vector.broadcast %648 : vector<1x8xf32> to vector<32x8xf32>
    %652 = arith.minimumf %651, %650 : vector<32x8xf32>
    %653 = arith.fptosi %652 : vector<32x8xf32> to vector<32x8xi32>
    %654 = vector.broadcast %53 : vector<1x8xi32> to vector<32x8xi32>
    %655 = arith.muli %653, %654 : vector<32x8xi32>
    %656 = vector.broadcast %54 : vector<1x8xi32> to vector<32x8xi32>
    %657 = arith.addi %656, %655 : vector<32x8xi32>
    %658 = arith.addi %657, %646 : vector<32x8xi32>
    %659 = arith.mulf %308, %639 : vector<32x8xf32>
    %660 = arith.mulf %659, %265 : vector<32x8xf32>
    %661 = vector.extract_strided_slice %658 {offsets = [0, 0], sizes = [32, 1], strides = [1, 1]} : vector<32x8xi32> to vector<32x1xi32>
    %662 = vector.broadcast %661 : vector<32x1xi32> to vector<32x80xi32>
    %663 = arith.cmpi eq, %662, %234 : vector<32x80xi32>
    %664 = arith.extui %663 : vector<32x80xi1> to vector<32x80xi32>
    %665 = arith.sitofp %664 : vector<32x80xi32> to vector<32x80xf32>
    %666 = vector.extract_strided_slice %660 {offsets = [0, 0], sizes = [32, 1], strides = [1, 1]} : vector<32x8xf32> to vector<32x1xf32>
    %667 = vector.broadcast %666 : vector<32x1xf32> to vector<32x80xf32>
    %668 = arith.mulf %667, %665 : vector<32x80xf32>
    %669 = arith.addf %626, %668 : vector<32x80xf32>
    %670 = vector.extract_strided_slice %658 {offsets = [0, 1], sizes = [32, 1], strides = [1, 1]} : vector<32x8xi32> to vector<32x1xi32>
    %671 = vector.broadcast %670 : vector<32x1xi32> to vector<32x80xi32>
    %672 = arith.cmpi eq, %671, %234 : vector<32x80xi32>
    %673 = arith.extui %672 : vector<32x80xi1> to vector<32x80xi32>
    %674 = arith.sitofp %673 : vector<32x80xi32> to vector<32x80xf32>
    %675 = vector.extract_strided_slice %660 {offsets = [0, 1], sizes = [32, 1], strides = [1, 1]} : vector<32x8xf32> to vector<32x1xf32>
    %676 = vector.broadcast %675 : vector<32x1xf32> to vector<32x80xf32>
    %677 = arith.mulf %676, %674 : vector<32x80xf32>
    %678 = arith.addf %669, %677 : vector<32x80xf32>
    %679 = vector.extract_strided_slice %658 {offsets = [0, 2], sizes = [32, 1], strides = [1, 1]} : vector<32x8xi32> to vector<32x1xi32>
    %680 = vector.broadcast %679 : vector<32x1xi32> to vector<32x80xi32>
    %681 = arith.cmpi eq, %680, %234 : vector<32x80xi32>
    %682 = arith.extui %681 : vector<32x80xi1> to vector<32x80xi32>
    %683 = arith.sitofp %682 : vector<32x80xi32> to vector<32x80xf32>
    %684 = vector.extract_strided_slice %660 {offsets = [0, 2], sizes = [32, 1], strides = [1, 1]} : vector<32x8xf32> to vector<32x1xf32>
    %685 = vector.broadcast %684 : vector<32x1xf32> to vector<32x80xf32>
    %686 = arith.mulf %685, %683 : vector<32x80xf32>
    %687 = arith.addf %678, %686 : vector<32x80xf32>
    %688 = vector.extract_strided_slice %658 {offsets = [0, 3], sizes = [32, 1], strides = [1, 1]} : vector<32x8xi32> to vector<32x1xi32>
    %689 = vector.broadcast %688 : vector<32x1xi32> to vector<32x80xi32>
    %690 = arith.cmpi eq, %689, %234 : vector<32x80xi32>
    %691 = arith.extui %690 : vector<32x80xi1> to vector<32x80xi32>
    %692 = arith.sitofp %691 : vector<32x80xi32> to vector<32x80xf32>
    %693 = vector.extract_strided_slice %660 {offsets = [0, 3], sizes = [32, 1], strides = [1, 1]} : vector<32x8xf32> to vector<32x1xf32>
    %694 = vector.broadcast %693 : vector<32x1xf32> to vector<32x80xf32>
    %695 = arith.mulf %694, %692 : vector<32x80xf32>
    %696 = arith.addf %687, %695 : vector<32x80xf32>
    %697 = vector.extract_strided_slice %658 {offsets = [0, 4], sizes = [32, 1], strides = [1, 1]} : vector<32x8xi32> to vector<32x1xi32>
    %698 = vector.broadcast %697 : vector<32x1xi32> to vector<32x80xi32>
    %699 = arith.cmpi eq, %698, %234 : vector<32x80xi32>
    %700 = arith.extui %699 : vector<32x80xi1> to vector<32x80xi32>
    %701 = arith.sitofp %700 : vector<32x80xi32> to vector<32x80xf32>
    %702 = vector.extract_strided_slice %660 {offsets = [0, 4], sizes = [32, 1], strides = [1, 1]} : vector<32x8xf32> to vector<32x1xf32>
    %703 = vector.broadcast %702 : vector<32x1xf32> to vector<32x80xf32>
    %704 = arith.mulf %703, %701 : vector<32x80xf32>
    %705 = arith.addf %696, %704 : vector<32x80xf32>
    %706 = vector.extract_strided_slice %658 {offsets = [0, 5], sizes = [32, 1], strides = [1, 1]} : vector<32x8xi32> to vector<32x1xi32>
    %707 = vector.broadcast %706 : vector<32x1xi32> to vector<32x80xi32>
    %708 = arith.cmpi eq, %707, %234 : vector<32x80xi32>
    %709 = arith.extui %708 : vector<32x80xi1> to vector<32x80xi32>
    %710 = arith.sitofp %709 : vector<32x80xi32> to vector<32x80xf32>
    %711 = vector.extract_strided_slice %660 {offsets = [0, 5], sizes = [32, 1], strides = [1, 1]} : vector<32x8xf32> to vector<32x1xf32>
    %712 = vector.broadcast %711 : vector<32x1xf32> to vector<32x80xf32>
    %713 = arith.mulf %712, %710 : vector<32x80xf32>
    %714 = arith.addf %705, %713 : vector<32x80xf32>
    %715 = vector.extract_strided_slice %658 {offsets = [0, 6], sizes = [32, 1], strides = [1, 1]} : vector<32x8xi32> to vector<32x1xi32>
    %716 = vector.broadcast %715 : vector<32x1xi32> to vector<32x80xi32>
    %717 = arith.cmpi eq, %716, %234 : vector<32x80xi32>
    %718 = arith.extui %717 : vector<32x80xi1> to vector<32x80xi32>
    %719 = arith.sitofp %718 : vector<32x80xi32> to vector<32x80xf32>
    %720 = vector.extract_strided_slice %660 {offsets = [0, 6], sizes = [32, 1], strides = [1, 1]} : vector<32x8xf32> to vector<32x1xf32>
    %721 = vector.broadcast %720 : vector<32x1xf32> to vector<32x80xf32>
    %722 = arith.mulf %721, %719 : vector<32x80xf32>
    %723 = arith.addf %714, %722 : vector<32x80xf32>
    %724 = vector.extract_strided_slice %658 {offsets = [0, 7], sizes = [32, 1], strides = [1, 1]} : vector<32x8xi32> to vector<32x1xi32>
    %725 = vector.broadcast %724 : vector<32x1xi32> to vector<32x80xi32>
    %726 = arith.cmpi eq, %725, %234 : vector<32x80xi32>
    %727 = arith.extui %726 : vector<32x80xi1> to vector<32x80xi32>
    %728 = arith.sitofp %727 : vector<32x80xi32> to vector<32x80xf32>
    %729 = vector.extract_strided_slice %660 {offsets = [0, 7], sizes = [32, 1], strides = [1, 1]} : vector<32x8xf32> to vector<32x1xf32>
    %730 = vector.broadcast %729 : vector<32x1xf32> to vector<32x80xf32>
    %731 = arith.mulf %730, %728 : vector<32x80xf32>
    %732 = arith.addf %723, %731 : vector<32x80xf32>
    %cst_173 = arith.constant dense<0.000000e+00> : vector<32x32xf32>
    %733 = tpu.matmul %732, %241, %cst_173 {dimension_numbers = #tpu.dot_dimension_numbers<[1], [0], [0], [1], [0, 0, 1, 1], [], []>} : vector<32x80xf32>, vector<80x32xf32>, vector<32x32xf32> -> vector<32x32xf32>
    %734 = vector.extract_strided_slice %733 {offsets = [0, 0], sizes = [8, 8], strides = [1, 1]} : vector<32x32xf32> to vector<8x8xf32>
    %735 = vector.extract_strided_slice %733 {offsets = [8, 8], sizes = [8, 8], strides = [1, 1]} : vector<32x32xf32> to vector<8x8xf32>
    %736 = vector.extract_strided_slice %733 {offsets = [16, 16], sizes = [8, 8], strides = [1, 1]} : vector<32x32xf32> to vector<8x8xf32>
    %737 = vector.extract_strided_slice %733 {offsets = [24, 24], sizes = [8, 8], strides = [1, 1]} : vector<32x32xf32> to vector<8x8xf32>
    %738 = tpu.concatenate %734, %735, %736, %737 in 1 : vector<8x8xf32>, vector<8x8xf32>, vector<8x8xf32>, vector<8x8xf32> -> vector<8x32xf32>
    %c80 = arith.constant 80 : index
    %c0_174 = arith.constant 0 : index
    %739 = vector.load %arg3[%c80, %c0_174] : memref<160x32xf32, #tpu.memory_space<vmem>>, vector<80x32xf32>
    %cst_175 = arith.constant dense<0.000000e+00> : vector<80x32xf32>
    %740 = tpu.matmul %739, %22, %cst_175 {dimension_numbers = #tpu.dot_dimension_numbers<[1], [0], [0], [1], [0, 0, 1, 1], [], []>} : vector<80x32xf32>, vector<32x32xf32>, vector<80x32xf32> -> vector<80x32xf32>
    %741 = vector.broadcast %24 : vector<1x32xf32> to vector<80x32xf32>
    %742 = arith.addf %740, %741 : vector<80x32xf32>
    %c80_176 = arith.constant 80 : index
    %c0_177 = arith.constant 0 : index
    %743 = vector.load %arg4[%c80_176, %c0_177] : memref<160x1xf32, #tpu.memory_space<vmem>>, vector<80x1xf32>
    %744 = vector.broadcast %743 : vector<80x1xf32> to vector<80x32xf32>
    %745 = arith.mulf %742, %744 : vector<80x32xf32>
    %746 = vector.extract_strided_slice %231 {offsets = [8, 0], sizes = [8, 8], strides = [1, 1]} : vector<16x32xf32> to vector<8x8xf32>
    %747 = vector.extract_strided_slice %231 {offsets = [8, 8], sizes = [8, 8], strides = [1, 1]} : vector<16x32xf32> to vector<8x8xf32>
    %748 = vector.extract_strided_slice %231 {offsets = [8, 16], sizes = [8, 8], strides = [1, 1]} : vector<16x32xf32> to vector<8x8xf32>
    %749 = vector.extract_strided_slice %231 {offsets = [8, 24], sizes = [8, 8], strides = [1, 1]} : vector<16x32xf32> to vector<8x8xf32>
    %750 = tpu.concatenate %746, %747, %748, %749 in 0 : vector<8x8xf32>, vector<8x8xf32>, vector<8x8xf32>, vector<8x8xf32> -> vector<32x8xf32>
    %751 = vector.extract_strided_slice %232 {offsets = [8, 0], sizes = [8, 8], strides = [1, 1]} : vector<16x32xf32> to vector<8x8xf32>
    %752 = vector.extract_strided_slice %232 {offsets = [8, 8], sizes = [8, 8], strides = [1, 1]} : vector<16x32xf32> to vector<8x8xf32>
    %753 = vector.extract_strided_slice %232 {offsets = [8, 16], sizes = [8, 8], strides = [1, 1]} : vector<16x32xf32> to vector<8x8xf32>
    %754 = vector.extract_strided_slice %232 {offsets = [8, 24], sizes = [8, 8], strides = [1, 1]} : vector<16x32xf32> to vector<8x8xf32>
    %755 = tpu.concatenate %751, %752, %753, %754 in 0 : vector<8x8xf32>, vector<8x8xf32>, vector<8x8xf32>, vector<8x8xf32> -> vector<32x8xf32>
    %756 = vector.extract_strided_slice %233 {offsets = [8, 0], sizes = [8, 8], strides = [1, 1]} : vector<16x32xf32> to vector<8x8xf32>
    %757 = vector.extract_strided_slice %233 {offsets = [8, 8], sizes = [8, 8], strides = [1, 1]} : vector<16x32xf32> to vector<8x8xf32>
    %758 = vector.extract_strided_slice %233 {offsets = [8, 16], sizes = [8, 8], strides = [1, 1]} : vector<16x32xf32> to vector<8x8xf32>
    %759 = vector.extract_strided_slice %233 {offsets = [8, 24], sizes = [8, 8], strides = [1, 1]} : vector<16x32xf32> to vector<8x8xf32>
    %760 = tpu.concatenate %756, %757, %758, %759 in 0 : vector<8x8xf32>, vector<8x8xf32>, vector<8x8xf32>, vector<8x8xf32> -> vector<32x8xf32>
    %cst_178 = arith.constant dense<0xFF800000> : vector<32xf32>
    %761 = vector.multi_reduction <maximumf>, %760, %cst_178 [1] : vector<32x8xf32> to vector<32xf32>
    %762 = vector.shape_cast %761 : vector<32xf32> to vector<32x1xf32>
    %763 = vector.broadcast %762 : vector<32x1xf32> to vector<32x8xf32>
    %764 = arith.subf %760, %763 : vector<32x8xf32>
    %765 = math.exp %764 : vector<32x8xf32>
    %cst_179 = arith.constant dense<0.000000e+00> : vector<32xf32>
    %766 = vector.multi_reduction <add>, %765, %cst_179 [1] : vector<32x8xf32> to vector<32xf32>
    %767 = vector.shape_cast %766 : vector<32xf32> to vector<32x1xf32>
    %768 = vector.broadcast %767 : vector<32x1xf32> to vector<32x8xf32>
    %769 = arith.divf %765, %768 : vector<32x8xf32>
    %c8 = arith.constant 8 : index
    %c0_180 = arith.constant 0 : index
    %770 = vector.load %arg5[%c8, %c0_180] : memref<16x8xf32, #tpu.memory_space<vmem>>, vector<8x8xf32>
    %771 = tpu.concatenate %770, %770, %770, %770 in 0 : vector<8x8xf32>, vector<8x8xf32>, vector<8x8xf32>, vector<8x8xf32> -> vector<32x8xf32>
    %c8_181 = arith.constant 8 : index
    %c0_182 = arith.constant 0 : index
    %772 = vector.load %arg6[%c8_181, %c0_182] : memref<16x8xf32, #tpu.memory_space<vmem>>, vector<8x8xf32>
    %773 = tpu.concatenate %772, %772, %772, %772 in 0 : vector<8x8xf32>, vector<8x8xf32>, vector<8x8xf32>, vector<8x8xf32> -> vector<32x8xf32>
    %774 = vector.broadcast %49 : vector<1x8xf32> to vector<32x8xf32>
    %775 = arith.mulf %750, %774 : vector<32x8xf32>
    %776 = arith.addf %771, %775 : vector<32x8xf32>
    %777 = vector.broadcast %51 : vector<1x8xf32> to vector<32x8xf32>
    %778 = arith.mulf %776, %777 : vector<32x8xf32>
    %cst_183 = arith.constant 5.000000e-01 : f32
    %779 = vector.broadcast %cst_183 : f32 to vector<32x8xf32>
    %780 = arith.subf %778, %779 : vector<32x8xf32>
    %781 = vector.broadcast %50 : vector<1x8xf32> to vector<32x8xf32>
    %782 = arith.mulf %755, %781 : vector<32x8xf32>
    %783 = arith.addf %773, %782 : vector<32x8xf32>
    %784 = vector.broadcast %52 : vector<1x8xf32> to vector<32x8xf32>
    %785 = arith.mulf %783, %784 : vector<32x8xf32>
    %cst_184 = arith.constant 5.000000e-01 : f32
    %786 = vector.broadcast %cst_184 : f32 to vector<32x8xf32>
    %787 = arith.subf %785, %786 : vector<32x8xf32>
    %788 = math.floor %780 : vector<32x8xf32>
    %789 = math.floor %787 : vector<32x8xf32>
    %790 = arith.subf %780, %788 : vector<32x8xf32>
    %791 = arith.subf %787, %789 : vector<32x8xf32>
    %cst_185 = arith.constant 0.000000e+00 : f32
    %792 = vector.broadcast %cst_185 : f32 to vector<32x80xf32>
    %cst_186 = arith.constant 1.000000e+00 : f32
    %793 = vector.broadcast %cst_186 : f32 to vector<32x8xf32>
    %794 = arith.subf %793, %790 : vector<32x8xf32>
    %cst_187 = arith.constant 1.000000e+00 : f32
    %795 = vector.broadcast %cst_187 : f32 to vector<32x8xf32>
    %796 = arith.subf %795, %791 : vector<32x8xf32>
    %797 = arith.mulf %794, %796 : vector<32x8xf32>
    %cst_188 = arith.constant 1.000000e+00 : f32
    %798 = vector.broadcast %cst_188 : f32 to vector<32x8xf32>
    %799 = arith.addf %788, %798 : vector<32x8xf32>
    %cst_189 = arith.constant 1.000000e+00 : f32
    %800 = vector.broadcast %cst_189 : f32 to vector<32x8xf32>
    %801 = arith.subf %800, %791 : vector<32x8xf32>
    %802 = arith.mulf %790, %801 : vector<32x8xf32>
    %cst_190 = arith.constant 1.000000e+00 : f32
    %803 = vector.broadcast %cst_190 : f32 to vector<32x8xf32>
    %804 = arith.addf %789, %803 : vector<32x8xf32>
    %cst_191 = arith.constant 1.000000e+00 : f32
    %805 = vector.broadcast %cst_191 : f32 to vector<32x8xf32>
    %806 = arith.subf %805, %790 : vector<32x8xf32>
    %807 = arith.mulf %806, %791 : vector<32x8xf32>
    %cst_192 = arith.constant 1.000000e+00 : f32
    %808 = vector.broadcast %cst_192 : f32 to vector<32x8xf32>
    %809 = arith.addf %788, %808 : vector<32x8xf32>
    %cst_193 = arith.constant 1.000000e+00 : f32
    %810 = vector.broadcast %cst_193 : f32 to vector<32x8xf32>
    %811 = arith.addf %789, %810 : vector<32x8xf32>
    %812 = arith.mulf %790, %791 : vector<32x8xf32>
    %cst_194 = arith.constant 0.000000e+00 : f32
    %813 = vector.broadcast %cst_194 : f32 to vector<32x8xf32>
    %814 = arith.cmpf oge, %788, %813 : vector<32x8xf32>
    %815 = vector.broadcast %51 : vector<1x8xf32> to vector<32x8xf32>
    %816 = arith.cmpf olt, %788, %815 : vector<32x8xf32>
    %817 = arith.andi %814, %816 : vector<32x8xi1>
    %cst_195 = arith.constant 0.000000e+00 : f32
    %818 = vector.broadcast %cst_195 : f32 to vector<32x8xf32>
    %819 = arith.cmpf oge, %789, %818 : vector<32x8xf32>
    %820 = arith.andi %817, %819 : vector<32x8xi1>
    %821 = vector.broadcast %52 : vector<1x8xf32> to vector<32x8xf32>
    %822 = arith.cmpf olt, %789, %821 : vector<32x8xf32>
    %823 = arith.andi %820, %822 : vector<32x8xi1>
    %824 = arith.extui %823 : vector<32x8xi1> to vector<32x8xi32>
    %825 = arith.sitofp %824 : vector<32x8xi32> to vector<32x8xf32>
    %cst_196 = arith.constant 1.000000e+00 : f32
    %826 = vector.broadcast %cst_196 : f32 to vector<1x8xf32>
    %827 = arith.subf %51, %826 : vector<1x8xf32>
    %cst_197 = arith.constant 0.000000e+00 : f32
    %828 = vector.broadcast %cst_197 : f32 to vector<32x8xf32>
    %829 = arith.maximumf %828, %788 : vector<32x8xf32>
    %830 = vector.broadcast %827 : vector<1x8xf32> to vector<32x8xf32>
    %831 = arith.minimumf %830, %829 : vector<32x8xf32>
    %832 = arith.fptosi %831 : vector<32x8xf32> to vector<32x8xi32>
    %cst_198 = arith.constant 1.000000e+00 : f32
    %833 = vector.broadcast %cst_198 : f32 to vector<1x8xf32>
    %834 = arith.subf %52, %833 : vector<1x8xf32>
    %cst_199 = arith.constant 0.000000e+00 : f32
    %835 = vector.broadcast %cst_199 : f32 to vector<32x8xf32>
    %836 = arith.maximumf %835, %789 : vector<32x8xf32>
    %837 = vector.broadcast %834 : vector<1x8xf32> to vector<32x8xf32>
    %838 = arith.minimumf %837, %836 : vector<32x8xf32>
    %839 = arith.fptosi %838 : vector<32x8xf32> to vector<32x8xi32>
    %840 = vector.broadcast %53 : vector<1x8xi32> to vector<32x8xi32>
    %841 = arith.muli %839, %840 : vector<32x8xi32>
    %842 = vector.broadcast %54 : vector<1x8xi32> to vector<32x8xi32>
    %843 = arith.addi %842, %841 : vector<32x8xi32>
    %844 = arith.addi %843, %832 : vector<32x8xi32>
    %845 = arith.mulf %797, %825 : vector<32x8xf32>
    %846 = arith.mulf %845, %769 : vector<32x8xf32>
    %847 = vector.extract_strided_slice %844 {offsets = [0, 0], sizes = [32, 1], strides = [1, 1]} : vector<32x8xi32> to vector<32x1xi32>
    %848 = vector.broadcast %847 : vector<32x1xi32> to vector<32x80xi32>
    %849 = arith.cmpi eq, %848, %234 : vector<32x80xi32>
    %850 = arith.extui %849 : vector<32x80xi1> to vector<32x80xi32>
    %851 = arith.sitofp %850 : vector<32x80xi32> to vector<32x80xf32>
    %852 = vector.extract_strided_slice %846 {offsets = [0, 0], sizes = [32, 1], strides = [1, 1]} : vector<32x8xf32> to vector<32x1xf32>
    %853 = vector.broadcast %852 : vector<32x1xf32> to vector<32x80xf32>
    %854 = arith.mulf %853, %851 : vector<32x80xf32>
    %855 = arith.addf %792, %854 : vector<32x80xf32>
    %856 = vector.extract_strided_slice %844 {offsets = [0, 1], sizes = [32, 1], strides = [1, 1]} : vector<32x8xi32> to vector<32x1xi32>
    %857 = vector.broadcast %856 : vector<32x1xi32> to vector<32x80xi32>
    %858 = arith.cmpi eq, %857, %234 : vector<32x80xi32>
    %859 = arith.extui %858 : vector<32x80xi1> to vector<32x80xi32>
    %860 = arith.sitofp %859 : vector<32x80xi32> to vector<32x80xf32>
    %861 = vector.extract_strided_slice %846 {offsets = [0, 1], sizes = [32, 1], strides = [1, 1]} : vector<32x8xf32> to vector<32x1xf32>
    %862 = vector.broadcast %861 : vector<32x1xf32> to vector<32x80xf32>
    %863 = arith.mulf %862, %860 : vector<32x80xf32>
    %864 = arith.addf %855, %863 : vector<32x80xf32>
    %865 = vector.extract_strided_slice %844 {offsets = [0, 2], sizes = [32, 1], strides = [1, 1]} : vector<32x8xi32> to vector<32x1xi32>
    %866 = vector.broadcast %865 : vector<32x1xi32> to vector<32x80xi32>
    %867 = arith.cmpi eq, %866, %234 : vector<32x80xi32>
    %868 = arith.extui %867 : vector<32x80xi1> to vector<32x80xi32>
    %869 = arith.sitofp %868 : vector<32x80xi32> to vector<32x80xf32>
    %870 = vector.extract_strided_slice %846 {offsets = [0, 2], sizes = [32, 1], strides = [1, 1]} : vector<32x8xf32> to vector<32x1xf32>
    %871 = vector.broadcast %870 : vector<32x1xf32> to vector<32x80xf32>
    %872 = arith.mulf %871, %869 : vector<32x80xf32>
    %873 = arith.addf %864, %872 : vector<32x80xf32>
    %874 = vector.extract_strided_slice %844 {offsets = [0, 3], sizes = [32, 1], strides = [1, 1]} : vector<32x8xi32> to vector<32x1xi32>
    %875 = vector.broadcast %874 : vector<32x1xi32> to vector<32x80xi32>
    %876 = arith.cmpi eq, %875, %234 : vector<32x80xi32>
    %877 = arith.extui %876 : vector<32x80xi1> to vector<32x80xi32>
    %878 = arith.sitofp %877 : vector<32x80xi32> to vector<32x80xf32>
    %879 = vector.extract_strided_slice %846 {offsets = [0, 3], sizes = [32, 1], strides = [1, 1]} : vector<32x8xf32> to vector<32x1xf32>
    %880 = vector.broadcast %879 : vector<32x1xf32> to vector<32x80xf32>
    %881 = arith.mulf %880, %878 : vector<32x80xf32>
    %882 = arith.addf %873, %881 : vector<32x80xf32>
    %883 = vector.extract_strided_slice %844 {offsets = [0, 4], sizes = [32, 1], strides = [1, 1]} : vector<32x8xi32> to vector<32x1xi32>
    %884 = vector.broadcast %883 : vector<32x1xi32> to vector<32x80xi32>
    %885 = arith.cmpi eq, %884, %234 : vector<32x80xi32>
    %886 = arith.extui %885 : vector<32x80xi1> to vector<32x80xi32>
    %887 = arith.sitofp %886 : vector<32x80xi32> to vector<32x80xf32>
    %888 = vector.extract_strided_slice %846 {offsets = [0, 4], sizes = [32, 1], strides = [1, 1]} : vector<32x8xf32> to vector<32x1xf32>
    %889 = vector.broadcast %888 : vector<32x1xf32> to vector<32x80xf32>
    %890 = arith.mulf %889, %887 : vector<32x80xf32>
    %891 = arith.addf %882, %890 : vector<32x80xf32>
    %892 = vector.extract_strided_slice %844 {offsets = [0, 5], sizes = [32, 1], strides = [1, 1]} : vector<32x8xi32> to vector<32x1xi32>
    %893 = vector.broadcast %892 : vector<32x1xi32> to vector<32x80xi32>
    %894 = arith.cmpi eq, %893, %234 : vector<32x80xi32>
    %895 = arith.extui %894 : vector<32x80xi1> to vector<32x80xi32>
    %896 = arith.sitofp %895 : vector<32x80xi32> to vector<32x80xf32>
    %897 = vector.extract_strided_slice %846 {offsets = [0, 5], sizes = [32, 1], strides = [1, 1]} : vector<32x8xf32> to vector<32x1xf32>
    %898 = vector.broadcast %897 : vector<32x1xf32> to vector<32x80xf32>
    %899 = arith.mulf %898, %896 : vector<32x80xf32>
    %900 = arith.addf %891, %899 : vector<32x80xf32>
    %901 = vector.extract_strided_slice %844 {offsets = [0, 6], sizes = [32, 1], strides = [1, 1]} : vector<32x8xi32> to vector<32x1xi32>
    %902 = vector.broadcast %901 : vector<32x1xi32> to vector<32x80xi32>
    %903 = arith.cmpi eq, %902, %234 : vector<32x80xi32>
    %904 = arith.extui %903 : vector<32x80xi1> to vector<32x80xi32>
    %905 = arith.sitofp %904 : vector<32x80xi32> to vector<32x80xf32>
    %906 = vector.extract_strided_slice %846 {offsets = [0, 6], sizes = [32, 1], strides = [1, 1]} : vector<32x8xf32> to vector<32x1xf32>
    %907 = vector.broadcast %906 : vector<32x1xf32> to vector<32x80xf32>
    %908 = arith.mulf %907, %905 : vector<32x80xf32>
    %909 = arith.addf %900, %908 : vector<32x80xf32>
    %910 = vector.extract_strided_slice %844 {offsets = [0, 7], sizes = [32, 1], strides = [1, 1]} : vector<32x8xi32> to vector<32x1xi32>
    %911 = vector.broadcast %910 : vector<32x1xi32> to vector<32x80xi32>
    %912 = arith.cmpi eq, %911, %234 : vector<32x80xi32>
    %913 = arith.extui %912 : vector<32x80xi1> to vector<32x80xi32>
    %914 = arith.sitofp %913 : vector<32x80xi32> to vector<32x80xf32>
    %915 = vector.extract_strided_slice %846 {offsets = [0, 7], sizes = [32, 1], strides = [1, 1]} : vector<32x8xf32> to vector<32x1xf32>
    %916 = vector.broadcast %915 : vector<32x1xf32> to vector<32x80xf32>
    %917 = arith.mulf %916, %914 : vector<32x80xf32>
    %918 = arith.addf %909, %917 : vector<32x80xf32>
    %cst_200 = arith.constant 0.000000e+00 : f32
    %919 = vector.broadcast %cst_200 : f32 to vector<32x8xf32>
    %920 = arith.cmpf oge, %799, %919 : vector<32x8xf32>
    %921 = vector.broadcast %51 : vector<1x8xf32> to vector<32x8xf32>
    %922 = arith.cmpf olt, %799, %921 : vector<32x8xf32>
    %923 = arith.andi %920, %922 : vector<32x8xi1>
    %cst_201 = arith.constant 0.000000e+00 : f32
    %924 = vector.broadcast %cst_201 : f32 to vector<32x8xf32>
    %925 = arith.cmpf oge, %789, %924 : vector<32x8xf32>
    %926 = arith.andi %923, %925 : vector<32x8xi1>
    %927 = vector.broadcast %52 : vector<1x8xf32> to vector<32x8xf32>
    %928 = arith.cmpf olt, %789, %927 : vector<32x8xf32>
    %929 = arith.andi %926, %928 : vector<32x8xi1>
    %930 = arith.extui %929 : vector<32x8xi1> to vector<32x8xi32>
    %931 = arith.sitofp %930 : vector<32x8xi32> to vector<32x8xf32>
    %cst_202 = arith.constant 1.000000e+00 : f32
    %932 = vector.broadcast %cst_202 : f32 to vector<1x8xf32>
    %933 = arith.subf %51, %932 : vector<1x8xf32>
    %cst_203 = arith.constant 0.000000e+00 : f32
    %934 = vector.broadcast %cst_203 : f32 to vector<32x8xf32>
    %935 = arith.maximumf %934, %799 : vector<32x8xf32>
    %936 = vector.broadcast %933 : vector<1x8xf32> to vector<32x8xf32>
    %937 = arith.minimumf %936, %935 : vector<32x8xf32>
    %938 = arith.fptosi %937 : vector<32x8xf32> to vector<32x8xi32>
    %cst_204 = arith.constant 1.000000e+00 : f32
    %939 = vector.broadcast %cst_204 : f32 to vector<1x8xf32>
    %940 = arith.subf %52, %939 : vector<1x8xf32>
    %cst_205 = arith.constant 0.000000e+00 : f32
    %941 = vector.broadcast %cst_205 : f32 to vector<32x8xf32>
    %942 = arith.maximumf %941, %789 : vector<32x8xf32>
    %943 = vector.broadcast %940 : vector<1x8xf32> to vector<32x8xf32>
    %944 = arith.minimumf %943, %942 : vector<32x8xf32>
    %945 = arith.fptosi %944 : vector<32x8xf32> to vector<32x8xi32>
    %946 = vector.broadcast %53 : vector<1x8xi32> to vector<32x8xi32>
    %947 = arith.muli %945, %946 : vector<32x8xi32>
    %948 = vector.broadcast %54 : vector<1x8xi32> to vector<32x8xi32>
    %949 = arith.addi %948, %947 : vector<32x8xi32>
    %950 = arith.addi %949, %938 : vector<32x8xi32>
    %951 = arith.mulf %802, %931 : vector<32x8xf32>
    %952 = arith.mulf %951, %769 : vector<32x8xf32>
    %953 = vector.extract_strided_slice %950 {offsets = [0, 0], sizes = [32, 1], strides = [1, 1]} : vector<32x8xi32> to vector<32x1xi32>
    %954 = vector.broadcast %953 : vector<32x1xi32> to vector<32x80xi32>
    %955 = arith.cmpi eq, %954, %234 : vector<32x80xi32>
    %956 = arith.extui %955 : vector<32x80xi1> to vector<32x80xi32>
    %957 = arith.sitofp %956 : vector<32x80xi32> to vector<32x80xf32>
    %958 = vector.extract_strided_slice %952 {offsets = [0, 0], sizes = [32, 1], strides = [1, 1]} : vector<32x8xf32> to vector<32x1xf32>
    %959 = vector.broadcast %958 : vector<32x1xf32> to vector<32x80xf32>
    %960 = arith.mulf %959, %957 : vector<32x80xf32>
    %961 = arith.addf %918, %960 : vector<32x80xf32>
    %962 = vector.extract_strided_slice %950 {offsets = [0, 1], sizes = [32, 1], strides = [1, 1]} : vector<32x8xi32> to vector<32x1xi32>
    %963 = vector.broadcast %962 : vector<32x1xi32> to vector<32x80xi32>
    %964 = arith.cmpi eq, %963, %234 : vector<32x80xi32>
    %965 = arith.extui %964 : vector<32x80xi1> to vector<32x80xi32>
    %966 = arith.sitofp %965 : vector<32x80xi32> to vector<32x80xf32>
    %967 = vector.extract_strided_slice %952 {offsets = [0, 1], sizes = [32, 1], strides = [1, 1]} : vector<32x8xf32> to vector<32x1xf32>
    %968 = vector.broadcast %967 : vector<32x1xf32> to vector<32x80xf32>
    %969 = arith.mulf %968, %966 : vector<32x80xf32>
    %970 = arith.addf %961, %969 : vector<32x80xf32>
    %971 = vector.extract_strided_slice %950 {offsets = [0, 2], sizes = [32, 1], strides = [1, 1]} : vector<32x8xi32> to vector<32x1xi32>
    %972 = vector.broadcast %971 : vector<32x1xi32> to vector<32x80xi32>
    %973 = arith.cmpi eq, %972, %234 : vector<32x80xi32>
    %974 = arith.extui %973 : vector<32x80xi1> to vector<32x80xi32>
    %975 = arith.sitofp %974 : vector<32x80xi32> to vector<32x80xf32>
    %976 = vector.extract_strided_slice %952 {offsets = [0, 2], sizes = [32, 1], strides = [1, 1]} : vector<32x8xf32> to vector<32x1xf32>
    %977 = vector.broadcast %976 : vector<32x1xf32> to vector<32x80xf32>
    %978 = arith.mulf %977, %975 : vector<32x80xf32>
    %979 = arith.addf %970, %978 : vector<32x80xf32>
    %980 = vector.extract_strided_slice %950 {offsets = [0, 3], sizes = [32, 1], strides = [1, 1]} : vector<32x8xi32> to vector<32x1xi32>
    %981 = vector.broadcast %980 : vector<32x1xi32> to vector<32x80xi32>
    %982 = arith.cmpi eq, %981, %234 : vector<32x80xi32>
    %983 = arith.extui %982 : vector<32x80xi1> to vector<32x80xi32>
    %984 = arith.sitofp %983 : vector<32x80xi32> to vector<32x80xf32>
    %985 = vector.extract_strided_slice %952 {offsets = [0, 3], sizes = [32, 1], strides = [1, 1]} : vector<32x8xf32> to vector<32x1xf32>
    %986 = vector.broadcast %985 : vector<32x1xf32> to vector<32x80xf32>
    %987 = arith.mulf %986, %984 : vector<32x80xf32>
    %988 = arith.addf %979, %987 : vector<32x80xf32>
    %989 = vector.extract_strided_slice %950 {offsets = [0, 4], sizes = [32, 1], strides = [1, 1]} : vector<32x8xi32> to vector<32x1xi32>
    %990 = vector.broadcast %989 : vector<32x1xi32> to vector<32x80xi32>
    %991 = arith.cmpi eq, %990, %234 : vector<32x80xi32>
    %992 = arith.extui %991 : vector<32x80xi1> to vector<32x80xi32>
    %993 = arith.sitofp %992 : vector<32x80xi32> to vector<32x80xf32>
    %994 = vector.extract_strided_slice %952 {offsets = [0, 4], sizes = [32, 1], strides = [1, 1]} : vector<32x8xf32> to vector<32x1xf32>
    %995 = vector.broadcast %994 : vector<32x1xf32> to vector<32x80xf32>
    %996 = arith.mulf %995, %993 : vector<32x80xf32>
    %997 = arith.addf %988, %996 : vector<32x80xf32>
    %998 = vector.extract_strided_slice %950 {offsets = [0, 5], sizes = [32, 1], strides = [1, 1]} : vector<32x8xi32> to vector<32x1xi32>
    %999 = vector.broadcast %998 : vector<32x1xi32> to vector<32x80xi32>
    %1000 = arith.cmpi eq, %999, %234 : vector<32x80xi32>
    %1001 = arith.extui %1000 : vector<32x80xi1> to vector<32x80xi32>
    %1002 = arith.sitofp %1001 : vector<32x80xi32> to vector<32x80xf32>
    %1003 = vector.extract_strided_slice %952 {offsets = [0, 5], sizes = [32, 1], strides = [1, 1]} : vector<32x8xf32> to vector<32x1xf32>
    %1004 = vector.broadcast %1003 : vector<32x1xf32> to vector<32x80xf32>
    %1005 = arith.mulf %1004, %1002 : vector<32x80xf32>
    %1006 = arith.addf %997, %1005 : vector<32x80xf32>
    %1007 = vector.extract_strided_slice %950 {offsets = [0, 6], sizes = [32, 1], strides = [1, 1]} : vector<32x8xi32> to vector<32x1xi32>
    %1008 = vector.broadcast %1007 : vector<32x1xi32> to vector<32x80xi32>
    %1009 = arith.cmpi eq, %1008, %234 : vector<32x80xi32>
    %1010 = arith.extui %1009 : vector<32x80xi1> to vector<32x80xi32>
    %1011 = arith.sitofp %1010 : vector<32x80xi32> to vector<32x80xf32>
    %1012 = vector.extract_strided_slice %952 {offsets = [0, 6], sizes = [32, 1], strides = [1, 1]} : vector<32x8xf32> to vector<32x1xf32>
    %1013 = vector.broadcast %1012 : vector<32x1xf32> to vector<32x80xf32>
    %1014 = arith.mulf %1013, %1011 : vector<32x80xf32>
    %1015 = arith.addf %1006, %1014 : vector<32x80xf32>
    %1016 = vector.extract_strided_slice %950 {offsets = [0, 7], sizes = [32, 1], strides = [1, 1]} : vector<32x8xi32> to vector<32x1xi32>
    %1017 = vector.broadcast %1016 : vector<32x1xi32> to vector<32x80xi32>
    %1018 = arith.cmpi eq, %1017, %234 : vector<32x80xi32>
    %1019 = arith.extui %1018 : vector<32x80xi1> to vector<32x80xi32>
    %1020 = arith.sitofp %1019 : vector<32x80xi32> to vector<32x80xf32>
    %1021 = vector.extract_strided_slice %952 {offsets = [0, 7], sizes = [32, 1], strides = [1, 1]} : vector<32x8xf32> to vector<32x1xf32>
    %1022 = vector.broadcast %1021 : vector<32x1xf32> to vector<32x80xf32>
    %1023 = arith.mulf %1022, %1020 : vector<32x80xf32>
    %1024 = arith.addf %1015, %1023 : vector<32x80xf32>
    %cst_206 = arith.constant 0.000000e+00 : f32
    %1025 = vector.broadcast %cst_206 : f32 to vector<32x8xf32>
    %1026 = arith.cmpf oge, %788, %1025 : vector<32x8xf32>
    %1027 = vector.broadcast %51 : vector<1x8xf32> to vector<32x8xf32>
    %1028 = arith.cmpf olt, %788, %1027 : vector<32x8xf32>
    %1029 = arith.andi %1026, %1028 : vector<32x8xi1>
    %cst_207 = arith.constant 0.000000e+00 : f32
    %1030 = vector.broadcast %cst_207 : f32 to vector<32x8xf32>
    %1031 = arith.cmpf oge, %804, %1030 : vector<32x8xf32>
    %1032 = arith.andi %1029, %1031 : vector<32x8xi1>
    %1033 = vector.broadcast %52 : vector<1x8xf32> to vector<32x8xf32>
    %1034 = arith.cmpf olt, %804, %1033 : vector<32x8xf32>
    %1035 = arith.andi %1032, %1034 : vector<32x8xi1>
    %1036 = arith.extui %1035 : vector<32x8xi1> to vector<32x8xi32>
    %1037 = arith.sitofp %1036 : vector<32x8xi32> to vector<32x8xf32>
    %cst_208 = arith.constant 1.000000e+00 : f32
    %1038 = vector.broadcast %cst_208 : f32 to vector<1x8xf32>
    %1039 = arith.subf %51, %1038 : vector<1x8xf32>
    %cst_209 = arith.constant 0.000000e+00 : f32
    %1040 = vector.broadcast %cst_209 : f32 to vector<32x8xf32>
    %1041 = arith.maximumf %1040, %788 : vector<32x8xf32>
    %1042 = vector.broadcast %1039 : vector<1x8xf32> to vector<32x8xf32>
    %1043 = arith.minimumf %1042, %1041 : vector<32x8xf32>
    %1044 = arith.fptosi %1043 : vector<32x8xf32> to vector<32x8xi32>
    %cst_210 = arith.constant 1.000000e+00 : f32
    %1045 = vector.broadcast %cst_210 : f32 to vector<1x8xf32>
    %1046 = arith.subf %52, %1045 : vector<1x8xf32>
    %cst_211 = arith.constant 0.000000e+00 : f32
    %1047 = vector.broadcast %cst_211 : f32 to vector<32x8xf32>
    %1048 = arith.maximumf %1047, %804 : vector<32x8xf32>
    %1049 = vector.broadcast %1046 : vector<1x8xf32> to vector<32x8xf32>
    %1050 = arith.minimumf %1049, %1048 : vector<32x8xf32>
    %1051 = arith.fptosi %1050 : vector<32x8xf32> to vector<32x8xi32>
    %1052 = vector.broadcast %53 : vector<1x8xi32> to vector<32x8xi32>
    %1053 = arith.muli %1051, %1052 : vector<32x8xi32>
    %1054 = vector.broadcast %54 : vector<1x8xi32> to vector<32x8xi32>
    %1055 = arith.addi %1054, %1053 : vector<32x8xi32>
    %1056 = arith.addi %1055, %1044 : vector<32x8xi32>
    %1057 = arith.mulf %807, %1037 : vector<32x8xf32>
    %1058 = arith.mulf %1057, %769 : vector<32x8xf32>
    %1059 = vector.extract_strided_slice %1056 {offsets = [0, 0], sizes = [32, 1], strides = [1, 1]} : vector<32x8xi32> to vector<32x1xi32>
    %1060 = vector.broadcast %1059 : vector<32x1xi32> to vector<32x80xi32>
    %1061 = arith.cmpi eq, %1060, %234 : vector<32x80xi32>
    %1062 = arith.extui %1061 : vector<32x80xi1> to vector<32x80xi32>
    %1063 = arith.sitofp %1062 : vector<32x80xi32> to vector<32x80xf32>
    %1064 = vector.extract_strided_slice %1058 {offsets = [0, 0], sizes = [32, 1], strides = [1, 1]} : vector<32x8xf32> to vector<32x1xf32>
    %1065 = vector.broadcast %1064 : vector<32x1xf32> to vector<32x80xf32>
    %1066 = arith.mulf %1065, %1063 : vector<32x80xf32>
    %1067 = arith.addf %1024, %1066 : vector<32x80xf32>
    %1068 = vector.extract_strided_slice %1056 {offsets = [0, 1], sizes = [32, 1], strides = [1, 1]} : vector<32x8xi32> to vector<32x1xi32>
    %1069 = vector.broadcast %1068 : vector<32x1xi32> to vector<32x80xi32>
    %1070 = arith.cmpi eq, %1069, %234 : vector<32x80xi32>
    %1071 = arith.extui %1070 : vector<32x80xi1> to vector<32x80xi32>
    %1072 = arith.sitofp %1071 : vector<32x80xi32> to vector<32x80xf32>
    %1073 = vector.extract_strided_slice %1058 {offsets = [0, 1], sizes = [32, 1], strides = [1, 1]} : vector<32x8xf32> to vector<32x1xf32>
    %1074 = vector.broadcast %1073 : vector<32x1xf32> to vector<32x80xf32>
    %1075 = arith.mulf %1074, %1072 : vector<32x80xf32>
    %1076 = arith.addf %1067, %1075 : vector<32x80xf32>
    %1077 = vector.extract_strided_slice %1056 {offsets = [0, 2], sizes = [32, 1], strides = [1, 1]} : vector<32x8xi32> to vector<32x1xi32>
    %1078 = vector.broadcast %1077 : vector<32x1xi32> to vector<32x80xi32>
    %1079 = arith.cmpi eq, %1078, %234 : vector<32x80xi32>
    %1080 = arith.extui %1079 : vector<32x80xi1> to vector<32x80xi32>
    %1081 = arith.sitofp %1080 : vector<32x80xi32> to vector<32x80xf32>
    %1082 = vector.extract_strided_slice %1058 {offsets = [0, 2], sizes = [32, 1], strides = [1, 1]} : vector<32x8xf32> to vector<32x1xf32>
    %1083 = vector.broadcast %1082 : vector<32x1xf32> to vector<32x80xf32>
    %1084 = arith.mulf %1083, %1081 : vector<32x80xf32>
    %1085 = arith.addf %1076, %1084 : vector<32x80xf32>
    %1086 = vector.extract_strided_slice %1056 {offsets = [0, 3], sizes = [32, 1], strides = [1, 1]} : vector<32x8xi32> to vector<32x1xi32>
    %1087 = vector.broadcast %1086 : vector<32x1xi32> to vector<32x80xi32>
    %1088 = arith.cmpi eq, %1087, %234 : vector<32x80xi32>
    %1089 = arith.extui %1088 : vector<32x80xi1> to vector<32x80xi32>
    %1090 = arith.sitofp %1089 : vector<32x80xi32> to vector<32x80xf32>
    %1091 = vector.extract_strided_slice %1058 {offsets = [0, 3], sizes = [32, 1], strides = [1, 1]} : vector<32x8xf32> to vector<32x1xf32>
    %1092 = vector.broadcast %1091 : vector<32x1xf32> to vector<32x80xf32>
    %1093 = arith.mulf %1092, %1090 : vector<32x80xf32>
    %1094 = arith.addf %1085, %1093 : vector<32x80xf32>
    %1095 = vector.extract_strided_slice %1056 {offsets = [0, 4], sizes = [32, 1], strides = [1, 1]} : vector<32x8xi32> to vector<32x1xi32>
    %1096 = vector.broadcast %1095 : vector<32x1xi32> to vector<32x80xi32>
    %1097 = arith.cmpi eq, %1096, %234 : vector<32x80xi32>
    %1098 = arith.extui %1097 : vector<32x80xi1> to vector<32x80xi32>
    %1099 = arith.sitofp %1098 : vector<32x80xi32> to vector<32x80xf32>
    %1100 = vector.extract_strided_slice %1058 {offsets = [0, 4], sizes = [32, 1], strides = [1, 1]} : vector<32x8xf32> to vector<32x1xf32>
    %1101 = vector.broadcast %1100 : vector<32x1xf32> to vector<32x80xf32>
    %1102 = arith.mulf %1101, %1099 : vector<32x80xf32>
    %1103 = arith.addf %1094, %1102 : vector<32x80xf32>
    %1104 = vector.extract_strided_slice %1056 {offsets = [0, 5], sizes = [32, 1], strides = [1, 1]} : vector<32x8xi32> to vector<32x1xi32>
    %1105 = vector.broadcast %1104 : vector<32x1xi32> to vector<32x80xi32>
    %1106 = arith.cmpi eq, %1105, %234 : vector<32x80xi32>
    %1107 = arith.extui %1106 : vector<32x80xi1> to vector<32x80xi32>
    %1108 = arith.sitofp %1107 : vector<32x80xi32> to vector<32x80xf32>
    %1109 = vector.extract_strided_slice %1058 {offsets = [0, 5], sizes = [32, 1], strides = [1, 1]} : vector<32x8xf32> to vector<32x1xf32>
    %1110 = vector.broadcast %1109 : vector<32x1xf32> to vector<32x80xf32>
    %1111 = arith.mulf %1110, %1108 : vector<32x80xf32>
    %1112 = arith.addf %1103, %1111 : vector<32x80xf32>
    %1113 = vector.extract_strided_slice %1056 {offsets = [0, 6], sizes = [32, 1], strides = [1, 1]} : vector<32x8xi32> to vector<32x1xi32>
    %1114 = vector.broadcast %1113 : vector<32x1xi32> to vector<32x80xi32>
    %1115 = arith.cmpi eq, %1114, %234 : vector<32x80xi32>
    %1116 = arith.extui %1115 : vector<32x80xi1> to vector<32x80xi32>
    %1117 = arith.sitofp %1116 : vector<32x80xi32> to vector<32x80xf32>
    %1118 = vector.extract_strided_slice %1058 {offsets = [0, 6], sizes = [32, 1], strides = [1, 1]} : vector<32x8xf32> to vector<32x1xf32>
    %1119 = vector.broadcast %1118 : vector<32x1xf32> to vector<32x80xf32>
    %1120 = arith.mulf %1119, %1117 : vector<32x80xf32>
    %1121 = arith.addf %1112, %1120 : vector<32x80xf32>
    %1122 = vector.extract_strided_slice %1056 {offsets = [0, 7], sizes = [32, 1], strides = [1, 1]} : vector<32x8xi32> to vector<32x1xi32>
    %1123 = vector.broadcast %1122 : vector<32x1xi32> to vector<32x80xi32>
    %1124 = arith.cmpi eq, %1123, %234 : vector<32x80xi32>
    %1125 = arith.extui %1124 : vector<32x80xi1> to vector<32x80xi32>
    %1126 = arith.sitofp %1125 : vector<32x80xi32> to vector<32x80xf32>
    %1127 = vector.extract_strided_slice %1058 {offsets = [0, 7], sizes = [32, 1], strides = [1, 1]} : vector<32x8xf32> to vector<32x1xf32>
    %1128 = vector.broadcast %1127 : vector<32x1xf32> to vector<32x80xf32>
    %1129 = arith.mulf %1128, %1126 : vector<32x80xf32>
    %1130 = arith.addf %1121, %1129 : vector<32x80xf32>
    %cst_212 = arith.constant 0.000000e+00 : f32
    %1131 = vector.broadcast %cst_212 : f32 to vector<32x8xf32>
    %1132 = arith.cmpf oge, %809, %1131 : vector<32x8xf32>
    %1133 = vector.broadcast %51 : vector<1x8xf32> to vector<32x8xf32>
    %1134 = arith.cmpf olt, %809, %1133 : vector<32x8xf32>
    %1135 = arith.andi %1132, %1134 : vector<32x8xi1>
    %cst_213 = arith.constant 0.000000e+00 : f32
    %1136 = vector.broadcast %cst_213 : f32 to vector<32x8xf32>
    %1137 = arith.cmpf oge, %811, %1136 : vector<32x8xf32>
    %1138 = arith.andi %1135, %1137 : vector<32x8xi1>
    %1139 = vector.broadcast %52 : vector<1x8xf32> to vector<32x8xf32>
    %1140 = arith.cmpf olt, %811, %1139 : vector<32x8xf32>
    %1141 = arith.andi %1138, %1140 : vector<32x8xi1>
    %1142 = arith.extui %1141 : vector<32x8xi1> to vector<32x8xi32>
    %1143 = arith.sitofp %1142 : vector<32x8xi32> to vector<32x8xf32>
    %cst_214 = arith.constant 1.000000e+00 : f32
    %1144 = vector.broadcast %cst_214 : f32 to vector<1x8xf32>
    %1145 = arith.subf %51, %1144 : vector<1x8xf32>
    %cst_215 = arith.constant 0.000000e+00 : f32
    %1146 = vector.broadcast %cst_215 : f32 to vector<32x8xf32>
    %1147 = arith.maximumf %1146, %809 : vector<32x8xf32>
    %1148 = vector.broadcast %1145 : vector<1x8xf32> to vector<32x8xf32>
    %1149 = arith.minimumf %1148, %1147 : vector<32x8xf32>
    %1150 = arith.fptosi %1149 : vector<32x8xf32> to vector<32x8xi32>
    %cst_216 = arith.constant 1.000000e+00 : f32
    %1151 = vector.broadcast %cst_216 : f32 to vector<1x8xf32>
    %1152 = arith.subf %52, %1151 : vector<1x8xf32>
    %cst_217 = arith.constant 0.000000e+00 : f32
    %1153 = vector.broadcast %cst_217 : f32 to vector<32x8xf32>
    %1154 = arith.maximumf %1153, %811 : vector<32x8xf32>
    %1155 = vector.broadcast %1152 : vector<1x8xf32> to vector<32x8xf32>
    %1156 = arith.minimumf %1155, %1154 : vector<32x8xf32>
    %1157 = arith.fptosi %1156 : vector<32x8xf32> to vector<32x8xi32>
    %1158 = vector.broadcast %53 : vector<1x8xi32> to vector<32x8xi32>
    %1159 = arith.muli %1157, %1158 : vector<32x8xi32>
    %1160 = vector.broadcast %54 : vector<1x8xi32> to vector<32x8xi32>
    %1161 = arith.addi %1160, %1159 : vector<32x8xi32>
    %1162 = arith.addi %1161, %1150 : vector<32x8xi32>
    %1163 = arith.mulf %812, %1143 : vector<32x8xf32>
    %1164 = arith.mulf %1163, %769 : vector<32x8xf32>
    %1165 = vector.extract_strided_slice %1162 {offsets = [0, 0], sizes = [32, 1], strides = [1, 1]} : vector<32x8xi32> to vector<32x1xi32>
    %1166 = vector.broadcast %1165 : vector<32x1xi32> to vector<32x80xi32>
    %1167 = arith.cmpi eq, %1166, %234 : vector<32x80xi32>
    %1168 = arith.extui %1167 : vector<32x80xi1> to vector<32x80xi32>
    %1169 = arith.sitofp %1168 : vector<32x80xi32> to vector<32x80xf32>
    %1170 = vector.extract_strided_slice %1164 {offsets = [0, 0], sizes = [32, 1], strides = [1, 1]} : vector<32x8xf32> to vector<32x1xf32>
    %1171 = vector.broadcast %1170 : vector<32x1xf32> to vector<32x80xf32>
    %1172 = arith.mulf %1171, %1169 : vector<32x80xf32>
    %1173 = arith.addf %1130, %1172 : vector<32x80xf32>
    %1174 = vector.extract_strided_slice %1162 {offsets = [0, 1], sizes = [32, 1], strides = [1, 1]} : vector<32x8xi32> to vector<32x1xi32>
    %1175 = vector.broadcast %1174 : vector<32x1xi32> to vector<32x80xi32>
    %1176 = arith.cmpi eq, %1175, %234 : vector<32x80xi32>
    %1177 = arith.extui %1176 : vector<32x80xi1> to vector<32x80xi32>
    %1178 = arith.sitofp %1177 : vector<32x80xi32> to vector<32x80xf32>
    %1179 = vector.extract_strided_slice %1164 {offsets = [0, 1], sizes = [32, 1], strides = [1, 1]} : vector<32x8xf32> to vector<32x1xf32>
    %1180 = vector.broadcast %1179 : vector<32x1xf32> to vector<32x80xf32>
    %1181 = arith.mulf %1180, %1178 : vector<32x80xf32>
    %1182 = arith.addf %1173, %1181 : vector<32x80xf32>
    %1183 = vector.extract_strided_slice %1162 {offsets = [0, 2], sizes = [32, 1], strides = [1, 1]} : vector<32x8xi32> to vector<32x1xi32>
    %1184 = vector.broadcast %1183 : vector<32x1xi32> to vector<32x80xi32>
    %1185 = arith.cmpi eq, %1184, %234 : vector<32x80xi32>
    %1186 = arith.extui %1185 : vector<32x80xi1> to vector<32x80xi32>
    %1187 = arith.sitofp %1186 : vector<32x80xi32> to vector<32x80xf32>
    %1188 = vector.extract_strided_slice %1164 {offsets = [0, 2], sizes = [32, 1], strides = [1, 1]} : vector<32x8xf32> to vector<32x1xf32>
    %1189 = vector.broadcast %1188 : vector<32x1xf32> to vector<32x80xf32>
    %1190 = arith.mulf %1189, %1187 : vector<32x80xf32>
    %1191 = arith.addf %1182, %1190 : vector<32x80xf32>
    %1192 = vector.extract_strided_slice %1162 {offsets = [0, 3], sizes = [32, 1], strides = [1, 1]} : vector<32x8xi32> to vector<32x1xi32>
    %1193 = vector.broadcast %1192 : vector<32x1xi32> to vector<32x80xi32>
    %1194 = arith.cmpi eq, %1193, %234 : vector<32x80xi32>
    %1195 = arith.extui %1194 : vector<32x80xi1> to vector<32x80xi32>
    %1196 = arith.sitofp %1195 : vector<32x80xi32> to vector<32x80xf32>
    %1197 = vector.extract_strided_slice %1164 {offsets = [0, 3], sizes = [32, 1], strides = [1, 1]} : vector<32x8xf32> to vector<32x1xf32>
    %1198 = vector.broadcast %1197 : vector<32x1xf32> to vector<32x80xf32>
    %1199 = arith.mulf %1198, %1196 : vector<32x80xf32>
    %1200 = arith.addf %1191, %1199 : vector<32x80xf32>
    %1201 = vector.extract_strided_slice %1162 {offsets = [0, 4], sizes = [32, 1], strides = [1, 1]} : vector<32x8xi32> to vector<32x1xi32>
    %1202 = vector.broadcast %1201 : vector<32x1xi32> to vector<32x80xi32>
    %1203 = arith.cmpi eq, %1202, %234 : vector<32x80xi32>
    %1204 = arith.extui %1203 : vector<32x80xi1> to vector<32x80xi32>
    %1205 = arith.sitofp %1204 : vector<32x80xi32> to vector<32x80xf32>
    %1206 = vector.extract_strided_slice %1164 {offsets = [0, 4], sizes = [32, 1], strides = [1, 1]} : vector<32x8xf32> to vector<32x1xf32>
    %1207 = vector.broadcast %1206 : vector<32x1xf32> to vector<32x80xf32>
    %1208 = arith.mulf %1207, %1205 : vector<32x80xf32>
    %1209 = arith.addf %1200, %1208 : vector<32x80xf32>
    %1210 = vector.extract_strided_slice %1162 {offsets = [0, 5], sizes = [32, 1], strides = [1, 1]} : vector<32x8xi32> to vector<32x1xi32>
    %1211 = vector.broadcast %1210 : vector<32x1xi32> to vector<32x80xi32>
    %1212 = arith.cmpi eq, %1211, %234 : vector<32x80xi32>
    %1213 = arith.extui %1212 : vector<32x80xi1> to vector<32x80xi32>
    %1214 = arith.sitofp %1213 : vector<32x80xi32> to vector<32x80xf32>
    %1215 = vector.extract_strided_slice %1164 {offsets = [0, 5], sizes = [32, 1], strides = [1, 1]} : vector<32x8xf32> to vector<32x1xf32>
    %1216 = vector.broadcast %1215 : vector<32x1xf32> to vector<32x80xf32>
    %1217 = arith.mulf %1216, %1214 : vector<32x80xf32>
    %1218 = arith.addf %1209, %1217 : vector<32x80xf32>
    %1219 = vector.extract_strided_slice %1162 {offsets = [0, 6], sizes = [32, 1], strides = [1, 1]} : vector<32x8xi32> to vector<32x1xi32>
    %1220 = vector.broadcast %1219 : vector<32x1xi32> to vector<32x80xi32>
    %1221 = arith.cmpi eq, %1220, %234 : vector<32x80xi32>
    %1222 = arith.extui %1221 : vector<32x80xi1> to vector<32x80xi32>
    %1223 = arith.sitofp %1222 : vector<32x80xi32> to vector<32x80xf32>
    %1224 = vector.extract_strided_slice %1164 {offsets = [0, 6], sizes = [32, 1], strides = [1, 1]} : vector<32x8xf32> to vector<32x1xf32>
    %1225 = vector.broadcast %1224 : vector<32x1xf32> to vector<32x80xf32>
    %1226 = arith.mulf %1225, %1223 : vector<32x80xf32>
    %1227 = arith.addf %1218, %1226 : vector<32x80xf32>
    %1228 = vector.extract_strided_slice %1162 {offsets = [0, 7], sizes = [32, 1], strides = [1, 1]} : vector<32x8xi32> to vector<32x1xi32>
    %1229 = vector.broadcast %1228 : vector<32x1xi32> to vector<32x80xi32>
    %1230 = arith.cmpi eq, %1229, %234 : vector<32x80xi32>
    %1231 = arith.extui %1230 : vector<32x80xi1> to vector<32x80xi32>
    %1232 = arith.sitofp %1231 : vector<32x80xi32> to vector<32x80xf32>
    %1233 = vector.extract_strided_slice %1164 {offsets = [0, 7], sizes = [32, 1], strides = [1, 1]} : vector<32x8xf32> to vector<32x1xf32>
    %1234 = vector.broadcast %1233 : vector<32x1xf32> to vector<32x80xf32>
    %1235 = arith.mulf %1234, %1232 : vector<32x80xf32>
    %1236 = arith.addf %1227, %1235 : vector<32x80xf32>
    %cst_218 = arith.constant dense<0.000000e+00> : vector<32x32xf32>
    %1237 = tpu.matmul %1236, %745, %cst_218 {dimension_numbers = #tpu.dot_dimension_numbers<[1], [0], [0], [1], [0, 0, 1, 1], [], []>} : vector<32x80xf32>, vector<80x32xf32>, vector<32x32xf32> -> vector<32x32xf32>
    %1238 = vector.extract_strided_slice %1237 {offsets = [0, 0], sizes = [8, 8], strides = [1, 1]} : vector<32x32xf32> to vector<8x8xf32>
    %1239 = vector.extract_strided_slice %1237 {offsets = [8, 8], sizes = [8, 8], strides = [1, 1]} : vector<32x32xf32> to vector<8x8xf32>
    %1240 = vector.extract_strided_slice %1237 {offsets = [16, 16], sizes = [8, 8], strides = [1, 1]} : vector<32x32xf32> to vector<8x8xf32>
    %1241 = vector.extract_strided_slice %1237 {offsets = [24, 24], sizes = [8, 8], strides = [1, 1]} : vector<32x32xf32> to vector<8x8xf32>
    %1242 = tpu.concatenate %1238, %1239, %1240, %1241 in 1 : vector<8x8xf32>, vector<8x8xf32>, vector<8x8xf32>, vector<8x8xf32> -> vector<8x32xf32>
    %1243 = tpu.concatenate %738, %1242 in 0 : vector<8x32xf32>, vector<8x32xf32> -> vector<16x32xf32>
    %cst_219 = arith.constant dense<0.000000e+00> : vector<16x32xf32>
    %1244 = tpu.matmul %1243, %30, %cst_219 {dimension_numbers = #tpu.dot_dimension_numbers<[1], [0], [0], [1], [0, 0, 1, 1], [], []>} : vector<16x32xf32>, vector<32x32xf32>, vector<16x32xf32> -> vector<16x32xf32>
    %1245 = vector.broadcast %32 : vector<1x32xf32> to vector<16x32xf32>
    %1246 = arith.addf %1244, %1245 : vector<16x32xf32>
    %1247 = arith.addf %226, %1246 : vector<16x32xf32>
    %cst_220 = arith.constant dense<0.000000e+00> : vector<16xf32>
    %1248 = vector.multi_reduction <add>, %1247, %cst_220 [1] : vector<16x32xf32> to vector<16xf32>
    %1249 = vector.shape_cast %1248 : vector<16xf32> to vector<16x1xf32>
    %cst_221 = arith.constant 3.200000e+01 : f32
    %1250 = vector.broadcast %cst_221 : f32 to vector<16x1xf32>
    %1251 = arith.divf %1249, %1250 : vector<16x1xf32>
    %1252 = vector.broadcast %1251 : vector<16x1xf32> to vector<16x32xf32>
    %1253 = arith.subf %1247, %1252 : vector<16x32xf32>
    %1254 = arith.mulf %1253, %1253 : vector<16x32xf32>
    %cst_222 = arith.constant dense<0.000000e+00> : vector<16xf32>
    %1255 = vector.multi_reduction <add>, %1254, %cst_222 [1] : vector<16x32xf32> to vector<16xf32>
    %1256 = vector.shape_cast %1255 : vector<16xf32> to vector<16x1xf32>
    %cst_223 = arith.constant 3.200000e+01 : f32
    %1257 = vector.broadcast %cst_223 : f32 to vector<16x1xf32>
    %1258 = arith.divf %1256, %1257 : vector<16x1xf32>
    %1259 = vector.broadcast %1251 : vector<16x1xf32> to vector<16x32xf32>
    %1260 = arith.subf %1247, %1259 : vector<16x32xf32>
    %cst_224 = arith.constant 9.99999974E-6 : f32
    %1261 = vector.broadcast %cst_224 : f32 to vector<16x1xf32>
    %1262 = arith.addf %1258, %1261 : vector<16x1xf32>
    %1263 = math.rsqrt %1262 : vector<16x1xf32>
    %1264 = vector.broadcast %1263 : vector<16x1xf32> to vector<16x32xf32>
    %1265 = arith.mulf %1260, %1264 : vector<16x32xf32>
    %1266 = vector.broadcast %34 : vector<1x32xf32> to vector<16x32xf32>
    %1267 = arith.mulf %1265, %1266 : vector<16x32xf32>
    %1268 = vector.broadcast %36 : vector<1x32xf32> to vector<16x32xf32>
    %1269 = arith.addf %1267, %1268 : vector<16x32xf32>
    %cst_225 = arith.constant dense<0.000000e+00> : vector<16x64xf32>
    %1270 = tpu.matmul %1269, %38, %cst_225 {dimension_numbers = #tpu.dot_dimension_numbers<[1], [0], [0], [1], [0, 0, 1, 1], [], []>} : vector<16x32xf32>, vector<32x64xf32>, vector<16x64xf32> -> vector<16x64xf32>
    %1271 = vector.broadcast %40 : vector<1x64xf32> to vector<16x64xf32>
    %1272 = arith.addf %1270, %1271 : vector<16x64xf32>
    %cst_226 = arith.constant 0.000000e+00 : f32
    %1273 = vector.broadcast %cst_226 : f32 to vector<16x64xf32>
    %1274 = arith.maximumf %1272, %1273 : vector<16x64xf32>
    %cst_227 = arith.constant dense<0.000000e+00> : vector<16x32xf32>
    %1275 = tpu.matmul %1274, %42, %cst_227 {dimension_numbers = #tpu.dot_dimension_numbers<[1], [0], [0], [1], [0, 0, 1, 1], [], []>} : vector<16x64xf32>, vector<64x32xf32>, vector<16x32xf32> -> vector<16x32xf32>
    %1276 = vector.broadcast %44 : vector<1x32xf32> to vector<16x32xf32>
    %1277 = arith.addf %1275, %1276 : vector<16x32xf32>
    %1278 = arith.addf %1269, %1277 : vector<16x32xf32>
    %cst_228 = arith.constant dense<0.000000e+00> : vector<16xf32>
    %1279 = vector.multi_reduction <add>, %1278, %cst_228 [1] : vector<16x32xf32> to vector<16xf32>
    %1280 = vector.shape_cast %1279 : vector<16xf32> to vector<16x1xf32>
    %cst_229 = arith.constant 3.200000e+01 : f32
    %1281 = vector.broadcast %cst_229 : f32 to vector<16x1xf32>
    %1282 = arith.divf %1280, %1281 : vector<16x1xf32>
    %1283 = vector.broadcast %1282 : vector<16x1xf32> to vector<16x32xf32>
    %1284 = arith.subf %1278, %1283 : vector<16x32xf32>
    %1285 = arith.mulf %1284, %1284 : vector<16x32xf32>
    %cst_230 = arith.constant dense<0.000000e+00> : vector<16xf32>
    %1286 = vector.multi_reduction <add>, %1285, %cst_230 [1] : vector<16x32xf32> to vector<16xf32>
    %1287 = vector.shape_cast %1286 : vector<16xf32> to vector<16x1xf32>
    %cst_231 = arith.constant 3.200000e+01 : f32
    %1288 = vector.broadcast %cst_231 : f32 to vector<16x1xf32>
    %1289 = arith.divf %1287, %1288 : vector<16x1xf32>
    %1290 = vector.broadcast %1282 : vector<16x1xf32> to vector<16x32xf32>
    %1291 = arith.subf %1278, %1290 : vector<16x32xf32>
    %cst_232 = arith.constant 9.99999974E-6 : f32
    %1292 = vector.broadcast %cst_232 : f32 to vector<16x1xf32>
    %1293 = arith.addf %1289, %1292 : vector<16x1xf32>
    %1294 = math.rsqrt %1293 : vector<16x1xf32>
    %1295 = vector.broadcast %1294 : vector<16x1xf32> to vector<16x32xf32>
    %1296 = arith.mulf %1291, %1295 : vector<16x32xf32>
    %1297 = vector.broadcast %46 : vector<1x32xf32> to vector<16x32xf32>
    %1298 = arith.mulf %1296, %1297 : vector<16x32xf32>
    %1299 = vector.broadcast %48 : vector<1x32xf32> to vector<16x32xf32>
    %1300 = arith.addf %1298, %1299 : vector<16x32xf32>
    %c0_233 = arith.constant 0 : index
    %c0_234 = arith.constant 0 : index
    %1301 = vector.load %arg32[%c0_233, %c0_234] : memref<16x32xf32, #tpu.memory_space<vmem>>, vector<16x32xf32>
    tpu.vector_store %arg32[%c0_233, %c0_234], %1300 {strides = array<i32>} : memref<16x32xf32, #tpu.memory_space<vmem>>, vector<16x32xf32>,
    %c0_235 = arith.constant 0 : index
    %c0_236 = arith.constant 0 : index
    %1302 = vector.load %arg31[%c0_235, %c0_236] : memref<16x32xf32, #tpu.memory_space<vmem>>, vector<16x32xf32>
    tpu.vector_store %arg31[%c0_235, %c0_236], %1300 {strides = array<i32>} : memref<16x32xf32, #tpu.memory_space<vmem>>, vector<16x32xf32>,
    return
  }
  func.func @transform_0(%arg0: i32) -> (i32, i32) {
    %c0_i32 = arith.constant 0 : i32
    %c0_i32_0 = arith.constant 0 : i32
    %c0_i32_1 = arith.constant 0 : i32
    return %c0_i32, %c0_i32_0 : i32, i32
  }
  func.func @transform_1(%arg0: i32) -> (i32, i32) {
    %c0_i32 = arith.constant 0 : i32
    %c0_i32_0 = arith.constant 0 : i32
    %c0_i32_1 = arith.constant 0 : i32
    return %c0_i32, %c0_i32_0 : i32, i32
  }
  func.func @transform_2(%arg0: i32) -> (i32, i32) {
    %c0_i32 = arith.constant 0 : i32
    %c0_i32_0 = arith.constant 0 : i32
    %c0_i32_1 = arith.constant 0 : i32
    return %c0_i32, %c0_i32_0 : i32, i32
  }
  func.func @transform_3(%arg0: i32) -> (i32, i32) {
    %c0_i32 = arith.constant 0 : i32
    %c0_i32_0 = arith.constant 0 : i32
    %c0_i32_1 = arith.constant 0 : i32
    return %c0_i32, %c0_i32_0 : i32, i32
  }
  func.func @transform_4(%arg0: i32) -> (i32, i32) {
    %c0_i32 = arith.constant 0 : i32
    %c0_i32_0 = arith.constant 0 : i32
    %c0_i32_1 = arith.constant 0 : i32
    return %c0_i32, %c0_i32_0 : i32, i32
  }
  func.func @transform_5(%arg0: i32) -> (i32, i32) {
    %c0_i32 = arith.constant 0 : i32
    %c0_i32_0 = arith.constant 0 : i32
    %c0_i32_1 = arith.constant 0 : i32
    return %c0_i32, %c0_i32_0 : i32, i32
  }
  func.func @transform_6(%arg0: i32) -> (i32, i32) {
    %c0_i32 = arith.constant 0 : i32
    %c0_i32_0 = arith.constant 0 : i32
    %c0_i32_1 = arith.constant 0 : i32
    return %c0_i32, %c0_i32_0 : i32, i32
  }
  func.func @transform_7(%arg0: i32) -> (i32, i32) {
    %c0_i32 = arith.constant 0 : i32
    %c0_i32_0 = arith.constant 0 : i32
    %c0_i32_1 = arith.constant 0 : i32
    return %c0_i32, %c0_i32_0 : i32, i32
  }
  func.func @transform_8(%arg0: i32) -> (i32, i32, i32) {
    %c0_i32 = arith.constant 0 : i32
    %c0_i32_0 = arith.constant 0 : i32
    %c0_i32_1 = arith.constant 0 : i32
    return %arg0, %c0_i32, %c0_i32_0 : i32, i32, i32
  }
  func.func @transform_9(%arg0: i32) -> (i32, i32, i32) {
    %c0_i32 = arith.constant 0 : i32
    %c0_i32_0 = arith.constant 0 : i32
    %c0_i32_1 = arith.constant 0 : i32
    return %arg0, %c0_i32, %c0_i32_0 : i32, i32, i32
  }
  func.func @transform_10(%arg0: i32) -> (i32, i32, i32) {
    %c0_i32 = arith.constant 0 : i32
    %c0_i32_0 = arith.constant 0 : i32
    %c0_i32_1 = arith.constant 0 : i32
    return %arg0, %c0_i32, %c0_i32_0 : i32, i32, i32
  }
  func.func @transform_11(%arg0: i32) -> (i32, i32, i32) {
    %c0_i32 = arith.constant 0 : i32
    %c0_i32_0 = arith.constant 0 : i32
    %c0_i32_1 = arith.constant 0 : i32
    return %arg0, %c0_i32, %c0_i32_0 : i32, i32, i32
  }
  func.func @transform_12(%arg0: i32) -> (i32, i32, i32) {
    %c0_i32 = arith.constant 0 : i32
    %c0_i32_0 = arith.constant 0 : i32
    %c0_i32_1 = arith.constant 0 : i32
    return %arg0, %c0_i32, %c0_i32_0 : i32, i32, i32
  }
  func.func @transform_13(%arg0: i32) -> (i32, i32, i32) {
    %c0_i32 = arith.constant 0 : i32
    %c0_i32_0 = arith.constant 0 : i32
    %c0_i32_1 = arith.constant 0 : i32
    return %arg0, %c0_i32, %c0_i32_0 : i32, i32, i32
  }
  func.func @transform_14(%arg0: i32) -> (i32, i32, i32) {
    %c0_i32 = arith.constant 0 : i32
    %c0_i32_0 = arith.constant 0 : i32
    %c0_i32_1 = arith.constant 0 : i32
    return %arg0, %c0_i32, %c0_i32_0 : i32, i32, i32
  }
  func.func @transform_15(%arg0: i32) -> (i32, i32, i32) {
    %c0_i32 = arith.constant 0 : i32
    %c0_i32_0 = arith.constant 0 : i32
    %c0_i32_1 = arith.constant 0 : i32
    return %arg0, %c0_i32, %c0_i32_0 : i32, i32, i32
  }
  func.func @transform_16(%arg0: i32) -> (i32, i32, i32) {
    %c0_i32 = arith.constant 0 : i32
    %c0_i32_0 = arith.constant 0 : i32
    %c0_i32_1 = arith.constant 0 : i32
    return %arg0, %c0_i32, %c0_i32_0 : i32, i32, i32
  }
  func.func @transform_17(%arg0: i32) -> (i32, i32, i32) {
    %c0_i32 = arith.constant 0 : i32
    %c0_i32_0 = arith.constant 0 : i32
    %c0_i32_1 = arith.constant 0 : i32
    return %arg0, %c0_i32, %c0_i32_0 : i32, i32, i32
  }
  func.func @transform_18(%arg0: i32) -> (i32, i32, i32) {
    %c0_i32 = arith.constant 0 : i32
    %c0_i32_0 = arith.constant 0 : i32
    %c0_i32_1 = arith.constant 0 : i32
    return %arg0, %c0_i32, %c0_i32_0 : i32, i32, i32
  }
  func.func @transform_19(%arg0: i32) -> (i32, i32, i32) {
    %c0_i32 = arith.constant 0 : i32
    %c0_i32_0 = arith.constant 0 : i32
    %c0_i32_1 = arith.constant 0 : i32
    return %arg0, %c0_i32, %c0_i32_0 : i32, i32, i32
  }
  func.func @transform_20(%arg0: i32) -> (i32, i32, i32) {
    %c0_i32 = arith.constant 0 : i32
    %c0_i32_0 = arith.constant 0 : i32
    %c0_i32_1 = arith.constant 0 : i32
    return %arg0, %c0_i32, %c0_i32_0 : i32, i32, i32
  }
  func.func @transform_21(%arg0: i32) -> (i32, i32, i32) {
    %c0_i32 = arith.constant 0 : i32
    %c0_i32_0 = arith.constant 0 : i32
    %c0_i32_1 = arith.constant 0 : i32
    return %arg0, %c0_i32, %c0_i32_0 : i32, i32, i32
  }
  func.func @transform_22(%arg0: i32) -> (i32, i32, i32) {
    %c0_i32 = arith.constant 0 : i32
    %c0_i32_0 = arith.constant 0 : i32
    %c0_i32_1 = arith.constant 0 : i32
    return %arg0, %c0_i32, %c0_i32_0 : i32, i32, i32
  }
  func.func @transform_23(%arg0: i32) -> (i32, i32, i32) {
    %c0_i32 = arith.constant 0 : i32
    %c0_i32_0 = arith.constant 0 : i32
    %c0_i32_1 = arith.constant 0 : i32
    return %arg0, %c0_i32, %c0_i32_0 : i32, i32, i32
  }
  func.func @transform_24(%arg0: i32) -> (i32, i32, i32) {
    %c0_i32 = arith.constant 0 : i32
    %c0_i32_0 = arith.constant 0 : i32
    %c0_i32_1 = arith.constant 0 : i32
    return %arg0, %c0_i32, %c0_i32_0 : i32, i32, i32
  }
  func.func @transform_25(%arg0: i32) -> (i32, i32, i32) {
    %c0_i32 = arith.constant 0 : i32
    %c0_i32_0 = arith.constant 0 : i32
    %c0_i32_1 = arith.constant 0 : i32
    return %arg0, %c0_i32, %c0_i32_0 : i32, i32, i32
  }
  func.func @transform_26(%arg0: i32) -> (i32, i32, i32) {
    %c0_i32 = arith.constant 0 : i32
    %c0_i32_0 = arith.constant 0 : i32
    %c0_i32_1 = arith.constant 0 : i32
    return %arg0, %c0_i32, %c0_i32_0 : i32, i32, i32
  }
  func.func @transform_27(%arg0: i32) -> (i32, i32, i32) {
    %c0_i32 = arith.constant 0 : i32
    %c0_i32_0 = arith.constant 0 : i32
    %c0_i32_1 = arith.constant 0 : i32
    return %arg0, %c0_i32, %c0_i32_0 : i32, i32, i32
  }
  func.func @transform_28(%arg0: i32) -> (i32, i32, i32) {
    %c0_i32 = arith.constant 0 : i32
    %c0_i32_0 = arith.constant 0 : i32
    %c0_i32_1 = arith.constant 0 : i32
    return %arg0, %c0_i32, %c0_i32_0 : i32, i32, i32
  }
  func.func @transform_29(%arg0: i32) -> (i32, i32, i32) {
    %c0_i32 = arith.constant 0 : i32
    %c0_i32_0 = arith.constant 0 : i32
    %c0_i32_1 = arith.constant 0 : i32
    return %arg0, %c0_i32, %c0_i32_0 : i32, i32, i32
  }
  func.func @transform_30(%arg0: i32) -> (i32, i32) {
    %c0_i32 = arith.constant 0 : i32
    %c0_i32_0 = arith.constant 0 : i32
    %c0_i32_1 = arith.constant 0 : i32
    return %c0_i32, %c0_i32_0 : i32, i32
  }
}

</mosaic_0001>

<llo_original>
// kernel: tpu_custom_call.1
$region0: #{tpu_custom_call.1}
  #allocation0 [shape = 'u32[]', space=smem, size = 0x4, offset = 0x4, fixed_abs, tag = 'smem constant byte address 0x4 - core index']
  #allocation1 [shape = 'u32[144,128]{1,0:T(1,128)}', space=vmem, size = 0x12000, scoped, tag = 'internal scratch']
  #allocation2 [shape = 'f32[16,32]{1,0:T(8,128)}', space=vmem, size = 0x2000, scoped, tag = 'scratch operand']
  %s0 = inlined_call_operand.smem [shape: u32[31], index: -1, kind: input, shape index: {}]
  %s1 = sld [smem:[%s0]]
  %s2 = scalar_lea.smem %s0, 1
  %s3 = sld [smem:[%s2]]
  %s4 = scalar_lea.smem %s0, 2
  %s5 = sld [smem:[%s4]]
  %s6 = scalar_lea.smem %s0, 3
  %s7 = sld [smem:[%s6]]
  %s8 = scalar_lea.smem %s0, 4
  %s9 = sld [smem:[%s8]]
  %s10 = scalar_lea.smem %s0, 5
  %s11 = sld [smem:[%s10]]
  %s12 = scalar_lea.smem %s0, 6
  %s13 = sld [smem:[%s12]]
  %s14 = scalar_lea.smem %s0, 7
  %s15 = sld [smem:[%s14]]
  %s16 = scalar_lea.smem %s0, 8
  %s17 = sld [smem:[%s16]]
  %s18 = scalar_lea.smem %s0, 9
  %s19 = sld [smem:[%s18]]
  %s20 = scalar_lea.smem %s0, 10
  %s21 = sld [smem:[%s20]]
  %s22 = scalar_lea.smem %s0, 11
  %s23 = sld [smem:[%s22]]
  %s24 = scalar_lea.smem %s0, 12
  %s25 = sld [smem:[%s24]]
  %s26 = scalar_lea.smem %s0, 13
  %s27 = sld [smem:[%s26]]
  %s28 = scalar_lea.smem %s0, 14
  %s29 = sld [smem:[%s28]]
  %s30 = scalar_lea.smem %s0, 15
  %s31 = sld [smem:[%s30]]
  %s32 = scalar_lea.smem %s0, 16
  %s33 = sld [smem:[%s32]]
  %s34 = scalar_lea.smem %s0, 17
  %s35 = sld [smem:[%s34]]
  %s36 = scalar_lea.smem %s0, 18
  %s37 = sld [smem:[%s36]]
  %s38 = scalar_lea.smem %s0, 19
  %s39 = sld [smem:[%s38]]
  %s40 = scalar_lea.smem %s0, 20
  %s41 = sld [smem:[%s40]]
  %s42 = scalar_lea.smem %s0, 21
  %s43 = sld [smem:[%s42]]
  %s44 = scalar_lea.smem %s0, 22
  %s45 = sld [smem:[%s44]]
  %s46 = scalar_lea.smem %s0, 23
  %s47 = sld [smem:[%s46]]
  %s48 = scalar_lea.smem %s0, 24
  %s49 = sld [smem:[%s48]]
  %s50 = scalar_lea.smem %s0, 25
  %s51 = sld [smem:[%s50]]
  %s52 = scalar_lea.smem %s0, 26
  %s53 = sld [smem:[%s52]]
  %s54 = scalar_lea.smem %s0, 27
  %s55 = sld [smem:[%s54]]
  %s56 = scalar_lea.smem %s0, 28
  %s57 = sld [smem:[%s56]]
  %s58 = scalar_lea.smem %s0, 29
  %s59 = sld [smem:[%s58]]
  %s60 = scalar_lea.smem %s0, 30
  %s61 = sld [smem:[%s60]]
  %s62 = sld [smem:[#allocation0]]
  $region161: #{tpu_custom_call.1} parent=0
    _
  %s64 = ssub.s32 1, %s62
  %s65 = scalar_select 0, %s64, %s62
  $region1: #{tpu_custom_call.1} parent=0
    #allocation3 [shape = 'u8[8192]{0}', space=vmem, size = 0x2000, scoped, tag = 'input window, operand 0, single buffered']
    #allocation4 [shape = 's32[2]{0}', space=sflag, size = 0x8, scoped, tag = 'scoped memory for tpu_custom_call.1']
    #allocation5 [shape = 's32[2]{0}', space=sflag, size = 0x8, scoped, tag = 'scoped memory for tpu_custom_call.1']
    #allocation6 [shape = 'u8[8192]{0}', space=vmem, size = 0x2000, scoped, tag = 'output window, operand 0, single buffered']
    %66 = vsyncpa [#allocation4], 0
    %67 = vsyncpa [#allocation5], 0
    loop: start=0, step=1, limit=4
    $region2: #{tpu_custom_call.1} parent=1 // loop_pre_header
      _
    $region3: #{tpu_custom_call.1} parent=1 // loop_header
      %s69 = sphi 0, %s73
      %p70 = scmp.ge.s32.totalorder %s69, 4
      %s77 = sphi 0, %s77
      %s79 = sphi 0, %s77
      %s80 = sphi 0, %s79
      %s94 = sphi 0, %s80
      %s98 = sphi 0, %s98
      %s100 = sphi 0, %s98
      %s101 = sphi 0, %s100
      %s115 = sphi 0, %s101
      %s119 = sphi 0, %s119
      %s121 = sphi 0, %s119
      %s122 = sphi 0, %s121
      %s136 = sphi 0, %s122
      %s140 = sphi 0, %s140
      %s142 = sphi 0, %s140
      %s143 = sphi 0, %s142
      %s157 = sphi 0, %s143
      %s161 = sphi 0, %s161
      %s163 = sphi 0, %s161
      %s164 = sphi 0, %s163
      %s178 = sphi 0, %s164
      %s182 = sphi 0, %s182
      %s184 = sphi 0, %s182
      %s185 = sphi 0, %s184
      %s199 = sphi 0, %s185
      %s203 = sphi 0, %s203
      %s205 = sphi 0, %s203
      %s206 = sphi 0, %s205
      %s220 = sphi 0, %s206
      %s224 = sphi 0, %s224
      %s226 = sphi 0, %s224
      %s227 = sphi 0, %s226
      %s241 = sphi 0, %s227
      %s247 = sphi 0, %s249
      %s250 = sphi 0, %s247
      %s251 = sphi 0, %s250
      %s267 = sphi 0, %s251
      %s273 = sphi 0, %s275
      %s276 = sphi 0, %s273
      %s277 = sphi 0, %s276
      %s293 = sphi 0, %s277
      %s299 = sphi 0, %s301
      %s302 = sphi 0, %s299
      %s303 = sphi 0, %s302
      %s319 = sphi 0, %s303
      %s325 = sphi 0, %s327
      %s328 = sphi 0, %s325
      %s329 = sphi 0, %s328
      %s345 = sphi 0, %s329
      %s351 = sphi 0, %s353
      %s354 = sphi 0, %s351
      %s355 = sphi 0, %s354
      %s371 = sphi 0, %s355
      %s377 = sphi 0, %s379
      %s380 = sphi 0, %s377
      %s381 = sphi 0, %s380
      %s397 = sphi 0, %s381
      %s403 = sphi 0, %s405
      %s406 = sphi 0, %s403
      %s407 = sphi 0, %s406
      %s423 = sphi 0, %s407
      %s429 = sphi 0, %s431
      %s432 = sphi 0, %s429
      %s433 = sphi 0, %s432
      %s449 = sphi 0, %s433
      %s455 = sphi 0, %s457
      %s458 = sphi 0, %s455
      %s459 = sphi 0, %s458
      %s475 = sphi 0, %s459
      %s481 = sphi 0, %s483
      %s484 = sphi 0, %s481
      %s485 = sphi 0, %s484
      %s501 = sphi 0, %s485
      %s507 = sphi 0, %s509
      %s510 = sphi 0, %s507
      %s511 = sphi 0, %s510
      %s527 = sphi 0, %s511
      %s533 = sphi 0, %s535
      %s536 = sphi 0, %s533
      %s537 = sphi 0, %s536
      %s553 = sphi 0, %s537
      %s559 = sphi 0, %s561
      %s562 = sphi 0, %s559
      %s563 = sphi 0, %s562
      %s579 = sphi 0, %s563
      %s585 = sphi 0, %s587
      %s588 = sphi 0, %s585
      %s589 = sphi 0, %s588
      %s605 = sphi 0, %s589
      %s611 = sphi 0, %s613
      %s614 = sphi 0, %s611
      %s615 = sphi 0, %s614
      %s631 = sphi 0, %s615
      %s637 = sphi 0, %s639
      %s640 = sphi 0, %s637
      %s641 = sphi 0, %s640
      %s657 = sphi 0, %s641
      %s663 = sphi 0, %s665
      %s666 = sphi 0, %s663
      %s667 = sphi 0, %s666
      %s683 = sphi 0, %s667
      %s689 = sphi 0, %s691
      %s692 = sphi 0, %s689
      %s693 = sphi 0, %s692
      %s709 = sphi 0, %s693
      %s715 = sphi 0, %s717
      %s718 = sphi 0, %s715
      %s719 = sphi 0, %s718
      %s735 = sphi 0, %s719
      %s741 = sphi 0, %s743
      %s744 = sphi 0, %s741
      %s745 = sphi 0, %s744
      %s761 = sphi 0, %s745
      %s767 = sphi 0, %s769
      %s770 = sphi 0, %s767
      %s771 = sphi 0, %s770
      %s787 = sphi 0, %s771
      %s793 = sphi 0, %s795
      %s796 = sphi 0, %s793
      %s797 = sphi 0, %s796
      %s813 = sphi 0, %s797
      %s817 = sphi 0, %s817
      %s819 = sphi 0, %s817
      %s820 = sphi 0, %s819
      %s834 = sphi 0, %s820
    $region4: #{tpu_custom_call.1} parent=1 // loop_header_branch
      %72 = sbr.rel (%p70) target = $region8
    $region5: #{tpu_custom_call.1} parent=1 // loop_body
      %s74 = ssub.s32 %s69, 1
      %s75 = ssub.s32 %s69, 2
      %s76 = sadd.s32 %s69, 1
      %s78 = sadd.s32 %s77, 1
      %p81 = scmp.eq.s32.totalorder %s69, 1
      %p82 = scmp.ne.s32.totalorder %s77, %s79
      %p83 = scmp.eq.s32.totalorder %s69, 0
      %p84 = por %p82, %p83
      %p85 = scmp.ne.s32.totalorder %s77, %s79
      %p86 = scmp.eq.s32.totalorder %s74, 1
      %p87 = por %p85, %p86
      %p88 = scmp.ne.s32.totalorder %s79, %s80
      %p89 = scmp.eq.s32.totalorder %s74, 0
      %p90 = por %p88, %p89
      %p91 = scmp.ne.s32.totalorder %s79, %s80
      %p92 = scmp.eq.s32.totalorder %s75, 1
      %p93 = por %p91, %p92
      %p95 = scmp.ne.s32.totalorder %s80, %s94
      %p96 = scmp.eq.s32.totalorder %s75, 0
      %p97 = por %p95, %p96
      %s99 = sadd.s32 %s98, 1
      %p102 = scmp.eq.s32.totalorder %s69, 1
      %p103 = scmp.ne.s32.totalorder %s98, %s100
      %p104 = scmp.eq.s32.totalorder %s69, 0
      %p105 = por %p103, %p104
      %p106 = scmp.ne.s32.totalorder %s98, %s100
      %p107 = scmp.eq.s32.totalorder %s74, 1
      %p108 = por %p106, %p107
      %p109 = scmp.ne.s32.totalorder %s100, %s101
      %p110 = scmp.eq.s32.totalorder %s74, 0
      %p111 = por %p109, %p110
      %p112 = scmp.ne.s32.totalorder %s100, %s101
      %p113 = scmp.eq.s32.totalorder %s75, 1
      %p114 = por %p112, %p113
      %p116 = scmp.ne.s32.totalorder %s101, %s115
      %p117 = scmp.eq.s32.totalorder %s75, 0
      %p118 = por %p116, %p117
      %s120 = sadd.s32 %s119, 1
      %p123 = scmp.eq.s32.totalorder %s69, 1
      %p124 = scmp.ne.s32.totalorder %s119, %s121
      %p125 = scmp.eq.s32.totalorder %s69, 0
      %p126 = por %p124, %p125
      %p127 = scmp.ne.s32.totalorder %s119, %s121
      %p128 = scmp.eq.s32.totalorder %s74, 1
      %p129 = por %p127, %p128
      %p130 = scmp.ne.s32.totalorder %s121, %s122
      %p131 = scmp.eq.s32.totalorder %s74, 0
      %p132 = por %p130, %p131
      %p133 = scmp.ne.s32.totalorder %s121, %s122
      %p134 = scmp.eq.s32.totalorder %s75, 1
      %p135 = por %p133, %p134
      %p137 = scmp.ne.s32.totalorder %s122, %s136
      %p138 = scmp.eq.s32.totalorder %s75, 0
      %p139 = por %p137, %p138
      %s141 = sadd.s32 %s140, 1
      %p144 = scmp.eq.s32.totalorder %s69, 1
      %p145 = scmp.ne.s32.totalorder %s140, %s142
      %p146 = scmp.eq.s32.totalorder %s69, 0
      %p147 = por %p145, %p146
      %p148 = scmp.ne.s32.totalorder %s140, %s142
      %p149 = scmp.eq.s32.totalorder %s74, 1
      %p150 = por %p148, %p149
      %p151 = scmp.ne.s32.totalorder %s142, %s143
      %p152 = scmp.eq.s32.totalorder %s74, 0
      %p153 = por %p151, %p152
      %p154 = scmp.ne.s32.totalorder %s142, %s143
      %p155 = scmp.eq.s32.totalorder %s75, 1
      %p156 = por %p154, %p155
      %p158 = scmp.ne.s32.totalorder %s143, %s157
      %p159 = scmp.eq.s32.totalorder %s75, 0
      %p160 = por %p158, %p159
      %s162 = sadd.s32 %s161, 1
      %p165 = scmp.eq.s32.totalorder %s69, 1
      %p166 = scmp.ne.s32.totalorder %s161, %s163
      %p167 = scmp.eq.s32.totalorder %s69, 0
      %p168 = por %p166, %p167
      %p169 = scmp.ne.s32.totalorder %s161, %s163
      %p170 = scmp.eq.s32.totalorder %s74, 1
      %p171 = por %p169, %p170
      %p172 = scmp.ne.s32.totalorder %s163, %s164
      %p173 = scmp.eq.s32.totalorder %s74, 0
      %p174 = por %p172, %p173
      %p175 = scmp.ne.s32.totalorder %s163, %s164
      %p176 = scmp.eq.s32.totalorder %s75, 1
      %p177 = por %p175, %p176
      %p179 = scmp.ne.s32.totalorder %s164, %s178
      %p180 = scmp.eq.s32.totalorder %s75, 0
      %p181 = por %p179, %p180
      %s183 = sadd.s32 %s182, 1
      %p186 = scmp.eq.s32.totalorder %s69, 1
      %p187 = scmp.ne.s32.totalorder %s182, %s184
      %p188 = scmp.eq.s32.totalorder %s69, 0
      %p189 = por %p187, %p188
      %p190 = scmp.ne.s32.totalorder %s182, %s184
      %p191 = scmp.eq.s32.totalorder %s74, 1
      %p192 = por %p190, %p191
      %p193 = scmp.ne.s32.totalorder %s184, %s185
      %p194 = scmp.eq.s32.totalorder %s74, 0
      %p195 = por %p193, %p194
      %p196 = scmp.ne.s32.totalorder %s184, %s185
      %p197 = scmp.eq.s32.totalorder %s75, 1
      %p198 = por %p196, %p197
      %p200 = scmp.ne.s32.totalorder %s185, %s199
      %p201 = scmp.eq.s32.totalorder %s75, 0
      %p202 = por %p200, %p201
      %s204 = sadd.s32 %s203, 1
      %p207 = scmp.eq.s32.totalorder %s69, 1
      %p208 = scmp.ne.s32.totalorder %s203, %s205
      %p209 = scmp.eq.s32.totalorder %s69, 0
      %p210 = por %p208, %p209
      %p211 = scmp.ne.s32.totalorder %s203, %s205
      %p212 = scmp.eq.s32.totalorder %s74, 1
      %p213 = por %p211, %p212
      %p214 = scmp.ne.s32.totalorder %s205, %s206
      %p215 = scmp.eq.s32.totalorder %s74, 0
      %p216 = por %p214, %p215
      %p217 = scmp.ne.s32.totalorder %s205, %s206
      %p218 = scmp.eq.s32.totalorder %s75, 1
      %p219 = por %p217, %p218
      %p221 = scmp.ne.s32.totalorder %s206, %s220
      %p222 = scmp.eq.s32.totalorder %s75, 0
      %p223 = por %p221, %p222
      %s225 = sadd.s32 %s224, 1
      %p228 = scmp.eq.s32.totalorder %s69, 1
      %p229 = scmp.ne.s32.totalorder %s224, %s226
      %p230 = scmp.eq.s32.totalorder %s69, 0
      %p231 = por %p229, %p230
      %p232 = scmp.ne.s32.totalorder %s224, %s226
      %p233 = scmp.eq.s32.totalorder %s74, 1
      %p234 = por %p232, %p233
      %p235 = scmp.ne.s32.totalorder %s226, %s227
      %p236 = scmp.eq.s32.totalorder %s74, 0
      %p237 = por %p235, %p236
      %p238 = scmp.ne.s32.totalorder %s226, %s227
      %p239 = scmp.eq.s32.totalorder %s75, 1
      %p240 = por %p238, %p239
      %p242 = scmp.ne.s32.totalorder %s227, %s241
      %p243 = scmp.eq.s32.totalorder %s75, 0
      %p244 = por %p242, %p243
      %s245 = ssub.s32 %s69, %s76
      %p246 = scmp.eq.s32.totalorder %s245, 0
      %s248 = sadd.s32 %s247, 1
      %s249 = scalar_select %p246, %s247, %s248
      %p252 = pneg %p246
      %p253 = scmp.eq.s32.totalorder %s69, 1
      %p254 = por %p252, %p253
      %p255 = scmp.ne.s32.totalorder %s247, %s250
      %p256 = scmp.eq.s32.totalorder %s69, 0
      %p257 = por %p255, %p256
      %p258 = scmp.ne.s32.totalorder %s247, %s250
      %p259 = scmp.eq.s32.totalorder %s74, 1
      %p260 = por %p258, %p259
      %p261 = scmp.ne.s32.totalorder %s250, %s251
      %p262 = scmp.eq.s32.totalorder %s74, 0
      %p263 = por %p261, %p262
      %p264 = scmp.ne.s32.totalorder %s250, %s251
      %p265 = scmp.eq.s32.totalorder %s75, 1
      %p266 = por %p264, %p265
      %p268 = scmp.ne.s32.totalorder %s251, %s267
      %p269 = scmp.eq.s32.totalorder %s75, 0
      %p270 = por %p268, %p269
      %s271 = ssub.s32 %s69, %s76
      %p272 = scmp.eq.s32.totalorder %s271, 0
      %s274 = sadd.s32 %s273, 1
      %s275 = scalar_select %p272, %s273, %s274
      %p278 = pneg %p272
      %p279 = scmp.eq.s32.totalorder %s69, 1
      %p280 = por %p278, %p279
      %p281 = scmp.ne.s32.totalorder %s273, %s276
      %p282 = scmp.eq.s32.totalorder %s69, 0
      %p283 = por %p281, %p282
      %p284 = scmp.ne.s32.totalorder %s273, %s276
      %p285 = scmp.eq.s32.totalorder %s74, 1
      %p286 = por %p284, %p285
      %p287 = scmp.ne.s32.totalorder %s276, %s277
      %p288 = scmp.eq.s32.totalorder %s74, 0
      %p289 = por %p287, %p288
      %p290 = scmp.ne.s32.totalorder %s276, %s277
      %p291 = scmp.eq.s32.totalorder %s75, 1
      %p292 = por %p290, %p291
      %p294 = scmp.ne.s32.totalorder %s277, %s293
      %p295 = scmp.eq.s32.totalorder %s75, 0
      %p296 = por %p294, %p295
      %s297 = ssub.s32 %s69, %s76
      %p298 = scmp.eq.s32.totalorder %s297, 0
      %s300 = sadd.s32 %s299, 1
      %s301 = scalar_select %p298, %s299, %s300
      %p304 = pneg %p298
      %p305 = scmp.eq.s32.totalorder %s69, 1
      %p306 = por %p304, %p305
      %p307 = scmp.ne.s32.totalorder %s299, %s302
      %p308 = scmp.eq.s32.totalorder %s69, 0
      %p309 = por %p307, %p308
      %p310 = scmp.ne.s32.totalorder %s299, %s302
      %p311 = scmp.eq.s32.totalorder %s74, 1
      %p312 = por %p310, %p311
      %p313 = scmp.ne.s32.totalorder %s302, %s303
      %p314 = scmp.eq.s32.totalorder %s74, 0
      %p315 = por %p313, %p314
      %p316 = scmp.ne.s32.totalorder %s302, %s303
      %p317 = scmp.eq.s32.totalorder %s75, 1
      %p318 = por %p316, %p317
      %p320 = scmp.ne.s32.totalorder %s303, %s319
      %p321 = scmp.eq.s32.totalorder %s75, 0
      %p322 = por %p320, %p321
      %s323 = ssub.s32 %s69, %s76
      %p324 = scmp.eq.s32.totalorder %s323, 0
      %s326 = sadd.s32 %s325, 1
      %s327 = scalar_select %p324, %s325, %s326
      %p330 = pneg %p324
      %p331 = scmp.eq.s32.totalorder %s69, 1
      %p332 = por %p330, %p331
      %p333 = scmp.ne.s32.totalorder %s325, %s328
      %p334 = scmp.eq.s32.totalorder %s69, 0
      %p335 = por %p333, %p334
      %p336 = scmp.ne.s32.totalorder %s325, %s328
      %p337 = scmp.eq.s32.totalorder %s74, 1
      %p338 = por %p336, %p337
      %p339 = scmp.ne.s32.totalorder %s328, %s329
      %p340 = scmp.eq.s32.totalorder %s74, 0
      %p341 = por %p339, %p340
      %p342 = scmp.ne.s32.totalorder %s328, %s329
      %p343 = scmp.eq.s32.totalorder %s75, 1
      %p344 = por %p342, %p343
      %p346 = scmp.ne.s32.totalorder %s329, %s345
      %p347 = scmp.eq.s32.totalorder %s75, 0
      %p348 = por %p346, %p347
      %s349 = ssub.s32 %s69, %s76
      %p350 = scmp.eq.s32.totalorder %s349, 0
      %s352 = sadd.s32 %s351, 1
      %s353 = scalar_select %p350, %s351, %s352
      %p356 = pneg %p350
      %p357 = scmp.eq.s32.totalorder %s69, 1
      %p358 = por %p356, %p357
      %p359 = scmp.ne.s32.totalorder %s351, %s354
      %p360 = scmp.eq.s32.totalorder %s69, 0
      %p361 = por %p359, %p360
      %p362 = scmp.ne.s32.totalorder %s351, %s354
      %p363 = scmp.eq.s32.totalorder %s74, 1
      %p364 = por %p362, %p363
      %p365 = scmp.ne.s32.totalorder %s354, %s355
      %p366 = scmp.eq.s32.totalorder %s74, 0
      %p367 = por %p365, %p366
      %p368 = scmp.ne.s32.totalorder %s354, %s355
      %p369 = scmp.eq.s32.totalorder %s75, 1
      %p370 = por %p368, %p369
      %p372 = scmp.ne.s32.totalorder %s355, %s371
      %p373 = scmp.eq.s32.totalorder %s75, 0
      %p374 = por %p372, %p373
      %s375 = ssub.s32 %s69, %s76
      %p376 = scmp.eq.s32.totalorder %s375, 0
      %s378 = sadd.s32 %s377, 1
      %s379 = scalar_select %p376, %s377, %s378
      %p382 = pneg %p376
      %p383 = scmp.eq.s32.totalorder %s69, 1
      %p384 = por %p382, %p383
      %p385 = scmp.ne.s32.totalorder %s377, %s380
      %p386 = scmp.eq.s32.totalorder %s69, 0
      %p387 = por %p385, %p386
      %p388 = scmp.ne.s32.totalorder %s377, %s380
      %p389 = scmp.eq.s32.totalorder %s74, 1
      %p390 = por %p388, %p389
      %p391 = scmp.ne.s32.totalorder %s380, %s381
      %p392 = scmp.eq.s32.totalorder %s74, 0
      %p393 = por %p391, %p392
      %p394 = scmp.ne.s32.totalorder %s380, %s381
      %p395 = scmp.eq.s32.totalorder %s75, 1
      %p396 = por %p394, %p395
      %p398 = scmp.ne.s32.totalorder %s381, %s397
      %p399 = scmp.eq.s32.totalorder %s75, 0
      %p400 = por %p398, %p399
      %s401 = ssub.s32 %s69, %s76
      %p402 = scmp.eq.s32.totalorder %s401, 0
      %s404 = sadd.s32 %s403, 1
      %s405 = scalar_select %p402, %s403, %s404
      %p408 = pneg %p402
      %p409 = scmp.eq.s32.totalorder %s69, 1
      %p410 = por %p408, %p409
      %p411 = scmp.ne.s32.totalorder %s403, %s406
      %p412 = scmp.eq.s32.totalorder %s69, 0
      %p413 = por %p411, %p412
      %p414 = scmp.ne.s32.totalorder %s403, %s406
      %p415 = scmp.eq.s32.totalorder %s74, 1
      %p416 = por %p414, %p415
      %p417 = scmp.ne.s32.totalorder %s406, %s407
      %p418 = scmp.eq.s32.totalorder %s74, 0
      %p419 = por %p417, %p418
      %p420 = scmp.ne.s32.totalorder %s406, %s407
      %p421 = scmp.eq.s32.totalorder %s75, 1
      %p422 = por %p420, %p421
      %p424 = scmp.ne.s32.totalorder %s407, %s423
      %p425 = scmp.eq.s32.totalorder %s75, 0
      %p426 = por %p424, %p425
      %s427 = ssub.s32 %s69, %s76
      %p428 = scmp.eq.s32.totalorder %s427, 0
      %s430 = sadd.s32 %s429, 1
      %s431 = scalar_select %p428, %s429, %s430
      %p434 = pneg %p428
      %p435 = scmp.eq.s32.totalorder %s69, 1
      %p436 = por %p434, %p435
      %p437 = scmp.ne.s32.totalorder %s429, %s432
      %p438 = scmp.eq.s32.totalorder %s69, 0
      %p439 = por %p437, %p438
      %p440 = scmp.ne.s32.totalorder %s429, %s432
      %p441 = scmp.eq.s32.totalorder %s74, 1
      %p442 = por %p440, %p441
      %p443 = scmp.ne.s32.totalorder %s432, %s433
      %p444 = scmp.eq.s32.totalorder %s74, 0
      %p445 = por %p443, %p444
      %p446 = scmp.ne.s32.totalorder %s432, %s433
      %p447 = scmp.eq.s32.totalorder %s75, 1
      %p448 = por %p446, %p447
      %p450 = scmp.ne.s32.totalorder %s433, %s449
      %p451 = scmp.eq.s32.totalorder %s75, 0
      %p452 = por %p450, %p451
      %s453 = ssub.s32 %s69, %s76
      %p454 = scmp.eq.s32.totalorder %s453, 0
      %s456 = sadd.s32 %s455, 1
      %s457 = scalar_select %p454, %s455, %s456
      %p460 = pneg %p454
      %p461 = scmp.eq.s32.totalorder %s69, 1
      %p462 = por %p460, %p461
      %p463 = scmp.ne.s32.totalorder %s455, %s458
      %p464 = scmp.eq.s32.totalorder %s69, 0
      %p465 = por %p463, %p464
      %p466 = scmp.ne.s32.totalorder %s455, %s458
      %p467 = scmp.eq.s32.totalorder %s74, 1
      %p468 = por %p466, %p467
      %p469 = scmp.ne.s32.totalorder %s458, %s459
      %p470 = scmp.eq.s32.totalorder %s74, 0
      %p471 = por %p469, %p470
      %p472 = scmp.ne.s32.totalorder %s458, %s459
      %p473 = scmp.eq.s32.totalorder %s75, 1
      %p474 = por %p472, %p473
      %p476 = scmp.ne.s32.totalorder %s459, %s475
      %p477 = scmp.eq.s32.totalorder %s75, 0
      %p478 = por %p476, %p477
      %s479 = ssub.s32 %s69, %s76
      %p480 = scmp.eq.s32.totalorder %s479, 0
      %s482 = sadd.s32 %s481, 1
      %s483 = scalar_select %p480, %s481, %s482
      %p486 = pneg %p480
      %p487 = scmp.eq.s32.totalorder %s69, 1
      %p488 = por %p486, %p487
      %p489 = scmp.ne.s32.totalorder %s481, %s484
      %p490 = scmp.eq.s32.totalorder %s69, 0
      %p491 = por %p489, %p490
      %p492 = scmp.ne.s32.totalorder %s481, %s484
      %p493 = scmp.eq.s32.totalorder %s74, 1
      %p494 = por %p492, %p493
      %p495 = scmp.ne.s32.totalorder %s484, %s485
      %p496 = scmp.eq.s32.totalorder %s74, 0
      %p497 = por %p495, %p496
      %p498 = scmp.ne.s32.totalorder %s484, %s485
      %p499 = scmp.eq.s32.totalorder %s75, 1
      %p500 = por %p498, %p499
      %p502 = scmp.ne.s32.totalorder %s485, %s501
      %p503 = scmp.eq.s32.totalorder %s75, 0
      %p504 = por %p502, %p503
      %s505 = ssub.s32 %s69, %s76
      %p506 = scmp.eq.s32.totalorder %s505, 0
      %s508 = sadd.s32 %s507, 1
      %s509 = scalar_select %p506, %s507, %s508
      %p512 = pneg %p506
      %p513 = scmp.eq.s32.totalorder %s69, 1
      %p514 = por %p512, %p513
      %p515 = scmp.ne.s32.totalorder %s507, %s510
      %p516 = scmp.eq.s32.totalorder %s69, 0
      %p517 = por %p515, %p516
      %p518 = scmp.ne.s32.totalorder %s507, %s510
      %p519 = scmp.eq.s32.totalorder %s74, 1
      %p520 = por %p518, %p519
      %p521 = scmp.ne.s32.totalorder %s510, %s511
      %p522 = scmp.eq.s32.totalorder %s74, 0
      %p523 = por %p521, %p522
      %p524 = scmp.ne.s32.totalorder %s510, %s511
      %p525 = scmp.eq.s32.totalorder %s75, 1
      %p526 = por %p524, %p525
      %p528 = scmp.ne.s32.totalorder %s511, %s527
      %p529 = scmp.eq.s32.totalorder %s75, 0
      %p530 = por %p528, %p529
      %s531 = ssub.s32 %s69, %s76
      %p532 = scmp.eq.s32.totalorder %s531, 0
      %s534 = sadd.s32 %s533, 1
      %s535 = scalar_select %p532, %s533, %s534
      %p538 = pneg %p532
      %p539 = scmp.eq.s32.totalorder %s69, 1
      %p540 = por %p538, %p539
      %p541 = scmp.ne.s32.totalorder %s533, %s536
      %p542 = scmp.eq.s32.totalorder %s69, 0
      %p543 = por %p541, %p542
      %p544 = scmp.ne.s32.totalorder %s533, %s536
      %p545 = scmp.eq.s32.totalorder %s74, 1
      %p546 = por %p544, %p545
      %p547 = scmp.ne.s32.totalorder %s536, %s537
      %p548 = scmp.eq.s32.totalorder %s74, 0
      %p549 = por %p547, %p548
      %p550 = scmp.ne.s32.totalorder %s536, %s537
      %p551 = scmp.eq.s32.totalorder %s75, 1
      %p552 = por %p550, %p551
      %p554 = scmp.ne.s32.totalorder %s537, %s553
      %p555 = scmp.eq.s32.totalorder %s75, 0
      %p556 = por %p554, %p555
      %s557 = ssub.s32 %s69, %s76
      %p558 = scmp.eq.s32.totalorder %s557, 0
      %s560 = sadd.s32 %s559, 1
      %s561 = scalar_select %p558, %s559, %s560
      %p564 = pneg %p558
      %p565 = scmp.eq.s32.totalorder %s69, 1
      %p566 = por %p564, %p565
      %p567 = scmp.ne.s32.totalorder %s559, %s562
      %p568 = scmp.eq.s32.totalorder %s69, 0
      %p569 = por %p567, %p568
      %p570 = scmp.ne.s32.totalorder %s559, %s562
      %p571 = scmp.eq.s32.totalorder %s74, 1
      %p572 = por %p570, %p571
      %p573 = scmp.ne.s32.totalorder %s562, %s563
      %p574 = scmp.eq.s32.totalorder %s74, 0
      %p575 = por %p573, %p574
      %p576 = scmp.ne.s32.totalorder %s562, %s563
      %p577 = scmp.eq.s32.totalorder %s75, 1
      %p578 = por %p576, %p577
      %p580 = scmp.ne.s32.totalorder %s563, %s579
      %p581 = scmp.eq.s32.totalorder %s75, 0
      %p582 = por %p580, %p581
      %s583 = ssub.s32 %s69, %s76
      %p584 = scmp.eq.s32.totalorder %s583, 0
      %s586 = sadd.s32 %s585, 1
      %s587 = scalar_select %p584, %s585, %s586
      %p590 = pneg %p584
      %p591 = scmp.eq.s32.totalorder %s69, 1
      %p592 = por %p590, %p591
      %p593 = scmp.ne.s32.totalorder %s585, %s588
      %p594 = scmp.eq.s32.totalorder %s69, 0
      %p595 = por %p593, %p594
      %p596 = scmp.ne.s32.totalorder %s585, %s588
      %p597 = scmp.eq.s32.totalorder %s74, 1
      %p598 = por %p596, %p597
      %p599 = scmp.ne.s32.totalorder %s588, %s589
      %p600 = scmp.eq.s32.totalorder %s74, 0
      %p601 = por %p599, %p600
      %p602 = scmp.ne.s32.totalorder %s588, %s589
      %p603 = scmp.eq.s32.totalorder %s75, 1
      %p604 = por %p602, %p603
      %p606 = scmp.ne.s32.totalorder %s589, %s605
      %p607 = scmp.eq.s32.totalorder %s75, 0
      %p608 = por %p606, %p607
      %s609 = ssub.s32 %s69, %s76
      %p610 = scmp.eq.s32.totalorder %s609, 0
      %s612 = sadd.s32 %s611, 1
      %s613 = scalar_select %p610, %s611, %s612
      %p616 = pneg %p610
      %p617 = scmp.eq.s32.totalorder %s69, 1
      %p618 = por %p616, %p617
      %p619 = scmp.ne.s32.totalorder %s611, %s614
      %p620 = scmp.eq.s32.totalorder %s69, 0
      %p621 = por %p619, %p620
      %p622 = scmp.ne.s32.totalorder %s611, %s614
      %p623 = scmp.eq.s32.totalorder %s74, 1
      %p624 = por %p622, %p623
      %p625 = scmp.ne.s32.totalorder %s614, %s615
      %p626 = scmp.eq.s32.totalorder %s74, 0
      %p627 = por %p625, %p626
      %p628 = scmp.ne.s32.totalorder %s614, %s615
      %p629 = scmp.eq.s32.totalorder %s75, 1
      %p630 = por %p628, %p629
      %p632 = scmp.ne.s32.totalorder %s615, %s631
      %p633 = scmp.eq.s32.totalorder %s75, 0
      %p634 = por %p632, %p633
      %s635 = ssub.s32 %s69, %s76
      %p636 = scmp.eq.s32.totalorder %s635, 0
      %s638 = sadd.s32 %s637, 1
      %s639 = scalar_select %p636, %s637, %s638
      %p642 = pneg %p636
      %p643 = scmp.eq.s32.totalorder %s69, 1
      %p644 = por %p642, %p643
      %p645 = scmp.ne.s32.totalorder %s637, %s640
      %p646 = scmp.eq.s32.totalorder %s69, 0
      %p647 = por %p645, %p646
      %p648 = scmp.ne.s32.totalorder %s637, %s640
      %p649 = scmp.eq.s32.totalorder %s74, 1
      %p650 = por %p648, %p649
      %p651 = scmp.ne.s32.totalorder %s640, %s641
      %p652 = scmp.eq.s32.totalorder %s74, 0
      %p653 = por %p651, %p652
      %p654 = scmp.ne.s32.totalorder %s640, %s641
      %p655 = scmp.eq.s32.totalorder %s75, 1
      %p656 = por %p654, %p655
      %p658 = scmp.ne.s32.totalorder %s641, %s657
      %p659 = scmp.eq.s32.totalorder %s75, 0
      %p660 = por %p658, %p659
      %s661 = ssub.s32 %s69, %s76
      %p662 = scmp.eq.s32.totalorder %s661, 0
      %s664 = sadd.s32 %s663, 1
      %s665 = scalar_select %p662, %s663, %s664
      %p668 = pneg %p662
      %p669 = scmp.eq.s32.totalorder %s69, 1
      %p670 = por %p668, %p669
      %p671 = scmp.ne.s32.totalorder %s663, %s666
      %p672 = scmp.eq.s32.totalorder %s69, 0
      %p673 = por %p671, %p672
      %p674 = scmp.ne.s32.totalorder %s663, %s666
      %p675 = scmp.eq.s32.totalorder %s74, 1
      %p676 = por %p674, %p675
      %p677 = scmp.ne.s32.totalorder %s666, %s667
      %p678 = scmp.eq.s32.totalorder %s74, 0
      %p679 = por %p677, %p678
      %p680 = scmp.ne.s32.totalorder %s666, %s667
      %p681 = scmp.eq.s32.totalorder %s75, 1
      %p682 = por %p680, %p681
      %p684 = scmp.ne.s32.totalorder %s667, %s683
      %p685 = scmp.eq.s32.totalorder %s75, 0
      %p686 = por %p684, %p685
      %s687 = ssub.s32 %s69, %s76
      %p688 = scmp.eq.s32.totalorder %s687, 0
      %s690 = sadd.s32 %s689, 1
      %s691 = scalar_select %p688, %s689, %s690
      %p694 = pneg %p688
      %p695 = scmp.eq.s32.totalorder %s69, 1
      %p696 = por %p694, %p695
      %p697 = scmp.ne.s32.totalorder %s689, %s692
      %p698 = scmp.eq.s32.totalorder %s69, 0
      %p699 = por %p697, %p698
      %p700 = scmp.ne.s32.totalorder %s689, %s692
      %p701 = scmp.eq.s32.totalorder %s74, 1
      %p702 = por %p700, %p701
      %p703 = scmp.ne.s32.totalorder %s692, %s693
      %p704 = scmp.eq.s32.totalorder %s74, 0
      %p705 = por %p703, %p704
      %p706 = scmp.ne.s32.totalorder %s692, %s693
      %p707 = scmp.eq.s32.totalorder %s75, 1
      %p708 = por %p706, %p707
      %p710 = scmp.ne.s32.totalorder %s693, %s709
      %p711 = scmp.eq.s32.totalorder %s75, 0
      %p712 = por %p710, %p711
      %s713 = ssub.s32 %s69, %s76
      %p714 = scmp.eq.s32.totalorder %s713, 0
      %s716 = sadd.s32 %s715, 1
      %s717 = scalar_select %p714, %s715, %s716
      %p720 = pneg %p714
      %p721 = scmp.eq.s32.totalorder %s69, 1
      %p722 = por %p720, %p721
      %p723 = scmp.ne.s32.totalorder %s715, %s718
      %p724 = scmp.eq.s32.totalorder %s69, 0
      %p725 = por %p723, %p724
      %p726 = scmp.ne.s32.totalorder %s715, %s718
      %p727 = scmp.eq.s32.totalorder %s74, 1
      %p728 = por %p726, %p727
      %p729 = scmp.ne.s32.totalorder %s718, %s719
      %p730 = scmp.eq.s32.totalorder %s74, 0
      %p731 = por %p729, %p730
      %p732 = scmp.ne.s32.totalorder %s718, %s719
      %p733 = scmp.eq.s32.totalorder %s75, 1
      %p734 = por %p732, %p733
      %p736 = scmp.ne.s32.totalorder %s719, %s735
      %p737 = scmp.eq.s32.totalorder %s75, 0
      %p738 = por %p736, %p737
      %s739 = ssub.s32 %s69, %s76
      %p740 = scmp.eq.s32.totalorder %s739, 0
      %s742 = sadd.s32 %s741, 1
      %s743 = scalar_select %p740, %s741, %s742
      %p746 = pneg %p740
      %p747 = scmp.eq.s32.totalorder %s69, 1
      %p748 = por %p746, %p747
      %p749 = scmp.ne.s32.totalorder %s741, %s744
      %p750 = scmp.eq.s32.totalorder %s69, 0
      %p751 = por %p749, %p750
      %p752 = scmp.ne.s32.totalorder %s741, %s744
      %p753 = scmp.eq.s32.totalorder %s74, 1
      %p754 = por %p752, %p753
      %p755 = scmp.ne.s32.totalorder %s744, %s745
      %p756 = scmp.eq.s32.totalorder %s74, 0
      %p757 = por %p755, %p756
      %p758 = scmp.ne.s32.totalorder %s744, %s745
      %p759 = scmp.eq.s32.totalorder %s75, 1
      %p760 = por %p758, %p759
      %p762 = scmp.ne.s32.totalorder %s745, %s761
      %p763 = scmp.eq.s32.totalorder %s75, 0
      %p764 = por %p762, %p763
      %s765 = ssub.s32 %s69, %s76
      %p766 = scmp.eq.s32.totalorder %s765, 0
      %s768 = sadd.s32 %s767, 1
      %s769 = scalar_select %p766, %s767, %s768
      %p772 = pneg %p766
      %p773 = scmp.eq.s32.totalorder %s69, 1
      %p774 = por %p772, %p773
      %p775 = scmp.ne.s32.totalorder %s767, %s770
      %p776 = scmp.eq.s32.totalorder %s69, 0
      %p777 = por %p775, %p776
      %p778 = scmp.ne.s32.totalorder %s767, %s770
      %p779 = scmp.eq.s32.totalorder %s74, 1
      %p780 = por %p778, %p779
      %p781 = scmp.ne.s32.totalorder %s770, %s771
      %p782 = scmp.eq.s32.totalorder %s74, 0
      %p783 = por %p781, %p782
      %p784 = scmp.ne.s32.totalorder %s770, %s771
      %p785 = scmp.eq.s32.totalorder %s75, 1
      %p786 = por %p784, %p785
      %p788 = scmp.ne.s32.totalorder %s771, %s787
      %p789 = scmp.eq.s32.totalorder %s75, 0
      %p790 = por %p788, %p789
      %s791 = ssub.s32 %s69, %s76
      %p792 = scmp.eq.s32.totalorder %s791, 0
      %s794 = sadd.s32 %s793, 1
      %s795 = scalar_select %p792, %s793, %s794
      %p798 = pneg %p792
      %p799 = scmp.eq.s32.totalorder %s69, 1
      %p800 = por %p798, %p799
      %p801 = scmp.ne.s32.totalorder %s793, %s796
      %p802 = scmp.eq.s32.totalorder %s69, 0
      %p803 = por %p801, %p802
      %p804 = scmp.ne.s32.totalorder %s793, %s796
      %p805 = scmp.eq.s32.totalorder %s74, 1
      %p806 = por %p804, %p805
      %p807 = scmp.ne.s32.totalorder %s796, %s797
      %p808 = scmp.eq.s32.totalorder %s74, 0
      %p809 = por %p807, %p808
      %p810 = scmp.ne.s32.totalorder %s796, %s797
      %p811 = scmp.eq.s32.totalorder %s75, 1
      %p812 = por %p810, %p811
      %p814 = scmp.ne.s32.totalorder %s797, %s813
      %p815 = scmp.eq.s32.totalorder %s75, 0
      %p816 = por %p814, %p815
      %s818 = sadd.s32 %s817, 1
      %p821 = scmp.eq.s32.totalorder %s69, 1
      %p822 = scmp.ne.s32.totalorder %s817, %s819
      %p823 = scmp.eq.s32.totalorder %s69, 0
      %p824 = por %p822, %p823
      %p825 = scmp.ne.s32.totalorder %s817, %s819
      %p826 = scmp.eq.s32.totalorder %s74, 1
      %p827 = por %p825, %p826
      %p828 = scmp.ne.s32.totalorder %s819, %s820
      %p829 = scmp.eq.s32.totalorder %s74, 0
      %p830 = por %p828, %p829
      %p831 = scmp.ne.s32.totalorder %s819, %s820
      %p832 = scmp.eq.s32.totalorder %s75, 1
      %p833 = por %p831, %p832
      %p835 = scmp.ne.s32.totalorder %s820, %s834
      %p836 = scmp.eq.s32.totalorder %s75, 0
      %p837 = por %p835, %p836
      %p838 = scmp.le.s32.totalorder 1, %s69
      %p839 = scmp.lt.s32.totalorder %s69, 3
      %p840 = pnand %p838, %p839
      %p841 = pneg %p840
      // Predicated region
      $region9: #{tpu_custom_call.1} parent=5 // pred_check
        _
      $region10: #{tpu_custom_call.1} parent=5 // pred_check_branch
        %843 = sbr.rel (%p840) target = $region12
      $region11: #{tpu_custom_call.1} parent=5 // pred_region
        %s844 = ssub.s32 %s69, 1
        // Predicated region
        $region13: #{tpu_custom_call.1} parent=11 // pred_check
          %p845 = pneg %p90
        $region14: #{tpu_custom_call.1} parent=11 // pred_check_branch
          %847 = sbr.rel (%p845) target = $region16
        $region15: #{tpu_custom_call.1} parent=11 // pred_region
          %s849 = ssub.s32 256, 256
          %850 = vsyncadd [#allocation4], %s849
          %s851 = sshll.u32 [#allocation3], 4
          %s852 = int_to_ptr.vmem [resolvable:$true] %s851
          %857 = dma.hbm_to_vmem [thread:$0]  %s1, 256, %s852, [#allocation4], 128, 128, 8
        $region16: #{tpu_custom_call.1} parent=11 // pred_fallthru
          _
        // Predicated region
        $region17: #{tpu_custom_call.1} parent=11 // pred_check
          %p858 = pneg %p111
        $region18: #{tpu_custom_call.1} parent=11 // pred_check_branch
          %860 = sbr.rel (%p858) target = $region20
        $region19: #{tpu_custom_call.1} parent=11 // pred_region
          _
        $region20: #{tpu_custom_call.1} parent=11 // pred_fallthru
          _
        // Predicated region
        $region21: #{tpu_custom_call.1} parent=11 // pred_check
          %p861 = pneg %p132
        $region22: #{tpu_custom_call.1} parent=11 // pred_check_branch
          %863 = sbr.rel (%p861) target = $region24
        $region23: #{tpu_custom_call.1} parent=11 // pred_region
          _
        $region24: #{tpu_custom_call.1} parent=11 // pred_fallthru
          _
        // Predicated region
        $region25: #{tpu_custom_call.1} parent=11 // pred_check
          %p864 = pneg %p153
        $region26: #{tpu_custom_call.1} parent=11 // pred_check_branch
          %866 = sbr.rel (%p864) target = $region28
        $region27: #{tpu_custom_call.1} parent=11 // pred_region
          _
        $region28: #{tpu_custom_call.1} parent=11 // pred_fallthru
          _
        // Predicated region
        $region29: #{tpu_custom_call.1} parent=11 // pred_check
          %p867 = pneg %p174
        $region30: #{tpu_custom_call.1} parent=11 // pred_check_branch
          %869 = sbr.rel (%p867) target = $region32
        $region31: #{tpu_custom_call.1} parent=11 // pred_region
          _
        $region32: #{tpu_custom_call.1} parent=11 // pred_fallthru
          _
        // Predicated region
        $region33: #{tpu_custom_call.1} parent=11 // pred_check
          %p870 = pneg %p195
        $region34: #{tpu_custom_call.1} parent=11 // pred_check_branch
          %872 = sbr.rel (%p870) target = $region36
        $region35: #{tpu_custom_call.1} parent=11 // pred_region
          _
        $region36: #{tpu_custom_call.1} parent=11 // pred_fallthru
          _
        // Predicated region
        $region37: #{tpu_custom_call.1} parent=11 // pred_check
          %p873 = pneg %p216
        $region38: #{tpu_custom_call.1} parent=11 // pred_check_branch
          %875 = sbr.rel (%p873) target = $region40
        $region39: #{tpu_custom_call.1} parent=11 // pred_region
          _
        $region40: #{tpu_custom_call.1} parent=11 // pred_fallthru
          _
        // Predicated region
        $region41: #{tpu_custom_call.1} parent=11 // pred_check
          %p876 = pneg %p237
        $region42: #{tpu_custom_call.1} parent=11 // pred_check_branch
          %878 = sbr.rel (%p876) target = $region44
        $region43: #{tpu_custom_call.1} parent=11 // pred_region
          _
        $region44: #{tpu_custom_call.1} parent=11 // pred_fallthru
          _
      $region12: #{tpu_custom_call.1} parent=5 // pred_fallthru
        _
      %p879 = scmp.lt.s32.totalorder %s69, 2
      // Predicated region
      $region45: #{tpu_custom_call.1} parent=5 // pred_check
        %p880 = pneg %p879
      $region46: #{tpu_custom_call.1} parent=5 // pred_check_branch
        %882 = sbr.rel (%p880) target = $region48
      $region47: #{tpu_custom_call.1} parent=5 // pred_region
        // Predicated region
        $region49: #{tpu_custom_call.1} parent=47 // pred_check
          %p883 = pneg %p257
        $region50: #{tpu_custom_call.1} parent=47 // pred_check_branch
          %885 = sbr.rel (%p883) target = $region52
        $region51: #{tpu_custom_call.1} parent=47 // pred_region
          %p886 = scmp.lt.s32.totalorder %s69, 1
          %s887 = scalar_select %p886, %s69, 1
          %s888 = smul.addr %s887, 4
          %s889 = smul.addr %s888, 8
          %s890 = scalar_lea.vmem %s17, %s889
        $region52: #{tpu_custom_call.1} parent=47 // pred_fallthru
          _
        // Predicated region
        $region53: #{tpu_custom_call.1} parent=47 // pred_check
          %p891 = pneg %p283
        $region54: #{tpu_custom_call.1} parent=47 // pred_check_branch
          %893 = sbr.rel (%p891) target = $region56
        $region55: #{tpu_custom_call.1} parent=47 // pred_region
          %p894 = scmp.lt.s32.totalorder %s69, 1
          %s895 = scalar_select %p894, %s69, 1
          %s896 = scalar_lea.vmem %s19, %s895
        $region56: #{tpu_custom_call.1} parent=47 // pred_fallthru
          _
        // Predicated region
        $region57: #{tpu_custom_call.1} parent=47 // pred_check
          %p897 = pneg %p309
        $region58: #{tpu_custom_call.1} parent=47 // pred_check_branch
          %899 = sbr.rel (%p897) target = $region60
        $region59: #{tpu_custom_call.1} parent=47 // pred_region
          %p900 = scmp.lt.s32.totalorder %s69, 1
          %s901 = scalar_select %p900, %s69, 1
          %s902 = smul.addr %s901, 4
          %s903 = smul.addr %s902, 8
          %s904 = scalar_lea.vmem %s21, %s903
        $region60: #{tpu_custom_call.1} parent=47 // pred_fallthru
          _
        // Predicated region
        $region61: #{tpu_custom_call.1} parent=47 // pred_check
          %p905 = pneg %p335
        $region62: #{tpu_custom_call.1} parent=47 // pred_check_branch
          %907 = sbr.rel (%p905) target = $region64
        $region63: #{tpu_custom_call.1} parent=47 // pred_region
          %p908 = scmp.lt.s32.totalorder %s69, 1
          %s909 = scalar_select %p908, %s69, 1
          %s910 = scalar_lea.vmem %s23, %s909
        $region64: #{tpu_custom_call.1} parent=47 // pred_fallthru
          _
        // Predicated region
        $region65: #{tpu_custom_call.1} parent=47 // pred_check
          %p911 = pneg %p361
        $region66: #{tpu_custom_call.1} parent=47 // pred_check_branch
          %913 = sbr.rel (%p911) target = $region68
        $region67: #{tpu_custom_call.1} parent=47 // pred_region
          %p914 = scmp.lt.s32.totalorder %s69, 1
          %s915 = scalar_select %p914, %s69, 1
          %s916 = smul.addr %s915, 4
          %s917 = smul.addr %s916, 8
          %s918 = scalar_lea.vmem %s25, %s917
        $region68: #{tpu_custom_call.1} parent=47 // pred_fallthru
          _
        // Predicated region
        $region69: #{tpu_custom_call.1} parent=47 // pred_check
          %p919 = pneg %p387
        $region70: #{tpu_custom_call.1} parent=47 // pred_check_branch
          %921 = sbr.rel (%p919) target = $region72
        $region71: #{tpu_custom_call.1} parent=47 // pred_region
          %p922 = scmp.lt.s32.totalorder %s69, 1
          %s923 = scalar_select %p922, %s69, 1
          %s924 = scalar_lea.vmem %s27, %s923
        $region72: #{tpu_custom_call.1} parent=47 // pred_fallthru
          _
        // Predicated region
        $region73: #{tpu_custom_call.1} parent=47 // pred_check
          %p925 = pneg %p413
        $region74: #{tpu_custom_call.1} parent=47 // pred_check_branch
          %927 = sbr.rel (%p925) target = $region76
        $region75: #{tpu_custom_call.1} parent=47 // pred_region
          %p928 = scmp.lt.s32.totalorder %s69, 1
          %s929 = scalar_select %p928, %s69, 1
          %s930 = scalar_lea.vmem %s29, %s929
        $region76: #{tpu_custom_call.1} parent=47 // pred_fallthru
          _
        // Predicated region
        $region77: #{tpu_custom_call.1} parent=47 // pred_check
          %p931 = pneg %p439
        $region78: #{tpu_custom_call.1} parent=47 // pred_check_branch
          %933 = sbr.rel (%p931) target = $region80
        $region79: #{tpu_custom_call.1} parent=47 // pred_region
          %p934 = scmp.lt.s32.totalorder %s69, 1
          %s935 = scalar_select %p934, %s69, 1
          %s936 = scalar_lea.vmem %s31, %s935
        $region80: #{tpu_custom_call.1} parent=47 // pred_fallthru
          _
        // Predicated region
        $region81: #{tpu_custom_call.1} parent=47 // pred_check
          %p937 = pneg %p465
        $region82: #{tpu_custom_call.1} parent=47 // pred_check_branch
          %939 = sbr.rel (%p937) target = $region84
        $region83: #{tpu_custom_call.1} parent=47 // pred_region
          %p940 = scmp.lt.s32.totalorder %s69, 1
          %s941 = scalar_select %p940, %s69, 1
          %s942 = smul.addr %s941, 4
          %s943 = smul.addr %s942, 8
          %s944 = scalar_lea.vmem %s33, %s943
        $region84: #{tpu_custom_call.1} parent=47 // pred_fallthru
          _
        // Predicated region
        $region85: #{tpu_custom_call.1} parent=47 // pred_check
          %p945 = pneg %p491
        $region86: #{tpu_custom_call.1} parent=47 // pred_check_branch
          %947 = sbr.rel (%p945) target = $region88
        $region87: #{tpu_custom_call.1} parent=47 // pred_region
          %p948 = scmp.lt.s32.totalorder %s69, 1
          %s949 = scalar_select %p948, %s69, 1
          %s950 = scalar_lea.vmem %s35, %s949
        $region88: #{tpu_custom_call.1} parent=47 // pred_fallthru
          _
        // Predicated region
        $region89: #{tpu_custom_call.1} parent=47 // pred_check
          %p951 = pneg %p517
        $region90: #{tpu_custom_call.1} parent=47 // pred_check_branch
          %953 = sbr.rel (%p951) target = $region92
        $region91: #{tpu_custom_call.1} parent=47 // pred_region
          %p954 = scmp.lt.s32.totalorder %s69, 1
          %s955 = scalar_select %p954, %s69, 1
          %s956 = smul.addr %s955, 4
          %s957 = smul.addr %s956, 8
          %s958 = scalar_lea.vmem %s37, %s957
        $region92: #{tpu_custom_call.1} parent=47 // pred_fallthru
          _
        // Predicated region
        $region93: #{tpu_custom_call.1} parent=47 // pred_check
          %p959 = pneg %p543
        $region94: #{tpu_custom_call.1} parent=47 // pred_check_branch
          %961 = sbr.rel (%p959) target = $region96
        $region95: #{tpu_custom_call.1} parent=47 // pred_region
          %p962 = scmp.lt.s32.totalorder %s69, 1
          %s963 = scalar_select %p962, %s69, 1
          %s964 = scalar_lea.vmem %s39, %s963
        $region96: #{tpu_custom_call.1} parent=47 // pred_fallthru
          _
        // Predicated region
        $region97: #{tpu_custom_call.1} parent=47 // pred_check
          %p965 = pneg %p569
        $region98: #{tpu_custom_call.1} parent=47 // pred_check_branch
          %967 = sbr.rel (%p965) target = $region100
        $region99: #{tpu_custom_call.1} parent=47 // pred_region
          %p968 = scmp.lt.s32.totalorder %s69, 1
          %s969 = scalar_select %p968, %s69, 1
          %s970 = smul.addr %s969, 4
          %s971 = smul.addr %s970, 8
          %s972 = scalar_lea.vmem %s41, %s971
        $region100: #{tpu_custom_call.1} parent=47 // pred_fallthru
          _
        // Predicated region
        $region101: #{tpu_custom_call.1} parent=47 // pred_check
          %p973 = pneg %p595
        $region102: #{tpu_custom_call.1} parent=47 // pred_check_branch
          %975 = sbr.rel (%p973) target = $region104
        $region103: #{tpu_custom_call.1} parent=47 // pred_region
          %p976 = scmp.lt.s32.totalorder %s69, 1
          %s977 = scalar_select %p976, %s69, 1
          %s978 = scalar_lea.vmem %s43, %s977
        $region104: #{tpu_custom_call.1} parent=47 // pred_fallthru
          _
        // Predicated region
        $region105: #{tpu_custom_call.1} parent=47 // pred_check
          %p979 = pneg %p621
        $region106: #{tpu_custom_call.1} parent=47 // pred_check_branch
          %981 = sbr.rel (%p979) target = $region108
        $region107: #{tpu_custom_call.1} parent=47 // pred_region
          %p982 = scmp.lt.s32.totalorder %s69, 1
          %s983 = scalar_select %p982, %s69, 1
          %s984 = scalar_lea.vmem %s45, %s983
        $region108: #{tpu_custom_call.1} parent=47 // pred_fallthru
          _
        // Predicated region
        $region109: #{tpu_custom_call.1} parent=47 // pred_check
          %p985 = pneg %p647
        $region110: #{tpu_custom_call.1} parent=47 // pred_check_branch
          %987 = sbr.rel (%p985) target = $region112
        $region111: #{tpu_custom_call.1} parent=47 // pred_region
          %p988 = scmp.lt.s32.totalorder %s69, 1
          %s989 = scalar_select %p988, %s69, 1
          %s990 = scalar_lea.vmem %s47, %s989
        $region112: #{tpu_custom_call.1} parent=47 // pred_fallthru
          _
        // Predicated region
        $region113: #{tpu_custom_call.1} parent=47 // pred_check
          %p991 = pneg %p673
        $region114: #{tpu_custom_call.1} parent=47 // pred_check_branch
          %993 = sbr.rel (%p991) target = $region116
        $region115: #{tpu_custom_call.1} parent=47 // pred_region
          %p994 = scmp.lt.s32.totalorder %s69, 1
          %s995 = scalar_select %p994, %s69, 1
          %s996 = smul.addr %s995, 4
          %s997 = smul.addr %s996, 8
          %s998 = scalar_lea.vmem %s49, %s997
        $region116: #{tpu_custom_call.1} parent=47 // pred_fallthru
          _
        // Predicated region
        $region117: #{tpu_custom_call.1} parent=47 // pred_check
          %p999 = pneg %p699
        $region118: #{tpu_custom_call.1} parent=47 // pred_check_branch
          %1001 = sbr.rel (%p999) target = $region120
        $region119: #{tpu_custom_call.1} parent=47 // pred_region
          %p1002 = scmp.lt.s32.totalorder %s69, 1
          %s1003 = scalar_select %p1002, %s69, 1
          %s1004 = scalar_lea.vmem %s51, %s1003
        $region120: #{tpu_custom_call.1} parent=47 // pred_fallthru
          _
        // Predicated region
        $region121: #{tpu_custom_call.1} parent=47 // pred_check
          %p1005 = pneg %p725
        $region122: #{tpu_custom_call.1} parent=47 // pred_check_branch
          %1007 = sbr.rel (%p1005) target = $region124
        $region123: #{tpu_custom_call.1} parent=47 // pred_region
          %p1008 = scmp.lt.s32.totalorder %s69, 1
          %s1009 = scalar_select %p1008, %s69, 1
          %s1010 = smul.addr %s1009, 8
          %s1011 = smul.addr %s1010, 8
          %s1012 = scalar_lea.vmem %s53, %s1011
        $region124: #{tpu_custom_call.1} parent=47 // pred_fallthru
          _
        // Predicated region
        $region125: #{tpu_custom_call.1} parent=47 // pred_check
          %p1013 = pneg %p751
        $region126: #{tpu_custom_call.1} parent=47 // pred_check_branch
          %1015 = sbr.rel (%p1013) target = $region128
        $region127: #{tpu_custom_call.1} parent=47 // pred_region
          %p1016 = scmp.lt.s32.totalorder %s69, 1
          %s1017 = scalar_select %p1016, %s69, 1
          %s1018 = scalar_lea.vmem %s55, %s1017
        $region128: #{tpu_custom_call.1} parent=47 // pred_fallthru
          _
        // Predicated region
        $region129: #{tpu_custom_call.1} parent=47 // pred_check
          %p1019 = pneg %p777
        $region130: #{tpu_custom_call.1} parent=47 // pred_check_branch
          %1021 = sbr.rel (%p1019) target = $region132
        $region131: #{tpu_custom_call.1} parent=47 // pred_region
          %p1022 = scmp.lt.s32.totalorder %s69, 1
          %s1023 = scalar_select %p1022, %s69, 1
          %s1024 = scalar_lea.vmem %s57, %s1023
        $region132: #{tpu_custom_call.1} parent=47 // pred_fallthru
          _
        // Predicated region
        $region133: #{tpu_custom_call.1} parent=47 // pred_check
          %p1025 = pneg %p803
        $region134: #{tpu_custom_call.1} parent=47 // pred_check_branch
          %1027 = sbr.rel (%p1025) target = $region136
        $region135: #{tpu_custom_call.1} parent=47 // pred_region
          %p1028 = scmp.lt.s32.totalorder %s69, 1
          %s1029 = scalar_select %p1028, %s69, 1
          %s1030 = scalar_lea.vmem %s59, %s1029
        $region136: #{tpu_custom_call.1} parent=47 // pred_fallthru
          _
      $region48: #{tpu_custom_call.1} parent=5 // pred_fallthru
        _
      %p1031 = scmp.le.s32.totalorder 1, %s69
      %p1032 = scmp.lt.s32.totalorder %s69, 3
      %p1033 = pnand %p1031, %p1032
      %p1034 = pneg %p1033
      // Predicated region
      $region137: #{tpu_custom_call.1} parent=5 // pred_check
        _
      $region138: #{tpu_custom_call.1} parent=5 // pred_check_branch
        %1036 = sbr.rel (%p1033) target = $region140
      $region139: #{tpu_custom_call.1} parent=5 // pred_region
        %s1037 = ssub.s32 %s69, 1
        // Predicated region
        $region141: #{tpu_custom_call.1} parent=139 // pred_check
          %p1038 = pneg %p90
        $region142: #{tpu_custom_call.1} parent=139 // pred_check_branch
          %1040 = sbr.rel (%p1038) target = $region144
        $region143: #{tpu_custom_call.1} parent=139 // pred_region
          %1041 = dma.done [#allocation4], 256
        $region144: #{tpu_custom_call.1} parent=139 // pred_fallthru
          _
        %p1042 = pneg %p90
        %p1043 = pneg %p87
        %p1044 = pneg %p111
        %p1045 = pneg %p108
        %p1046 = pneg %p132
        %p1047 = pneg %p129
        %p1048 = pneg %p153
        %p1049 = pneg %p150
        %p1050 = pneg %p174
        %p1051 = pneg %p171
        %p1052 = pneg %p195
        %p1053 = pneg %p192
        %p1054 = pneg %p216
        %p1055 = pneg %p213
        %p1056 = pneg %p237
        %p1057 = pneg %p234
        %p1058 = scmp.lt.s32.totalorder %s74, 1
        %s1059 = scalar_select %p1058, %s74, 1
        %s1060 = smul.addr %s1059, 4
        %s1061 = smul.addr %s1060, 8
        %s1062 = scalar_lea.vmem %s17, %s1061
        %p1063 = pneg %p263
        %p1064 = pneg %p260
        %p1065 = scmp.lt.s32.totalorder %s74, 1
        %s1066 = scalar_select %p1065, %s74, 1
        %s1067 = scalar_lea.vmem %s19, %s1066
        %p1068 = pneg %p289
        %p1069 = pneg %p286
        %p1070 = scmp.lt.s32.totalorder %s74, 1
        %s1071 = scalar_select %p1070, %s74, 1
        %s1072 = smul.addr %s1071, 4
        %s1073 = smul.addr %s1072, 8
        %s1074 = scalar_lea.vmem %s21, %s1073
        %p1075 = pneg %p315
        %p1076 = pneg %p312
        %p1077 = scmp.lt.s32.totalorder %s74, 1
        %s1078 = scalar_select %p1077, %s74, 1
        %s1079 = scalar_lea.vmem %s23, %s1078
        %p1080 = pneg %p341
        %p1081 = pneg %p338
        %p1082 = scmp.lt.s32.totalorder %s74, 1
        %s1083 = scalar_select %p1082, %s74, 1
        %s1084 = smul.addr %s1083, 4
        %s1085 = smul.addr %s1084, 8
        %s1086 = scalar_lea.vmem %s25, %s1085
        %p1087 = pneg %p367
        %p1088 = pneg %p364
        %p1089 = scmp.lt.s32.totalorder %s74, 1
        %s1090 = scalar_select %p1089, %s74, 1
        %s1091 = scalar_lea.vmem %s27, %s1090
        %p1092 = pneg %p393
        %p1093 = pneg %p390
        %p1094 = scmp.lt.s32.totalorder %s74, 1
        %s1095 = scalar_select %p1094, %s74, 1
        %s1096 = scalar_lea.vmem %s29, %s1095
        %p1097 = pneg %p419
        %p1098 = pneg %p416
        %p1099 = scmp.lt.s32.totalorder %s74, 1
        %s1100 = scalar_select %p1099, %s74, 1
        %s1101 = scalar_lea.vmem %s31, %s1100
        %p1102 = pneg %p445
        %p1103 = pneg %p442
        %p1104 = scmp.lt.s32.totalorder %s74, 1
        %s1105 = scalar_select %p1104, %s74, 1
        %s1106 = smul.addr %s1105, 4
        %s1107 = smul.addr %s1106, 8
        %s1108 = scalar_lea.vmem %s33, %s1107
        %p1109 = pneg %p471
        %p1110 = pneg %p468
        %p1111 = scmp.lt.s32.totalorder %s74, 1
        %s1112 = scalar_select %p1111, %s74, 1
        %s1113 = scalar_lea.vmem %s35, %s1112
        %p1114 = pneg %p497
        %p1115 = pneg %p494
        %p1116 = scmp.lt.s32.totalorder %s74, 1
        %s1117 = scalar_select %p1116, %s74, 1
        %s1118 = smul.addr %s1117, 4
        %s1119 = smul.addr %s1118, 8
        %s1120 = scalar_lea.vmem %s37, %s1119
        %p1121 = pneg %p523
        %p1122 = pneg %p520
        %p1123 = scmp.lt.s32.totalorder %s74, 1
        %s1124 = scalar_select %p1123, %s74, 1
        %s1125 = scalar_lea.vmem %s39, %s1124
        %p1126 = pneg %p549
        %p1127 = pneg %p546
        %p1128 = scmp.lt.s32.totalorder %s74, 1
        %s1129 = scalar_select %p1128, %s74, 1
        %s1130 = smul.addr %s1129, 4
        %s1131 = smul.addr %s1130, 8
        %s1132 = scalar_lea.vmem %s41, %s1131
        %p1133 = pneg %p575
        %p1134 = pneg %p572
        %p1135 = scmp.lt.s32.totalorder %s74, 1
        %s1136 = scalar_select %p1135, %s74, 1
        %s1137 = scalar_lea.vmem %s43, %s1136
        %p1138 = pneg %p601
        %p1139 = pneg %p598
        %p1140 = scmp.lt.s32.totalorder %s74, 1
        %s1141 = scalar_select %p1140, %s74, 1
        %s1142 = scalar_lea.vmem %s45, %s1141
        %p1143 = pneg %p627
        %p1144 = pneg %p624
        %p1145 = scmp.lt.s32.totalorder %s74, 1
        %s1146 = scalar_select %p1145, %s74, 1
        %s1147 = scalar_lea.vmem %s47, %s1146
        %p1148 = pneg %p653
        %p1149 = pneg %p650
        %p1150 = scmp.lt.s32.totalorder %s74, 1
        %s1151 = scalar_select %p1150, %s74, 1
        %s1152 = smul.addr %s1151, 4
        %s1153 = smul.addr %s1152, 8
        %s1154 = scalar_lea.vmem %s49, %s1153
        %p1155 = pneg %p679
        %p1156 = pneg %p676
        %p1157 = scmp.lt.s32.totalorder %s74, 1
        %s1158 = scalar_select %p1157, %s74, 1
        %s1159 = scalar_lea.vmem %s51, %s1158
        %p1160 = pneg %p705
        %p1161 = pneg %p702
        %p1162 = scmp.lt.s32.totalorder %s74, 1
        %s1163 = scalar_select %p1162, %s74, 1
        %s1164 = smul.addr %s1163, 8
        %s1165 = smul.addr %s1164, 8
        %s1166 = scalar_lea.vmem %s53, %s1165
        %p1167 = pneg %p731
        %p1168 = pneg %p728
        %p1169 = scmp.lt.s32.totalorder %s74, 1
        %s1170 = scalar_select %p1169, %s74, 1
        %s1171 = scalar_lea.vmem %s55, %s1170
        %p1172 = pneg %p757
        %p1173 = pneg %p754
        %p1174 = scmp.lt.s32.totalorder %s74, 1
        %s1175 = scalar_select %p1174, %s74, 1
        %s1176 = scalar_lea.vmem %s57, %s1175
        %p1177 = pneg %p783
        %p1178 = pneg %p780
        %p1179 = scmp.lt.s32.totalorder %s74, 1
        %s1180 = scalar_select %p1179, %s74, 1
        %s1181 = scalar_lea.vmem %s59, %s1180
        %p1182 = pneg %p809
        %p1183 = pneg %p806
        %p1184 = pneg %p830
        %p1185 = pneg %p827
        %p1186 = scmp.lt.s32.totalorder %s74, 1
        %s1187 = scalar_select %p1186, %s74, 1
        %s1188 = smul.addr %s1187, 4
        %s1189 = smul.addr %s1188, 8
        %s1190 = scalar_lea.vmem %s17, %s1189
        %p1191 = scmp.lt.s32.totalorder %s74, 1
        %s1192 = scalar_select %p1191, %s74, 1
        %s1193 = scalar_lea.vmem %s19, %s1192
        %p1194 = scmp.lt.s32.totalorder %s74, 1
        %s1195 = scalar_select %p1194, %s74, 1
        %s1196 = smul.addr %s1195, 4
        %s1197 = smul.addr %s1196, 8
        %s1198 = scalar_lea.vmem %s21, %s1197
        %p1199 = scmp.lt.s32.totalorder %s74, 1
        %s1200 = scalar_select %p1199, %s74, 1
        %s1201 = scalar_lea.vmem %s23, %s1200
        %p1202 = scmp.lt.s32.totalorder %s74, 1
        %s1203 = scalar_select %p1202, %s74, 1
        %s1204 = smul.addr %s1203, 4
        %s1205 = smul.addr %s1204, 8
        %s1206 = scalar_lea.vmem %s25, %s1205
        %p1207 = scmp.lt.s32.totalorder %s74, 1
        %s1208 = scalar_select %p1207, %s74, 1
        %s1209 = scalar_lea.vmem %s27, %s1208
        %p1210 = scmp.lt.s32.totalorder %s74, 1
        %s1211 = scalar_select %p1210, %s74, 1
        %s1212 = scalar_lea.vmem %s29, %s1211
        %p1213 = scmp.lt.s32.totalorder %s74, 1
        %s1214 = scalar_select %p1213, %s74, 1
        %s1215 = scalar_lea.vmem %s31, %s1214
        %p1216 = scmp.lt.s32.totalorder %s74, 1
        %s1217 = scalar_select %p1216, %s74, 1
        %s1218 = smul.addr %s1217, 4
        %s1219 = smul.addr %s1218, 8
        %s1220 = scalar_lea.vmem %s33, %s1219
        %p1221 = scmp.lt.s32.totalorder %s74, 1
        %s1222 = scalar_select %p1221, %s74, 1
        %s1223 = scalar_lea.vmem %s35, %s1222
        %p1224 = scmp.lt.s32.totalorder %s74, 1
        %s1225 = scalar_select %p1224, %s74, 1
        %s1226 = smul.addr %s1225, 4
        %s1227 = smul.addr %s1226, 8
        %s1228 = scalar_lea.vmem %s37, %s1227
        %p1229 = scmp.lt.s32.totalorder %s74, 1
        %s1230 = scalar_select %p1229, %s74, 1
        %s1231 = scalar_lea.vmem %s39, %s1230
        %p1232 = scmp.lt.s32.totalorder %s74, 1
        %s1233 = scalar_select %p1232, %s74, 1
        %s1234 = smul.addr %s1233, 4
        %s1235 = smul.addr %s1234, 8
        %s1236 = scalar_lea.vmem %s41, %s1235
        %p1237 = scmp.lt.s32.totalorder %s74, 1
        %s1238 = scalar_select %p1237, %s74, 1
        %s1239 = scalar_lea.vmem %s43, %s1238
        %p1240 = scmp.lt.s32.totalorder %s74, 1
        %s1241 = scalar_select %p1240, %s74, 1
        %s1242 = scalar_lea.vmem %s45, %s1241
        %p1243 = scmp.lt.s32.totalorder %s74, 1
        %s1244 = scalar_select %p1243, %s74, 1
        %s1245 = scalar_lea.vmem %s47, %s1244
        %p1246 = scmp.lt.s32.totalorder %s74, 1
        %s1247 = scalar_select %p1246, %s74, 1
        %s1248 = smul.addr %s1247, 4
        %s1249 = smul.addr %s1248, 8
        %s1250 = scalar_lea.vmem %s49, %s1249
        %p1251 = scmp.lt.s32.totalorder %s74, 1
        %s1252 = scalar_select %p1251, %s74, 1
        %s1253 = scalar_lea.vmem %s51, %s1252
        %p1254 = scmp.lt.s32.totalorder %s74, 1
        %s1255 = scalar_select %p1254, %s74, 1
        %s1256 = smul.addr %s1255, 8
        %s1257 = smul.addr %s1256, 8
        %s1258 = scalar_lea.vmem %s53, %s1257
        %p1259 = scmp.lt.s32.totalorder %s74, 1
        %s1260 = scalar_select %p1259, %s74, 1
        %s1261 = scalar_lea.vmem %s55, %s1260
        %p1262 = scmp.lt.s32.totalorder %s74, 1
        %s1263 = scalar_select %p1262, %s74, 1
        %s1264 = scalar_lea.vmem %s57, %s1263
        %p1265 = scmp.lt.s32.totalorder %s74, 1
        %s1266 = scalar_select %p1265, %s74, 1
        %s1267 = scalar_lea.vmem %s59, %s1266
        %p1268 = scmp.eq.s32.totalorder %s74, 0
        // Predicated region
        $region145: #{tpu_custom_call.1} parent=139 // pred_check
          %p1269 = pneg %p1268
        $region146: #{tpu_custom_call.1} parent=139 // pred_check_branch
          %1271 = sbr.rel (%p1269) target = $region148
        $region147: #{tpu_custom_call.1} parent=139 // pred_region
          %v1272 = vld [vmem:[#allocation3] sm:$0xff]
          %v1273 = vld [vmem:[#allocation3 + $0x8] sm:$0xff]
          %vm1274 = vcmask 261120
          %1275 = vst.msk [vmem:[#allocation2] sm:$0xff] %vm1274, %v1272
          %1276 = vst.msk [vmem:[#allocation2 + $0x8] sm:$0xff] %vm1274, %v1273
        $region148: #{tpu_custom_call.1} parent=139 // pred_fallthru
          _
        %v1277 = vld [vmem:[#allocation2] sm:$0xff]
        %v1278 = vld [vmem:[#allocation2 + $0x8] sm:$0xff]
        %v1279 = vld [vmem:[%s3] sm:$0xff]
        %v1280 = vld [vmem:[%s3 + $0x8] sm:$0xff]
        %v1281 = vld [vmem:[%s1190] sm:$0xff]
        %v1282 = vld [vmem:[%s1190 + $0x8] sm:$0xff]
        %v1283 = vld [vmem:[%s1190 + $0x10] sm:$0xff]
        %v1284 = vld [vmem:[%s1190 + $0x18] sm:$0xff]
        %v1285 = vld [vmem:[%s1193] sm:$0x1]
        %v1286 = vld [vmem:[%s1198] sm:$0xff]
        %v1287 = vld [vmem:[%s1198 + $0x8] sm:$0xff]
        %v1288 = vld [vmem:[%s1198 + $0x10] sm:$0xff]
        %v1289 = vld [vmem:[%s1198 + $0x18] sm:$0xff]
        %v1290 = vld [vmem:[%s1201] sm:$0x1]
        %v1291 = vld [vmem:[%s1206] sm:$0xff]
        %v1292 = vld [vmem:[%s1206 + $0x8] sm:$0xff]
        %v1293 = vld [vmem:[%s1206 + $0x10] sm:$0xff]
        %v1294 = vld [vmem:[%s1206 + $0x18] sm:$0xff]
        %v1295 = vld [vmem:[%s1209] sm:$0x1]
        %v1296 = vld [vmem:[%s1212] sm:$0x1]
        %v1297 = vld [vmem:[%s1215] sm:$0x1]
        %v1298 = vld [vmem:[%s1220] sm:$0xff]
        %v1299 = vld [vmem:[%s1220 + $0x8] sm:$0xff]
        %v1300 = vld [vmem:[%s1220 + $0x10] sm:$0xff]
        %v1301 = vld [vmem:[%s1220 + $0x18] sm:$0xff]
        %v1302 = vld [vmem:[%s1223] sm:$0x1]
        %v1303 = vld [vmem:[%s1228] sm:$0xff]
        %v1304 = vld [vmem:[%s1228 + $0x8] sm:$0xff]
        %v1305 = vld [vmem:[%s1228 + $0x10] sm:$0xff]
        %v1306 = vld [vmem:[%s1228 + $0x18] sm:$0xff]
        %v1307 = vld [vmem:[%s1231] sm:$0x1]
        %v1308 = vld [vmem:[%s1236] sm:$0xff]
        %v1309 = vld [vmem:[%s1236 + $0x8] sm:$0xff]
        %v1310 = vld [vmem:[%s1236 + $0x10] sm:$0xff]
        %v1311 = vld [vmem:[%s1236 + $0x18] sm:$0xff]
        %v1312 = vld [vmem:[%s1239] sm:$0x1]
        %v1313 = vld [vmem:[%s1242] sm:$0x1]
        %v1314 = vld [vmem:[%s1245] sm:$0x1]
        %v1315 = vld [vmem:[%s1250] sm:$0xff]
        %v1316 = vld [vmem:[%s1250 + $0x8] sm:$0xff]
        %v1317 = vld [vmem:[%s1250 + $0x10] sm:$0xff]
        %v1318 = vld [vmem:[%s1250 + $0x18] sm:$0xff]
        %v1319 = vld [vmem:[%s1253] sm:$0x1]
        %v1320 = vld [vmem:[%s1258] sm:$0xff]
        %v1321 = vld [vmem:[%s1258 + $0x8] sm:$0xff]
        %v1322 = vld [vmem:[%s1258 + $0x10] sm:$0xff]
        %v1323 = vld [vmem:[%s1258 + $0x18] sm:$0xff]
        %v1324 = vld [vmem:[%s1258 + $0x20] sm:$0xff]
        %v1325 = vld [vmem:[%s1258 + $0x28] sm:$0xff]
        %v1326 = vld [vmem:[%s1258 + $0x30] sm:$0xff]
        %v1327 = vld [vmem:[%s1258 + $0x38] sm:$0xff]
        %v1328 = vld [vmem:[%s1261] sm:$0x1]
        %v1329 = vld [vmem:[%s1264] sm:$0x1]
        %v1330 = vld [vmem:[%s1267] sm:$0x1]
        %v1331 = vld [vmem:[%s13] sm:$0x1]
        %v1332 = vld [vmem:[%s13 + $0x1] sm:$0x1]
        %v1333 = vld [vmem:[%s13 + $0x2] sm:$0x1]
        %v1334 = vld [vmem:[%s13 + $0x3] sm:$0x1]
        %v1335 = vld [vmem:[%s15] sm:$0x1]
        %v1336 = vld [vmem:[%s15 + $0x1] sm:$0x1]
        %v1337 = vadd.f32 %v1277, %v1279
        %v1338 = vadd.f32 %v1278, %v1280
        %v1340 = vlaneseq
        %v1341 = vshrl.u32 %v1340, 7
        %v1342 = vsub.s32 0, %v1341
        %v1343 = vrot.slane %v1285, %v1342
        %vm1345 = vcmask 261120
        %v1347 = vsel %vm1345, %v1337, 0
        %v1350 = vsel %vm1345, %v1338, 0
        %1352 = vmatprep.subr.mxu0 0.0
        %1353 = vmatpush1.msra.mxu0 %v1281
        %1354 = vmatprep.subr.mxu0 0.0
        %1355 = vmatpush1.msra.mxu0 %v1282
        %1356 = vmatprep.subr.mxu0 0.0
        %1357 = vmatpush1.msra.mxu0 %v1283
        %1358 = vmatprep.subr.mxu0 0.0
        %1359 = vmatpush1.msra.mxu0 %v1284
        %1360 = vmatprep.subr.mxu0 0.0
        %1361 = vmatpush1.msra.mxu0 0.0
        %1362 = vmatprep.subr.mxu0 0.0
        %1363 = vmatpush1.msra.mxu0 0.0
        %1364 = vmatprep.subr.mxu0 0.0
        %1365 = vmatpush1.msra.mxu0 0.0
        %1366 = vmatprep.subr.mxu0 0.0
        %1367 = vmatpush1.msra.mxu0 0.0
        %1368 = vmatprep.subr.mxu0 0.0
        %1369 = vmatpush1.msra.mxu0 0.0
        %1370 = vmatprep.subr.mxu0 0.0
        %1371 = vmatpush1.msra.mxu0 0.0
        %1372 = vmatprep.subr.mxu0 0.0
        %1373 = vmatpush1.msra.mxu0 0.0
        %1374 = vmatprep.subr.mxu0 0.0
        %1375 = vmatpush1.msra.mxu0 0.0
        %1376 = vmatprep.subr.mxu0 0.0
        %1377 = vmatpush1.msra.mxu0 0.0
        %1378 = vmatprep.subr.mxu0 0.0
        %1379 = vmatpush1.msra.mxu0 0.0
        %1380 = vmatprep.subr.mxu0 0.0
        %1381 = vmatpush1.msra.mxu0 0.0
        %1382 = vmatprep.subr.mxu0 0.0
        %1383 = vmatpush1.msra.mxu0 0.0
        %1384 = vmatprep.subr.mxu0 0.0
        %1385 = vmatpush1.msra.mxu0 0.0
        %1386 = vmatprep.subr.mxu0 0.0
        %1387 = vmatpush1.msra.mxu0 0.0
        %1388 = vmatprep.subr.mxu0 0.0
        %1389 = vmatpush1.msra.mxu0 0.0
        %1390 = vmatprep.subr.mxu0 0.0
        %1391 = vmatpush1.msra.mxu0 0.0
        %1392 = vmatprep.subr.mxu0 0.0
        %1393 = vmatpush1.msra.mxu0 0.0
        %1394 = vmatprep.subr.mxu0 0.0
        %1395 = vmatpush1.msra.mxu0 0.0
        %1396 = vmatprep.subr.mxu0 0.0
        %1397 = vmatpush1.msra.mxu0 0.0
        %1398 = vmatprep.subr.mxu0 0.0
        %1399 = vmatpush1.msra.mxu0 0.0
        %1400 = vmatprep.subr.mxu0 0.0
        %1401 = vmatpush1.msra.mxu0 0.0
        %1402 = vmatprep.subr.mxu0 0.0
        %1403 = vmatpush1.msra.mxu0 0.0
        %1404 = vmatprep.subr.mxu0 0.0
        %1405 = vmatpush1.msra.mxu0 0.0
        %1406 = vmatprep.subr.mxu0 0.0
        %1407 = vmatpush1.msra.mxu0 0.0
        %1408 = vmatprep.subr.mxu0 0.0
        %1409 = vmatpush1.msra.mxu0 0.0
        %1410 = vmatprep.subr.mxu0 0.0
        %1411 = vmatpush1.msra.mxu0 0.0
        %1412 = vmatprep.subr.mxu0 0.0
        %1413 = vmatpush1.msra.mxu0 0.0
        %1414 = vmatprep.subr.mxu0 0.0
        %1415 = vmatpush1.msra.mxu0 0.0
        %1416 = vmatprep.mubr.f32.mxu0 0.0
        %1417 = vmatmul.mubr.f32.gmra.mrb[0].mxu0 %v1347
        %v1418 = vpop.f32.mrb[0].mxu0
        %v1419 = vadd.f32 %v1343, %v1418
        %v1420 = vpop.f32.mrb[0].mxu0
        %1421 = vmatprep.mubr.f32.mxu0 0.0
        %1422 = vmatmul.mubr.f32.gmra.mrb[0].mxu0 %v1350
        %v1423 = vpop.f32.mrb[0].mxu0
        %v1424 = vadd.f32 %v1343, %v1423
        %v1425 = vpop.f32.mrb[0].mxu0
        %1426 = vdwg.mxu0
        %v1428 = vlaneseq
        %v1429 = vshrl.u32 %v1428, 7
        %v1430 = vsub.s32 0, %v1429
        %v1431 = vrot.slane %v1290, %v1430
        %v1434 = vsel %vm1345, %v1277, 0
        %v1437 = vsel %vm1345, %v1278, 0
        %1439 = vmatprep.subr.mxu0 0.0
        %1440 = vmatpush1.msra.mxu0 %v1286
        %1441 = vmatprep.subr.mxu0 0.0
        %1442 = vmatpush1.msra.mxu0 %v1287
        %1443 = vmatprep.subr.mxu0 0.0
        %1444 = vmatpush1.msra.mxu0 %v1288
        %1445 = vmatprep.subr.mxu0 0.0
        %1446 = vmatpush1.msra.mxu0 %v1289
        %1447 = vmatprep.subr.mxu0 0.0
        %1448 = vmatpush1.msra.mxu0 0.0
        %1449 = vmatprep.subr.mxu0 0.0
        %1450 = vmatpush1.msra.mxu0 0.0
        %1451 = vmatprep.subr.mxu0 0.0
        %1452 = vmatpush1.msra.mxu0 0.0
        %1453 = vmatprep.subr.mxu0 0.0
        %1454 = vmatpush1.msra.mxu0 0.0
        %1455 = vmatprep.subr.mxu0 0.0
        %1456 = vmatpush1.msra.mxu0 0.0
        %1457 = vmatprep.subr.mxu0 0.0
        %1458 = vmatpush1.msra.mxu0 0.0
        %1459 = vmatprep.subr.mxu0 0.0
        %1460 = vmatpush1.msra.mxu0 0.0
        %1461 = vmatprep.subr.mxu0 0.0
        %1462 = vmatpush1.msra.mxu0 0.0
        %1463 = vmatprep.subr.mxu0 0.0
        %1464 = vmatpush1.msra.mxu0 0.0
        %1465 = vmatprep.subr.mxu0 0.0
        %1466 = vmatpush1.msra.mxu0 0.0
        %1467 = vmatprep.subr.mxu0 0.0
        %1468 = vmatpush1.msra.mxu0 0.0
        %1469 = vmatprep.subr.mxu0 0.0
        %1470 = vmatpush1.msra.mxu0 0.0
        %1471 = vmatprep.subr.mxu0 0.0
        %1472 = vmatpush1.msra.mxu0 0.0
        %1473 = vmatprep.subr.mxu0 0.0
        %1474 = vmatpush1.msra.mxu0 0.0
        %1475 = vmatprep.subr.mxu0 0.0
        %1476 = vmatpush1.msra.mxu0 0.0
        %1477 = vmatprep.subr.mxu0 0.0
        %1478 = vmatpush1.msra.mxu0 0.0
        %1479 = vmatprep.subr.mxu0 0.0
        %1480 = vmatpush1.msra.mxu0 0.0
        %1481 = vmatprep.subr.mxu0 0.0
        %1482 = vmatpush1.msra.mxu0 0.0
        %1483 = vmatprep.subr.mxu0 0.0
        %1484 = vmatpush1.msra.mxu0 0.0
        %1485 = vmatprep.subr.mxu0 0.0
        %1486 = vmatpush1.msra.mxu0 0.0
        %1487 = vmatprep.subr.mxu0 0.0
        %1488 = vmatpush1.msra.mxu0 0.0
        %1489 = vmatprep.subr.mxu0 0.0
        %1490 = vmatpush1.msra.mxu0 0.0
        %1491 = vmatprep.subr.mxu0 0.0
        %1492 = vmatpush1.msra.mxu0 0.0
        %1493 = vmatprep.subr.mxu0 0.0
        %1494 = vmatpush1.msra.mxu0 0.0
        %1495 = vmatprep.subr.mxu0 0.0
        %1496 = vmatpush1.msra.mxu0 0.0
        %1497 = vmatprep.subr.mxu0 0.0
        %1498 = vmatpush1.msra.mxu0 0.0
        %1499 = vmatprep.subr.mxu0 0.0
        %1500 = vmatpush1.msra.mxu0 0.0
        %1501 = vmatprep.subr.mxu0 0.0
        %1502 = vmatpush1.msra.mxu0 0.0
        %1503 = vmatprep.mubr.f32.mxu0 0.0
        %1504 = vmatmul.mubr.f32.gmra.mrb[0].mxu0 %v1434
        %v1505 = vpop.f32.mrb[0].mxu0
        %v1506 = vadd.f32 %v1431, %v1505
        %v1507 = vpop.f32.mrb[0].mxu0
        %1508 = vmatprep.mubr.f32.mxu0 0.0
        %1509 = vmatmul.mubr.f32.gmra.mrb[0].mxu0 %v1437
        %v1510 = vpop.f32.mrb[0].mxu0
        %v1511 = vadd.f32 %v1431, %v1510
        %v1512 = vpop.f32.mrb[0].mxu0
        %1513 = vdwg.mxu0
        %1515 = vrot.lane.b32.xlu0 %v1419, 96
        %v1516 = vpop.permute.xlu0 %1515
        %vm1517 = vcmask 64512
        %v1518 = vsel %vm1517, %v1419, 0
        %v1520 = vsel %vm1517, %v1516, 0
        %1522 = vmatprep.subr.mxu0 0.0
        %1523 = vmatpush1.xpose.msra.mxu0 %v1520
        %1524 = vmatprep.subr.mxu0 0.0
        %1525 = vmatpush1.xpose.msra.mxu0 0.0
        %1526 = vmatprep.subr.mxu0 0.0
        %1527 = vmatpush1.xpose.msra.mxu0 0.0
        %1528 = vmatprep.subr.mxu0 0.0
        %1529 = vmatpush1.xpose.msra.mxu0 0.0
        %1530 = vmatprep.subr.mxu0 0.0
        %1531 = vmatpush1.xpose.msra.mxu0 0.0
        %1532 = vmatprep.subr.mxu0 0.0
        %1533 = vmatpush1.xpose.msra.mxu0 0.0
        %1534 = vmatprep.subr.mxu0 0.0
        %1535 = vmatpush1.xpose.msra.mxu0 0.0
        %1536 = vmatprep.subr.mxu0 0.0
        %1537 = vmatpush1.xpose.msra.mxu0 0.0
        %1538 = vmatprep.subr.mxu0 0.0
        %1539 = vmatpush1.xpose.msra.mxu0 0.0
        %1540 = vmatprep.subr.mxu0 0.0
        %1541 = vmatpush1.xpose.msra.mxu0 0.0
        %1542 = vmatprep.subr.mxu0 0.0
        %1543 = vmatpush1.xpose.msra.mxu0 0.0
        %1544 = vmatprep.subr.mxu0 0.0
        %1545 = vmatpush1.xpose.msra.mxu0 0.0
        %1546 = vmatprep.subr.mxu0 0.0
        %1547 = vmatpush1.xpose.msra.mxu0 0.0
        %1548 = vmatprep.subr.mxu0 0.0
        %1549 = vmatpush1.xpose.msra.mxu0 0.0
        %1550 = vmatprep.subr.mxu0 0.0
        %1551 = vmatpush1.xpose.msra.mxu0 0.0
        %1552 = vmatprep.subr.mxu0 0.0
        %1553 = vmatpush1.xpose.msra.mxu0 0.0
        %1554 = vmatprep.subr.mxu0 0.0
        %1555 = vmatpush1.xpose.msra.mxu0 0.0
        %1556 = vmatprep.subr.mxu0 0.0
        %1557 = vmatpush1.xpose.msra.mxu0 0.0
        %1558 = vmatprep.subr.mxu0 0.0
        %1559 = vmatpush1.xpose.msra.mxu0 0.0
        %1560 = vmatprep.subr.mxu0 0.0
        %1561 = vmatpush1.xpose.msra.mxu0 0.0
        %1562 = vmatprep.subr.mxu0 0.0
        %1563 = vmatpush1.xpose.msra.mxu0 0.0
        %1564 = vmatprep.subr.mxu0 0.0
        %1565 = vmatpush1.xpose.msra.mxu0 0.0
        %1566 = vmatprep.subr.mxu0 0.0
        %1567 = vmatpush1.xpose.msra.mxu0 0.0
        %1568 = vmatprep.subr.mxu0 0.0
        %1569 = vmatpush1.xpose.msra.mxu0 0.0
        %1570 = vmatprep.subr.mxu0 0.0
        %1571 = vmatpush1.xpose.msra.mxu0 0.0
        %1572 = vmatprep.subr.mxu0 0.0
        %1573 = vmatpush1.xpose.msra.mxu0 0.0
        %1574 = vmatprep.subr.mxu0 0.0
        %1575 = vmatpush1.xpose.msra.mxu0 0.0
        %1576 = vmatprep.subr.mxu0 0.0
        %1577 = vmatpush1.xpose.msra.mxu0 0.0
        %1578 = vmatprep.subr.mxu0 0.0
        %1579 = vmatpush1.xpose.msra.mxu0 0.0
        %1580 = vmatprep.subr.mxu0 0.0
        %1581 = vmatpush1.xpose.msra.mxu0 0.0
        %1582 = vmatprep.subr.mxu0 0.0
        %1583 = vmatpush1.xpose.msra.mxu0 0.0
        %1584 = vmatprep.subr.mxu0 0.0
        %1585 = vmatpush1.xpose.msra.mxu0 0.0
        %1586 = vmatprep.mubr.f32.mxu0 0.0
        %1587 = vmatmul.mubr.f32.gmra.mrb[0].mxu0 %v1518
        %v1588 = vpop.f32.mrb[0].mxu0
        %v1589 = vadd.f32 0.0, %v1588
        %v1590 = vpop.f32.mrb[0].mxu0
        %1591 = vdwg.mxu0
        %v1592 = vmul.f32 %v1589, 0.35355338
        %v1593 = vsel %vm1517, %v1592, -inf
        %1594 = vmax.xlane.f32.xlu0 %v1593
        %v1595 = vpop.xlane.xlu0 %1594
        %v1596 = vsub.f32 %v1592, %v1595
        %v1597 = vmul.f32 %v1596, 1.442695
        %v1598 = vpow.pop %v1597
        %v1599 = vsel %vm1517, %v1598, 0.0
        %1600 = vadd.xlane.f32.xlu0 %v1599
        %v1601 = vpop.xlane.xlu0 %1600
        %v1602 = vrcp.pop %v1601
        %v1603 = vmul.f32 %v1598, %v1602
        %v1605 = vsel %vm1517, %v1603, 0
        %1607 = vmatprep.subr.mxu0 0.0
        %1608 = vmatpush1.msra.mxu0 %v1506
        %1609 = vmatprep.subr.mxu0 0.0
        %1610 = vmatpush1.msra.mxu0 0.0
        %1611 = vmatprep.subr.mxu0 0.0
        %1612 = vmatpush1.msra.mxu0 0.0
        %1613 = vmatprep.subr.mxu0 0.0
        %1614 = vmatpush1.msra.mxu0 0.0
        %1615 = vmatprep.subr.mxu0 0.0
        %1616 = vmatpush1.msra.mxu0 0.0
        %1617 = vmatprep.subr.mxu0 0.0
        %1618 = vmatpush1.msra.mxu0 0.0
        %1619 = vmatprep.subr.mxu0 0.0
        %1620 = vmatpush1.msra.mxu0 0.0
        %1621 = vmatprep.subr.mxu0 0.0
        %1622 = vmatpush1.msra.mxu0 0.0
        %1623 = vmatprep.subr.mxu0 0.0
        %1624 = vmatpush1.msra.mxu0 0.0
        %1625 = vmatprep.subr.mxu0 0.0
        %1626 = vmatpush1.msra.mxu0 0.0
        %1627 = vmatprep.subr.mxu0 0.0
        %1628 = vmatpush1.msra.mxu0 0.0
        %1629 = vmatprep.subr.mxu0 0.0
        %1630 = vmatpush1.msra.mxu0 0.0
        %1631 = vmatprep.subr.mxu0 0.0
        %1632 = vmatpush1.msra.mxu0 0.0
        %1633 = vmatprep.subr.mxu0 0.0
        %1634 = vmatpush1.msra.mxu0 0.0
        %1635 = vmatprep.subr.mxu0 0.0
        %1636 = vmatpush1.msra.mxu0 0.0
        %1637 = vmatprep.subr.mxu0 0.0
        %1638 = vmatpush1.msra.mxu0 0.0
        %1639 = vmatprep.subr.mxu0 0.0
        %1640 = vmatpush1.msra.mxu0 0.0
        %1641 = vmatprep.subr.mxu0 0.0
        %1642 = vmatpush1.msra.mxu0 0.0
        %1643 = vmatprep.subr.mxu0 0.0
        %1644 = vmatpush1.msra.mxu0 0.0
        %1645 = vmatprep.subr.mxu0 0.0
        %1646 = vmatpush1.msra.mxu0 0.0
        %1647 = vmatprep.subr.mxu0 0.0
        %1648 = vmatpush1.msra.mxu0 0.0
        %1649 = vmatprep.subr.mxu0 0.0
        %1650 = vmatpush1.msra.mxu0 0.0
        %1651 = vmatprep.subr.mxu0 0.0
        %1652 = vmatpush1.msra.mxu0 0.0
        %1653 = vmatprep.subr.mxu0 0.0
        %1654 = vmatpush1.msra.mxu0 0.0
        %1655 = vmatprep.subr.mxu0 0.0
        %1656 = vmatpush1.msra.mxu0 0.0
        %1657 = vmatprep.subr.mxu0 0.0
        %1658 = vmatpush1.msra.mxu0 0.0
        %1659 = vmatprep.subr.mxu0 0.0
        %1660 = vmatpush1.msra.mxu0 0.0
        %1661 = vmatprep.subr.mxu0 0.0
        %1662 = vmatpush1.msra.mxu0 0.0
        %1663 = vmatprep.subr.mxu0 0.0
        %1664 = vmatpush1.msra.mxu0 0.0
        %1665 = vmatprep.subr.mxu0 0.0
        %1666 = vmatpush1.msra.mxu0 0.0
        %1667 = vmatprep.subr.mxu0 0.0
        %1668 = vmatpush1.msra.mxu0 0.0
        %1669 = vmatprep.subr.mxu0 0.0
        %1670 = vmatpush1.msra.mxu0 0.0
        %1671 = vmatprep.mubr.f32.mxu0 0.0
        %1672 = vmatmul.mubr.f32.gmra.mrb[0].mxu0 %v1605
        %v1673 = vpop.f32.mrb[0].mxu0
        %v1674 = vadd.f32 0.0, %v1673
        %v1675 = vpop.f32.mrb[0].mxu0
        %1676 = vdwg.mxu0
        %1677 = vrot.lane.b32.xlu0 %v1419, 120
        %v1678 = vpop.permute.xlu0 %1677
        %1679 = vrot.lane.b32.xlu0 %v1419, 88
        %v1680 = vpop.permute.xlu0 %1679
        %v1681 = vsel %vm1517, %v1678, 0
        %v1683 = vsel %vm1517, %v1680, 0
        %1685 = vmatprep.subr.mxu0 0.0
        %1686 = vmatpush1.xpose.msra.mxu0 %v1683
        %1687 = vmatprep.subr.mxu0 0.0
        %1688 = vmatpush1.xpose.msra.mxu0 0.0
        %1689 = vmatprep.subr.mxu0 0.0
        %1690 = vmatpush1.xpose.msra.mxu0 0.0
        %1691 = vmatprep.subr.mxu0 0.0
        %1692 = vmatpush1.xpose.msra.mxu0 0.0
        %1693 = vmatprep.subr.mxu0 0.0
        %1694 = vmatpush1.xpose.msra.mxu0 0.0
        %1695 = vmatprep.subr.mxu0 0.0
        %1696 = vmatpush1.xpose.msra.mxu0 0.0
        %1697 = vmatprep.subr.mxu0 0.0
        %1698 = vmatpush1.xpose.msra.mxu0 0.0
        %1699 = vmatprep.subr.mxu0 0.0
        %1700 = vmatpush1.xpose.msra.mxu0 0.0
        %1701 = vmatprep.subr.mxu0 0.0
        %1702 = vmatpush1.xpose.msra.mxu0 0.0
        %1703 = vmatprep.subr.mxu0 0.0
        %1704 = vmatpush1.xpose.msra.mxu0 0.0
        %1705 = vmatprep.subr.mxu0 0.0
        %1706 = vmatpush1.xpose.msra.mxu0 0.0
        %1707 = vmatprep.subr.mxu0 0.0
        %1708 = vmatpush1.xpose.msra.mxu0 0.0
        %1709 = vmatprep.subr.mxu0 0.0
        %1710 = vmatpush1.xpose.msra.mxu0 0.0
        %1711 = vmatprep.subr.mxu0 0.0
        %1712 = vmatpush1.xpose.msra.mxu0 0.0
        %1713 = vmatprep.subr.mxu0 0.0
        %1714 = vmatpush1.xpose.msra.mxu0 0.0
        %1715 = vmatprep.subr.mxu0 0.0
        %1716 = vmatpush1.xpose.msra.mxu0 0.0
        %1717 = vmatprep.subr.mxu0 0.0
        %1718 = vmatpush1.xpose.msra.mxu0 0.0
        %1719 = vmatprep.subr.mxu0 0.0
        %1720 = vmatpush1.xpose.msra.mxu0 0.0
        %1721 = vmatprep.subr.mxu0 0.0
        %1722 = vmatpush1.xpose.msra.mxu0 0.0
        %1723 = vmatprep.subr.mxu0 0.0
        %1724 = vmatpush1.xpose.msra.mxu0 0.0
        %1725 = vmatprep.subr.mxu0 0.0
        %1726 = vmatpush1.xpose.msra.mxu0 0.0
        %1727 = vmatprep.subr.mxu0 0.0
        %1728 = vmatpush1.xpose.msra.mxu0 0.0
        %1729 = vmatprep.subr.mxu0 0.0
        %1730 = vmatpush1.xpose.msra.mxu0 0.0
        %1731 = vmatprep.subr.mxu0 0.0
        %1732 = vmatpush1.xpose.msra.mxu0 0.0
        %1733 = vmatprep.subr.mxu0 0.0
        %1734 = vmatpush1.xpose.msra.mxu0 0.0
        %1735 = vmatprep.subr.mxu0 0.0
        %1736 = vmatpush1.xpose.msra.mxu0 0.0
        %1737 = vmatprep.subr.mxu0 0.0
        %1738 = vmatpush1.xpose.msra.mxu0 0.0
        %1739 = vmatprep.subr.mxu0 0.0
        %1740 = vmatpush1.xpose.msra.mxu0 0.0
        %1741 = vmatprep.subr.mxu0 0.0
        %1742 = vmatpush1.xpose.msra.mxu0 0.0
        %1743 = vmatprep.subr.mxu0 0.0
        %1744 = vmatpush1.xpose.msra.mxu0 0.0
        %1745 = vmatprep.subr.mxu0 0.0
        %1746 = vmatpush1.xpose.msra.mxu0 0.0
        %1747 = vmatprep.subr.mxu0 0.0
        %1748 = vmatpush1.xpose.msra.mxu0 0.0
        %1749 = vmatprep.mubr.f32.mxu0 0.0
        %1750 = vmatmul.mubr.f32.gmra.mrb[0].mxu0 %v1681
        %v1751 = vpop.f32.mrb[0].mxu0
        %v1752 = vadd.f32 0.0, %v1751
        %v1753 = vpop.f32.mrb[0].mxu0
        %1754 = vdwg.mxu0
        %v1755 = vmul.f32 %v1752, 0.35355338
        %v1756 = vsel %vm1517, %v1755, -inf
        %1757 = vmax.xlane.f32.xlu0 %v1756
        %v1758 = vpop.xlane.xlu0 %1757
        %v1759 = vsub.f32 %v1755, %v1758
        %v1760 = vmul.f32 %v1759, 1.442695
        %v1761 = vpow.pop %v1760
        %v1762 = vsel %vm1517, %v1761, 0.0
        %1763 = vadd.xlane.f32.xlu0 %v1762
        %v1764 = vpop.xlane.xlu0 %1763
        %v1765 = vrcp.pop %v1764
        %v1766 = vmul.f32 %v1761, %v1765
        %1768 = vrot.lane.b32.xlu0 %v1506, 120
        %v1769 = vpop.permute.xlu0 %1768
        %v1772 = vsel %vm1517, %v1766, 0
        %1774 = vmatprep.subr.mxu0 0.0
        %1775 = vmatpush1.msra.mxu0 %v1769
        %1776 = vmatprep.subr.mxu0 0.0
        %1777 = vmatpush1.msra.mxu0 0.0
        %1778 = vmatprep.subr.mxu0 0.0
        %1779 = vmatpush1.msra.mxu0 0.0
        %1780 = vmatprep.subr.mxu0 0.0
        %1781 = vmatpush1.msra.mxu0 0.0
        %1782 = vmatprep.subr.mxu0 0.0
        %1783 = vmatpush1.msra.mxu0 0.0
        %1784 = vmatprep.subr.mxu0 0.0
        %1785 = vmatpush1.msra.mxu0 0.0
        %1786 = vmatprep.subr.mxu0 0.0
        %1787 = vmatpush1.msra.mxu0 0.0
        %1788 = vmatprep.subr.mxu0 0.0
        %1789 = vmatpush1.msra.mxu0 0.0
        %1790 = vmatprep.subr.mxu0 0.0
        %1791 = vmatpush1.msra.mxu0 0.0
        %1792 = vmatprep.subr.mxu0 0.0
        %1793 = vmatpush1.msra.mxu0 0.0
        %1794 = vmatprep.subr.mxu0 0.0
        %1795 = vmatpush1.msra.mxu0 0.0
        %1796 = vmatprep.subr.mxu0 0.0
        %1797 = vmatpush1.msra.mxu0 0.0
        %1798 = vmatprep.subr.mxu0 0.0
        %1799 = vmatpush1.msra.mxu0 0.0
        %1800 = vmatprep.subr.mxu0 0.0
        %1801 = vmatpush1.msra.mxu0 0.0
        %1802 = vmatprep.subr.mxu0 0.0
        %1803 = vmatpush1.msra.mxu0 0.0
        %1804 = vmatprep.subr.mxu0 0.0
        %1805 = vmatpush1.msra.mxu0 0.0
        %1806 = vmatprep.subr.mxu0 0.0
        %1807 = vmatpush1.msra.mxu0 0.0
        %1808 = vmatprep.subr.mxu0 0.0
        %1809 = vmatpush1.msra.mxu0 0.0
        %1810 = vmatprep.subr.mxu0 0.0
        %1811 = vmatpush1.msra.mxu0 0.0
        %1812 = vmatprep.subr.mxu0 0.0
        %1813 = vmatpush1.msra.mxu0 0.0
        %1814 = vmatprep.subr.mxu0 0.0
        %1815 = vmatpush1.msra.mxu0 0.0
        %1816 = vmatprep.subr.mxu0 0.0
        %1817 = vmatpush1.msra.mxu0 0.0
        %1818 = vmatprep.subr.mxu0 0.0
        %1819 = vmatpush1.msra.mxu0 0.0
        %1820 = vmatprep.subr.mxu0 0.0
        %1821 = vmatpush1.msra.mxu0 0.0
        %1822 = vmatprep.subr.mxu0 0.0
        %1823 = vmatpush1.msra.mxu0 0.0
        %1824 = vmatprep.subr.mxu0 0.0
        %1825 = vmatpush1.msra.mxu0 0.0
        %1826 = vmatprep.subr.mxu0 0.0
        %1827 = vmatpush1.msra.mxu0 0.0
        %1828 = vmatprep.subr.mxu0 0.0
        %1829 = vmatpush1.msra.mxu0 0.0
        %1830 = vmatprep.subr.mxu0 0.0
        %1831 = vmatpush1.msra.mxu0 0.0
        %1832 = vmatprep.subr.mxu0 0.0
        %1833 = vmatpush1.msra.mxu0 0.0
        %1834 = vmatprep.subr.mxu0 0.0
        %1835 = vmatpush1.msra.mxu0 0.0
        %1836 = vmatprep.subr.mxu0 0.0
        %1837 = vmatpush1.msra.mxu0 0.0
        %1838 = vmatprep.mubr.f32.mxu0 0.0
        %1839 = vmatmul.mubr.f32.gmra.mrb[0].mxu0 %v1772
        %v1840 = vpop.f32.mrb[0].mxu0
        %v1841 = vadd.f32 0.0, %v1840
        %v1842 = vpop.f32.mrb[0].mxu0
        %1843 = vdwg.mxu0
        %1844 = vrot.lane.b32.xlu0 %v1419, 112
        %v1845 = vpop.permute.xlu0 %1844
        %1846 = vrot.lane.b32.xlu0 %v1419, 80
        %v1847 = vpop.permute.xlu0 %1846
        %v1848 = vsel %vm1517, %v1845, 0
        %v1850 = vsel %vm1517, %v1847, 0
        %1852 = vmatprep.subr.mxu0 0.0
        %1853 = vmatpush1.xpose.msra.mxu0 %v1850
        %1854 = vmatprep.subr.mxu0 0.0
        %1855 = vmatpush1.xpose.msra.mxu0 0.0
        %1856 = vmatprep.subr.mxu0 0.0
        %1857 = vmatpush1.xpose.msra.mxu0 0.0
        %1858 = vmatprep.subr.mxu0 0.0
        %1859 = vmatpush1.xpose.msra.mxu0 0.0
        %1860 = vmatprep.subr.mxu0 0.0
        %1861 = vmatpush1.xpose.msra.mxu0 0.0
        %1862 = vmatprep.subr.mxu0 0.0
        %1863 = vmatpush1.xpose.msra.mxu0 0.0
        %1864 = vmatprep.subr.mxu0 0.0
        %1865 = vmatpush1.xpose.msra.mxu0 0.0
        %1866 = vmatprep.subr.mxu0 0.0
        %1867 = vmatpush1.xpose.msra.mxu0 0.0
        %1868 = vmatprep.subr.mxu0 0.0
        %1869 = vmatpush1.xpose.msra.mxu0 0.0
        %1870 = vmatprep.subr.mxu0 0.0
        %1871 = vmatpush1.xpose.msra.mxu0 0.0
        %1872 = vmatprep.subr.mxu0 0.0
        %1873 = vmatpush1.xpose.msra.mxu0 0.0
        %1874 = vmatprep.subr.mxu0 0.0
        %1875 = vmatpush1.xpose.msra.mxu0 0.0
        %1876 = vmatprep.subr.mxu0 0.0
        %1877 = vmatpush1.xpose.msra.mxu0 0.0
        %1878 = vmatprep.subr.mxu0 0.0
        %1879 = vmatpush1.xpose.msra.mxu0 0.0
        %1880 = vmatprep.subr.mxu0 0.0
        %1881 = vmatpush1.xpose.msra.mxu0 0.0
        %1882 = vmatprep.subr.mxu0 0.0
        %1883 = vmatpush1.xpose.msra.mxu0 0.0
        %1884 = vmatprep.subr.mxu0 0.0
        %1885 = vmatpush1.xpose.msra.mxu0 0.0
        %1886 = vmatprep.subr.mxu0 0.0
        %1887 = vmatpush1.xpose.msra.mxu0 0.0
        %1888 = vmatprep.subr.mxu0 0.0
        %1889 = vmatpush1.xpose.msra.mxu0 0.0
        %1890 = vmatprep.subr.mxu0 0.0
        %1891 = vmatpush1.xpose.msra.mxu0 0.0
        %1892 = vmatprep.subr.mxu0 0.0
        %1893 = vmatpush1.xpose.msra.mxu0 0.0
        %1894 = vmatprep.subr.mxu0 0.0
        %1895 = vmatpush1.xpose.msra.mxu0 0.0
        %1896 = vmatprep.subr.mxu0 0.0
        %1897 = vmatpush1.xpose.msra.mxu0 0.0
        %1898 = vmatprep.subr.mxu0 0.0
        %1899 = vmatpush1.xpose.msra.mxu0 0.0
        %1900 = vmatprep.subr.mxu0 0.0
        %1901 = vmatpush1.xpose.msra.mxu0 0.0
        %1902 = vmatprep.subr.mxu0 0.0
        %1903 = vmatpush1.xpose.msra.mxu0 0.0
        %1904 = vmatprep.subr.mxu0 0.0
        %1905 = vmatpush1.xpose.msra.mxu0 0.0
        %1906 = vmatprep.subr.mxu0 0.0
        %1907 = vmatpush1.xpose.msra.mxu0 0.0
        %1908 = vmatprep.subr.mxu0 0.0
        %1909 = vmatpush1.xpose.msra.mxu0 0.0
        %1910 = vmatprep.subr.mxu0 0.0
        %1911 = vmatpush1.xpose.msra.mxu0 0.0
        %1912 = vmatprep.subr.mxu0 0.0
        %1913 = vmatpush1.xpose.msra.mxu0 0.0
        %1914 = vmatprep.subr.mxu0 0.0
        %1915 = vmatpush1.xpose.msra.mxu0 0.0
        %1916 = vmatprep.mubr.f32.mxu0 0.0
        %1917 = vmatmul.mubr.f32.gmra.mrb[0].mxu0 %v1848
        %v1918 = vpop.f32.mrb[0].mxu0
        %v1919 = vadd.f32 0.0, %v1918
        %v1920 = vpop.f32.mrb[0].mxu0
        %1921 = vdwg.mxu0
        %v1922 = vmul.f32 %v1919, 0.35355338
        %v1923 = vsel %vm1517, %v1922, -inf
        %1924 = vmax.xlane.f32.xlu0 %v1923
        %v1925 = vpop.xlane.xlu0 %1924
        %v1926 = vsub.f32 %v1922, %v1925
        %v1927 = vmul.f32 %v1926, 1.442695
        %v1928 = vpow.pop %v1927
        %v1929 = vsel %vm1517, %v1928, 0.0
        %1930 = vadd.xlane.f32.xlu0 %v1929
        %v1931 = vpop.xlane.xlu0 %1930
        %v1932 = vrcp.pop %v1931
        %v1933 = vmul.f32 %v1928, %v1932
        %1934 = vrot.lane.b32.xlu0 %v1506, 112
        %v1935 = vpop.permute.xlu0 %1934
        %v1938 = vsel %vm1517, %v1933, 0
        %1940 = vmatprep.subr.mxu0 0.0
        %1941 = vmatpush1.msra.mxu0 %v1935
        %1942 = vmatprep.subr.mxu0 0.0
        %1943 = vmatpush1.msra.mxu0 0.0
        %1944 = vmatprep.subr.mxu0 0.0
        %1945 = vmatpush1.msra.mxu0 0.0
        %1946 = vmatprep.subr.mxu0 0.0
        %1947 = vmatpush1.msra.mxu0 0.0
        %1948 = vmatprep.subr.mxu0 0.0
        %1949 = vmatpush1.msra.mxu0 0.0
        %1950 = vmatprep.subr.mxu0 0.0
        %1951 = vmatpush1.msra.mxu0 0.0
        %1952 = vmatprep.subr.mxu0 0.0
        %1953 = vmatpush1.msra.mxu0 0.0
        %1954 = vmatprep.subr.mxu0 0.0
        %1955 = vmatpush1.msra.mxu0 0.0
        %1956 = vmatprep.subr.mxu0 0.0
        %1957 = vmatpush1.msra.mxu0 0.0
        %1958 = vmatprep.subr.mxu0 0.0
        %1959 = vmatpush1.msra.mxu0 0.0
        %1960 = vmatprep.subr.mxu0 0.0
        %1961 = vmatpush1.msra.mxu0 0.0
        %1962 = vmatprep.subr.mxu0 0.0
        %1963 = vmatpush1.msra.mxu0 0.0
        %1964 = vmatprep.subr.mxu0 0.0
        %1965 = vmatpush1.msra.mxu0 0.0
        %1966 = vmatprep.subr.mxu0 0.0
        %1967 = vmatpush1.msra.mxu0 0.0
        %1968 = vmatprep.subr.mxu0 0.0
        %1969 = vmatpush1.msra.mxu0 0.0
        %1970 = vmatprep.subr.mxu0 0.0
        %1971 = vmatpush1.msra.mxu0 0.0
        %1972 = vmatprep.subr.mxu0 0.0
        %1973 = vmatpush1.msra.mxu0 0.0
        %1974 = vmatprep.subr.mxu0 0.0
        %1975 = vmatpush1.msra.mxu0 0.0
        %1976 = vmatprep.subr.mxu0 0.0
        %1977 = vmatpush1.msra.mxu0 0.0
        %1978 = vmatprep.subr.mxu0 0.0
        %1979 = vmatpush1.msra.mxu0 0.0
        %1980 = vmatprep.subr.mxu0 0.0
        %1981 = vmatpush1.msra.mxu0 0.0
        %1982 = vmatprep.subr.mxu0 0.0
        %1983 = vmatpush1.msra.mxu0 0.0
        %1984 = vmatprep.subr.mxu0 0.0
        %1985 = vmatpush1.msra.mxu0 0.0
        %1986 = vmatprep.subr.mxu0 0.0
        %1987 = vmatpush1.msra.mxu0 0.0
        %1988 = vmatprep.subr.mxu0 0.0
        %1989 = vmatpush1.msra.mxu0 0.0
        %1990 = vmatprep.subr.mxu0 0.0
        %1991 = vmatpush1.msra.mxu0 0.0
        %1992 = vmatprep.subr.mxu0 0.0
        %1993 = vmatpush1.msra.mxu0 0.0
        %1994 = vmatprep.subr.mxu0 0.0
        %1995 = vmatpush1.msra.mxu0 0.0
        %1996 = vmatprep.subr.mxu0 0.0
        %1997 = vmatpush1.msra.mxu0 0.0
        %1998 = vmatprep.subr.mxu0 0.0
        %1999 = vmatpush1.msra.mxu0 0.0
        %2000 = vmatprep.subr.mxu0 0.0
        %2001 = vmatpush1.msra.mxu0 0.0
        %2002 = vmatprep.subr.mxu0 0.0
        %2003 = vmatpush1.msra.mxu0 0.0
        %2004 = vmatprep.mubr.f32.mxu0 0.0
        %2005 = vmatmul.mubr.f32.gmra.mrb[0].mxu0 %v1938
        %v2006 = vpop.f32.mrb[0].mxu0
        %v2007 = vadd.f32 0.0, %v2006
        %v2008 = vpop.f32.mrb[0].mxu0
        %2009 = vdwg.mxu0
        %2010 = vrot.lane.b32.xlu0 %v1419, 104
        %v2011 = vpop.permute.xlu0 %2010
        %2012 = vrot.lane.b32.xlu0 %v1419, 72
        %v2013 = vpop.permute.xlu0 %2012
        %v2014 = vsel %vm1517, %v2011, 0
        %v2016 = vsel %vm1517, %v2013, 0
        %2018 = vmatprep.subr.mxu0 0.0
        %2019 = vmatpush1.xpose.msra.mxu0 %v2016
        %2020 = vmatprep.subr.mxu0 0.0
        %2021 = vmatpush1.xpose.msra.mxu0 0.0
        %2022 = vmatprep.subr.mxu0 0.0
        %2023 = vmatpush1.xpose.msra.mxu0 0.0
        %2024 = vmatprep.subr.mxu0 0.0
        %2025 = vmatpush1.xpose.msra.mxu0 0.0
        %2026 = vmatprep.subr.mxu0 0.0
        %2027 = vmatpush1.xpose.msra.mxu0 0.0
        %2028 = vmatprep.subr.mxu0 0.0
        %2029 = vmatpush1.xpose.msra.mxu0 0.0
        %2030 = vmatprep.subr.mxu0 0.0
        %2031 = vmatpush1.xpose.msra.mxu0 0.0
        %2032 = vmatprep.subr.mxu0 0.0
        %2033 = vmatpush1.xpose.msra.mxu0 0.0
        %2034 = vmatprep.subr.mxu0 0.0
        %2035 = vmatpush1.xpose.msra.mxu0 0.0
        %2036 = vmatprep.subr.mxu0 0.0
        %2037 = vmatpush1.xpose.msra.mxu0 0.0
        %2038 = vmatprep.subr.mxu0 0.0
        %2039 = vmatpush1.xpose.msra.mxu0 0.0
        %2040 = vmatprep.subr.mxu0 0.0
        %2041 = vmatpush1.xpose.msra.mxu0 0.0
        %2042 = vmatprep.subr.mxu0 0.0
        %2043 = vmatpush1.xpose.msra.mxu0 0.0
        %2044 = vmatprep.subr.mxu0 0.0
        %2045 = vmatpush1.xpose.msra.mxu0 0.0
        %2046 = vmatprep.subr.mxu0 0.0
        %2047 = vmatpush1.xpose.msra.mxu0 0.0
        %2048 = vmatprep.subr.mxu0 0.0
        %2049 = vmatpush1.xpose.msra.mxu0 0.0
        %2050 = vmatprep.subr.mxu0 0.0
        %2051 = vmatpush1.xpose.msra.mxu0 0.0
        %2052 = vmatprep.subr.mxu0 0.0
        %2053 = vmatpush1.xpose.msra.mxu0 0.0
        %2054 = vmatprep.subr.mxu0 0.0
        %2055 = vmatpush1.xpose.msra.mxu0 0.0
        %2056 = vmatprep.subr.mxu0 0.0
        %2057 = vmatpush1.xpose.msra.mxu0 0.0
        %2058 = vmatprep.subr.mxu0 0.0
        %2059 = vmatpush1.xpose.msra.mxu0 0.0
        %2060 = vmatprep.subr.mxu0 0.0
        %2061 = vmatpush1.xpose.msra.mxu0 0.0
        %2062 = vmatprep.subr.mxu0 0.0
        %2063 = vmatpush1.xpose.msra.mxu0 0.0
        %2064 = vmatprep.subr.mxu0 0.0
        %2065 = vmatpush1.xpose.msra.mxu0 0.0
        %2066 = vmatprep.subr.mxu0 0.0
        %2067 = vmatpush1.xpose.msra.mxu0 0.0
        %2068 = vmatprep.subr.mxu0 0.0
        %2069 = vmatpush1.xpose.msra.mxu0 0.0
        %2070 = vmatprep.subr.mxu0 0.0
        %2071 = vmatpush1.xpose.msra.mxu0 0.0
        %2072 = vmatprep.subr.mxu0 0.0
        %2073 = vmatpush1.xpose.msra.mxu0 0.0
        %2074 = vmatprep.subr.mxu0 0.0
        %2075 = vmatpush1.xpose.msra.mxu0 0.0
        %2076 = vmatprep.subr.mxu0 0.0
        %2077 = vmatpush1.xpose.msra.mxu0 0.0
        %2078 = vmatprep.subr.mxu0 0.0
        %2079 = vmatpush1.xpose.msra.mxu0 0.0
        %2080 = vmatprep.subr.mxu0 0.0
        %2081 = vmatpush1.xpose.msra.mxu0 0.0
        %2082 = vmatprep.mubr.f32.mxu0 0.0
        %2083 = vmatmul.mubr.f32.gmra.mrb[0].mxu0 %v2014
        %v2084 = vpop.f32.mrb[0].mxu0
        %v2085 = vadd.f32 0.0, %v2084
        %v2086 = vpop.f32.mrb[0].mxu0
        %2087 = vdwg.mxu0
        %v2088 = vmul.f32 %v2085, 0.35355338
        %v2089 = vsel %vm1517, %v2088, -inf
        %2090 = vmax.xlane.f32.xlu0 %v2089
        %v2091 = vpop.xlane.xlu0 %2090
        %v2092 = vsub.f32 %v2088, %v2091
        %v2093 = vmul.f32 %v2092, 1.442695
        %v2094 = vpow.pop %v2093
        %v2095 = vsel %vm1517, %v2094, 0.0
        %2096 = vadd.xlane.f32.xlu0 %v2095
        %v2097 = vpop.xlane.xlu0 %2096
        %v2098 = vrcp.pop %v2097
        %v2099 = vmul.f32 %v2094, %v2098
        %2100 = vrot.lane.b32.xlu0 %v1506, 104
        %v2101 = vpop.permute.xlu0 %2100
        %v2104 = vsel %vm1517, %v2099, 0
        %2106 = vmatprep.subr.mxu0 0.0
        %2107 = vmatpush1.msra.mxu0 %v2101
        %2108 = vmatprep.subr.mxu0 0.0
        %2109 = vmatpush1.msra.mxu0 0.0
        %2110 = vmatprep.subr.mxu0 0.0
        %2111 = vmatpush1.msra.mxu0 0.0
        %2112 = vmatprep.subr.mxu0 0.0
        %2113 = vmatpush1.msra.mxu0 0.0
        %2114 = vmatprep.subr.mxu0 0.0
        %2115 = vmatpush1.msra.mxu0 0.0
        %2116 = vmatprep.subr.mxu0 0.0
        %2117 = vmatpush1.msra.mxu0 0.0
        %2118 = vmatprep.subr.mxu0 0.0
        %2119 = vmatpush1.msra.mxu0 0.0
        %2120 = vmatprep.subr.mxu0 0.0
        %2121 = vmatpush1.msra.mxu0 0.0
        %2122 = vmatprep.subr.mxu0 0.0
        %2123 = vmatpush1.msra.mxu0 0.0
        %2124 = vmatprep.subr.mxu0 0.0
        %2125 = vmatpush1.msra.mxu0 0.0
        %2126 = vmatprep.subr.mxu0 0.0
        %2127 = vmatpush1.msra.mxu0 0.0
        %2128 = vmatprep.subr.mxu0 0.0
        %2129 = vmatpush1.msra.mxu0 0.0
        %2130 = vmatprep.subr.mxu0 0.0
        %2131 = vmatpush1.msra.mxu0 0.0
        %2132 = vmatprep.subr.mxu0 0.0
        %2133 = vmatpush1.msra.mxu0 0.0
        %2134 = vmatprep.subr.mxu0 0.0
        %2135 = vmatpush1.msra.mxu0 0.0
        %2136 = vmatprep.subr.mxu0 0.0
        %2137 = vmatpush1.msra.mxu0 0.0
        %2138 = vmatprep.subr.mxu0 0.0
        %2139 = vmatpush1.msra.mxu0 0.0
        %2140 = vmatprep.subr.mxu0 0.0
        %2141 = vmatpush1.msra.mxu0 0.0
        %2142 = vmatprep.subr.mxu0 0.0
        %2143 = vmatpush1.msra.mxu0 0.0
        %2144 = vmatprep.subr.mxu0 0.0
        %2145 = vmatpush1.msra.mxu0 0.0
        %2146 = vmatprep.subr.mxu0 0.0
        %2147 = vmatpush1.msra.mxu0 0.0
        %2148 = vmatprep.subr.mxu0 0.0
        %2149 = vmatpush1.msra.mxu0 0.0
        %2150 = vmatprep.subr.mxu0 0.0
        %2151 = vmatpush1.msra.mxu0 0.0
        %2152 = vmatprep.subr.mxu0 0.0
        %2153 = vmatpush1.msra.mxu0 0.0
        %2154 = vmatprep.subr.mxu0 0.0
        %2155 = vmatpush1.msra.mxu0 0.0
        %2156 = vmatprep.subr.mxu0 0.0
        %2157 = vmatpush1.msra.mxu0 0.0
        %2158 = vmatprep.subr.mxu0 0.0
        %2159 = vmatpush1.msra.mxu0 0.0
        %2160 = vmatprep.subr.mxu0 0.0
        %2161 = vmatpush1.msra.mxu0 0.0
        %2162 = vmatprep.subr.mxu0 0.0
        %2163 = vmatpush1.msra.mxu0 0.0
        %2164 = vmatprep.subr.mxu0 0.0
        %2165 = vmatpush1.msra.mxu0 0.0
        %2166 = vmatprep.subr.mxu0 0.0
        %2167 = vmatpush1.msra.mxu0 0.0
        %2168 = vmatprep.subr.mxu0 0.0
        %2169 = vmatpush1.msra.mxu0 0.0
        %2170 = vmatprep.mubr.f32.mxu0 0.0
        %2171 = vmatmul.mubr.f32.gmra.mrb[0].mxu0 %v2104
        %v2172 = vpop.f32.mrb[0].mxu0
        %v2173 = vadd.f32 0.0, %v2172
        %v2174 = vpop.f32.mrb[0].mxu0
        %2175 = vdwg.mxu0
        %2177 = vrot.lane.b32.xlu0 %v1841, 8
        %v2178 = vpop.permute.xlu0 %2177
        %2181 = vrot.lane.b32.xlu0 %v2007, 16
        %v2182 = vpop.permute.xlu0 %2181
        %2185 = vrot.lane.b32.xlu0 %v2173, 24
        %v2186 = vpop.permute.xlu0 %2185
        %v2188 = vsel %vm1517, %v1674, %v2178
        %vm2189 = vcmask 130048
        %v2190 = vsel %vm2189, %v2188, %v2182
        %vm2191 = vcmask 195584
        %v2192 = vsel %vm2191, %v2190, %v2186
        %2194 = vrot.lane.b32.xlu0 %v1424, 96
        %v2195 = vpop.permute.xlu0 %2194
        %v2196 = vsel %vm1517, %v1424, 0
        %v2198 = vsel %vm1517, %v2195, 0
        %2200 = vmatprep.subr.mxu0 0.0
        %2201 = vmatpush1.xpose.msra.mxu0 %v2198
        %2202 = vmatprep.subr.mxu0 0.0
        %2203 = vmatpush1.xpose.msra.mxu0 0.0
        %2204 = vmatprep.subr.mxu0 0.0
        %2205 = vmatpush1.xpose.msra.mxu0 0.0
        %2206 = vmatprep.subr.mxu0 0.0
        %2207 = vmatpush1.xpose.msra.mxu0 0.0
        %2208 = vmatprep.subr.mxu0 0.0
        %2209 = vmatpush1.xpose.msra.mxu0 0.0
        %2210 = vmatprep.subr.mxu0 0.0
        %2211 = vmatpush1.xpose.msra.mxu0 0.0
        %2212 = vmatprep.subr.mxu0 0.0
        %2213 = vmatpush1.xpose.msra.mxu0 0.0
        %2214 = vmatprep.subr.mxu0 0.0
        %2215 = vmatpush1.xpose.msra.mxu0 0.0
        %2216 = vmatprep.subr.mxu0 0.0
        %2217 = vmatpush1.xpose.msra.mxu0 0.0
        %2218 = vmatprep.subr.mxu0 0.0
        %2219 = vmatpush1.xpose.msra.mxu0 0.0
        %2220 = vmatprep.subr.mxu0 0.0
        %2221 = vmatpush1.xpose.msra.mxu0 0.0
        %2222 = vmatprep.subr.mxu0 0.0
        %2223 = vmatpush1.xpose.msra.mxu0 0.0
        %2224 = vmatprep.subr.mxu0 0.0
        %2225 = vmatpush1.xpose.msra.mxu0 0.0
        %2226 = vmatprep.subr.mxu0 0.0
        %2227 = vmatpush1.xpose.msra.mxu0 0.0
        %2228 = vmatprep.subr.mxu0 0.0
        %2229 = vmatpush1.xpose.msra.mxu0 0.0
        %2230 = vmatprep.subr.mxu0 0.0
        %2231 = vmatpush1.xpose.msra.mxu0 0.0
        %2232 = vmatprep.subr.mxu0 0.0
        %2233 = vmatpush1.xpose.msra.mxu0 0.0
        %2234 = vmatprep.subr.mxu0 0.0
        %2235 = vmatpush1.xpose.msra.mxu0 0.0
        %2236 = vmatprep.subr.mxu0 0.0
        %2237 = vmatpush1.xpose.msra.mxu0 0.0
        %2238 = vmatprep.subr.mxu0 0.0
        %2239 = vmatpush1.xpose.msra.mxu0 0.0
        %2240 = vmatprep.subr.mxu0 0.0
        %2241 = vmatpush1.xpose.msra.mxu0 0.0
        %2242 = vmatprep.subr.mxu0 0.0
        %2243 = vmatpush1.xpose.msra.mxu0 0.0
        %2244 = vmatprep.subr.mxu0 0.0
        %2245 = vmatpush1.xpose.msra.mxu0 0.0
        %2246 = vmatprep.subr.mxu0 0.0
        %2247 = vmatpush1.xpose.msra.mxu0 0.0
        %2248 = vmatprep.subr.mxu0 0.0
        %2249 = vmatpush1.xpose.msra.mxu0 0.0
        %2250 = vmatprep.subr.mxu0 0.0
        %2251 = vmatpush1.xpose.msra.mxu0 0.0
        %2252 = vmatprep.subr.mxu0 0.0
        %2253 = vmatpush1.xpose.msra.mxu0 0.0
        %2254 = vmatprep.subr.mxu0 0.0
        %2255 = vmatpush1.xpose.msra.mxu0 0.0
        %2256 = vmatprep.subr.mxu0 0.0
        %2257 = vmatpush1.xpose.msra.mxu0 0.0
        %2258 = vmatprep.subr.mxu0 0.0
        %2259 = vmatpush1.xpose.msra.mxu0 0.0
        %2260 = vmatprep.subr.mxu0 0.0
        %2261 = vmatpush1.xpose.msra.mxu0 0.0
        %2262 = vmatprep.subr.mxu0 0.0
        %2263 = vmatpush1.xpose.msra.mxu0 0.0
        %2264 = vmatprep.mubr.f32.mxu0 0.0
        %2265 = vmatmul.mubr.f32.gmra.mrb[0].mxu0 %v2196
        %v2266 = vpop.f32.mrb[0].mxu0
        %v2267 = vadd.f32 0.0, %v2266
        %v2268 = vpop.f32.mrb[0].mxu0
        %2269 = vdwg.mxu0
        %v2270 = vmul.f32 %v2267, 0.35355338
        %v2271 = vsel %vm1517, %v2270, -inf
        %2272 = vmax.xlane.f32.xlu0 %v2271
        %v2273 = vpop.xlane.xlu0 %2272
        %v2274 = vsub.f32 %v2270, %v2273
        %v2275 = vmul.f32 %v2274, 1.442695
        %v2276 = vpow.pop %v2275
        %v2277 = vsel %vm1517, %v2276, 0.0
        %2278 = vadd.xlane.f32.xlu0 %v2277
        %v2279 = vpop.xlane.xlu0 %2278
        %v2280 = vrcp.pop %v2279
        %v2281 = vmul.f32 %v2276, %v2280
        %v2283 = vsel %vm1517, %v2281, 0
        %2285 = vmatprep.subr.mxu0 0.0
        %2286 = vmatpush1.msra.mxu0 %v1511
        %2287 = vmatprep.subr.mxu0 0.0
        %2288 = vmatpush1.msra.mxu0 0.0
        %2289 = vmatprep.subr.mxu0 0.0
        %2290 = vmatpush1.msra.mxu0 0.0
        %2291 = vmatprep.subr.mxu0 0.0
        %2292 = vmatpush1.msra.mxu0 0.0
        %2293 = vmatprep.subr.mxu0 0.0
        %2294 = vmatpush1.msra.mxu0 0.0
        %2295 = vmatprep.subr.mxu0 0.0
        %2296 = vmatpush1.msra.mxu0 0.0
        %2297 = vmatprep.subr.mxu0 0.0
        %2298 = vmatpush1.msra.mxu0 0.0
        %2299 = vmatprep.subr.mxu0 0.0
        %2300 = vmatpush1.msra.mxu0 0.0
        %2301 = vmatprep.subr.mxu0 0.0
        %2302 = vmatpush1.msra.mxu0 0.0
        %2303 = vmatprep.subr.mxu0 0.0
        %2304 = vmatpush1.msra.mxu0 0.0
        %2305 = vmatprep.subr.mxu0 0.0
        %2306 = vmatpush1.msra.mxu0 0.0
        %2307 = vmatprep.subr.mxu0 0.0
        %2308 = vmatpush1.msra.mxu0 0.0
        %2309 = vmatprep.subr.mxu0 0.0
        %2310 = vmatpush1.msra.mxu0 0.0
        %2311 = vmatprep.subr.mxu0 0.0
        %2312 = vmatpush1.msra.mxu0 0.0
        %2313 = vmatprep.subr.mxu0 0.0
        %2314 = vmatpush1.msra.mxu0 0.0
        %2315 = vmatprep.subr.mxu0 0.0
        %2316 = vmatpush1.msra.mxu0 0.0
        %2317 = vmatprep.subr.mxu0 0.0
        %2318 = vmatpush1.msra.mxu0 0.0
        %2319 = vmatprep.subr.mxu0 0.0
        %2320 = vmatpush1.msra.mxu0 0.0
        %2321 = vmatprep.subr.mxu0 0.0
        %2322 = vmatpush1.msra.mxu0 0.0
        %2323 = vmatprep.subr.mxu0 0.0
        %2324 = vmatpush1.msra.mxu0 0.0
        %2325 = vmatprep.subr.mxu0 0.0
        %2326 = vmatpush1.msra.mxu0 0.0
        %2327 = vmatprep.subr.mxu0 0.0
        %2328 = vmatpush1.msra.mxu0 0.0
        %2329 = vmatprep.subr.mxu0 0.0
        %2330 = vmatpush1.msra.mxu0 0.0
        %2331 = vmatprep.subr.mxu0 0.0
        %2332 = vmatpush1.msra.mxu0 0.0
        %2333 = vmatprep.subr.mxu0 0.0
        %2334 = vmatpush1.msra.mxu0 0.0
        %2335 = vmatprep.subr.mxu0 0.0
        %2336 = vmatpush1.msra.mxu0 0.0
        %2337 = vmatprep.subr.mxu0 0.0
        %2338 = vmatpush1.msra.mxu0 0.0
        %2339 = vmatprep.subr.mxu0 0.0
        %2340 = vmatpush1.msra.mxu0 0.0
        %2341 = vmatprep.subr.mxu0 0.0
        %2342 = vmatpush1.msra.mxu0 0.0
        %2343 = vmatprep.subr.mxu0 0.0
        %2344 = vmatpush1.msra.mxu0 0.0
        %2345 = vmatprep.subr.mxu0 0.0
        %2346 = vmatpush1.msra.mxu0 0.0
        %2347 = vmatprep.subr.mxu0 0.0
        %2348 = vmatpush1.msra.mxu0 0.0
        %2349 = vmatprep.mubr.f32.mxu0 0.0
        %2350 = vmatmul.mubr.f32.gmra.mrb[0].mxu0 %v2283
        %v2351 = vpop.f32.mrb[0].mxu0
        %v2352 = vadd.f32 0.0, %v2351
        %v2353 = vpop.f32.mrb[0].mxu0
        %2354 = vdwg.mxu0
        %2355 = vrot.lane.b32.xlu0 %v1424, 120
        %v2356 = vpop.permute.xlu0 %2355
        %2357 = vrot.lane.b32.xlu0 %v1424, 88
        %v2358 = vpop.permute.xlu0 %2357
        %v2359 = vsel %vm1517, %v2356, 0
        %v2361 = vsel %vm1517, %v2358, 0
        %2363 = vmatprep.subr.mxu0 0.0
        %2364 = vmatpush1.xpose.msra.mxu0 %v2361
        %2365 = vmatprep.subr.mxu0 0.0
        %2366 = vmatpush1.xpose.msra.mxu0 0.0
        %2367 = vmatprep.subr.mxu0 0.0
        %2368 = vmatpush1.xpose.msra.mxu0 0.0
        %2369 = vmatprep.subr.mxu0 0.0
        %2370 = vmatpush1.xpose.msra.mxu0 0.0
        %2371 = vmatprep.subr.mxu0 0.0
        %2372 = vmatpush1.xpose.msra.mxu0 0.0
        %2373 = vmatprep.subr.mxu0 0.0
        %2374 = vmatpush1.xpose.msra.mxu0 0.0
        %2375 = vmatprep.subr.mxu0 0.0
        %2376 = vmatpush1.xpose.msra.mxu0 0.0
        %2377 = vmatprep.subr.mxu0 0.0
        %2378 = vmatpush1.xpose.msra.mxu0 0.0
        %2379 = vmatprep.subr.mxu0 0.0
        %2380 = vmatpush1.xpose.msra.mxu0 0.0
        %2381 = vmatprep.subr.mxu0 0.0
        %2382 = vmatpush1.xpose.msra.mxu0 0.0
        %2383 = vmatprep.subr.mxu0 0.0
        %2384 = vmatpush1.xpose.msra.mxu0 0.0
        %2385 = vmatprep.subr.mxu0 0.0
        %2386 = vmatpush1.xpose.msra.mxu0 0.0
        %2387 = vmatprep.subr.mxu0 0.0
        %2388 = vmatpush1.xpose.msra.mxu0 0.0
        %2389 = vmatprep.subr.mxu0 0.0
        %2390 = vmatpush1.xpose.msra.mxu0 0.0
        %2391 = vmatprep.subr.mxu0 0.0
        %2392 = vmatpush1.xpose.msra.mxu0 0.0
        %2393 = vmatprep.subr.mxu0 0.0
        %2394 = vmatpush1.xpose.msra.mxu0 0.0
        %2395 = vmatprep.subr.mxu0 0.0
        %2396 = vmatpush1.xpose.msra.mxu0 0.0
        %2397 = vmatprep.subr.mxu0 0.0
        %2398 = vmatpush1.xpose.msra.mxu0 0.0
        %2399 = vmatprep.subr.mxu0 0.0
        %2400 = vmatpush1.xpose.msra.mxu0 0.0
        %2401 = vmatprep.subr.mxu0 0.0
        %2402 = vmatpush1.xpose.msra.mxu0 0.0
        %2403 = vmatprep.subr.mxu0 0.0
        %2404 = vmatpush1.xpose.msra.mxu0 0.0
        %2405 = vmatprep.subr.mxu0 0.0
        %2406 = vmatpush1.xpose.msra.mxu0 0.0
        %2407 = vmatprep.subr.mxu0 0.0
        %2408 = vmatpush1.xpose.msra.mxu0 0.0
        %2409 = vmatprep.subr.mxu0 0.0
        %2410 = vmatpush1.xpose.msra.mxu0 0.0
        %2411 = vmatprep.subr.mxu0 0.0
        %2412 = vmatpush1.xpose.msra.mxu0 0.0
        %2413 = vmatprep.subr.mxu0 0.0
        %2414 = vmatpush1.xpose.msra.mxu0 0.0
        %2415 = vmatprep.subr.mxu0 0.0
        %2416 = vmatpush1.xpose.msra.mxu0 0.0
        %2417 = vmatprep.subr.mxu0 0.0
        %2418 = vmatpush1.xpose.msra.mxu0 0.0
        %2419 = vmatprep.subr.mxu0 0.0
        %2420 = vmatpush1.xpose.msra.mxu0 0.0
        %2421 = vmatprep.subr.mxu0 0.0
        %2422 = vmatpush1.xpose.msra.mxu0 0.0
        %2423 = vmatprep.subr.mxu0 0.0
        %2424 = vmatpush1.xpose.msra.mxu0 0.0
        %2425 = vmatprep.subr.mxu0 0.0
        %2426 = vmatpush1.xpose.msra.mxu0 0.0
        %2427 = vmatprep.mubr.f32.mxu0 0.0
        %2428 = vmatmul.mubr.f32.gmra.mrb[0].mxu0 %v2359
        %v2429 = vpop.f32.mrb[0].mxu0
        %v2430 = vadd.f32 0.0, %v2429
        %v2431 = vpop.f32.mrb[0].mxu0
        %2432 = vdwg.mxu0
        %v2433 = vmul.f32 %v2430, 0.35355338
        %v2434 = vsel %vm1517, %v2433, -inf
        %2435 = vmax.xlane.f32.xlu0 %v2434
        %v2436 = vpop.xlane.xlu0 %2435
        %v2437 = vsub.f32 %v2433, %v2436
        %v2438 = vmul.f32 %v2437, 1.442695
        %v2439 = vpow.pop %v2438
        %v2440 = vsel %vm1517, %v2439, 0.0
        %2441 = vadd.xlane.f32.xlu0 %v2440
        %v2442 = vpop.xlane.xlu0 %2441
        %v2443 = vrcp.pop %v2442
        %v2444 = vmul.f32 %v2439, %v2443
        %2446 = vrot.lane.b32.xlu0 %v1511, 120
        %v2447 = vpop.permute.xlu0 %2446
        %v2450 = vsel %vm1517, %v2444, 0
        %2452 = vmatprep.subr.mxu0 0.0
        %2453 = vmatpush1.msra.mxu0 %v2447
        %2454 = vmatprep.subr.mxu0 0.0
        %2455 = vmatpush1.msra.mxu0 0.0
        %2456 = vmatprep.subr.mxu0 0.0
        %2457 = vmatpush1.msra.mxu0 0.0
        %2458 = vmatprep.subr.mxu0 0.0
        %2459 = vmatpush1.msra.mxu0 0.0
        %2460 = vmatprep.subr.mxu0 0.0
        %2461 = vmatpush1.msra.mxu0 0.0
        %2462 = vmatprep.subr.mxu0 0.0
        %2463 = vmatpush1.msra.mxu0 0.0
        %2464 = vmatprep.subr.mxu0 0.0
        %2465 = vmatpush1.msra.mxu0 0.0
        %2466 = vmatprep.subr.mxu0 0.0
        %2467 = vmatpush1.msra.mxu0 0.0
        %2468 = vmatprep.subr.mxu0 0.0
        %2469 = vmatpush1.msra.mxu0 0.0
        %2470 = vmatprep.subr.mxu0 0.0
        %2471 = vmatpush1.msra.mxu0 0.0
        %2472 = vmatprep.subr.mxu0 0.0
        %2473 = vmatpush1.msra.mxu0 0.0
        %2474 = vmatprep.subr.mxu0 0.0
        %2475 = vmatpush1.msra.mxu0 0.0
        %2476 = vmatprep.subr.mxu0 0.0
        %2477 = vmatpush1.msra.mxu0 0.0
        %2478 = vmatprep.subr.mxu0 0.0
        %2479 = vmatpush1.msra.mxu0 0.0
        %2480 = vmatprep.subr.mxu0 0.0
        %2481 = vmatpush1.msra.mxu0 0.0
        %2482 = vmatprep.subr.mxu0 0.0
        %2483 = vmatpush1.msra.mxu0 0.0
        %2484 = vmatprep.subr.mxu0 0.0
        %2485 = vmatpush1.msra.mxu0 0.0
        %2486 = vmatprep.subr.mxu0 0.0
        %2487 = vmatpush1.msra.mxu0 0.0
        %2488 = vmatprep.subr.mxu0 0.0
        %2489 = vmatpush1.msra.mxu0 0.0
        %2490 = vmatprep.subr.mxu0 0.0
        %2491 = vmatpush1.msra.mxu0 0.0
        %2492 = vmatprep.subr.mxu0 0.0
        %2493 = vmatpush1.msra.mxu0 0.0
        %2494 = vmatprep.subr.mxu0 0.0
        %2495 = vmatpush1.msra.mxu0 0.0
        %2496 = vmatprep.subr.mxu0 0.0
        %2497 = vmatpush1.msra.mxu0 0.0
        %2498 = vmatprep.subr.mxu0 0.0
        %2499 = vmatpush1.msra.mxu0 0.0
        %2500 = vmatprep.subr.mxu0 0.0
        %2501 = vmatpush1.msra.mxu0 0.0
        %2502 = vmatprep.subr.mxu0 0.0
        %2503 = vmatpush1.msra.mxu0 0.0
        %2504 = vmatprep.subr.mxu0 0.0
        %2505 = vmatpush1.msra.mxu0 0.0
        %2506 = vmatprep.subr.mxu0 0.0
        %2507 = vmatpush1.msra.mxu0 0.0
        %2508 = vmatprep.subr.mxu0 0.0
        %2509 = vmatpush1.msra.mxu0 0.0
        %2510 = vmatprep.subr.mxu0 0.0
        %2511 = vmatpush1.msra.mxu0 0.0
        %2512 = vmatprep.subr.mxu0 0.0
        %2513 = vmatpush1.msra.mxu0 0.0
        %2514 = vmatprep.subr.mxu0 0.0
        %2515 = vmatpush1.msra.mxu0 0.0
        %2516 = vmatprep.mubr.f32.mxu0 0.0
        %2517 = vmatmul.mubr.f32.gmra.mrb[0].mxu0 %v2450
        %v2518 = vpop.f32.mrb[0].mxu0
        %v2519 = vadd.f32 0.0, %v2518
        %v2520 = vpop.f32.mrb[0].mxu0
        %2521 = vdwg.mxu0
        %2522 = vrot.lane.b32.xlu0 %v1424, 112
        %v2523 = vpop.permute.xlu0 %2522
        %2524 = vrot.lane.b32.xlu0 %v1424, 80
        %v2525 = vpop.permute.xlu0 %2524
        %v2526 = vsel %vm1517, %v2523, 0
        %v2528 = vsel %vm1517, %v2525, 0
        %2530 = vmatprep.subr.mxu0 0.0
        %2531 = vmatpush1.xpose.msra.mxu0 %v2528
        %2532 = vmatprep.subr.mxu0 0.0
        %2533 = vmatpush1.xpose.msra.mxu0 0.0
        %2534 = vmatprep.subr.mxu0 0.0
        %2535 = vmatpush1.xpose.msra.mxu0 0.0
        %2536 = vmatprep.subr.mxu0 0.0
        %2537 = vmatpush1.xpose.msra.mxu0 0.0
        %2538 = vmatprep.subr.mxu0 0.0
        %2539 = vmatpush1.xpose.msra.mxu0 0.0
        %2540 = vmatprep.subr.mxu0 0.0
        %2541 = vmatpush1.xpose.msra.mxu0 0.0
        %2542 = vmatprep.subr.mxu0 0.0
        %2543 = vmatpush1.xpose.msra.mxu0 0.0
        %2544 = vmatprep.subr.mxu0 0.0
        %2545 = vmatpush1.xpose.msra.mxu0 0.0
        %2546 = vmatprep.subr.mxu0 0.0
        %2547 = vmatpush1.xpose.msra.mxu0 0.0
        %2548 = vmatprep.subr.mxu0 0.0
        %2549 = vmatpush1.xpose.msra.mxu0 0.0
        %2550 = vmatprep.subr.mxu0 0.0
        %2551 = vmatpush1.xpose.msra.mxu0 0.0
        %2552 = vmatprep.subr.mxu0 0.0
        %2553 = vmatpush1.xpose.msra.mxu0 0.0
        %2554 = vmatprep.subr.mxu0 0.0
        %2555 = vmatpush1.xpose.msra.mxu0 0.0
        %2556 = vmatprep.subr.mxu0 0.0
        %2557 = vmatpush1.xpose.msra.mxu0 0.0
        %2558 = vmatprep.subr.mxu0 0.0
        %2559 = vmatpush1.xpose.msra.mxu0 0.0
        %2560 = vmatprep.subr.mxu0 0.0
        %2561 = vmatpush1.xpose.msra.mxu0 0.0
        %2562 = vmatprep.subr.mxu0 0.0
        %2563 = vmatpush1.xpose.msra.mxu0 0.0
        %2564 = vmatprep.subr.mxu0 0.0
        %2565 = vmatpush1.xpose.msra.mxu0 0.0
        %2566 = vmatprep.subr.mxu0 0.0
        %2567 = vmatpush1.xpose.msra.mxu0 0.0
        %2568 = vmatprep.subr.mxu0 0.0
        %2569 = vmatpush1.xpose.msra.mxu0 0.0
        %2570 = vmatprep.subr.mxu0 0.0
        %2571 = vmatpush1.xpose.msra.mxu0 0.0
        %2572 = vmatprep.subr.mxu0 0.0
        %2573 = vmatpush1.xpose.msra.mxu0 0.0
        %2574 = vmatprep.subr.mxu0 0.0
        %2575 = vmatpush1.xpose.msra.mxu0 0.0
        %2576 = vmatprep.subr.mxu0 0.0
        %2577 = vmatpush1.xpose.msra.mxu0 0.0
        %2578 = vmatprep.subr.mxu0 0.0
        %2579 = vmatpush1.xpose.msra.mxu0 0.0
        %2580 = vmatprep.subr.mxu0 0.0
        %2581 = vmatpush1.xpose.msra.mxu0 0.0
        %2582 = vmatprep.subr.mxu0 0.0
        %2583 = vmatpush1.xpose.msra.mxu0 0.0
        %2584 = vmatprep.subr.mxu0 0.0
        %2585 = vmatpush1.xpose.msra.mxu0 0.0
        %2586 = vmatprep.subr.mxu0 0.0
        %2587 = vmatpush1.xpose.msra.mxu0 0.0
        %2588 = vmatprep.subr.mxu0 0.0
        %2589 = vmatpush1.xpose.msra.mxu0 0.0
        %2590 = vmatprep.subr.mxu0 0.0
        %2591 = vmatpush1.xpose.msra.mxu0 0.0
        %2592 = vmatprep.subr.mxu0 0.0
        %2593 = vmatpush1.xpose.msra.mxu0 0.0
        %2594 = vmatprep.mubr.f32.mxu0 0.0
        %2595 = vmatmul.mubr.f32.gmra.mrb[0].mxu0 %v2526
        %v2596 = vpop.f32.mrb[0].mxu0
        %v2597 = vadd.f32 0.0, %v2596
        %v2598 = vpop.f32.mrb[0].mxu0
        %2599 = vdwg.mxu0
        %v2600 = vmul.f32 %v2597, 0.35355338
        %v2601 = vsel %vm1517, %v2600, -inf
        %2602 = vmax.xlane.f32.xlu0 %v2601
        %v2603 = vpop.xlane.xlu0 %2602
        %v2604 = vsub.f32 %v2600, %v2603
        %v2605 = vmul.f32 %v2604, 1.442695
        %v2606 = vpow.pop %v2605
        %v2607 = vsel %vm1517, %v2606, 0.0
        %2608 = vadd.xlane.f32.xlu0 %v2607
        %v2609 = vpop.xlane.xlu0 %2608
        %v2610 = vrcp.pop %v2609
        %v2611 = vmul.f32 %v2606, %v2610
        %2612 = vrot.lane.b32.xlu0 %v1511, 112
        %v2613 = vpop.permute.xlu0 %2612
        %v2616 = vsel %vm1517, %v2611, 0
        %2618 = vmatprep.subr.mxu0 0.0
        %2619 = vmatpush1.msra.mxu0 %v2613
        %2620 = vmatprep.subr.mxu0 0.0
        %2621 = vmatpush1.msra.mxu0 0.0
        %2622 = vmatprep.subr.mxu0 0.0
        %2623 = vmatpush1.msra.mxu0 0.0
        %2624 = vmatprep.subr.mxu0 0.0
        %2625 = vmatpush1.msra.mxu0 0.0
        %2626 = vmatprep.subr.mxu0 0.0
        %2627 = vmatpush1.msra.mxu0 0.0
        %2628 = vmatprep.subr.mxu0 0.0
        %2629 = vmatpush1.msra.mxu0 0.0
        %2630 = vmatprep.subr.mxu0 0.0
        %2631 = vmatpush1.msra.mxu0 0.0
        %2632 = vmatprep.subr.mxu0 0.0
        %2633 = vmatpush1.msra.mxu0 0.0
        %2634 = vmatprep.subr.mxu0 0.0
        %2635 = vmatpush1.msra.mxu0 0.0
        %2636 = vmatprep.subr.mxu0 0.0
        %2637 = vmatpush1.msra.mxu0 0.0
        %2638 = vmatprep.subr.mxu0 0.0
        %2639 = vmatpush1.msra.mxu0 0.0
        %2640 = vmatprep.subr.mxu0 0.0
        %2641 = vmatpush1.msra.mxu0 0.0
        %2642 = vmatprep.subr.mxu0 0.0
        %2643 = vmatpush1.msra.mxu0 0.0
        %2644 = vmatprep.subr.mxu0 0.0
        %2645 = vmatpush1.msra.mxu0 0.0
        %2646 = vmatprep.subr.mxu0 0.0
        %2647 = vmatpush1.msra.mxu0 0.0
        %2648 = vmatprep.subr.mxu0 0.0
        %2649 = vmatpush1.msra.mxu0 0.0
        %2650 = vmatprep.subr.mxu0 0.0
        %2651 = vmatpush1.msra.mxu0 0.0
        %2652 = vmatprep.subr.mxu0 0.0
        %2653 = vmatpush1.msra.mxu0 0.0
        %2654 = vmatprep.subr.mxu0 0.0
        %2655 = vmatpush1.msra.mxu0 0.0
        %2656 = vmatprep.subr.mxu0 0.0
        %2657 = vmatpush1.msra.mxu0 0.0
        %2658 = vmatprep.subr.mxu0 0.0
        %2659 = vmatpush1.msra.mxu0 0.0
        %2660 = vmatprep.subr.mxu0 0.0
        %2661 = vmatpush1.msra.mxu0 0.0
        %2662 = vmatprep.subr.mxu0 0.0
        %2663 = vmatpush1.msra.mxu0 0.0
        %2664 = vmatprep.subr.mxu0 0.0
        %2665 = vmatpush1.msra.mxu0 0.0
        %2666 = vmatprep.subr.mxu0 0.0
        %2667 = vmatpush1.msra.mxu0 0.0
        %2668 = vmatprep.subr.mxu0 0.0
        %2669 = vmatpush1.msra.mxu0 0.0
        %2670 = vmatprep.subr.mxu0 0.0
        %2671 = vmatpush1.msra.mxu0 0.0
        %2672 = vmatprep.subr.mxu0 0.0
        %2673 = vmatpush1.msra.mxu0 0.0
        %2674 = vmatprep.subr.mxu0 0.0
        %2675 = vmatpush1.msra.mxu0 0.0
        %2676 = vmatprep.subr.mxu0 0.0
        %2677 = vmatpush1.msra.mxu0 0.0
        %2678 = vmatprep.subr.mxu0 0.0
        %2679 = vmatpush1.msra.mxu0 0.0
        %2680 = vmatprep.subr.mxu0 0.0
        %2681 = vmatpush1.msra.mxu0 0.0
        %2682 = vmatprep.mubr.f32.mxu0 0.0
        %2683 = vmatmul.mubr.f32.gmra.mrb[0].mxu0 %v2616
        %v2684 = vpop.f32.mrb[0].mxu0
        %v2685 = vadd.f32 0.0, %v2684
        %v2686 = vpop.f32.mrb[0].mxu0
        %2687 = vdwg.mxu0
        %2688 = vrot.lane.b32.xlu0 %v1424, 104
        %v2689 = vpop.permute.xlu0 %2688
        %2690 = vrot.lane.b32.xlu0 %v1424, 72
        %v2691 = vpop.permute.xlu0 %2690
        %v2692 = vsel %vm1517, %v2689, 0
        %v2694 = vsel %vm1517, %v2691, 0
        %2696 = vmatprep.subr.mxu0 0.0
        %2697 = vmatpush1.xpose.msra.mxu0 %v2694
        %2698 = vmatprep.subr.mxu0 0.0
        %2699 = vmatpush1.xpose.msra.mxu0 0.0
        %2700 = vmatprep.subr.mxu0 0.0
        %2701 = vmatpush1.xpose.msra.mxu0 0.0
        %2702 = vmatprep.subr.mxu0 0.0
        %2703 = vmatpush1.xpose.msra.mxu0 0.0
        %2704 = vmatprep.subr.mxu0 0.0
        %2705 = vmatpush1.xpose.msra.mxu0 0.0
        %2706 = vmatprep.subr.mxu0 0.0
        %2707 = vmatpush1.xpose.msra.mxu0 0.0
        %2708 = vmatprep.subr.mxu0 0.0
        %2709 = vmatpush1.xpose.msra.mxu0 0.0
        %2710 = vmatprep.subr.mxu0 0.0
        %2711 = vmatpush1.xpose.msra.mxu0 0.0
        %2712 = vmatprep.subr.mxu0 0.0
        %2713 = vmatpush1.xpose.msra.mxu0 0.0
        %2714 = vmatprep.subr.mxu0 0.0
        %2715 = vmatpush1.xpose.msra.mxu0 0.0
        %2716 = vmatprep.subr.mxu0 0.0
        %2717 = vmatpush1.xpose.msra.mxu0 0.0
        %2718 = vmatprep.subr.mxu0 0.0
        %2719 = vmatpush1.xpose.msra.mxu0 0.0
        %2720 = vmatprep.subr.mxu0 0.0
        %2721 = vmatpush1.xpose.msra.mxu0 0.0
        %2722 = vmatprep.subr.mxu0 0.0
        %2723 = vmatpush1.xpose.msra.mxu0 0.0
        %2724 = vmatprep.subr.mxu0 0.0
        %2725 = vmatpush1.xpose.msra.mxu0 0.0
        %2726 = vmatprep.subr.mxu0 0.0
        %2727 = vmatpush1.xpose.msra.mxu0 0.0
        %2728 = vmatprep.subr.mxu0 0.0
        %2729 = vmatpush1.xpose.msra.mxu0 0.0
        %2730 = vmatprep.subr.mxu0 0.0
        %2731 = vmatpush1.xpose.msra.mxu0 0.0
        %2732 = vmatprep.subr.mxu0 0.0
        %2733 = vmatpush1.xpose.msra.mxu0 0.0
        %2734 = vmatprep.subr.mxu0 0.0
        %2735 = vmatpush1.xpose.msra.mxu0 0.0
        %2736 = vmatprep.subr.mxu0 0.0
        %2737 = vmatpush1.xpose.msra.mxu0 0.0
        %2738 = vmatprep.subr.mxu0 0.0
        %2739 = vmatpush1.xpose.msra.mxu0 0.0
        %2740 = vmatprep.subr.mxu0 0.0
        %2741 = vmatpush1.xpose.msra.mxu0 0.0
        %2742 = vmatprep.subr.mxu0 0.0
        %2743 = vmatpush1.xpose.msra.mxu0 0.0
        %2744 = vmatprep.subr.mxu0 0.0
        %2745 = vmatpush1.xpose.msra.mxu0 0.0
        %2746 = vmatprep.subr.mxu0 0.0
        %2747 = vmatpush1.xpose.msra.mxu0 0.0
        %2748 = vmatprep.subr.mxu0 0.0
        %2749 = vmatpush1.xpose.msra.mxu0 0.0
        %2750 = vmatprep.subr.mxu0 0.0
        %2751 = vmatpush1.xpose.msra.mxu0 0.0
        %2752 = vmatprep.subr.mxu0 0.0
        %2753 = vmatpush1.xpose.msra.mxu0 0.0
        %2754 = vmatprep.subr.mxu0 0.0
        %2755 = vmatpush1.xpose.msra.mxu0 0.0
        %2756 = vmatprep.subr.mxu0 0.0
        %2757 = vmatpush1.xpose.msra.mxu0 0.0
        %2758 = vmatprep.subr.mxu0 0.0
        %2759 = vmatpush1.xpose.msra.mxu0 0.0
        %2760 = vmatprep.mubr.f32.mxu0 0.0
        %2761 = vmatmul.mubr.f32.gmra.mrb[0].mxu0 %v2692
        %v2762 = vpop.f32.mrb[0].mxu0
        %v2763 = vadd.f32 0.0, %v2762
        %v2764 = vpop.f32.mrb[0].mxu0
        %2765 = vdwg.mxu0
        %v2766 = vmul.f32 %v2763, 0.35355338
        %v2767 = vsel %vm1517, %v2766, -inf
        %2768 = vmax.xlane.f32.xlu0 %v2767
        %v2769 = vpop.xlane.xlu0 %2768
        %v2770 = vsub.f32 %v2766, %v2769
        %v2771 = vmul.f32 %v2770, 1.442695
        %v2772 = vpow.pop %v2771
        %v2773 = vsel %vm1517, %v2772, 0.0
        %2774 = vadd.xlane.f32.xlu0 %v2773
        %v2775 = vpop.xlane.xlu0 %2774
        %v2776 = vrcp.pop %v2775
        %v2777 = vmul.f32 %v2772, %v2776
        %2778 = vrot.lane.b32.xlu0 %v1511, 104
        %v2779 = vpop.permute.xlu0 %2778
        %v2782 = vsel %vm1517, %v2777, 0
        %2784 = vmatprep.subr.mxu0 0.0
        %2785 = vmatpush1.msra.mxu0 %v2779
        %2786 = vmatprep.subr.mxu0 0.0
        %2787 = vmatpush1.msra.mxu0 0.0
        %2788 = vmatprep.subr.mxu0 0.0
        %2789 = vmatpush1.msra.mxu0 0.0
        %2790 = vmatprep.subr.mxu0 0.0
        %2791 = vmatpush1.msra.mxu0 0.0
        %2792 = vmatprep.subr.mxu0 0.0
        %2793 = vmatpush1.msra.mxu0 0.0
        %2794 = vmatprep.subr.mxu0 0.0
        %2795 = vmatpush1.msra.mxu0 0.0
        %2796 = vmatprep.subr.mxu0 0.0
        %2797 = vmatpush1.msra.mxu0 0.0
        %2798 = vmatprep.subr.mxu0 0.0
        %2799 = vmatpush1.msra.mxu0 0.0
        %2800 = vmatprep.subr.mxu0 0.0
        %2801 = vmatpush1.msra.mxu0 0.0
        %2802 = vmatprep.subr.mxu0 0.0
        %2803 = vmatpush1.msra.mxu0 0.0
        %2804 = vmatprep.subr.mxu0 0.0
        %2805 = vmatpush1.msra.mxu0 0.0
        %2806 = vmatprep.subr.mxu0 0.0
        %2807 = vmatpush1.msra.mxu0 0.0
        %2808 = vmatprep.subr.mxu0 0.0
        %2809 = vmatpush1.msra.mxu0 0.0
        %2810 = vmatprep.subr.mxu0 0.0
        %2811 = vmatpush1.msra.mxu0 0.0
        %2812 = vmatprep.subr.mxu0 0.0
        %2813 = vmatpush1.msra.mxu0 0.0
        %2814 = vmatprep.subr.mxu0 0.0
        %2815 = vmatpush1.msra.mxu0 0.0
        %2816 = vmatprep.subr.mxu0 0.0
        %2817 = vmatpush1.msra.mxu0 0.0
        %2818 = vmatprep.subr.mxu0 0.0
        %2819 = vmatpush1.msra.mxu0 0.0
        %2820 = vmatprep.subr.mxu0 0.0
        %2821 = vmatpush1.msra.mxu0 0.0
        %2822 = vmatprep.subr.mxu0 0.0
        %2823 = vmatpush1.msra.mxu0 0.0
        %2824 = vmatprep.subr.mxu0 0.0
        %2825 = vmatpush1.msra.mxu0 0.0
        %2826 = vmatprep.subr.mxu0 0.0
        %2827 = vmatpush1.msra.mxu0 0.0
        %2828 = vmatprep.subr.mxu0 0.0
        %2829 = vmatpush1.msra.mxu0 0.0
        %2830 = vmatprep.subr.mxu0 0.0
        %2831 = vmatpush1.msra.mxu0 0.0
        %2832 = vmatprep.subr.mxu0 0.0
        %2833 = vmatpush1.msra.mxu0 0.0
        %2834 = vmatprep.subr.mxu0 0.0
        %2835 = vmatpush1.msra.mxu0 0.0
        %2836 = vmatprep.subr.mxu0 0.0
        %2837 = vmatpush1.msra.mxu0 0.0
        %2838 = vmatprep.subr.mxu0 0.0
        %2839 = vmatpush1.msra.mxu0 0.0
        %2840 = vmatprep.subr.mxu0 0.0
        %2841 = vmatpush1.msra.mxu0 0.0
        %2842 = vmatprep.subr.mxu0 0.0
        %2843 = vmatpush1.msra.mxu0 0.0
        %2844 = vmatprep.subr.mxu0 0.0
        %2845 = vmatpush1.msra.mxu0 0.0
        %2846 = vmatprep.subr.mxu0 0.0
        %2847 = vmatpush1.msra.mxu0 0.0
        %2848 = vmatprep.mubr.f32.mxu0 0.0
        %2849 = vmatmul.mubr.f32.gmra.mrb[0].mxu0 %v2782
        %v2850 = vpop.f32.mrb[0].mxu0
        %v2851 = vadd.f32 0.0, %v2850
        %v2852 = vpop.f32.mrb[0].mxu0
        %2853 = vdwg.mxu0
        %2855 = vrot.lane.b32.xlu0 %v2519, 8
        %v2856 = vpop.permute.xlu0 %2855
        %2859 = vrot.lane.b32.xlu0 %v2685, 16
        %v2860 = vpop.permute.xlu0 %2859
        %2863 = vrot.lane.b32.xlu0 %v2851, 24
        %v2864 = vpop.permute.xlu0 %2863
        %v2866 = vsel %vm1517, %v2352, %v2856
        %v2867 = vsel %vm2189, %v2866, %v2860
        %v2868 = vsel %vm2191, %v2867, %v2864
        %v2870 = vlaneseq
        %v2871 = vshrl.u32 %v2870, 7
        %v2872 = vsub.s32 0, %v2871
        %v2873 = vrot.slane %v1295, %v2872
        %v2876 = vsel %vm1345, %v2192, 0
        %v2879 = vsel %vm1345, %v2868, 0
        %2881 = vmatprep.subr.mxu0 0.0
        %2882 = vmatpush1.msra.mxu0 %v1291
        %2883 = vmatprep.subr.mxu0 0.0
        %2884 = vmatpush1.msra.mxu0 %v1292
        %2885 = vmatprep.subr.mxu0 0.0
        %2886 = vmatpush1.msra.mxu0 %v1293
        %2887 = vmatprep.subr.mxu0 0.0
        %2888 = vmatpush1.msra.mxu0 %v1294
        %2889 = vmatprep.subr.mxu0 0.0
        %2890 = vmatpush1.msra.mxu0 0.0
        %2891 = vmatprep.subr.mxu0 0.0
        %2892 = vmatpush1.msra.mxu0 0.0
        %2893 = vmatprep.subr.mxu0 0.0
        %2894 = vmatpush1.msra.mxu0 0.0
        %2895 = vmatprep.subr.mxu0 0.0
        %2896 = vmatpush1.msra.mxu0 0.0
        %2897 = vmatprep.subr.mxu0 0.0
        %2898 = vmatpush1.msra.mxu0 0.0
        %2899 = vmatprep.subr.mxu0 0.0
        %2900 = vmatpush1.msra.mxu0 0.0
        %2901 = vmatprep.subr.mxu0 0.0
        %2902 = vmatpush1.msra.mxu0 0.0
        %2903 = vmatprep.subr.mxu0 0.0
        %2904 = vmatpush1.msra.mxu0 0.0
        %2905 = vmatprep.subr.mxu0 0.0
        %2906 = vmatpush1.msra.mxu0 0.0
        %2907 = vmatprep.subr.mxu0 0.0
        %2908 = vmatpush1.msra.mxu0 0.0
        %2909 = vmatprep.subr.mxu0 0.0
        %2910 = vmatpush1.msra.mxu0 0.0
        %2911 = vmatprep.subr.mxu0 0.0
        %2912 = vmatpush1.msra.mxu0 0.0
        %2913 = vmatprep.subr.mxu0 0.0
        %2914 = vmatpush1.msra.mxu0 0.0
        %2915 = vmatprep.subr.mxu0 0.0
        %2916 = vmatpush1.msra.mxu0 0.0
        %2917 = vmatprep.subr.mxu0 0.0
        %2918 = vmatpush1.msra.mxu0 0.0
        %2919 = vmatprep.subr.mxu0 0.0
        %2920 = vmatpush1.msra.mxu0 0.0
        %2921 = vmatprep.subr.mxu0 0.0
        %2922 = vmatpush1.msra.mxu0 0.0
        %2923 = vmatprep.subr.mxu0 0.0
        %2924 = vmatpush1.msra.mxu0 0.0
        %2925 = vmatprep.subr.mxu0 0.0
        %2926 = vmatpush1.msra.mxu0 0.0
        %2927 = vmatprep.subr.mxu0 0.0
        %2928 = vmatpush1.msra.mxu0 0.0
        %2929 = vmatprep.subr.mxu0 0.0
        %2930 = vmatpush1.msra.mxu0 0.0
        %2931 = vmatprep.subr.mxu0 0.0
        %2932 = vmatpush1.msra.mxu0 0.0
        %2933 = vmatprep.subr.mxu0 0.0
        %2934 = vmatpush1.msra.mxu0 0.0
        %2935 = vmatprep.subr.mxu0 0.0
        %2936 = vmatpush1.msra.mxu0 0.0
        %2937 = vmatprep.subr.mxu0 0.0
        %2938 = vmatpush1.msra.mxu0 0.0
        %2939 = vmatprep.subr.mxu0 0.0
        %2940 = vmatpush1.msra.mxu0 0.0
        %2941 = vmatprep.subr.mxu0 0.0
        %2942 = vmatpush1.msra.mxu0 0.0
        %2943 = vmatprep.subr.mxu0 0.0
        %2944 = vmatpush1.msra.mxu0 0.0
        %2945 = vmatprep.mubr.f32.mxu0 0.0
        %2946 = vmatmul.mubr.f32.gmra.mrb[0].mxu0 %v2876
        %v2947 = vpop.f32.mrb[0].mxu0
        %v2948 = vadd.f32 %v2873, %v2947
        %v2949 = vpop.f32.mrb[0].mxu0
        %2950 = vmatprep.mubr.f32.mxu0 0.0
        %2951 = vmatmul.mubr.f32.gmra.mrb[0].mxu0 %v2879
        %v2952 = vpop.f32.mrb[0].mxu0
        %v2953 = vadd.f32 %v2873, %v2952
        %v2954 = vpop.f32.mrb[0].mxu0
        %2955 = vdwg.mxu0
        %v2956 = vadd.f32 %v1277, %v2948
        %v2957 = vadd.f32 %v1278, %v2953
        %v2958 = vsel %vm1345, %v2956, 0.0
        %2959 = vadd.xlane.f32.xlu0 %v2958
        %v2960 = vpop.xlane.xlu0 %2959
        %v2961 = vsel %vm1345, %v2957, 0.0
        %2962 = vadd.xlane.f32.xlu0 %v2961
        %v2963 = vpop.xlane.xlu0 %2962
        %v2964 = vrcp.pop 32.0
        %v2965 = vmul.f32 %v2960, %v2964
        %v2966 = vmul.f32 %v2963, %v2964
        %v2967 = vsub.f32 %v2956, %v2965
        %v2968 = vsub.f32 %v2957, %v2966
        %v2969 = vmul.f32 %v2967, %v2967
        %v2970 = vmul.f32 %v2968, %v2968
        %v2971 = vsel %vm1345, %v2969, 0.0
        %2972 = vadd.xlane.f32.xlu0 %v2971
        %v2973 = vpop.xlane.xlu0 %2972
        %v2974 = vsel %vm1345, %v2970, 0.0
        %2975 = vadd.xlane.f32.xlu0 %v2974
        %v2976 = vpop.xlane.xlu0 %2975
        %v2977 = vmul.f32 %v2973, %v2964
        %v2978 = vmul.f32 %v2976, %v2964
        %v2979 = vadd.f32 %v2977, 1e-05
        %v2980 = vadd.f32 %v2978, 1e-05
        %v2981 = vrsqrt.pop %v2979
        %v2982 = vrsqrt.pop %v2980
        %v2983 = vmul.f32 %v2967, %v2981
        %v2984 = vmul.f32 %v2968, %v2982
        %v2986 = vlaneseq
        %v2987 = vshrl.u32 %v2986, 7
        %v2988 = vsub.s32 0, %v2987
        %v2989 = vrot.slane %v1296, %v2988
        %v2991 = vmul.f32 %v2983, %v2989
        %v2992 = vmul.f32 %v2984, %v2989
        %v2994 = vlaneseq
        %v2995 = vshrl.u32 %v2994, 7
        %v2996 = vsub.s32 0, %v2995
        %v2997 = vrot.slane %v1297, %v2996
        %v2999 = vadd.f32 %v2991, %v2997
        %v3000 = vadd.f32 %v2992, %v2997
        %v3001 = vadd.f32 %v2999, %v1279
        %v3002 = vadd.f32 %v3000, %v1280
        %v3004 = vlaneseq
        %v3005 = vshrl.u32 %v3004, 7
        %v3006 = vsub.s32 0, %v3005
        %v3007 = vrot.slane %v1307, %v3006
        %v3010 = vsel %vm1345, %v3001, 0
        %v3013 = vsel %vm1345, %v3002, 0
        %3015 = vmatprep.subr.mxu0 0.0
        %3016 = vmatpush1.msra.mxu0 %v1303
        %3017 = vmatprep.subr.mxu0 0.0
        %3018 = vmatpush1.msra.mxu0 %v1304
        %3019 = vmatprep.subr.mxu0 0.0
        %3020 = vmatpush1.msra.mxu0 %v1305
        %3021 = vmatprep.subr.mxu0 0.0
        %3022 = vmatpush1.msra.mxu0 %v1306
        %3023 = vmatprep.subr.mxu0 0.0
        %3024 = vmatpush1.msra.mxu0 0.0
        %3025 = vmatprep.subr.mxu0 0.0
        %3026 = vmatpush1.msra.mxu0 0.0
        %3027 = vmatprep.subr.mxu0 0.0
        %3028 = vmatpush1.msra.mxu0 0.0
        %3029 = vmatprep.subr.mxu0 0.0
        %3030 = vmatpush1.msra.mxu0 0.0
        %3031 = vmatprep.subr.mxu0 0.0
        %3032 = vmatpush1.msra.mxu0 0.0
        %3033 = vmatprep.subr.mxu0 0.0
        %3034 = vmatpush1.msra.mxu0 0.0
        %3035 = vmatprep.subr.mxu0 0.0
        %3036 = vmatpush1.msra.mxu0 0.0
        %3037 = vmatprep.subr.mxu0 0.0
        %3038 = vmatpush1.msra.mxu0 0.0
        %3039 = vmatprep.subr.mxu0 0.0
        %3040 = vmatpush1.msra.mxu0 0.0
        %3041 = vmatprep.subr.mxu0 0.0
        %3042 = vmatpush1.msra.mxu0 0.0
        %3043 = vmatprep.subr.mxu0 0.0
        %3044 = vmatpush1.msra.mxu0 0.0
        %3045 = vmatprep.subr.mxu0 0.0
        %3046 = vmatpush1.msra.mxu0 0.0
        %3047 = vmatprep.subr.mxu0 0.0
        %3048 = vmatpush1.msra.mxu0 0.0
        %3049 = vmatprep.subr.mxu0 0.0
        %3050 = vmatpush1.msra.mxu0 0.0
        %3051 = vmatprep.subr.mxu0 0.0
        %3052 = vmatpush1.msra.mxu0 0.0
        %3053 = vmatprep.subr.mxu0 0.0
        %3054 = vmatpush1.msra.mxu0 0.0
        %3055 = vmatprep.subr.mxu0 0.0
        %3056 = vmatpush1.msra.mxu0 0.0
        %3057 = vmatprep.subr.mxu0 0.0
        %3058 = vmatpush1.msra.mxu0 0.0
        %3059 = vmatprep.subr.mxu0 0.0
        %3060 = vmatpush1.msra.mxu0 0.0
        %3061 = vmatprep.subr.mxu0 0.0
        %3062 = vmatpush1.msra.mxu0 0.0
        %3063 = vmatprep.subr.mxu0 0.0
        %3064 = vmatpush1.msra.mxu0 0.0
        %3065 = vmatprep.subr.mxu0 0.0
        %3066 = vmatpush1.msra.mxu0 0.0
        %3067 = vmatprep.subr.mxu0 0.0
        %3068 = vmatpush1.msra.mxu0 0.0
        %3069 = vmatprep.subr.mxu0 0.0
        %3070 = vmatpush1.msra.mxu0 0.0
        %3071 = vmatprep.subr.mxu0 0.0
        %3072 = vmatpush1.msra.mxu0 0.0
        %3073 = vmatprep.subr.mxu0 0.0
        %3074 = vmatpush1.msra.mxu0 0.0
        %3075 = vmatprep.subr.mxu0 0.0
        %3076 = vmatpush1.msra.mxu0 0.0
        %3077 = vmatprep.subr.mxu0 0.0
        %3078 = vmatpush1.msra.mxu0 0.0
        %3079 = vmatprep.mubr.f32.mxu0 0.0
        %3080 = vmatmul.mubr.f32.gmra.mrb[0].mxu0 %v3010
        %v3081 = vpop.f32.mrb[0].mxu0
        %v3082 = vadd.f32 %v3007, %v3081
        %v3083 = vpop.f32.mrb[0].mxu0
        %3084 = vmatprep.mubr.f32.mxu0 0.0
        %3085 = vmatmul.mubr.f32.gmra.mrb[0].mxu0 %v3013
        %v3086 = vpop.f32.mrb[0].mxu0
        %v3087 = vadd.f32 %v3007, %v3086
        %v3088 = vpop.f32.mrb[0].mxu0
        %3089 = vdwg.mxu0
        %v3090 = vlaneseq
        %v3091 = vand.u32 %v3090, 127
        %v3092 = vld [vmem:[%s5] sm:$0xff]
        %v3093 = vld [vmem:[%s5 + $0x8] sm:$0xff]
        %v3094 = vld [vmem:[%s5 + $0x10] sm:$0xff]
        %v3095 = vld [vmem:[%s5 + $0x18] sm:$0xff]
        %v3096 = vld [vmem:[%s5 + $0x20] sm:$0xff]
        %v3097 = vld [vmem:[%s5 + $0x28] sm:$0xff]
        %v3098 = vld [vmem:[%s5 + $0x30] sm:$0xff]
        %v3099 = vld [vmem:[%s5 + $0x38] sm:$0xff]
        %v3100 = vld [vmem:[%s5 + $0x40] sm:$0xff]
        %v3101 = vld [vmem:[%s5 + $0x48] sm:$0xff]
        %v3103 = vlaneseq
        %v3104 = vshrl.u32 %v3103, 7
        %v3105 = vsub.s32 0, %v3104
        %v3106 = vrot.slane %v1302, %v3105
        %v3109 = vsel %vm1345, %v3092, 0
        %v3112 = vsel %vm1345, %v3093, 0
        %v3115 = vsel %vm1345, %v3094, 0
        %v3118 = vsel %vm1345, %v3095, 0
        %v3121 = vsel %vm1345, %v3096, 0
        %v3124 = vsel %vm1345, %v3097, 0
        %v3127 = vsel %vm1345, %v3098, 0
        %v3130 = vsel %vm1345, %v3099, 0
        %v3133 = vsel %vm1345, %v3100, 0
        %v3136 = vsel %vm1345, %v3101, 0
        %3138 = vmatprep.subr.mxu0 0.0
        %3139 = vmatpush1.msra.mxu0 %v1298
        %3140 = vmatprep.subr.mxu0 0.0
        %3141 = vmatpush1.msra.mxu0 %v1299
        %3142 = vmatprep.subr.mxu0 0.0
        %3143 = vmatpush1.msra.mxu0 %v1300
        %3144 = vmatprep.subr.mxu0 0.0
        %3145 = vmatpush1.msra.mxu0 %v1301
        %3146 = vmatprep.subr.mxu0 0.0
        %3147 = vmatpush1.msra.mxu0 0.0
        %3148 = vmatprep.subr.mxu0 0.0
        %3149 = vmatpush1.msra.mxu0 0.0
        %3150 = vmatprep.subr.mxu0 0.0
        %3151 = vmatpush1.msra.mxu0 0.0
        %3152 = vmatprep.subr.mxu0 0.0
        %3153 = vmatpush1.msra.mxu0 0.0
        %3154 = vmatprep.subr.mxu0 0.0
        %3155 = vmatpush1.msra.mxu0 0.0
        %3156 = vmatprep.subr.mxu0 0.0
        %3157 = vmatpush1.msra.mxu0 0.0
        %3158 = vmatprep.subr.mxu0 0.0
        %3159 = vmatpush1.msra.mxu0 0.0
        %3160 = vmatprep.subr.mxu0 0.0
        %3161 = vmatpush1.msra.mxu0 0.0
        %3162 = vmatprep.subr.mxu0 0.0
        %3163 = vmatpush1.msra.mxu0 0.0
        %3164 = vmatprep.subr.mxu0 0.0
        %3165 = vmatpush1.msra.mxu0 0.0
        %3166 = vmatprep.subr.mxu0 0.0
        %3167 = vmatpush1.msra.mxu0 0.0
        %3168 = vmatprep.subr.mxu0 0.0
        %3169 = vmatpush1.msra.mxu0 0.0
        %3170 = vmatprep.subr.mxu0 0.0
        %3171 = vmatpush1.msra.mxu0 0.0
        %3172 = vmatprep.subr.mxu0 0.0
        %3173 = vmatpush1.msra.mxu0 0.0
        %3174 = vmatprep.subr.mxu0 0.0
        %3175 = vmatpush1.msra.mxu0 0.0
        %3176 = vmatprep.subr.mxu0 0.0
        %3177 = vmatpush1.msra.mxu0 0.0
        %3178 = vmatprep.subr.mxu0 0.0
        %3179 = vmatpush1.msra.mxu0 0.0
        %3180 = vmatprep.subr.mxu0 0.0
        %3181 = vmatpush1.msra.mxu0 0.0
        %3182 = vmatprep.subr.mxu0 0.0
        %3183 = vmatpush1.msra.mxu0 0.0
        %3184 = vmatprep.subr.mxu0 0.0
        %3185 = vmatpush1.msra.mxu0 0.0
        %3186 = vmatprep.subr.mxu0 0.0
        %3187 = vmatpush1.msra.mxu0 0.0
        %3188 = vmatprep.subr.mxu0 0.0
        %3189 = vmatpush1.msra.mxu0 0.0
        %3190 = vmatprep.subr.mxu0 0.0
        %3191 = vmatpush1.msra.mxu0 0.0
        %3192 = vmatprep.subr.mxu0 0.0
        %3193 = vmatpush1.msra.mxu0 0.0
        %3194 = vmatprep.subr.mxu0 0.0
        %3195 = vmatpush1.msra.mxu0 0.0
        %3196 = vmatprep.subr.mxu0 0.0
        %3197 = vmatpush1.msra.mxu0 0.0
        %3198 = vmatprep.subr.mxu0 0.0
        %3199 = vmatpush1.msra.mxu0 0.0
        %3200 = vmatprep.subr.mxu0 0.0
        %3201 = vmatpush1.msra.mxu0 0.0
        %3202 = vmatprep.mubr.f32.mxu0 0.0
        %3203 = vmatmul.mubr.f32.gmra.mrb[0].mxu0 %v3109
        %v3204 = vpop.f32.mrb[0].mxu0
        %v3205 = vadd.f32 %v3106, %v3204
        %v3206 = vpop.f32.mrb[0].mxu0
        %3207 = vmatprep.mubr.f32.mxu0 0.0
        %3208 = vmatmul.mubr.f32.gmra.mrb[0].mxu0 %v3112
        %v3209 = vpop.f32.mrb[0].mxu0
        %v3210 = vadd.f32 %v3106, %v3209
        %v3211 = vpop.f32.mrb[0].mxu0
        %3212 = vmatprep.mubr.f32.mxu0 0.0
        %3213 = vmatmul.mubr.f32.gmra.mrb[0].mxu0 %v3115
        %v3214 = vpop.f32.mrb[0].mxu0
        %v3215 = vadd.f32 %v3106, %v3214
        %v3216 = vpop.f32.mrb[0].mxu0
        %3217 = vmatprep.mubr.f32.mxu0 0.0
        %3218 = vmatmul.mubr.f32.gmra.mrb[0].mxu0 %v3118
        %v3219 = vpop.f32.mrb[0].mxu0
        %v3220 = vadd.f32 %v3106, %v3219
        %v3221 = vpop.f32.mrb[0].mxu0
        %3222 = vmatprep.mubr.f32.mxu0 0.0
        %3223 = vmatmul.mubr.f32.gmra.mrb[0].mxu0 %v3121
        %v3224 = vpop.f32.mrb[0].mxu0
        %v3225 = vadd.f32 %v3106, %v3224
        %v3226 = vpop.f32.mrb[0].mxu0
        %3227 = vmatprep.mubr.f32.mxu0 0.0
        %3228 = vmatmul.mubr.f32.gmra.mrb[0].mxu0 %v3124
        %v3229 = vpop.f32.mrb[0].mxu0
        %v3230 = vadd.f32 %v3106, %v3229
        %v3231 = vpop.f32.mrb[0].mxu0
        %3232 = vmatprep.mubr.f32.mxu0 0.0
        %3233 = vmatmul.mubr.f32.gmra.mrb[0].mxu0 %v3127
        %v3234 = vpop.f32.mrb[0].mxu0
        %v3235 = vadd.f32 %v3106, %v3234
        %v3236 = vpop.f32.mrb[0].mxu0
        %3237 = vmatprep.mubr.f32.mxu0 0.0
        %3238 = vmatmul.mubr.f32.gmra.mrb[0].mxu0 %v3130
        %v3239 = vpop.f32.mrb[0].mxu0
        %v3240 = vadd.f32 %v3106, %v3239
        %v3241 = vpop.f32.mrb[0].mxu0
        %3242 = vmatprep.mubr.f32.mxu0 0.0
        %3243 = vmatmul.mubr.f32.gmra.mrb[0].mxu0 %v3133
        %v3244 = vpop.f32.mrb[0].mxu0
        %v3245 = vadd.f32 %v3106, %v3244
        %v3246 = vpop.f32.mrb[0].mxu0
        %3247 = vmatprep.mubr.f32.mxu0 0.0
        %3248 = vmatmul.mubr.f32.gmra.mrb[0].mxu0 %v3136
        %v3249 = vpop.f32.mrb[0].mxu0
        %v3250 = vadd.f32 %v3106, %v3249
        %v3251 = vpop.f32.mrb[0].mxu0
        %3252 = vdwg.mxu0
        %v3253 = vld [vmem:[%s7] sm:$0xff]
        %v3254 = vld [vmem:[%s7 + $0x8] sm:$0xff]
        %v3255 = vld [vmem:[%s7 + $0x10] sm:$0xff]
        %v3256 = vld [vmem:[%s7 + $0x18] sm:$0xff]
        %v3257 = vld [vmem:[%s7 + $0x20] sm:$0xff]
        %v3258 = vld [vmem:[%s7 + $0x28] sm:$0xff]
        %v3259 = vld [vmem:[%s7 + $0x30] sm:$0xff]
        %v3260 = vld [vmem:[%s7 + $0x38] sm:$0xff]
        %v3261 = vld [vmem:[%s7 + $0x40] sm:$0xff]
        %v3262 = vld [vmem:[%s7 + $0x48] sm:$0xff]
        %3264 = vset.pattern.permute.xlu0 0
        %3265 = vperm.xlu0 %3264, %v3253
        %v3266 = vpop.permute.xlu0 %3265
        %3269 = vset.pattern.permute.xlu0 0
        %3270 = vperm.xlu0 %3269, %v3254
        %v3271 = vpop.permute.xlu0 %3270
        %3274 = vset.pattern.permute.xlu0 0
        %3275 = vperm.xlu0 %3274, %v3255
        %v3276 = vpop.permute.xlu0 %3275
        %3279 = vset.pattern.permute.xlu0 0
        %3280 = vperm.xlu0 %3279, %v3256
        %v3281 = vpop.permute.xlu0 %3280
        %3284 = vset.pattern.permute.xlu0 0
        %3285 = vperm.xlu0 %3284, %v3257
        %v3286 = vpop.permute.xlu0 %3285
        %3289 = vset.pattern.permute.xlu0 0
        %3290 = vperm.xlu0 %3289, %v3258
        %v3291 = vpop.permute.xlu0 %3290
        %3294 = vset.pattern.permute.xlu0 0
        %3295 = vperm.xlu0 %3294, %v3259
        %v3296 = vpop.permute.xlu0 %3295
        %3299 = vset.pattern.permute.xlu0 0
        %3300 = vperm.xlu0 %3299, %v3260
        %v3301 = vpop.permute.xlu0 %3300
        %3304 = vset.pattern.permute.xlu0 0
        %3305 = vperm.xlu0 %3304, %v3261
        %v3306 = vpop.permute.xlu0 %3305
        %3309 = vset.pattern.permute.xlu0 0
        %3310 = vperm.xlu0 %3309, %v3262
        %v3311 = vpop.permute.xlu0 %3310
        %v3313 = vmul.f32 %v3205, %v3266
        %v3314 = vmul.f32 %v3210, %v3271
        %v3315 = vmul.f32 %v3215, %v3276
        %v3316 = vmul.f32 %v3220, %v3281
        %v3317 = vmul.f32 %v3225, %v3286
        %v3318 = vmul.f32 %v3230, %v3291
        %v3319 = vmul.f32 %v3235, %v3296
        %v3320 = vmul.f32 %v3240, %v3301
        %v3321 = vmul.f32 %v3245, %v3306
        %v3322 = vmul.f32 %v3250, %v3311
        %3324 = vrot.lane.b32.xlu0 %v3082, 120
        %v3325 = vpop.permute.xlu0 %3324
        %3327 = vrot.lane.b32.xlu0 %v3082, 112
        %v3328 = vpop.permute.xlu0 %3327
        %3330 = vrot.lane.b32.xlu0 %v3082, 104
        %v3331 = vpop.permute.xlu0 %3330
        %vm3333 = vcmask 589312
        %v3334 = vsel %vm3333, %v3082, -inf
        %3335 = vmax.xlane.f32.xlu0 %v3334
        %v3336 = vpop.xlane.xlu0 %3335
        %v3337 = vsel %vm3333, %v3325, -inf
        %3338 = vmax.xlane.f32.xlu0 %v3337
        %v3339 = vpop.xlane.xlu0 %3338
        %v3340 = vsel %vm3333, %v3328, -inf
        %3341 = vmax.xlane.f32.xlu0 %v3340
        %v3342 = vpop.xlane.xlu0 %3341
        %v3343 = vsel %vm3333, %v3331, -inf
        %3344 = vmax.xlane.f32.xlu0 %v3343
        %v3345 = vpop.xlane.xlu0 %3344
        %v3346 = vsub.f32 %v3082, %v3336
        %v3347 = vsub.f32 %v3325, %v3339
        %v3348 = vsub.f32 %v3328, %v3342
        %v3349 = vsub.f32 %v3331, %v3345
        %v3350 = vmul.f32 %v3346, 1.442695
        %v3351 = vpow.pop %v3350
        %v3352 = vmul.f32 %v3347, 1.442695
        %v3353 = vpow.pop %v3352
        %v3354 = vmul.f32 %v3348, 1.442695
        %v3355 = vpow.pop %v3354
        %v3356 = vmul.f32 %v3349, 1.442695
        %v3357 = vpow.pop %v3356
        %3362 = vrot.lane.b32.xlu0 %v3351, 64
        %v3363 = vpop.permute.xlu0 %3362
        %3364 = vrot.lane.b32.xlu0 %v3353, 64
        %v3365 = vpop.permute.xlu0 %3364
        %3366 = vrot.lane.b32.xlu0 %v3355, 64
        %v3367 = vpop.permute.xlu0 %3366
        %3368 = vrot.lane.b32.xlu0 %v3357, 64
        %v3369 = vpop.permute.xlu0 %3368
        %v3374 = vsel %vm1517, %v3363, 0.0
        %3375 = vadd.xlane.f32.xlu0 %v3374
        %v3376 = vpop.xlane.xlu0 %3375
        %v3377 = vsel %vm1517, %v3365, 0.0
        %3378 = vadd.xlane.f32.xlu0 %v3377
        %v3379 = vpop.xlane.xlu0 %3378
        %v3380 = vsel %vm1517, %v3367, 0.0
        %3381 = vadd.xlane.f32.xlu0 %v3380
        %v3382 = vpop.xlane.xlu0 %3381
        %v3383 = vsel %vm1517, %v3369, 0.0
        %3384 = vadd.xlane.f32.xlu0 %v3383
        %v3385 = vpop.xlane.xlu0 %3384
        %v3386 = vrcp.pop %v3376
        %v3387 = vmul.f32 %v3351, %v3386
        %v3388 = vrcp.pop %v3379
        %v3389 = vmul.f32 %v3353, %v3388
        %v3390 = vrcp.pop %v3382
        %v3391 = vmul.f32 %v3355, %v3390
        %v3392 = vrcp.pop %v3385
        %v3393 = vmul.f32 %v3357, %v3392
        %v3394 = vld [vmem:[%s9] sm:$0xff]
        %v3395 = vld [vmem:[%s11] sm:$0xff]
        %v3396 = vlaneseq
        %v3397 = vshrl.u32 %v3396, 7
        %v3398 = vsub.s32 0, %v3397
        %v3399 = vrot.slane %v1331, %v3398
        %v3400 = vmul.f32 %v3082, %v3399
        %v3401 = vmul.f32 %v3325, %v3399
        %v3402 = vmul.f32 %v3328, %v3399
        %v3403 = vmul.f32 %v3331, %v3399
        %v3404 = vadd.f32 %v3394, %v3400
        %v3405 = vadd.f32 %v3394, %v3401
        %v3406 = vadd.f32 %v3394, %v3402
        %v3407 = vadd.f32 %v3394, %v3403
        %v3408 = vlaneseq
        %v3409 = vshrl.u32 %v3408, 7
        %v3410 = vsub.s32 0, %v3409
        %v3411 = vrot.slane %v1333, %v3410
        %v3412 = vmul.f32 %v3404, %v3411
        %v3413 = vmul.f32 %v3405, %v3411
        %v3414 = vmul.f32 %v3406, %v3411
        %v3415 = vmul.f32 %v3407, %v3411
        %v3416 = vsub.f32 %v3412, 0.5
        %v3417 = vsub.f32 %v3413, 0.5
        %v3418 = vsub.f32 %v3414, 0.5
        %v3419 = vsub.f32 %v3415, 0.5
        %v3420 = vlaneseq
        %v3421 = vshrl.u32 %v3420, 7
        %v3422 = vsub.s32 0, %v3421
        %v3423 = vrot.slane %v1332, %v3422
        %3425 = vrot.lane.b32.xlu0 %v3423, 32
        %v3426 = vpop.permute.xlu0 %3425
        %v3428 = vmul.f32 %v3082, %v3426
        %v3429 = vmul.f32 %v3325, %v3426
        %v3430 = vmul.f32 %v3328, %v3426
        %v3431 = vmul.f32 %v3331, %v3426
        %3436 = vrot.lane.b32.xlu0 %v3428, 96
        %v3437 = vpop.permute.xlu0 %3436
        %3438 = vrot.lane.b32.xlu0 %v3429, 96
        %v3439 = vpop.permute.xlu0 %3438
        %3440 = vrot.lane.b32.xlu0 %v3430, 96
        %v3441 = vpop.permute.xlu0 %3440
        %3442 = vrot.lane.b32.xlu0 %v3431, 96
        %v3443 = vpop.permute.xlu0 %3442
        %v3448 = vadd.f32 %v3395, %v3437
        %v3449 = vadd.f32 %v3395, %v3439
        %v3450 = vadd.f32 %v3395, %v3441
        %v3451 = vadd.f32 %v3395, %v3443
        %v3452 = vlaneseq
        %v3453 = vshrl.u32 %v3452, 7
        %v3454 = vsub.s32 0, %v3453
        %v3455 = vrot.slane %v1334, %v3454
        %v3456 = vmul.f32 %v3448, %v3455
        %v3457 = vmul.f32 %v3449, %v3455
        %v3458 = vmul.f32 %v3450, %v3455
        %v3459 = vmul.f32 %v3451, %v3455
        %v3460 = vsub.f32 %v3456, 0.5
        %v3461 = vsub.f32 %v3457, 0.5
        %v3462 = vsub.f32 %v3458, 0.5
        %v3463 = vsub.f32 %v3459, 0.5
        %v3464 = vfloor.f32 %v3416
        %v3465 = vfloor.f32 %v3417
        %v3466 = vfloor.f32 %v3418
        %v3467 = vfloor.f32 %v3419
        %v3468 = vfloor.f32 %v3460
        %v3469 = vfloor.f32 %v3461
        %v3470 = vfloor.f32 %v3462
        %v3471 = vfloor.f32 %v3463
        %v3472 = vsub.f32 %v3416, %v3464
        %v3473 = vsub.f32 %v3417, %v3465
        %v3474 = vsub.f32 %v3418, %v3466
        %v3475 = vsub.f32 %v3419, %v3467
        %v3476 = vsub.f32 %v3460, %v3468
        %v3477 = vsub.f32 %v3461, %v3469
        %v3478 = vsub.f32 %v3462, %v3470
        %v3479 = vsub.f32 %v3463, %v3471
        %v3480 = vsub.f32 1.0, %v3472
        %v3481 = vsub.f32 1.0, %v3473
        %v3482 = vsub.f32 1.0, %v3474
        %v3483 = vsub.f32 1.0, %v3475
        %v3484 = vsub.f32 1.0, %v3476
        %v3485 = vsub.f32 1.0, %v3477
        %v3486 = vsub.f32 1.0, %v3478
        %v3487 = vsub.f32 1.0, %v3479
        %v3488 = vmul.f32 %v3480, %v3484
        %v3489 = vmul.f32 %v3481, %v3485
        %v3490 = vmul.f32 %v3482, %v3486
        %v3491 = vmul.f32 %v3483, %v3487
        %v3492 = vadd.f32 %v3464, 1.0
        %v3493 = vadd.f32 %v3465, 1.0
        %v3494 = vadd.f32 %v3466, 1.0
        %v3495 = vadd.f32 %v3467, 1.0
        %v3496 = vmul.f32 %v3472, %v3484
        %v3497 = vmul.f32 %v3473, %v3485
        %v3498 = vmul.f32 %v3474, %v3486
        %v3499 = vmul.f32 %v3475, %v3487
        %v3500 = vadd.f32 %v3468, 1.0
        %v3501 = vadd.f32 %v3469, 1.0
        %v3502 = vadd.f32 %v3470, 1.0
        %v3503 = vadd.f32 %v3471, 1.0
        %v3504 = vmul.f32 %v3480, %v3476
        %v3505 = vmul.f32 %v3481, %v3477
        %v3506 = vmul.f32 %v3482, %v3478
        %v3507 = vmul.f32 %v3483, %v3479
        %v3508 = vmul.f32 %v3472, %v3476
        %v3509 = vmul.f32 %v3473, %v3477
        %v3510 = vmul.f32 %v3474, %v3478
        %v3511 = vmul.f32 %v3475, %v3479
        %vm3512 = vcmp.ge.f32.partialorder %v3464, 0.0
        %vm3513 = vcmp.ge.f32.partialorder %v3465, 0.0
        %vm3514 = vcmp.ge.f32.partialorder %v3466, 0.0
        %vm3515 = vcmp.ge.f32.partialorder %v3467, 0.0
        %vm3516 = vcmp.lt.f32.partialorder %v3464, %v3411
        %vm3517 = vcmp.lt.f32.partialorder %v3465, %v3411
        %vm3518 = vcmp.lt.f32.partialorder %v3466, %v3411
        %vm3519 = vcmp.lt.f32.partialorder %v3467, %v3411
        %vm3520 = vmand %vm3512, %vm3516
        %vm3521 = vmand %vm3513, %vm3517
        %vm3522 = vmand %vm3514, %vm3518
        %vm3523 = vmand %vm3515, %vm3519
        %vm3524 = vcmp.ge.f32.partialorder %v3468, 0.0
        %vm3525 = vcmp.ge.f32.partialorder %v3469, 0.0
        %vm3526 = vcmp.ge.f32.partialorder %v3470, 0.0
        %vm3527 = vcmp.ge.f32.partialorder %v3471, 0.0
        %vm3528 = vmand %vm3520, %vm3524
        %vm3529 = vmand %vm3521, %vm3525
        %vm3530 = vmand %vm3522, %vm3526
        %vm3531 = vmand %vm3523, %vm3527
        %vm3532 = vcmp.lt.f32.partialorder %v3468, %v3455
        %vm3533 = vcmp.lt.f32.partialorder %v3469, %v3455
        %vm3534 = vcmp.lt.f32.partialorder %v3470, %v3455
        %vm3535 = vcmp.lt.f32.partialorder %v3471, %v3455
        %vm3536 = vmand %vm3528, %vm3532
        %vm3537 = vmand %vm3529, %vm3533
        %vm3538 = vmand %vm3530, %vm3534
        %vm3539 = vmand %vm3531, %vm3535
        %v3540 = vsel %vm3536, 1, 0
        %v3541 = vsel %vm3537, 1, 0
        %v3542 = vsel %vm3538, 1, 0
        %v3543 = vsel %vm3539, 1, 0
        %v3544 = vcvt.s32.f32 %v3540
        %v3545 = vcvt.s32.f32 %v3541
        %v3546 = vcvt.s32.f32 %v3542
        %v3547 = vcvt.s32.f32 %v3543
        %v3548 = vsub.f32 %v1333, 1.0
        %v3549 = vmax.f32 %v3464, 0.0
        %v3550 = vmax.f32 %v3465, 0.0
        %v3551 = vmax.f32 %v3466, 0.0
        %v3552 = vmax.f32 %v3467, 0.0
        %v3553 = vlaneseq
        %v3554 = vshrl.u32 %v3553, 7
        %v3555 = vsub.s32 0, %v3554
        %v3556 = vrot.slane %v3548, %v3555
        %v3557 = vmin.f32 %v3556, %v3549
        %v3558 = vmin.f32 %v3556, %v3550
        %v3559 = vmin.f32 %v3556, %v3551
        %v3560 = vmin.f32 %v3556, %v3552
        %v3561 = vcvt.f32.s32.to.zero.pseudo %v3557
        %v3562 = vcvt.f32.s32.to.zero.pseudo %v3558
        %v3563 = vcvt.f32.s32.to.zero.pseudo %v3559
        %v3564 = vcvt.f32.s32.to.zero.pseudo %v3560
        %v3565 = vsub.f32 %v1334, 1.0
        %v3566 = vmax.f32 %v3468, 0.0
        %v3567 = vmax.f32 %v3469, 0.0
        %v3568 = vmax.f32 %v3470, 0.0
        %v3569 = vmax.f32 %v3471, 0.0
        %v3570 = vlaneseq
        %v3571 = vshrl.u32 %v3570, 7
        %v3572 = vsub.s32 0, %v3571
        %v3573 = vrot.slane %v3565, %v3572
        %v3574 = vmin.f32 %v3573, %v3566
        %v3575 = vmin.f32 %v3573, %v3567
        %v3576 = vmin.f32 %v3573, %v3568
        %v3577 = vmin.f32 %v3573, %v3569
        %v3578 = vcvt.f32.s32.to.zero.pseudo %v3574
        %v3579 = vcvt.f32.s32.to.zero.pseudo %v3575
        %v3580 = vcvt.f32.s32.to.zero.pseudo %v3576
        %v3581 = vcvt.f32.s32.to.zero.pseudo %v3577
        %v3582 = vlaneseq
        %v3583 = vshrl.u32 %v3582, 7
        %v3584 = vsub.s32 0, %v3583
        %v3585 = vrot.slane %v1335, %v3584
        %v3586 = vmul.u32 %v3578, %v3585
        %v3587 = vmul.u32 %v3579, %v3585
        %v3588 = vmul.u32 %v3580, %v3585
        %v3589 = vmul.u32 %v3581, %v3585
        %v3590 = vlaneseq
        %v3591 = vshrl.u32 %v3590, 7
        %v3592 = vsub.s32 0, %v3591
        %v3593 = vrot.slane %v1336, %v3592
        %v3594 = vadd.s32 %v3593, %v3586
        %v3595 = vadd.s32 %v3593, %v3587
        %v3596 = vadd.s32 %v3593, %v3588
        %v3597 = vadd.s32 %v3593, %v3589
        %v3598 = vadd.s32 %v3594, %v3561
        %v3599 = vadd.s32 %v3595, %v3562
        %v3600 = vadd.s32 %v3596, %v3563
        %v3601 = vadd.s32 %v3597, %v3564
        %v3602 = vmul.f32 %v3488, %v3544
        %v3603 = vmul.f32 %v3489, %v3545
        %v3604 = vmul.f32 %v3490, %v3546
        %v3605 = vmul.f32 %v3491, %v3547
        %3610 = vrot.lane.b32.xlu0 %v3387, 64
        %v3611 = vpop.permute.xlu0 %3610
        %3612 = vrot.lane.b32.xlu0 %v3389, 64
        %v3613 = vpop.permute.xlu0 %3612
        %3614 = vrot.lane.b32.xlu0 %v3391, 64
        %v3615 = vpop.permute.xlu0 %3614
        %3616 = vrot.lane.b32.xlu0 %v3393, 64
        %v3617 = vpop.permute.xlu0 %3616
        %v3622 = vmul.f32 %v3602, %v3611
        %v3623 = vmul.f32 %v3603, %v3613
        %v3624 = vmul.f32 %v3604, %v3615
        %v3625 = vmul.f32 %v3605, %v3617
        %3626 = vset.pattern.permute.xlu0 0
        %3627 = vperm.xlu0 %3626, %v3598
        %v3628 = vpop.permute.xlu0 %3627
        %3629 = vset.pattern.permute.xlu0 0
        %3630 = vperm.xlu0 %3629, %v3599
        %v3631 = vpop.permute.xlu0 %3630
        %3632 = vset.pattern.permute.xlu0 0
        %3633 = vperm.xlu0 %3632, %v3600
        %v3634 = vpop.permute.xlu0 %3633
        %3635 = vset.pattern.permute.xlu0 0
        %3636 = vperm.xlu0 %3635, %v3601
        %v3637 = vpop.permute.xlu0 %3636
        %vm3638 = vcmp.eq.s32.totalorder %v3628, %v3091
        %vm3639 = vcmp.eq.s32.totalorder %v3631, %v3091
        %vm3640 = vcmp.eq.s32.totalorder %v3634, %v3091
        %vm3641 = vcmp.eq.s32.totalorder %v3637, %v3091
        %v3642 = vsel %vm3638, 1, 0
        %v3643 = vsel %vm3639, 1, 0
        %v3644 = vsel %vm3640, 1, 0
        %v3645 = vsel %vm3641, 1, 0
        %v3646 = vcvt.s32.f32 %v3642
        %v3647 = vcvt.s32.f32 %v3643
        %v3648 = vcvt.s32.f32 %v3644
        %v3649 = vcvt.s32.f32 %v3645
        %3651 = vset.pattern.permute.xlu0 0
        %3652 = vperm.xlu0 %3651, %v3622
        %v3653 = vpop.permute.xlu0 %3652
        %3656 = vset.pattern.permute.xlu0 0
        %3657 = vperm.xlu0 %3656, %v3623
        %v3658 = vpop.permute.xlu0 %3657
        %3661 = vset.pattern.permute.xlu0 0
        %3662 = vperm.xlu0 %3661, %v3624
        %v3663 = vpop.permute.xlu0 %3662
        %3666 = vset.pattern.permute.xlu0 0
        %3667 = vperm.xlu0 %3666, %v3625
        %v3668 = vpop.permute.xlu0 %3667
        %v3670 = vmul.f32 %v3653, %v3646
        %v3671 = vmul.f32 %v3658, %v3647
        %v3672 = vmul.f32 %v3663, %v3648
        %v3673 = vmul.f32 %v3668, %v3649
        %v3674 = vadd.f32 %v3670, 0.0
        %v3675 = vadd.f32 %v3671, 0.0
        %v3676 = vadd.f32 %v3672, 0.0
        %v3677 = vadd.f32 %v3673, 0.0
        %3678 = vset.pattern.permute.xlu0 1
        %3679 = vperm.xlu0 %3678, %v3598
        %v3680 = vpop.permute.xlu0 %3679
        %3681 = vset.pattern.permute.xlu0 1
        %3682 = vperm.xlu0 %3681, %v3599
        %v3683 = vpop.permute.xlu0 %3682
        %3684 = vset.pattern.permute.xlu0 1
        %3685 = vperm.xlu0 %3684, %v3600
        %v3686 = vpop.permute.xlu0 %3685
        %3687 = vset.pattern.permute.xlu0 1
        %3688 = vperm.xlu0 %3687, %v3601
        %v3689 = vpop.permute.xlu0 %3688
        %vm3690 = vcmp.eq.s32.totalorder %v3680, %v3091
        %vm3691 = vcmp.eq.s32.totalorder %v3683, %v3091
        %vm3692 = vcmp.eq.s32.totalorder %v3686, %v3091
        %vm3693 = vcmp.eq.s32.totalorder %v3689, %v3091
        %v3694 = vsel %vm3690, 1, 0
        %v3695 = vsel %vm3691, 1, 0
        %v3696 = vsel %vm3692, 1, 0
        %v3697 = vsel %vm3693, 1, 0
        %v3698 = vcvt.s32.f32 %v3694
        %v3699 = vcvt.s32.f32 %v3695
        %v3700 = vcvt.s32.f32 %v3696
        %v3701 = vcvt.s32.f32 %v3697
        %3702 = vset.pattern.permute.xlu0 1
        %3703 = vperm.xlu0 %3702, %v3622
        %v3704 = vpop.permute.xlu0 %3703
        %3706 = vset.pattern.permute.xlu0 1
        %3707 = vperm.xlu0 %3706, %v3623
        %v3708 = vpop.permute.xlu0 %3707
        %3710 = vset.pattern.permute.xlu0 1
        %3711 = vperm.xlu0 %3710, %v3624
        %v3712 = vpop.permute.xlu0 %3711
        %3714 = vset.pattern.permute.xlu0 1
        %3715 = vperm.xlu0 %3714, %v3625
        %v3716 = vpop.permute.xlu0 %3715
        %v3718 = vmul.f32 %v3704, %v3698
        %v3719 = vmul.f32 %v3708, %v3699
        %v3720 = vmul.f32 %v3712, %v3700
        %v3721 = vmul.f32 %v3716, %v3701
        %v3722 = vadd.f32 %v3674, %v3718
        %v3723 = vadd.f32 %v3675, %v3719
        %v3724 = vadd.f32 %v3676, %v3720
        %v3725 = vadd.f32 %v3677, %v3721
        %3726 = vset.pattern.permute.xlu0 2
        %3727 = vperm.xlu0 %3726, %v3598
        %v3728 = vpop.permute.xlu0 %3727
        %3729 = vset.pattern.permute.xlu0 2
        %3730 = vperm.xlu0 %3729, %v3599
        %v3731 = vpop.permute.xlu0 %3730
        %3732 = vset.pattern.permute.xlu0 2
        %3733 = vperm.xlu0 %3732, %v3600
        %v3734 = vpop.permute.xlu0 %3733
        %3735 = vset.pattern.permute.xlu0 2
        %3736 = vperm.xlu0 %3735, %v3601
        %v3737 = vpop.permute.xlu0 %3736
        %vm3738 = vcmp.eq.s32.totalorder %v3728, %v3091
        %vm3739 = vcmp.eq.s32.totalorder %v3731, %v3091
        %vm3740 = vcmp.eq.s32.totalorder %v3734, %v3091
        %vm3741 = vcmp.eq.s32.totalorder %v3737, %v3091
        %v3742 = vsel %vm3738, 1, 0
        %v3743 = vsel %vm3739, 1, 0
        %v3744 = vsel %vm3740, 1, 0
        %v3745 = vsel %vm3741, 1, 0
        %v3746 = vcvt.s32.f32 %v3742
        %v3747 = vcvt.s32.f32 %v3743
        %v3748 = vcvt.s32.f32 %v3744
        %v3749 = vcvt.s32.f32 %v3745
        %3750 = vset.pattern.permute.xlu0 2
        %3751 = vperm.xlu0 %3750, %v3622
        %v3752 = vpop.permute.xlu0 %3751
        %3754 = vset.pattern.permute.xlu0 2
        %3755 = vperm.xlu0 %3754, %v3623
        %v3756 = vpop.permute.xlu0 %3755
        %3758 = vset.pattern.permute.xlu0 2
        %3759 = vperm.xlu0 %3758, %v3624
        %v3760 = vpop.permute.xlu0 %3759
        %3762 = vset.pattern.permute.xlu0 2
        %3763 = vperm.xlu0 %3762, %v3625
        %v3764 = vpop.permute.xlu0 %3763
        %v3766 = vmul.f32 %v3752, %v3746
        %v3767 = vmul.f32 %v3756, %v3747
        %v3768 = vmul.f32 %v3760, %v3748
        %v3769 = vmul.f32 %v3764, %v3749
        %v3770 = vadd.f32 %v3722, %v3766
        %v3771 = vadd.f32 %v3723, %v3767
        %v3772 = vadd.f32 %v3724, %v3768
        %v3773 = vadd.f32 %v3725, %v3769
        %3774 = vset.pattern.permute.xlu0 3
        %3775 = vperm.xlu0 %3774, %v3598
        %v3776 = vpop.permute.xlu0 %3775
        %3777 = vset.pattern.permute.xlu0 3
        %3778 = vperm.xlu0 %3777, %v3599
        %v3779 = vpop.permute.xlu0 %3778
        %3780 = vset.pattern.permute.xlu0 3
        %3781 = vperm.xlu0 %3780, %v3600
        %v3782 = vpop.permute.xlu0 %3781
        %3783 = vset.pattern.permute.xlu0 3
        %3784 = vperm.xlu0 %3783, %v3601
        %v3785 = vpop.permute.xlu0 %3784
        %vm3786 = vcmp.eq.s32.totalorder %v3776, %v3091
        %vm3787 = vcmp.eq.s32.totalorder %v3779, %v3091
        %vm3788 = vcmp.eq.s32.totalorder %v3782, %v3091
        %vm3789 = vcmp.eq.s32.totalorder %v3785, %v3091
        %v3790 = vsel %vm3786, 1, 0
        %v3791 = vsel %vm3787, 1, 0
        %v3792 = vsel %vm3788, 1, 0
        %v3793 = vsel %vm3789, 1, 0
        %v3794 = vcvt.s32.f32 %v3790
        %v3795 = vcvt.s32.f32 %v3791
        %v3796 = vcvt.s32.f32 %v3792
        %v3797 = vcvt.s32.f32 %v3793
        %3798 = vset.pattern.permute.xlu0 3
        %3799 = vperm.xlu0 %3798, %v3622
        %v3800 = vpop.permute.xlu0 %3799
        %3802 = vset.pattern.permute.xlu0 3
        %3803 = vperm.xlu0 %3802, %v3623
        %v3804 = vpop.permute.xlu0 %3803
        %3806 = vset.pattern.permute.xlu0 3
        %3807 = vperm.xlu0 %3806, %v3624
        %v3808 = vpop.permute.xlu0 %3807
        %3810 = vset.pattern.permute.xlu0 3
        %3811 = vperm.xlu0 %3810, %v3625
        %v3812 = vpop.permute.xlu0 %3811
        %v3814 = vmul.f32 %v3800, %v3794
        %v3815 = vmul.f32 %v3804, %v3795
        %v3816 = vmul.f32 %v3808, %v3796
        %v3817 = vmul.f32 %v3812, %v3797
        %v3818 = vadd.f32 %v3770, %v3814
        %v3819 = vadd.f32 %v3771, %v3815
        %v3820 = vadd.f32 %v3772, %v3816
        %v3821 = vadd.f32 %v3773, %v3817
        %3822 = vset.pattern.permute.xlu0 4
        %3823 = vperm.xlu0 %3822, %v3598
        %v3824 = vpop.permute.xlu0 %3823
        %3825 = vset.pattern.permute.xlu0 4
        %3826 = vperm.xlu0 %3825, %v3599
        %v3827 = vpop.permute.xlu0 %3826
        %3828 = vset.pattern.permute.xlu0 4
        %3829 = vperm.xlu0 %3828, %v3600
        %v3830 = vpop.permute.xlu0 %3829
        %3831 = vset.pattern.permute.xlu0 4
        %3832 = vperm.xlu0 %3831, %v3601
        %v3833 = vpop.permute.xlu0 %3832
        %vm3834 = vcmp.eq.s32.totalorder %v3824, %v3091
        %vm3835 = vcmp.eq.s32.totalorder %v3827, %v3091
        %vm3836 = vcmp.eq.s32.totalorder %v3830, %v3091
        %vm3837 = vcmp.eq.s32.totalorder %v3833, %v3091
        %v3838 = vsel %vm3834, 1, 0
        %v3839 = vsel %vm3835, 1, 0
        %v3840 = vsel %vm3836, 1, 0
        %v3841 = vsel %vm3837, 1, 0
        %v3842 = vcvt.s32.f32 %v3838
        %v3843 = vcvt.s32.f32 %v3839
        %v3844 = vcvt.s32.f32 %v3840
        %v3845 = vcvt.s32.f32 %v3841
        %3846 = vset.pattern.permute.xlu0 4
        %3847 = vperm.xlu0 %3846, %v3622
        %v3848 = vpop.permute.xlu0 %3847
        %3850 = vset.pattern.permute.xlu0 4
        %3851 = vperm.xlu0 %3850, %v3623
        %v3852 = vpop.permute.xlu0 %3851
        %3854 = vset.pattern.permute.xlu0 4
        %3855 = vperm.xlu0 %3854, %v3624
        %v3856 = vpop.permute.xlu0 %3855
        %3858 = vset.pattern.permute.xlu0 4
        %3859 = vperm.xlu0 %3858, %v3625
        %v3860 = vpop.permute.xlu0 %3859
        %v3862 = vmul.f32 %v3848, %v3842
        %v3863 = vmul.f32 %v3852, %v3843
        %v3864 = vmul.f32 %v3856, %v3844
        %v3865 = vmul.f32 %v3860, %v3845
        %v3866 = vadd.f32 %v3818, %v3862
        %v3867 = vadd.f32 %v3819, %v3863
        %v3868 = vadd.f32 %v3820, %v3864
        %v3869 = vadd.f32 %v3821, %v3865
        %3870 = vset.pattern.permute.xlu0 5
        %3871 = vperm.xlu0 %3870, %v3598
        %v3872 = vpop.permute.xlu0 %3871
        %3873 = vset.pattern.permute.xlu0 5
        %3874 = vperm.xlu0 %3873, %v3599
        %v3875 = vpop.permute.xlu0 %3874
        %3876 = vset.pattern.permute.xlu0 5
        %3877 = vperm.xlu0 %3876, %v3600
        %v3878 = vpop.permute.xlu0 %3877
        %3879 = vset.pattern.permute.xlu0 5
        %3880 = vperm.xlu0 %3879, %v3601
        %v3881 = vpop.permute.xlu0 %3880
        %vm3882 = vcmp.eq.s32.totalorder %v3872, %v3091
        %vm3883 = vcmp.eq.s32.totalorder %v3875, %v3091
        %vm3884 = vcmp.eq.s32.totalorder %v3878, %v3091
        %vm3885 = vcmp.eq.s32.totalorder %v3881, %v3091
        %v3886 = vsel %vm3882, 1, 0
        %v3887 = vsel %vm3883, 1, 0
        %v3888 = vsel %vm3884, 1, 0
        %v3889 = vsel %vm3885, 1, 0
        %v3890 = vcvt.s32.f32 %v3886
        %v3891 = vcvt.s32.f32 %v3887
        %v3892 = vcvt.s32.f32 %v3888
        %v3893 = vcvt.s32.f32 %v3889
        %3894 = vset.pattern.permute.xlu0 5
        %3895 = vperm.xlu0 %3894, %v3622
        %v3896 = vpop.permute.xlu0 %3895
        %3898 = vset.pattern.permute.xlu0 5
        %3899 = vperm.xlu0 %3898, %v3623
        %v3900 = vpop.permute.xlu0 %3899
        %3902 = vset.pattern.permute.xlu0 5
        %3903 = vperm.xlu0 %3902, %v3624
        %v3904 = vpop.permute.xlu0 %3903
        %3906 = vset.pattern.permute.xlu0 5
        %3907 = vperm.xlu0 %3906, %v3625
        %v3908 = vpop.permute.xlu0 %3907
        %v3910 = vmul.f32 %v3896, %v3890
        %v3911 = vmul.f32 %v3900, %v3891
        %v3912 = vmul.f32 %v3904, %v3892
        %v3913 = vmul.f32 %v3908, %v3893
        %v3914 = vadd.f32 %v3866, %v3910
        %v3915 = vadd.f32 %v3867, %v3911
        %v3916 = vadd.f32 %v3868, %v3912
        %v3917 = vadd.f32 %v3869, %v3913
        %3918 = vset.pattern.permute.xlu0 6
        %3919 = vperm.xlu0 %3918, %v3598
        %v3920 = vpop.permute.xlu0 %3919
        %3921 = vset.pattern.permute.xlu0 6
        %3922 = vperm.xlu0 %3921, %v3599
        %v3923 = vpop.permute.xlu0 %3922
        %3924 = vset.pattern.permute.xlu0 6
        %3925 = vperm.xlu0 %3924, %v3600
        %v3926 = vpop.permute.xlu0 %3925
        %3927 = vset.pattern.permute.xlu0 6
        %3928 = vperm.xlu0 %3927, %v3601
        %v3929 = vpop.permute.xlu0 %3928
        %vm3930 = vcmp.eq.s32.totalorder %v3920, %v3091
        %vm3931 = vcmp.eq.s32.totalorder %v3923, %v3091
        %vm3932 = vcmp.eq.s32.totalorder %v3926, %v3091
        %vm3933 = vcmp.eq.s32.totalorder %v3929, %v3091
        %v3934 = vsel %vm3930, 1, 0
        %v3935 = vsel %vm3931, 1, 0
        %v3936 = vsel %vm3932, 1, 0
        %v3937 = vsel %vm3933, 1, 0
        %v3938 = vcvt.s32.f32 %v3934
        %v3939 = vcvt.s32.f32 %v3935
        %v3940 = vcvt.s32.f32 %v3936
        %v3941 = vcvt.s32.f32 %v3937
        %3942 = vset.pattern.permute.xlu0 6
        %3943 = vperm.xlu0 %3942, %v3622
        %v3944 = vpop.permute.xlu0 %3943
        %3946 = vset.pattern.permute.xlu0 6
        %3947 = vperm.xlu0 %3946, %v3623
        %v3948 = vpop.permute.xlu0 %3947
        %3950 = vset.pattern.permute.xlu0 6
        %3951 = vperm.xlu0 %3950, %v3624
        %v3952 = vpop.permute.xlu0 %3951
        %3954 = vset.pattern.permute.xlu0 6
        %3955 = vperm.xlu0 %3954, %v3625
        %v3956 = vpop.permute.xlu0 %3955
        %v3958 = vmul.f32 %v3944, %v3938
        %v3959 = vmul.f32 %v3948, %v3939
        %v3960 = vmul.f32 %v3952, %v3940
        %v3961 = vmul.f32 %v3956, %v3941
        %v3962 = vadd.f32 %v3914, %v3958
        %v3963 = vadd.f32 %v3915, %v3959
        %v3964 = vadd.f32 %v3916, %v3960
        %v3965 = vadd.f32 %v3917, %v3961
        %3966 = vset.pattern.permute.xlu0 7
        %3967 = vperm.xlu0 %3966, %v3598
        %v3968 = vpop.permute.xlu0 %3967
        %3969 = vset.pattern.permute.xlu0 7
        %3970 = vperm.xlu0 %3969, %v3599
        %v3971 = vpop.permute.xlu0 %3970
        %3972 = vset.pattern.permute.xlu0 7
        %3973 = vperm.xlu0 %3972, %v3600
        %v3974 = vpop.permute.xlu0 %3973
        %3975 = vset.pattern.permute.xlu0 7
        %3976 = vperm.xlu0 %3975, %v3601
        %v3977 = vpop.permute.xlu0 %3976
        %vm3978 = vcmp.eq.s32.totalorder %v3968, %v3091
        %vm3979 = vcmp.eq.s32.totalorder %v3971, %v3091
        %vm3980 = vcmp.eq.s32.totalorder %v3974, %v3091
        %vm3981 = vcmp.eq.s32.totalorder %v3977, %v3091
        %v3982 = vsel %vm3978, 1, 0
        %v3983 = vsel %vm3979, 1, 0
        %v3984 = vsel %vm3980, 1, 0
        %v3985 = vsel %vm3981, 1, 0
        %v3986 = vcvt.s32.f32 %v3982
        %v3987 = vcvt.s32.f32 %v3983
        %v3988 = vcvt.s32.f32 %v3984
        %v3989 = vcvt.s32.f32 %v3985
        %3990 = vset.pattern.permute.xlu0 7
        %3991 = vperm.xlu0 %3990, %v3622
        %v3992 = vpop.permute.xlu0 %3991
        %3994 = vset.pattern.permute.xlu0 7
        %3995 = vperm.xlu0 %3994, %v3623
        %v3996 = vpop.permute.xlu0 %3995
        %3998 = vset.pattern.permute.xlu0 7
        %3999 = vperm.xlu0 %3998, %v3624
        %v4000 = vpop.permute.xlu0 %3999
        %4002 = vset.pattern.permute.xlu0 7
        %4003 = vperm.xlu0 %4002, %v3625
        %v4004 = vpop.permute.xlu0 %4003
        %v4006 = vmul.f32 %v3992, %v3986
        %v4007 = vmul.f32 %v3996, %v3987
        %v4008 = vmul.f32 %v4000, %v3988
        %v4009 = vmul.f32 %v4004, %v3989
        %v4010 = vadd.f32 %v3962, %v4006
        %v4011 = vadd.f32 %v3963, %v4007
        %v4012 = vadd.f32 %v3964, %v4008
        %v4013 = vadd.f32 %v3965, %v4009
        %vm4014 = vcmp.ge.f32.partialorder %v3492, 0.0
        %vm4015 = vcmp.ge.f32.partialorder %v3493, 0.0
        %vm4016 = vcmp.ge.f32.partialorder %v3494, 0.0
        %vm4017 = vcmp.ge.f32.partialorder %v3495, 0.0
        %vm4018 = vcmp.lt.f32.partialorder %v3492, %v3411
        %vm4019 = vcmp.lt.f32.partialorder %v3493, %v3411
        %vm4020 = vcmp.lt.f32.partialorder %v3494, %v3411
        %vm4021 = vcmp.lt.f32.partialorder %v3495, %v3411
        %vm4022 = vmand %vm4014, %vm4018
        %vm4023 = vmand %vm4015, %vm4019
        %vm4024 = vmand %vm4016, %vm4020
        %vm4025 = vmand %vm4017, %vm4021
        %vm4026 = vmand %vm4022, %vm3524
        %vm4027 = vmand %vm4023, %vm3525
        %vm4028 = vmand %vm4024, %vm3526
        %vm4029 = vmand %vm4025, %vm3527
        %vm4030 = vmand %vm4026, %vm3532
        %vm4031 = vmand %vm4027, %vm3533
        %vm4032 = vmand %vm4028, %vm3534
        %vm4033 = vmand %vm4029, %vm3535
        %v4034 = vsel %vm4030, 1, 0
        %v4035 = vsel %vm4031, 1, 0
        %v4036 = vsel %vm4032, 1, 0
        %v4037 = vsel %vm4033, 1, 0
        %v4038 = vcvt.s32.f32 %v4034
        %v4039 = vcvt.s32.f32 %v4035
        %v4040 = vcvt.s32.f32 %v4036
        %v4041 = vcvt.s32.f32 %v4037
        %v4042 = vmax.f32 %v3492, 0.0
        %v4043 = vmax.f32 %v3493, 0.0
        %v4044 = vmax.f32 %v3494, 0.0
        %v4045 = vmax.f32 %v3495, 0.0
        %v4046 = vmin.f32 %v3556, %v4042
        %v4047 = vmin.f32 %v3556, %v4043
        %v4048 = vmin.f32 %v3556, %v4044
        %v4049 = vmin.f32 %v3556, %v4045
        %v4050 = vcvt.f32.s32.to.zero.pseudo %v4046
        %v4051 = vcvt.f32.s32.to.zero.pseudo %v4047
        %v4052 = vcvt.f32.s32.to.zero.pseudo %v4048
        %v4053 = vcvt.f32.s32.to.zero.pseudo %v4049
        %v4054 = vadd.s32 %v3594, %v4050
        %v4055 = vadd.s32 %v3595, %v4051
        %v4056 = vadd.s32 %v3596, %v4052
        %v4057 = vadd.s32 %v3597, %v4053
        %v4058 = vmul.f32 %v3496, %v4038
        %v4059 = vmul.f32 %v3497, %v4039
        %v4060 = vmul.f32 %v3498, %v4040
        %v4061 = vmul.f32 %v3499, %v4041
        %v4062 = vmul.f32 %v4058, %v3611
        %v4063 = vmul.f32 %v4059, %v3613
        %v4064 = vmul.f32 %v4060, %v3615
        %v4065 = vmul.f32 %v4061, %v3617
        %4066 = vset.pattern.permute.xlu0 0
        %4067 = vperm.xlu0 %4066, %v4054
        %v4068 = vpop.permute.xlu0 %4067
        %4069 = vset.pattern.permute.xlu0 0
        %4070 = vperm.xlu0 %4069, %v4055
        %v4071 = vpop.permute.xlu0 %4070
        %4072 = vset.pattern.permute.xlu0 0
        %4073 = vperm.xlu0 %4072, %v4056
        %v4074 = vpop.permute.xlu0 %4073
        %4075 = vset.pattern.permute.xlu0 0
        %4076 = vperm.xlu0 %4075, %v4057
        %v4077 = vpop.permute.xlu0 %4076
        %vm4078 = vcmp.eq.s32.totalorder %v4068, %v3091
        %vm4079 = vcmp.eq.s32.totalorder %v4071, %v3091
        %vm4080 = vcmp.eq.s32.totalorder %v4074, %v3091
        %vm4081 = vcmp.eq.s32.totalorder %v4077, %v3091
        %v4082 = vsel %vm4078, 1, 0
        %v4083 = vsel %vm4079, 1, 0
        %v4084 = vsel %vm4080, 1, 0
        %v4085 = vsel %vm4081, 1, 0
        %v4086 = vcvt.s32.f32 %v4082
        %v4087 = vcvt.s32.f32 %v4083
        %v4088 = vcvt.s32.f32 %v4084
        %v4089 = vcvt.s32.f32 %v4085
        %4091 = vset.pattern.permute.xlu0 0
        %4092 = vperm.xlu0 %4091, %v4062
        %v4093 = vpop.permute.xlu0 %4092
        %4096 = vset.pattern.permute.xlu0 0
        %4097 = vperm.xlu0 %4096, %v4063
        %v4098 = vpop.permute.xlu0 %4097
        %4101 = vset.pattern.permute.xlu0 0
        %4102 = vperm.xlu0 %4101, %v4064
        %v4103 = vpop.permute.xlu0 %4102
        %4106 = vset.pattern.permute.xlu0 0
        %4107 = vperm.xlu0 %4106, %v4065
        %v4108 = vpop.permute.xlu0 %4107
        %v4110 = vmul.f32 %v4093, %v4086
        %v4111 = vmul.f32 %v4098, %v4087
        %v4112 = vmul.f32 %v4103, %v4088
        %v4113 = vmul.f32 %v4108, %v4089
        %v4114 = vadd.f32 %v4010, %v4110
        %v4115 = vadd.f32 %v4011, %v4111
        %v4116 = vadd.f32 %v4012, %v4112
        %v4117 = vadd.f32 %v4013, %v4113
        %4118 = vset.pattern.permute.xlu0 1
        %4119 = vperm.xlu0 %4118, %v4054
        %v4120 = vpop.permute.xlu0 %4119
        %4121 = vset.pattern.permute.xlu0 1
        %4122 = vperm.xlu0 %4121, %v4055
        %v4123 = vpop.permute.xlu0 %4122
        %4124 = vset.pattern.permute.xlu0 1
        %4125 = vperm.xlu0 %4124, %v4056
        %v4126 = vpop.permute.xlu0 %4125
        %4127 = vset.pattern.permute.xlu0 1
        %4128 = vperm.xlu0 %4127, %v4057
        %v4129 = vpop.permute.xlu0 %4128
        %vm4130 = vcmp.eq.s32.totalorder %v4120, %v3091
        %vm4131 = vcmp.eq.s32.totalorder %v4123, %v3091
        %vm4132 = vcmp.eq.s32.totalorder %v4126, %v3091
        %vm4133 = vcmp.eq.s32.totalorder %v4129, %v3091
        %v4134 = vsel %vm4130, 1, 0
        %v4135 = vsel %vm4131, 1, 0
        %v4136 = vsel %vm4132, 1, 0
        %v4137 = vsel %vm4133, 1, 0
        %v4138 = vcvt.s32.f32 %v4134
        %v4139 = vcvt.s32.f32 %v4135
        %v4140 = vcvt.s32.f32 %v4136
        %v4141 = vcvt.s32.f32 %v4137
        %4142 = vset.pattern.permute.xlu0 1
        %4143 = vperm.xlu0 %4142, %v4062
        %v4144 = vpop.permute.xlu0 %4143
        %4146 = vset.pattern.permute.xlu0 1
        %4147 = vperm.xlu0 %4146, %v4063
        %v4148 = vpop.permute.xlu0 %4147
        %4150 = vset.pattern.permute.xlu0 1
        %4151 = vperm.xlu0 %4150, %v4064
        %v4152 = vpop.permute.xlu0 %4151
        %4154 = vset.pattern.permute.xlu0 1
        %4155 = vperm.xlu0 %4154, %v4065
        %v4156 = vpop.permute.xlu0 %4155
        %v4158 = vmul.f32 %v4144, %v4138
        %v4159 = vmul.f32 %v4148, %v4139
        %v4160 = vmul.f32 %v4152, %v4140
        %v4161 = vmul.f32 %v4156, %v4141
        %v4162 = vadd.f32 %v4114, %v4158
        %v4163 = vadd.f32 %v4115, %v4159
        %v4164 = vadd.f32 %v4116, %v4160
        %v4165 = vadd.f32 %v4117, %v4161
        %4166 = vset.pattern.permute.xlu0 2
        %4167 = vperm.xlu0 %4166, %v4054
        %v4168 = vpop.permute.xlu0 %4167
        %4169 = vset.pattern.permute.xlu0 2
        %4170 = vperm.xlu0 %4169, %v4055
        %v4171 = vpop.permute.xlu0 %4170
        %4172 = vset.pattern.permute.xlu0 2
        %4173 = vperm.xlu0 %4172, %v4056
        %v4174 = vpop.permute.xlu0 %4173
        %4175 = vset.pattern.permute.xlu0 2
        %4176 = vperm.xlu0 %4175, %v4057
        %v4177 = vpop.permute.xlu0 %4176
        %vm4178 = vcmp.eq.s32.totalorder %v4168, %v3091
        %vm4179 = vcmp.eq.s32.totalorder %v4171, %v3091
        %vm4180 = vcmp.eq.s32.totalorder %v4174, %v3091
        %vm4181 = vcmp.eq.s32.totalorder %v4177, %v3091
        %v4182 = vsel %vm4178, 1, 0
        %v4183 = vsel %vm4179, 1, 0
        %v4184 = vsel %vm4180, 1, 0
        %v4185 = vsel %vm4181, 1, 0
        %v4186 = vcvt.s32.f32 %v4182
        %v4187 = vcvt.s32.f32 %v4183
        %v4188 = vcvt.s32.f32 %v4184
        %v4189 = vcvt.s32.f32 %v4185
        %4190 = vset.pattern.permute.xlu0 2
        %4191 = vperm.xlu0 %4190, %v4062
        %v4192 = vpop.permute.xlu0 %4191
        %4194 = vset.pattern.permute.xlu0 2
        %4195 = vperm.xlu0 %4194, %v4063
        %v4196 = vpop.permute.xlu0 %4195
        %4198 = vset.pattern.permute.xlu0 2
        %4199 = vperm.xlu0 %4198, %v4064
        %v4200 = vpop.permute.xlu0 %4199
        %4202 = vset.pattern.permute.xlu0 2
        %4203 = vperm.xlu0 %4202, %v4065
        %v4204 = vpop.permute.xlu0 %4203
        %v4206 = vmul.f32 %v4192, %v4186
        %v4207 = vmul.f32 %v4196, %v4187
        %v4208 = vmul.f32 %v4200, %v4188
        %v4209 = vmul.f32 %v4204, %v4189
        %v4210 = vadd.f32 %v4162, %v4206
        %v4211 = vadd.f32 %v4163, %v4207
        %v4212 = vadd.f32 %v4164, %v4208
        %v4213 = vadd.f32 %v4165, %v4209
        %4214 = vset.pattern.permute.xlu0 3
        %4215 = vperm.xlu0 %4214, %v4054
        %v4216 = vpop.permute.xlu0 %4215
        %4217 = vset.pattern.permute.xlu0 3
        %4218 = vperm.xlu0 %4217, %v4055
        %v4219 = vpop.permute.xlu0 %4218
        %4220 = vset.pattern.permute.xlu0 3
        %4221 = vperm.xlu0 %4220, %v4056
        %v4222 = vpop.permute.xlu0 %4221
        %4223 = vset.pattern.permute.xlu0 3
        %4224 = vperm.xlu0 %4223, %v4057
        %v4225 = vpop.permute.xlu0 %4224
        %vm4226 = vcmp.eq.s32.totalorder %v4216, %v3091
        %vm4227 = vcmp.eq.s32.totalorder %v4219, %v3091
        %vm4228 = vcmp.eq.s32.totalorder %v4222, %v3091
        %vm4229 = vcmp.eq.s32.totalorder %v4225, %v3091
        %v4230 = vsel %vm4226, 1, 0
        %v4231 = vsel %vm4227, 1, 0
        %v4232 = vsel %vm4228, 1, 0
        %v4233 = vsel %vm4229, 1, 0
        %v4234 = vcvt.s32.f32 %v4230
        %v4235 = vcvt.s32.f32 %v4231
        %v4236 = vcvt.s32.f32 %v4232
        %v4237 = vcvt.s32.f32 %v4233
        %4238 = vset.pattern.permute.xlu0 3
        %4239 = vperm.xlu0 %4238, %v4062
        %v4240 = vpop.permute.xlu0 %4239
        %4242 = vset.pattern.permute.xlu0 3
        %4243 = vperm.xlu0 %4242, %v4063
        %v4244 = vpop.permute.xlu0 %4243
        %4246 = vset.pattern.permute.xlu0 3
        %4247 = vperm.xlu0 %4246, %v4064
        %v4248 = vpop.permute.xlu0 %4247
        %4250 = vset.pattern.permute.xlu0 3
        %4251 = vperm.xlu0 %4250, %v4065
        %v4252 = vpop.permute.xlu0 %4251
        %v4254 = vmul.f32 %v4240, %v4234
        %v4255 = vmul.f32 %v4244, %v4235
        %v4256 = vmul.f32 %v4248, %v4236
        %v4257 = vmul.f32 %v4252, %v4237
        %v4258 = vadd.f32 %v4210, %v4254
        %v4259 = vadd.f32 %v4211, %v4255
        %v4260 = vadd.f32 %v4212, %v4256
        %v4261 = vadd.f32 %v4213, %v4257
        %4262 = vset.pattern.permute.xlu0 4
        %4263 = vperm.xlu0 %4262, %v4054
        %v4264 = vpop.permute.xlu0 %4263
        %4265 = vset.pattern.permute.xlu0 4
        %4266 = vperm.xlu0 %4265, %v4055
        %v4267 = vpop.permute.xlu0 %4266
        %4268 = vset.pattern.permute.xlu0 4
        %4269 = vperm.xlu0 %4268, %v4056
        %v4270 = vpop.permute.xlu0 %4269
        %4271 = vset.pattern.permute.xlu0 4
        %4272 = vperm.xlu0 %4271, %v4057
        %v4273 = vpop.permute.xlu0 %4272
        %vm4274 = vcmp.eq.s32.totalorder %v4264, %v3091
        %vm4275 = vcmp.eq.s32.totalorder %v4267, %v3091
        %vm4276 = vcmp.eq.s32.totalorder %v4270, %v3091
        %vm4277 = vcmp.eq.s32.totalorder %v4273, %v3091
        %v4278 = vsel %vm4274, 1, 0
        %v4279 = vsel %vm4275, 1, 0
        %v4280 = vsel %vm4276, 1, 0
        %v4281 = vsel %vm4277, 1, 0
        %v4282 = vcvt.s32.f32 %v4278
        %v4283 = vcvt.s32.f32 %v4279
        %v4284 = vcvt.s32.f32 %v4280
        %v4285 = vcvt.s32.f32 %v4281
        %4286 = vset.pattern.permute.xlu0 4
        %4287 = vperm.xlu0 %4286, %v4062
        %v4288 = vpop.permute.xlu0 %4287
        %4290 = vset.pattern.permute.xlu0 4
        %4291 = vperm.xlu0 %4290, %v4063
        %v4292 = vpop.permute.xlu0 %4291
        %4294 = vset.pattern.permute.xlu0 4
        %4295 = vperm.xlu0 %4294, %v4064
        %v4296 = vpop.permute.xlu0 %4295
        %4298 = vset.pattern.permute.xlu0 4
        %4299 = vperm.xlu0 %4298, %v4065
        %v4300 = vpop.permute.xlu0 %4299
        %v4302 = vmul.f32 %v4288, %v4282
        %v4303 = vmul.f32 %v4292, %v4283
        %v4304 = vmul.f32 %v4296, %v4284
        %v4305 = vmul.f32 %v4300, %v4285
        %v4306 = vadd.f32 %v4258, %v4302
        %v4307 = vadd.f32 %v4259, %v4303
        %v4308 = vadd.f32 %v4260, %v4304
        %v4309 = vadd.f32 %v4261, %v4305
        %4310 = vset.pattern.permute.xlu0 5
        %4311 = vperm.xlu0 %4310, %v4054
        %v4312 = vpop.permute.xlu0 %4311
        %4313 = vset.pattern.permute.xlu0 5
        %4314 = vperm.xlu0 %4313, %v4055
        %v4315 = vpop.permute.xlu0 %4314
        %4316 = vset.pattern.permute.xlu0 5
        %4317 = vperm.xlu0 %4316, %v4056
        %v4318 = vpop.permute.xlu0 %4317
        %4319 = vset.pattern.permute.xlu0 5
        %4320 = vperm.xlu0 %4319, %v4057
        %v4321 = vpop.permute.xlu0 %4320
        %vm4322 = vcmp.eq.s32.totalorder %v4312, %v3091
        %vm4323 = vcmp.eq.s32.totalorder %v4315, %v3091
        %vm4324 = vcmp.eq.s32.totalorder %v4318, %v3091
        %vm4325 = vcmp.eq.s32.totalorder %v4321, %v3091
        %v4326 = vsel %vm4322, 1, 0
        %v4327 = vsel %vm4323, 1, 0
        %v4328 = vsel %vm4324, 1, 0
        %v4329 = vsel %vm4325, 1, 0
        %v4330 = vcvt.s32.f32 %v4326
        %v4331 = vcvt.s32.f32 %v4327
        %v4332 = vcvt.s32.f32 %v4328
        %v4333 = vcvt.s32.f32 %v4329
        %4334 = vset.pattern.permute.xlu0 5
        %4335 = vperm.xlu0 %4334, %v4062
        %v4336 = vpop.permute.xlu0 %4335
        %4338 = vset.pattern.permute.xlu0 5
        %4339 = vperm.xlu0 %4338, %v4063
        %v4340 = vpop.permute.xlu0 %4339
        %4342 = vset.pattern.permute.xlu0 5
        %4343 = vperm.xlu0 %4342, %v4064
        %v4344 = vpop.permute.xlu0 %4343
        %4346 = vset.pattern.permute.xlu0 5
        %4347 = vperm.xlu0 %4346, %v4065
        %v4348 = vpop.permute.xlu0 %4347
        %v4350 = vmul.f32 %v4336, %v4330
        %v4351 = vmul.f32 %v4340, %v4331
        %v4352 = vmul.f32 %v4344, %v4332
        %v4353 = vmul.f32 %v4348, %v4333
        %v4354 = vadd.f32 %v4306, %v4350
        %v4355 = vadd.f32 %v4307, %v4351
        %v4356 = vadd.f32 %v4308, %v4352
        %v4357 = vadd.f32 %v4309, %v4353
        %4358 = vset.pattern.permute.xlu0 6
        %4359 = vperm.xlu0 %4358, %v4054
        %v4360 = vpop.permute.xlu0 %4359
        %4361 = vset.pattern.permute.xlu0 6
        %4362 = vperm.xlu0 %4361, %v4055
        %v4363 = vpop.permute.xlu0 %4362
        %4364 = vset.pattern.permute.xlu0 6
        %4365 = vperm.xlu0 %4364, %v4056
        %v4366 = vpop.permute.xlu0 %4365
        %4367 = vset.pattern.permute.xlu0 6
        %4368 = vperm.xlu0 %4367, %v4057
        %v4369 = vpop.permute.xlu0 %4368
        %vm4370 = vcmp.eq.s32.totalorder %v4360, %v3091
        %vm4371 = vcmp.eq.s32.totalorder %v4363, %v3091
        %vm4372 = vcmp.eq.s32.totalorder %v4366, %v3091
        %vm4373 = vcmp.eq.s32.totalorder %v4369, %v3091
        %v4374 = vsel %vm4370, 1, 0
        %v4375 = vsel %vm4371, 1, 0
        %v4376 = vsel %vm4372, 1, 0
        %v4377 = vsel %vm4373, 1, 0
        %v4378 = vcvt.s32.f32 %v4374
        %v4379 = vcvt.s32.f32 %v4375
        %v4380 = vcvt.s32.f32 %v4376
        %v4381 = vcvt.s32.f32 %v4377
        %4382 = vset.pattern.permute.xlu0 6
        %4383 = vperm.xlu0 %4382, %v4062
        %v4384 = vpop.permute.xlu0 %4383
        %4386 = vset.pattern.permute.xlu0 6
        %4387 = vperm.xlu0 %4386, %v4063
        %v4388 = vpop.permute.xlu0 %4387
        %4390 = vset.pattern.permute.xlu0 6
        %4391 = vperm.xlu0 %4390, %v4064
        %v4392 = vpop.permute.xlu0 %4391
        %4394 = vset.pattern.permute.xlu0 6
        %4395 = vperm.xlu0 %4394, %v4065
        %v4396 = vpop.permute.xlu0 %4395
        %v4398 = vmul.f32 %v4384, %v4378
        %v4399 = vmul.f32 %v4388, %v4379
        %v4400 = vmul.f32 %v4392, %v4380
        %v4401 = vmul.f32 %v4396, %v4381
        %v4402 = vadd.f32 %v4354, %v4398
        %v4403 = vadd.f32 %v4355, %v4399
        %v4404 = vadd.f32 %v4356, %v4400
        %v4405 = vadd.f32 %v4357, %v4401
        %4406 = vset.pattern.permute.xlu0 7
        %4407 = vperm.xlu0 %4406, %v4054
        %v4408 = vpop.permute.xlu0 %4407
        %4409 = vset.pattern.permute.xlu0 7
        %4410 = vperm.xlu0 %4409, %v4055
        %v4411 = vpop.permute.xlu0 %4410
        %4412 = vset.pattern.permute.xlu0 7
        %4413 = vperm.xlu0 %4412, %v4056
        %v4414 = vpop.permute.xlu0 %4413
        %4415 = vset.pattern.permute.xlu0 7
        %4416 = vperm.xlu0 %4415, %v4057
        %v4417 = vpop.permute.xlu0 %4416
        %vm4418 = vcmp.eq.s32.totalorder %v4408, %v3091
        %vm4419 = vcmp.eq.s32.totalorder %v4411, %v3091
        %vm4420 = vcmp.eq.s32.totalorder %v4414, %v3091
        %vm4421 = vcmp.eq.s32.totalorder %v4417, %v3091
        %v4422 = vsel %vm4418, 1, 0
        %v4423 = vsel %vm4419, 1, 0
        %v4424 = vsel %vm4420, 1, 0
        %v4425 = vsel %vm4421, 1, 0
        %v4426 = vcvt.s32.f32 %v4422
        %v4427 = vcvt.s32.f32 %v4423
        %v4428 = vcvt.s32.f32 %v4424
        %v4429 = vcvt.s32.f32 %v4425
        %4430 = vset.pattern.permute.xlu0 7
        %4431 = vperm.xlu0 %4430, %v4062
        %v4432 = vpop.permute.xlu0 %4431
        %4434 = vset.pattern.permute.xlu0 7
        %4435 = vperm.xlu0 %4434, %v4063
        %v4436 = vpop.permute.xlu0 %4435
        %4438 = vset.pattern.permute.xlu0 7
        %4439 = vperm.xlu0 %4438, %v4064
        %v4440 = vpop.permute.xlu0 %4439
        %4442 = vset.pattern.permute.xlu0 7
        %4443 = vperm.xlu0 %4442, %v4065
        %v4444 = vpop.permute.xlu0 %4443
        %v4446 = vmul.f32 %v4432, %v4426
        %v4447 = vmul.f32 %v4436, %v4427
        %v4448 = vmul.f32 %v4440, %v4428
        %v4449 = vmul.f32 %v4444, %v4429
        %v4450 = vadd.f32 %v4402, %v4446
        %v4451 = vadd.f32 %v4403, %v4447
        %v4452 = vadd.f32 %v4404, %v4448
        %v4453 = vadd.f32 %v4405, %v4449
        %vm4454 = vcmp.ge.f32.partialorder %v3500, 0.0
        %vm4455 = vcmp.ge.f32.partialorder %v3501, 0.0
        %vm4456 = vcmp.ge.f32.partialorder %v3502, 0.0
        %vm4457 = vcmp.ge.f32.partialorder %v3503, 0.0
        %vm4458 = vmand %vm3520, %vm4454
        %vm4459 = vmand %vm3521, %vm4455
        %vm4460 = vmand %vm3522, %vm4456
        %vm4461 = vmand %vm3523, %vm4457
        %vm4462 = vcmp.lt.f32.partialorder %v3500, %v3455
        %vm4463 = vcmp.lt.f32.partialorder %v3501, %v3455
        %vm4464 = vcmp.lt.f32.partialorder %v3502, %v3455
        %vm4465 = vcmp.lt.f32.partialorder %v3503, %v3455
        %vm4466 = vmand %vm4458, %vm4462
        %vm4467 = vmand %vm4459, %vm4463
        %vm4468 = vmand %vm4460, %vm4464
        %vm4469 = vmand %vm4461, %vm4465
        %v4470 = vsel %vm4466, 1, 0
        %v4471 = vsel %vm4467, 1, 0
        %v4472 = vsel %vm4468, 1, 0
        %v4473 = vsel %vm4469, 1, 0
        %v4474 = vcvt.s32.f32 %v4470
        %v4475 = vcvt.s32.f32 %v4471
        %v4476 = vcvt.s32.f32 %v4472
        %v4477 = vcvt.s32.f32 %v4473
        %v4478 = vmax.f32 %v3500, 0.0
        %v4479 = vmax.f32 %v3501, 0.0
        %v4480 = vmax.f32 %v3502, 0.0
        %v4481 = vmax.f32 %v3503, 0.0
        %v4482 = vmin.f32 %v3573, %v4478
        %v4483 = vmin.f32 %v3573, %v4479
        %v4484 = vmin.f32 %v3573, %v4480
        %v4485 = vmin.f32 %v3573, %v4481
        %v4486 = vcvt.f32.s32.to.zero.pseudo %v4482
        %v4487 = vcvt.f32.s32.to.zero.pseudo %v4483
        %v4488 = vcvt.f32.s32.to.zero.pseudo %v4484
        %v4489 = vcvt.f32.s32.to.zero.pseudo %v4485
        %v4490 = vmul.u32 %v4486, %v3585
        %v4491 = vmul.u32 %v4487, %v3585
        %v4492 = vmul.u32 %v4488, %v3585
        %v4493 = vmul.u32 %v4489, %v3585
        %v4494 = vadd.s32 %v3593, %v4490
        %v4495 = vadd.s32 %v3593, %v4491
        %v4496 = vadd.s32 %v3593, %v4492
        %v4497 = vadd.s32 %v3593, %v4493
        %v4498 = vadd.s32 %v4494, %v3561
        %v4499 = vadd.s32 %v4495, %v3562
        %v4500 = vadd.s32 %v4496, %v3563
        %v4501 = vadd.s32 %v4497, %v3564
        %v4502 = vmul.f32 %v3504, %v4474
        %v4503 = vmul.f32 %v3505, %v4475
        %v4504 = vmul.f32 %v3506, %v4476
        %v4505 = vmul.f32 %v3507, %v4477
        %v4506 = vmul.f32 %v4502, %v3611
        %v4507 = vmul.f32 %v4503, %v3613
        %v4508 = vmul.f32 %v4504, %v3615
        %v4509 = vmul.f32 %v4505, %v3617
        %4510 = vset.pattern.permute.xlu0 0
        %4511 = vperm.xlu0 %4510, %v4498
        %v4512 = vpop.permute.xlu0 %4511
        %4513 = vset.pattern.permute.xlu0 0
        %4514 = vperm.xlu0 %4513, %v4499
        %v4515 = vpop.permute.xlu0 %4514
        %4516 = vset.pattern.permute.xlu0 0
        %4517 = vperm.xlu0 %4516, %v4500
        %v4518 = vpop.permute.xlu0 %4517
        %4519 = vset.pattern.permute.xlu0 0
        %4520 = vperm.xlu0 %4519, %v4501
        %v4521 = vpop.permute.xlu0 %4520
        %vm4522 = vcmp.eq.s32.totalorder %v4512, %v3091
        %vm4523 = vcmp.eq.s32.totalorder %v4515, %v3091
        %vm4524 = vcmp.eq.s32.totalorder %v4518, %v3091
        %vm4525 = vcmp.eq.s32.totalorder %v4521, %v3091
        %v4526 = vsel %vm4522, 1, 0
        %v4527 = vsel %vm4523, 1, 0
        %v4528 = vsel %vm4524, 1, 0
        %v4529 = vsel %vm4525, 1, 0
        %v4530 = vcvt.s32.f32 %v4526
        %v4531 = vcvt.s32.f32 %v4527
        %v4532 = vcvt.s32.f32 %v4528
        %v4533 = vcvt.s32.f32 %v4529
        %4535 = vset.pattern.permute.xlu0 0
        %4536 = vperm.xlu0 %4535, %v4506
        %v4537 = vpop.permute.xlu0 %4536
        %4540 = vset.pattern.permute.xlu0 0
        %4541 = vperm.xlu0 %4540, %v4507
        %v4542 = vpop.permute.xlu0 %4541
        %4545 = vset.pattern.permute.xlu0 0
        %4546 = vperm.xlu0 %4545, %v4508
        %v4547 = vpop.permute.xlu0 %4546
        %4550 = vset.pattern.permute.xlu0 0
        %4551 = vperm.xlu0 %4550, %v4509
        %v4552 = vpop.permute.xlu0 %4551
        %v4554 = vmul.f32 %v4537, %v4530
        %v4555 = vmul.f32 %v4542, %v4531
        %v4556 = vmul.f32 %v4547, %v4532
        %v4557 = vmul.f32 %v4552, %v4533
        %v4558 = vadd.f32 %v4450, %v4554
        %v4559 = vadd.f32 %v4451, %v4555
        %v4560 = vadd.f32 %v4452, %v4556
        %v4561 = vadd.f32 %v4453, %v4557
        %4562 = vset.pattern.permute.xlu0 1
        %4563 = vperm.xlu0 %4562, %v4498
        %v4564 = vpop.permute.xlu0 %4563
        %4565 = vset.pattern.permute.xlu0 1
        %4566 = vperm.xlu0 %4565, %v4499
        %v4567 = vpop.permute.xlu0 %4566
        %4568 = vset.pattern.permute.xlu0 1
        %4569 = vperm.xlu0 %4568, %v4500
        %v4570 = vpop.permute.xlu0 %4569
        %4571 = vset.pattern.permute.xlu0 1
        %4572 = vperm.xlu0 %4571, %v4501
        %v4573 = vpop.permute.xlu0 %4572
        %vm4574 = vcmp.eq.s32.totalorder %v4564, %v3091
        %vm4575 = vcmp.eq.s32.totalorder %v4567, %v3091
        %vm4576 = vcmp.eq.s32.totalorder %v4570, %v3091
        %vm4577 = vcmp.eq.s32.totalorder %v4573, %v3091
        %v4578 = vsel %vm4574, 1, 0
        %v4579 = vsel %vm4575, 1, 0
        %v4580 = vsel %vm4576, 1, 0
        %v4581 = vsel %vm4577, 1, 0
        %v4582 = vcvt.s32.f32 %v4578
        %v4583 = vcvt.s32.f32 %v4579
        %v4584 = vcvt.s32.f32 %v4580
        %v4585 = vcvt.s32.f32 %v4581
        %4586 = vset.pattern.permute.xlu0 1
        %4587 = vperm.xlu0 %4586, %v4506
        %v4588 = vpop.permute.xlu0 %4587
        %4590 = vset.pattern.permute.xlu0 1
        %4591 = vperm.xlu0 %4590, %v4507
        %v4592 = vpop.permute.xlu0 %4591
        %4594 = vset.pattern.permute.xlu0 1
        %4595 = vperm.xlu0 %4594, %v4508
        %v4596 = vpop.permute.xlu0 %4595
        %4598 = vset.pattern.permute.xlu0 1
        %4599 = vperm.xlu0 %4598, %v4509
        %v4600 = vpop.permute.xlu0 %4599
        %v4602 = vmul.f32 %v4588, %v4582
        %v4603 = vmul.f32 %v4592, %v4583
        %v4604 = vmul.f32 %v4596, %v4584
        %v4605 = vmul.f32 %v4600, %v4585
        %v4606 = vadd.f32 %v4558, %v4602
        %v4607 = vadd.f32 %v4559, %v4603
        %v4608 = vadd.f32 %v4560, %v4604
        %v4609 = vadd.f32 %v4561, %v4605
        %4610 = vset.pattern.permute.xlu0 2
        %4611 = vperm.xlu0 %4610, %v4498
        %v4612 = vpop.permute.xlu0 %4611
        %4613 = vset.pattern.permute.xlu0 2
        %4614 = vperm.xlu0 %4613, %v4499
        %v4615 = vpop.permute.xlu0 %4614
        %4616 = vset.pattern.permute.xlu0 2
        %4617 = vperm.xlu0 %4616, %v4500
        %v4618 = vpop.permute.xlu0 %4617
        %4619 = vset.pattern.permute.xlu0 2
        %4620 = vperm.xlu0 %4619, %v4501
        %v4621 = vpop.permute.xlu0 %4620
        %vm4622 = vcmp.eq.s32.totalorder %v4612, %v3091
        %vm4623 = vcmp.eq.s32.totalorder %v4615, %v3091
        %vm4624 = vcmp.eq.s32.totalorder %v4618, %v3091
        %vm4625 = vcmp.eq.s32.totalorder %v4621, %v3091
        %v4626 = vsel %vm4622, 1, 0
        %v4627 = vsel %vm4623, 1, 0
        %v4628 = vsel %vm4624, 1, 0
        %v4629 = vsel %vm4625, 1, 0
        %v4630 = vcvt.s32.f32 %v4626
        %v4631 = vcvt.s32.f32 %v4627
        %v4632 = vcvt.s32.f32 %v4628
        %v4633 = vcvt.s32.f32 %v4629
        %4634 = vset.pattern.permute.xlu0 2
        %4635 = vperm.xlu0 %4634, %v4506
        %v4636 = vpop.permute.xlu0 %4635
        %4638 = vset.pattern.permute.xlu0 2
        %4639 = vperm.xlu0 %4638, %v4507
        %v4640 = vpop.permute.xlu0 %4639
        %4642 = vset.pattern.permute.xlu0 2
        %4643 = vperm.xlu0 %4642, %v4508
        %v4644 = vpop.permute.xlu0 %4643
        %4646 = vset.pattern.permute.xlu0 2
        %4647 = vperm.xlu0 %4646, %v4509
        %v4648 = vpop.permute.xlu0 %4647
        %v4650 = vmul.f32 %v4636, %v4630
        %v4651 = vmul.f32 %v4640, %v4631
        %v4652 = vmul.f32 %v4644, %v4632
        %v4653 = vmul.f32 %v4648, %v4633
        %v4654 = vadd.f32 %v4606, %v4650
        %v4655 = vadd.f32 %v4607, %v4651
        %v4656 = vadd.f32 %v4608, %v4652
        %v4657 = vadd.f32 %v4609, %v4653
        %4658 = vset.pattern.permute.xlu0 3
        %4659 = vperm.xlu0 %4658, %v4498
        %v4660 = vpop.permute.xlu0 %4659
        %4661 = vset.pattern.permute.xlu0 3
        %4662 = vperm.xlu0 %4661, %v4499
        %v4663 = vpop.permute.xlu0 %4662
        %4664 = vset.pattern.permute.xlu0 3
        %4665 = vperm.xlu0 %4664, %v4500
        %v4666 = vpop.permute.xlu0 %4665
        %4667 = vset.pattern.permute.xlu0 3
        %4668 = vperm.xlu0 %4667, %v4501
        %v4669 = vpop.permute.xlu0 %4668
        %vm4670 = vcmp.eq.s32.totalorder %v4660, %v3091
        %vm4671 = vcmp.eq.s32.totalorder %v4663, %v3091
        %vm4672 = vcmp.eq.s32.totalorder %v4666, %v3091
        %vm4673 = vcmp.eq.s32.totalorder %v4669, %v3091
        %v4674 = vsel %vm4670, 1, 0
        %v4675 = vsel %vm4671, 1, 0
        %v4676 = vsel %vm4672, 1, 0
        %v4677 = vsel %vm4673, 1, 0
        %v4678 = vcvt.s32.f32 %v4674
        %v4679 = vcvt.s32.f32 %v4675
        %v4680 = vcvt.s32.f32 %v4676
        %v4681 = vcvt.s32.f32 %v4677
        %4682 = vset.pattern.permute.xlu0 3
        %4683 = vperm.xlu0 %4682, %v4506
        %v4684 = vpop.permute.xlu0 %4683
        %4686 = vset.pattern.permute.xlu0 3
        %4687 = vperm.xlu0 %4686, %v4507
        %v4688 = vpop.permute.xlu0 %4687
        %4690 = vset.pattern.permute.xlu0 3
        %4691 = vperm.xlu0 %4690, %v4508
        %v4692 = vpop.permute.xlu0 %4691
        %4694 = vset.pattern.permute.xlu0 3
        %4695 = vperm.xlu0 %4694, %v4509
        %v4696 = vpop.permute.xlu0 %4695
        %v4698 = vmul.f32 %v4684, %v4678
        %v4699 = vmul.f32 %v4688, %v4679
        %v4700 = vmul.f32 %v4692, %v4680
        %v4701 = vmul.f32 %v4696, %v4681
        %v4702 = vadd.f32 %v4654, %v4698
        %v4703 = vadd.f32 %v4655, %v4699
        %v4704 = vadd.f32 %v4656, %v4700
        %v4705 = vadd.f32 %v4657, %v4701
        %4706 = vset.pattern.permute.xlu0 4
        %4707 = vperm.xlu0 %4706, %v4498
        %v4708 = vpop.permute.xlu0 %4707
        %4709 = vset.pattern.permute.xlu0 4
        %4710 = vperm.xlu0 %4709, %v4499
        %v4711 = vpop.permute.xlu0 %4710
        %4712 = vset.pattern.permute.xlu0 4
        %4713 = vperm.xlu0 %4712, %v4500
        %v4714 = vpop.permute.xlu0 %4713
        %4715 = vset.pattern.permute.xlu0 4
        %4716 = vperm.xlu0 %4715, %v4501
        %v4717 = vpop.permute.xlu0 %4716
        %vm4718 = vcmp.eq.s32.totalorder %v4708, %v3091
        %vm4719 = vcmp.eq.s32.totalorder %v4711, %v3091
        %vm4720 = vcmp.eq.s32.totalorder %v4714, %v3091
        %vm4721 = vcmp.eq.s32.totalorder %v4717, %v3091
        %v4722 = vsel %vm4718, 1, 0
        %v4723 = vsel %vm4719, 1, 0
        %v4724 = vsel %vm4720, 1, 0
        %v4725 = vsel %vm4721, 1, 0
        %v4726 = vcvt.s32.f32 %v4722
        %v4727 = vcvt.s32.f32 %v4723
        %v4728 = vcvt.s32.f32 %v4724
        %v4729 = vcvt.s32.f32 %v4725
        %4730 = vset.pattern.permute.xlu0 4
        %4731 = vperm.xlu0 %4730, %v4506
        %v4732 = vpop.permute.xlu0 %4731
        %4734 = vset.pattern.permute.xlu0 4
        %4735 = vperm.xlu0 %4734, %v4507
        %v4736 = vpop.permute.xlu0 %4735
        %4738 = vset.pattern.permute.xlu0 4
        %4739 = vperm.xlu0 %4738, %v4508
        %v4740 = vpop.permute.xlu0 %4739
        %4742 = vset.pattern.permute.xlu0 4
        %4743 = vperm.xlu0 %4742, %v4509
        %v4744 = vpop.permute.xlu0 %4743
        %v4746 = vmul.f32 %v4732, %v4726
        %v4747 = vmul.f32 %v4736, %v4727
        %v4748 = vmul.f32 %v4740, %v4728
        %v4749 = vmul.f32 %v4744, %v4729
        %v4750 = vadd.f32 %v4702, %v4746
        %v4751 = vadd.f32 %v4703, %v4747
        %v4752 = vadd.f32 %v4704, %v4748
        %v4753 = vadd.f32 %v4705, %v4749
        %4754 = vset.pattern.permute.xlu0 5
        %4755 = vperm.xlu0 %4754, %v4498
        %v4756 = vpop.permute.xlu0 %4755
        %4757 = vset.pattern.permute.xlu0 5
        %4758 = vperm.xlu0 %4757, %v4499
        %v4759 = vpop.permute.xlu0 %4758
        %4760 = vset.pattern.permute.xlu0 5
        %4761 = vperm.xlu0 %4760, %v4500
        %v4762 = vpop.permute.xlu0 %4761
        %4763 = vset.pattern.permute.xlu0 5
        %4764 = vperm.xlu0 %4763, %v4501
        %v4765 = vpop.permute.xlu0 %4764
        %vm4766 = vcmp.eq.s32.totalorder %v4756, %v3091
        %vm4767 = vcmp.eq.s32.totalorder %v4759, %v3091
        %vm4768 = vcmp.eq.s32.totalorder %v4762, %v3091
        %vm4769 = vcmp.eq.s32.totalorder %v4765, %v3091
        %v4770 = vsel %vm4766, 1, 0
        %v4771 = vsel %vm4767, 1, 0
        %v4772 = vsel %vm4768, 1, 0
        %v4773 = vsel %vm4769, 1, 0
        %v4774 = vcvt.s32.f32 %v4770
        %v4775 = vcvt.s32.f32 %v4771
        %v4776 = vcvt.s32.f32 %v4772
        %v4777 = vcvt.s32.f32 %v4773
        %4778 = vset.pattern.permute.xlu0 5
        %4779 = vperm.xlu0 %4778, %v4506
        %v4780 = vpop.permute.xlu0 %4779
        %4782 = vset.pattern.permute.xlu0 5
        %4783 = vperm.xlu0 %4782, %v4507
        %v4784 = vpop.permute.xlu0 %4783
        %4786 = vset.pattern.permute.xlu0 5
        %4787 = vperm.xlu0 %4786, %v4508
        %v4788 = vpop.permute.xlu0 %4787
        %4790 = vset.pattern.permute.xlu0 5
        %4791 = vperm.xlu0 %4790, %v4509
        %v4792 = vpop.permute.xlu0 %4791
        %v4794 = vmul.f32 %v4780, %v4774
        %v4795 = vmul.f32 %v4784, %v4775
        %v4796 = vmul.f32 %v4788, %v4776
        %v4797 = vmul.f32 %v4792, %v4777
        %v4798 = vadd.f32 %v4750, %v4794
        %v4799 = vadd.f32 %v4751, %v4795
        %v4800 = vadd.f32 %v4752, %v4796
        %v4801 = vadd.f32 %v4753, %v4797
        %4802 = vset.pattern.permute.xlu0 6
        %4803 = vperm.xlu0 %4802, %v4498
        %v4804 = vpop.permute.xlu0 %4803
        %4805 = vset.pattern.permute.xlu0 6
        %4806 = vperm.xlu0 %4805, %v4499
        %v4807 = vpop.permute.xlu0 %4806
        %4808 = vset.pattern.permute.xlu0 6
        %4809 = vperm.xlu0 %4808, %v4500
        %v4810 = vpop.permute.xlu0 %4809
        %4811 = vset.pattern.permute.xlu0 6
        %4812 = vperm.xlu0 %4811, %v4501
        %v4813 = vpop.permute.xlu0 %4812
        %vm4814 = vcmp.eq.s32.totalorder %v4804, %v3091
        %vm4815 = vcmp.eq.s32.totalorder %v4807, %v3091
        %vm4816 = vcmp.eq.s32.totalorder %v4810, %v3091
        %vm4817 = vcmp.eq.s32.totalorder %v4813, %v3091
        %v4818 = vsel %vm4814, 1, 0
        %v4819 = vsel %vm4815, 1, 0
        %v4820 = vsel %vm4816, 1, 0
        %v4821 = vsel %vm4817, 1, 0
        %v4822 = vcvt.s32.f32 %v4818
        %v4823 = vcvt.s32.f32 %v4819
        %v4824 = vcvt.s32.f32 %v4820
        %v4825 = vcvt.s32.f32 %v4821
        %4826 = vset.pattern.permute.xlu0 6
        %4827 = vperm.xlu0 %4826, %v4506
        %v4828 = vpop.permute.xlu0 %4827
        %4830 = vset.pattern.permute.xlu0 6
        %4831 = vperm.xlu0 %4830, %v4507
        %v4832 = vpop.permute.xlu0 %4831
        %4834 = vset.pattern.permute.xlu0 6
        %4835 = vperm.xlu0 %4834, %v4508
        %v4836 = vpop.permute.xlu0 %4835
        %4838 = vset.pattern.permute.xlu0 6
        %4839 = vperm.xlu0 %4838, %v4509
        %v4840 = vpop.permute.xlu0 %4839
        %v4842 = vmul.f32 %v4828, %v4822
        %v4843 = vmul.f32 %v4832, %v4823
        %v4844 = vmul.f32 %v4836, %v4824
        %v4845 = vmul.f32 %v4840, %v4825
        %v4846 = vadd.f32 %v4798, %v4842
        %v4847 = vadd.f32 %v4799, %v4843
        %v4848 = vadd.f32 %v4800, %v4844
        %v4849 = vadd.f32 %v4801, %v4845
        %4850 = vset.pattern.permute.xlu0 7
        %4851 = vperm.xlu0 %4850, %v4498
        %v4852 = vpop.permute.xlu0 %4851
        %4853 = vset.pattern.permute.xlu0 7
        %4854 = vperm.xlu0 %4853, %v4499
        %v4855 = vpop.permute.xlu0 %4854
        %4856 = vset.pattern.permute.xlu0 7
        %4857 = vperm.xlu0 %4856, %v4500
        %v4858 = vpop.permute.xlu0 %4857
        %4859 = vset.pattern.permute.xlu0 7
        %4860 = vperm.xlu0 %4859, %v4501
        %v4861 = vpop.permute.xlu0 %4860
        %vm4862 = vcmp.eq.s32.totalorder %v4852, %v3091
        %vm4863 = vcmp.eq.s32.totalorder %v4855, %v3091
        %vm4864 = vcmp.eq.s32.totalorder %v4858, %v3091
        %vm4865 = vcmp.eq.s32.totalorder %v4861, %v3091
        %v4866 = vsel %vm4862, 1, 0
        %v4867 = vsel %vm4863, 1, 0
        %v4868 = vsel %vm4864, 1, 0
        %v4869 = vsel %vm4865, 1, 0
        %v4870 = vcvt.s32.f32 %v4866
        %v4871 = vcvt.s32.f32 %v4867
        %v4872 = vcvt.s32.f32 %v4868
        %v4873 = vcvt.s32.f32 %v4869
        %4874 = vset.pattern.permute.xlu0 7
        %4875 = vperm.xlu0 %4874, %v4506
        %v4876 = vpop.permute.xlu0 %4875
        %4878 = vset.pattern.permute.xlu0 7
        %4879 = vperm.xlu0 %4878, %v4507
        %v4880 = vpop.permute.xlu0 %4879
        %4882 = vset.pattern.permute.xlu0 7
        %4883 = vperm.xlu0 %4882, %v4508
        %v4884 = vpop.permute.xlu0 %4883
        %4886 = vset.pattern.permute.xlu0 7
        %4887 = vperm.xlu0 %4886, %v4509
        %v4888 = vpop.permute.xlu0 %4887
        %v4890 = vmul.f32 %v4876, %v4870
        %v4891 = vmul.f32 %v4880, %v4871
        %v4892 = vmul.f32 %v4884, %v4872
        %v4893 = vmul.f32 %v4888, %v4873
        %v4894 = vadd.f32 %v4846, %v4890
        %v4895 = vadd.f32 %v4847, %v4891
        %v4896 = vadd.f32 %v4848, %v4892
        %v4897 = vadd.f32 %v4849, %v4893
        %vm4898 = vmand %vm4022, %vm4454
        %vm4899 = vmand %vm4023, %vm4455
        %vm4900 = vmand %vm4024, %vm4456
        %vm4901 = vmand %vm4025, %vm4457
        %vm4902 = vmand %vm4898, %vm4462
        %vm4903 = vmand %vm4899, %vm4463
        %vm4904 = vmand %vm4900, %vm4464
        %vm4905 = vmand %vm4901, %vm4465
        %v4906 = vsel %vm4902, 1, 0
        %v4907 = vsel %vm4903, 1, 0
        %v4908 = vsel %vm4904, 1, 0
        %v4909 = vsel %vm4905, 1, 0
        %v4910 = vcvt.s32.f32 %v4906
        %v4911 = vcvt.s32.f32 %v4907
        %v4912 = vcvt.s32.f32 %v4908
        %v4913 = vcvt.s32.f32 %v4909
        %v4914 = vadd.s32 %v4494, %v4050
        %v4915 = vadd.s32 %v4495, %v4051
        %v4916 = vadd.s32 %v4496, %v4052
        %v4917 = vadd.s32 %v4497, %v4053
        %v4918 = vmul.f32 %v3508, %v4910
        %v4919 = vmul.f32 %v3509, %v4911
        %v4920 = vmul.f32 %v3510, %v4912
        %v4921 = vmul.f32 %v3511, %v4913
        %v4922 = vmul.f32 %v4918, %v3611
        %v4923 = vmul.f32 %v4919, %v3613
        %v4924 = vmul.f32 %v4920, %v3615
        %v4925 = vmul.f32 %v4921, %v3617
        %4926 = vset.pattern.permute.xlu0 0
        %4927 = vperm.xlu0 %4926, %v4914
        %v4928 = vpop.permute.xlu0 %4927
        %4929 = vset.pattern.permute.xlu0 0
        %4930 = vperm.xlu0 %4929, %v4915
        %v4931 = vpop.permute.xlu0 %4930
        %4932 = vset.pattern.permute.xlu0 0
        %4933 = vperm.xlu0 %4932, %v4916
        %v4934 = vpop.permute.xlu0 %4933
        %4935 = vset.pattern.permute.xlu0 0
        %4936 = vperm.xlu0 %4935, %v4917
        %v4937 = vpop.permute.xlu0 %4936
        %vm4938 = vcmp.eq.s32.totalorder %v4928, %v3091
        %vm4939 = vcmp.eq.s32.totalorder %v4931, %v3091
        %vm4940 = vcmp.eq.s32.totalorder %v4934, %v3091
        %vm4941 = vcmp.eq.s32.totalorder %v4937, %v3091
        %v4942 = vsel %vm4938, 1, 0
        %v4943 = vsel %vm4939, 1, 0
        %v4944 = vsel %vm4940, 1, 0
        %v4945 = vsel %vm4941, 1, 0
        %v4946 = vcvt.s32.f32 %v4942
        %v4947 = vcvt.s32.f32 %v4943
        %v4948 = vcvt.s32.f32 %v4944
        %v4949 = vcvt.s32.f32 %v4945
        %4951 = vset.pattern.permute.xlu0 0
        %4952 = vperm.xlu0 %4951, %v4922
        %v4953 = vpop.permute.xlu0 %4952
        %4956 = vset.pattern.permute.xlu0 0
        %4957 = vperm.xlu0 %4956, %v4923
        %v4958 = vpop.permute.xlu0 %4957
        %4961 = vset.pattern.permute.xlu0 0
        %4962 = vperm.xlu0 %4961, %v4924
        %v4963 = vpop.permute.xlu0 %4962
        %4966 = vset.pattern.permute.xlu0 0
        %4967 = vperm.xlu0 %4966, %v4925
        %v4968 = vpop.permute.xlu0 %4967
        %v4970 = vmul.f32 %v4953, %v4946
        %v4971 = vmul.f32 %v4958, %v4947
        %v4972 = vmul.f32 %v4963, %v4948
        %v4973 = vmul.f32 %v4968, %v4949
        %v4974 = vadd.f32 %v4894, %v4970
        %v4975 = vadd.f32 %v4895, %v4971
        %v4976 = vadd.f32 %v4896, %v4972
        %v4977 = vadd.f32 %v4897, %v4973
        %4978 = vset.pattern.permute.xlu0 1
        %4979 = vperm.xlu0 %4978, %v4914
        %v4980 = vpop.permute.xlu0 %4979
        %4981 = vset.pattern.permute.xlu0 1
        %4982 = vperm.xlu0 %4981, %v4915
        %v4983 = vpop.permute.xlu0 %4982
        %4984 = vset.pattern.permute.xlu0 1
        %4985 = vperm.xlu0 %4984, %v4916
        %v4986 = vpop.permute.xlu0 %4985
        %4987 = vset.pattern.permute.xlu0 1
        %4988 = vperm.xlu0 %4987, %v4917
        %v4989 = vpop.permute.xlu0 %4988
        %vm4990 = vcmp.eq.s32.totalorder %v4980, %v3091
        %vm4991 = vcmp.eq.s32.totalorder %v4983, %v3091
        %vm4992 = vcmp.eq.s32.totalorder %v4986, %v3091
        %vm4993 = vcmp.eq.s32.totalorder %v4989, %v3091
        %v4994 = vsel %vm4990, 1, 0
        %v4995 = vsel %vm4991, 1, 0
        %v4996 = vsel %vm4992, 1, 0
        %v4997 = vsel %vm4993, 1, 0
        %v4998 = vcvt.s32.f32 %v4994
        %v4999 = vcvt.s32.f32 %v4995
        %v5000 = vcvt.s32.f32 %v4996
        %v5001 = vcvt.s32.f32 %v4997
        %5002 = vset.pattern.permute.xlu0 1
        %5003 = vperm.xlu0 %5002, %v4922
        %v5004 = vpop.permute.xlu0 %5003
        %5006 = vset.pattern.permute.xlu0 1
        %5007 = vperm.xlu0 %5006, %v4923
        %v5008 = vpop.permute.xlu0 %5007
        %5010 = vset.pattern.permute.xlu0 1
        %5011 = vperm.xlu0 %5010, %v4924
        %v5012 = vpop.permute.xlu0 %5011
        %5014 = vset.pattern.permute.xlu0 1
        %5015 = vperm.xlu0 %5014, %v4925
        %v5016 = vpop.permute.xlu0 %5015
        %v5018 = vmul.f32 %v5004, %v4998
        %v5019 = vmul.f32 %v5008, %v4999
        %v5020 = vmul.f32 %v5012, %v5000
        %v5021 = vmul.f32 %v5016, %v5001
        %v5022 = vadd.f32 %v4974, %v5018
        %v5023 = vadd.f32 %v4975, %v5019
        %v5024 = vadd.f32 %v4976, %v5020
        %v5025 = vadd.f32 %v4977, %v5021
        %5026 = vset.pattern.permute.xlu0 2
        %5027 = vperm.xlu0 %5026, %v4914
        %v5028 = vpop.permute.xlu0 %5027
        %5029 = vset.pattern.permute.xlu0 2
        %5030 = vperm.xlu0 %5029, %v4915
        %v5031 = vpop.permute.xlu0 %5030
        %5032 = vset.pattern.permute.xlu0 2
        %5033 = vperm.xlu0 %5032, %v4916
        %v5034 = vpop.permute.xlu0 %5033
        %5035 = vset.pattern.permute.xlu0 2
        %5036 = vperm.xlu0 %5035, %v4917
        %v5037 = vpop.permute.xlu0 %5036
        %vm5038 = vcmp.eq.s32.totalorder %v5028, %v3091
        %vm5039 = vcmp.eq.s32.totalorder %v5031, %v3091
        %vm5040 = vcmp.eq.s32.totalorder %v5034, %v3091
        %vm5041 = vcmp.eq.s32.totalorder %v5037, %v3091
        %v5042 = vsel %vm5038, 1, 0
        %v5043 = vsel %vm5039, 1, 0
        %v5044 = vsel %vm5040, 1, 0
        %v5045 = vsel %vm5041, 1, 0
        %v5046 = vcvt.s32.f32 %v5042
        %v5047 = vcvt.s32.f32 %v5043
        %v5048 = vcvt.s32.f32 %v5044
        %v5049 = vcvt.s32.f32 %v5045
        %5050 = vset.pattern.permute.xlu0 2
        %5051 = vperm.xlu0 %5050, %v4922
        %v5052 = vpop.permute.xlu0 %5051
        %5054 = vset.pattern.permute.xlu0 2
        %5055 = vperm.xlu0 %5054, %v4923
        %v5056 = vpop.permute.xlu0 %5055
        %5058 = vset.pattern.permute.xlu0 2
        %5059 = vperm.xlu0 %5058, %v4924
        %v5060 = vpop.permute.xlu0 %5059
        %5062 = vset.pattern.permute.xlu0 2
        %5063 = vperm.xlu0 %5062, %v4925
        %v5064 = vpop.permute.xlu0 %5063
        %v5066 = vmul.f32 %v5052, %v5046
        %v5067 = vmul.f32 %v5056, %v5047
        %v5068 = vmul.f32 %v5060, %v5048
        %v5069 = vmul.f32 %v5064, %v5049
        %v5070 = vadd.f32 %v5022, %v5066
        %v5071 = vadd.f32 %v5023, %v5067
        %v5072 = vadd.f32 %v5024, %v5068
        %v5073 = vadd.f32 %v5025, %v5069
        %5074 = vset.pattern.permute.xlu0 3
        %5075 = vperm.xlu0 %5074, %v4914
        %v5076 = vpop.permute.xlu0 %5075
        %5077 = vset.pattern.permute.xlu0 3
        %5078 = vperm.xlu0 %5077, %v4915
        %v5079 = vpop.permute.xlu0 %5078
        %5080 = vset.pattern.permute.xlu0 3
        %5081 = vperm.xlu0 %5080, %v4916
        %v5082 = vpop.permute.xlu0 %5081
        %5083 = vset.pattern.permute.xlu0 3
        %5084 = vperm.xlu0 %5083, %v4917
        %v5085 = vpop.permute.xlu0 %5084
        %vm5086 = vcmp.eq.s32.totalorder %v5076, %v3091
        %vm5087 = vcmp.eq.s32.totalorder %v5079, %v3091
        %vm5088 = vcmp.eq.s32.totalorder %v5082, %v3091
        %vm5089 = vcmp.eq.s32.totalorder %v5085, %v3091
        %v5090 = vsel %vm5086, 1, 0
        %v5091 = vsel %vm5087, 1, 0
        %v5092 = vsel %vm5088, 1, 0
        %v5093 = vsel %vm5089, 1, 0
        %v5094 = vcvt.s32.f32 %v5090
        %v5095 = vcvt.s32.f32 %v5091
        %v5096 = vcvt.s32.f32 %v5092
        %v5097 = vcvt.s32.f32 %v5093
        %5098 = vset.pattern.permute.xlu0 3
        %5099 = vperm.xlu0 %5098, %v4922
        %v5100 = vpop.permute.xlu0 %5099
        %5102 = vset.pattern.permute.xlu0 3
        %5103 = vperm.xlu0 %5102, %v4923
        %v5104 = vpop.permute.xlu0 %5103
        %5106 = vset.pattern.permute.xlu0 3
        %5107 = vperm.xlu0 %5106, %v4924
        %v5108 = vpop.permute.xlu0 %5107
        %5110 = vset.pattern.permute.xlu0 3
        %5111 = vperm.xlu0 %5110, %v4925
        %v5112 = vpop.permute.xlu0 %5111
        %v5114 = vmul.f32 %v5100, %v5094
        %v5115 = vmul.f32 %v5104, %v5095
        %v5116 = vmul.f32 %v5108, %v5096
        %v5117 = vmul.f32 %v5112, %v5097
        %v5118 = vadd.f32 %v5070, %v5114
        %v5119 = vadd.f32 %v5071, %v5115
        %v5120 = vadd.f32 %v5072, %v5116
        %v5121 = vadd.f32 %v5073, %v5117
        %5122 = vset.pattern.permute.xlu0 4
        %5123 = vperm.xlu0 %5122, %v4914
        %v5124 = vpop.permute.xlu0 %5123
        %5125 = vset.pattern.permute.xlu0 4
        %5126 = vperm.xlu0 %5125, %v4915
        %v5127 = vpop.permute.xlu0 %5126
        %5128 = vset.pattern.permute.xlu0 4
        %5129 = vperm.xlu0 %5128, %v4916
        %v5130 = vpop.permute.xlu0 %5129
        %5131 = vset.pattern.permute.xlu0 4
        %5132 = vperm.xlu0 %5131, %v4917
        %v5133 = vpop.permute.xlu0 %5132
        %vm5134 = vcmp.eq.s32.totalorder %v5124, %v3091
        %vm5135 = vcmp.eq.s32.totalorder %v5127, %v3091
        %vm5136 = vcmp.eq.s32.totalorder %v5130, %v3091
        %vm5137 = vcmp.eq.s32.totalorder %v5133, %v3091
        %v5138 = vsel %vm5134, 1, 0
        %v5139 = vsel %vm5135, 1, 0
        %v5140 = vsel %vm5136, 1, 0
        %v5141 = vsel %vm5137, 1, 0
        %v5142 = vcvt.s32.f32 %v5138
        %v5143 = vcvt.s32.f32 %v5139
        %v5144 = vcvt.s32.f32 %v5140
        %v5145 = vcvt.s32.f32 %v5141
        %5146 = vset.pattern.permute.xlu0 4
        %5147 = vperm.xlu0 %5146, %v4922
        %v5148 = vpop.permute.xlu0 %5147
        %5150 = vset.pattern.permute.xlu0 4
        %5151 = vperm.xlu0 %5150, %v4923
        %v5152 = vpop.permute.xlu0 %5151
        %5154 = vset.pattern.permute.xlu0 4
        %5155 = vperm.xlu0 %5154, %v4924
        %v5156 = vpop.permute.xlu0 %5155
        %5158 = vset.pattern.permute.xlu0 4
        %5159 = vperm.xlu0 %5158, %v4925
        %v5160 = vpop.permute.xlu0 %5159
        %v5162 = vmul.f32 %v5148, %v5142
        %v5163 = vmul.f32 %v5152, %v5143
        %v5164 = vmul.f32 %v5156, %v5144
        %v5165 = vmul.f32 %v5160, %v5145
        %v5166 = vadd.f32 %v5118, %v5162
        %v5167 = vadd.f32 %v5119, %v5163
        %v5168 = vadd.f32 %v5120, %v5164
        %v5169 = vadd.f32 %v5121, %v5165
        %5170 = vset.pattern.permute.xlu0 5
        %5171 = vperm.xlu0 %5170, %v4914
        %v5172 = vpop.permute.xlu0 %5171
        %5173 = vset.pattern.permute.xlu0 5
        %5174 = vperm.xlu0 %5173, %v4915
        %v5175 = vpop.permute.xlu0 %5174
        %5176 = vset.pattern.permute.xlu0 5
        %5177 = vperm.xlu0 %5176, %v4916
        %v5178 = vpop.permute.xlu0 %5177
        %5179 = vset.pattern.permute.xlu0 5
        %5180 = vperm.xlu0 %5179, %v4917
        %v5181 = vpop.permute.xlu0 %5180
        %vm5182 = vcmp.eq.s32.totalorder %v5172, %v3091
        %vm5183 = vcmp.eq.s32.totalorder %v5175, %v3091
        %vm5184 = vcmp.eq.s32.totalorder %v5178, %v3091
        %vm5185 = vcmp.eq.s32.totalorder %v5181, %v3091
        %v5186 = vsel %vm5182, 1, 0
        %v5187 = vsel %vm5183, 1, 0
        %v5188 = vsel %vm5184, 1, 0
        %v5189 = vsel %vm5185, 1, 0
        %v5190 = vcvt.s32.f32 %v5186
        %v5191 = vcvt.s32.f32 %v5187
        %v5192 = vcvt.s32.f32 %v5188
        %v5193 = vcvt.s32.f32 %v5189
        %5194 = vset.pattern.permute.xlu0 5
        %5195 = vperm.xlu0 %5194, %v4922
        %v5196 = vpop.permute.xlu0 %5195
        %5198 = vset.pattern.permute.xlu0 5
        %5199 = vperm.xlu0 %5198, %v4923
        %v5200 = vpop.permute.xlu0 %5199
        %5202 = vset.pattern.permute.xlu0 5
        %5203 = vperm.xlu0 %5202, %v4924
        %v5204 = vpop.permute.xlu0 %5203
        %5206 = vset.pattern.permute.xlu0 5
        %5207 = vperm.xlu0 %5206, %v4925
        %v5208 = vpop.permute.xlu0 %5207
        %v5210 = vmul.f32 %v5196, %v5190
        %v5211 = vmul.f32 %v5200, %v5191
        %v5212 = vmul.f32 %v5204, %v5192
        %v5213 = vmul.f32 %v5208, %v5193
        %v5214 = vadd.f32 %v5166, %v5210
        %v5215 = vadd.f32 %v5167, %v5211
        %v5216 = vadd.f32 %v5168, %v5212
        %v5217 = vadd.f32 %v5169, %v5213
        %5218 = vset.pattern.permute.xlu0 6
        %5219 = vperm.xlu0 %5218, %v4914
        %v5220 = vpop.permute.xlu0 %5219
        %5221 = vset.pattern.permute.xlu0 6
        %5222 = vperm.xlu0 %5221, %v4915
        %v5223 = vpop.permute.xlu0 %5222
        %5224 = vset.pattern.permute.xlu0 6
        %5225 = vperm.xlu0 %5224, %v4916
        %v5226 = vpop.permute.xlu0 %5225
        %5227 = vset.pattern.permute.xlu0 6
        %5228 = vperm.xlu0 %5227, %v4917
        %v5229 = vpop.permute.xlu0 %5228
        %vm5230 = vcmp.eq.s32.totalorder %v5220, %v3091
        %vm5231 = vcmp.eq.s32.totalorder %v5223, %v3091
        %vm5232 = vcmp.eq.s32.totalorder %v5226, %v3091
        %vm5233 = vcmp.eq.s32.totalorder %v5229, %v3091
        %v5234 = vsel %vm5230, 1, 0
        %v5235 = vsel %vm5231, 1, 0
        %v5236 = vsel %vm5232, 1, 0
        %v5237 = vsel %vm5233, 1, 0
        %v5238 = vcvt.s32.f32 %v5234
        %v5239 = vcvt.s32.f32 %v5235
        %v5240 = vcvt.s32.f32 %v5236
        %v5241 = vcvt.s32.f32 %v5237
        %5242 = vset.pattern.permute.xlu0 6
        %5243 = vperm.xlu0 %5242, %v4922
        %v5244 = vpop.permute.xlu0 %5243
        %5246 = vset.pattern.permute.xlu0 6
        %5247 = vperm.xlu0 %5246, %v4923
        %v5248 = vpop.permute.xlu0 %5247
        %5250 = vset.pattern.permute.xlu0 6
        %5251 = vperm.xlu0 %5250, %v4924
        %v5252 = vpop.permute.xlu0 %5251
        %5254 = vset.pattern.permute.xlu0 6
        %5255 = vperm.xlu0 %5254, %v4925
        %v5256 = vpop.permute.xlu0 %5255
        %v5258 = vmul.f32 %v5244, %v5238
        %v5259 = vmul.f32 %v5248, %v5239
        %v5260 = vmul.f32 %v5252, %v5240
        %v5261 = vmul.f32 %v5256, %v5241
        %v5262 = vadd.f32 %v5214, %v5258
        %v5263 = vadd.f32 %v5215, %v5259
        %v5264 = vadd.f32 %v5216, %v5260
        %v5265 = vadd.f32 %v5217, %v5261
        %5266 = vset.pattern.permute.xlu0 7
        %5267 = vperm.xlu0 %5266, %v4914
        %v5268 = vpop.permute.xlu0 %5267
        %5269 = vset.pattern.permute.xlu0 7
        %5270 = vperm.xlu0 %5269, %v4915
        %v5271 = vpop.permute.xlu0 %5270
        %5272 = vset.pattern.permute.xlu0 7
        %5273 = vperm.xlu0 %5272, %v4916
        %v5274 = vpop.permute.xlu0 %5273
        %5275 = vset.pattern.permute.xlu0 7
        %5276 = vperm.xlu0 %5275, %v4917
        %v5277 = vpop.permute.xlu0 %5276
        %vm5278 = vcmp.eq.s32.totalorder %v5268, %v3091
        %vm5279 = vcmp.eq.s32.totalorder %v5271, %v3091
        %vm5280 = vcmp.eq.s32.totalorder %v5274, %v3091
        %vm5281 = vcmp.eq.s32.totalorder %v5277, %v3091
        %v5282 = vsel %vm5278, 1, 0
        %v5283 = vsel %vm5279, 1, 0
        %v5284 = vsel %vm5280, 1, 0
        %v5285 = vsel %vm5281, 1, 0
        %v5286 = vcvt.s32.f32 %v5282
        %v5287 = vcvt.s32.f32 %v5283
        %v5288 = vcvt.s32.f32 %v5284
        %v5289 = vcvt.s32.f32 %v5285
        %5290 = vset.pattern.permute.xlu0 7
        %5291 = vperm.xlu0 %5290, %v4922
        %v5292 = vpop.permute.xlu0 %5291
        %5294 = vset.pattern.permute.xlu0 7
        %5295 = vperm.xlu0 %5294, %v4923
        %v5296 = vpop.permute.xlu0 %5295
        %5298 = vset.pattern.permute.xlu0 7
        %5299 = vperm.xlu0 %5298, %v4924
        %v5300 = vpop.permute.xlu0 %5299
        %5302 = vset.pattern.permute.xlu0 7
        %5303 = vperm.xlu0 %5302, %v4925
        %v5304 = vpop.permute.xlu0 %5303
        %v5306 = vmul.f32 %v5292, %v5286
        %v5307 = vmul.f32 %v5296, %v5287
        %v5308 = vmul.f32 %v5300, %v5288
        %v5309 = vmul.f32 %v5304, %v5289
        %v5310 = vadd.f32 %v5262, %v5306
        %v5311 = vadd.f32 %v5263, %v5307
        %v5312 = vadd.f32 %v5264, %v5308
        %v5313 = vadd.f32 %v5265, %v5309
        %vm5314 = vcmask 654336
        %v5316 = vsel %vm5314, %v5310, 0
        %v5319 = vsel %vm5314, %v5311, 0
        %v5322 = vsel %vm5314, %v5312, 0
        %v5325 = vsel %vm5314, %v5313, 0
        %5327 = vmatprep.subr.mxu0 0.0
        %5328 = vmatpush1.msra.mxu0 %v3313
        %5329 = vmatprep.subr.mxu0 0.0
        %5330 = vmatpush1.msra.mxu0 %v3314
        %5331 = vmatprep.subr.mxu0 0.0
        %5332 = vmatpush1.msra.mxu0 %v3315
        %5333 = vmatprep.subr.mxu0 0.0
        %5334 = vmatpush1.msra.mxu0 %v3316
        %5335 = vmatprep.subr.mxu0 0.0
        %5336 = vmatpush1.msra.mxu0 %v3317
        %5337 = vmatprep.subr.mxu0 0.0
        %5338 = vmatpush1.msra.mxu0 %v3318
        %5339 = vmatprep.subr.mxu0 0.0
        %5340 = vmatpush1.msra.mxu0 %v3319
        %5341 = vmatprep.subr.mxu0 0.0
        %5342 = vmatpush1.msra.mxu0 %v3320
        %5343 = vmatprep.subr.mxu0 0.0
        %5344 = vmatpush1.msra.mxu0 %v3321
        %5345 = vmatprep.subr.mxu0 0.0
        %5346 = vmatpush1.msra.mxu0 %v3322
        %5347 = vmatprep.subr.mxu0 0.0
        %5348 = vmatpush1.msra.mxu0 0.0
        %5349 = vmatprep.subr.mxu0 0.0
        %5350 = vmatpush1.msra.mxu0 0.0
        %5351 = vmatprep.subr.mxu0 0.0
        %5352 = vmatpush1.msra.mxu0 0.0
        %5353 = vmatprep.subr.mxu0 0.0
        %5354 = vmatpush1.msra.mxu0 0.0
        %5355 = vmatprep.subr.mxu0 0.0
        %5356 = vmatpush1.msra.mxu0 0.0
        %5357 = vmatprep.subr.mxu0 0.0
        %5358 = vmatpush1.msra.mxu0 0.0
        %5359 = vmatprep.subr.mxu0 0.0
        %5360 = vmatpush1.msra.mxu0 0.0
        %5361 = vmatprep.subr.mxu0 0.0
        %5362 = vmatpush1.msra.mxu0 0.0
        %5363 = vmatprep.subr.mxu0 0.0
        %5364 = vmatpush1.msra.mxu0 0.0
        %5365 = vmatprep.subr.mxu0 0.0
        %5366 = vmatpush1.msra.mxu0 0.0
        %5367 = vmatprep.subr.mxu0 0.0
        %5368 = vmatpush1.msra.mxu0 0.0
        %5369 = vmatprep.subr.mxu0 0.0
        %5370 = vmatpush1.msra.mxu0 0.0
        %5371 = vmatprep.subr.mxu0 0.0
        %5372 = vmatpush1.msra.mxu0 0.0
        %5373 = vmatprep.subr.mxu0 0.0
        %5374 = vmatpush1.msra.mxu0 0.0
        %5375 = vmatprep.subr.mxu0 0.0
        %5376 = vmatpush1.msra.mxu0 0.0
        %5377 = vmatprep.subr.mxu0 0.0
        %5378 = vmatpush1.msra.mxu0 0.0
        %5379 = vmatprep.subr.mxu0 0.0
        %5380 = vmatpush1.msra.mxu0 0.0
        %5381 = vmatprep.subr.mxu0 0.0
        %5382 = vmatpush1.msra.mxu0 0.0
        %5383 = vmatprep.subr.mxu0 0.0
        %5384 = vmatpush1.msra.mxu0 0.0
        %5385 = vmatprep.subr.mxu0 0.0
        %5386 = vmatpush1.msra.mxu0 0.0
        %5387 = vmatprep.subr.mxu0 0.0
        %5388 = vmatpush1.msra.mxu0 0.0
        %5389 = vmatprep.subr.mxu0 0.0
        %5390 = vmatpush1.msra.mxu0 0.0
        %5391 = vmatprep.mubr.f32.mxu0 0.0
        %5392 = vmatmul.mubr.f32.gmra.mrb[0].mxu0 %v5316
        %v5393 = vpop.f32.mrb[0].mxu0
        %v5394 = vadd.f32 0.0, %v5393
        %v5395 = vpop.f32.mrb[0].mxu0
        %5396 = vmatprep.mubr.f32.mxu0 0.0
        %5397 = vmatmul.mubr.f32.gmra.mrb[0].mxu0 %v5319
        %v5398 = vpop.f32.mrb[0].mxu0
        %v5399 = vadd.f32 0.0, %v5398
        %v5400 = vpop.f32.mrb[0].mxu0
        %5401 = vmatprep.mubr.f32.mxu0 0.0
        %5402 = vmatmul.mubr.f32.gmra.mrb[0].mxu0 %v5322
        %v5403 = vpop.f32.mrb[0].mxu0
        %v5404 = vadd.f32 0.0, %v5403
        %v5405 = vpop.f32.mrb[0].mxu0
        %5406 = vmatprep.mubr.f32.mxu0 0.0
        %5407 = vmatmul.mubr.f32.gmra.mrb[0].mxu0 %v5325
        %v5408 = vpop.f32.mrb[0].mxu0
        %v5409 = vadd.f32 0.0, %v5408
        %v5410 = vpop.f32.mrb[0].mxu0
        %5411 = vdwg.mxu0
        %v5412 = vsel %vm1517, %v5394, %v5399
        %v5413 = vsel %vm2189, %v5412, %v5404
        %v5414 = vsel %vm2191, %v5413, %v5409
        %v5415 = vld [vmem:[%s5 + $0x50] sm:$0xff]
        %v5416 = vld [vmem:[%s5 + $0x58] sm:$0xff]
        %v5417 = vld [vmem:[%s5 + $0x60] sm:$0xff]
        %v5418 = vld [vmem:[%s5 + $0x68] sm:$0xff]
        %v5419 = vld [vmem:[%s5 + $0x70] sm:$0xff]
        %v5420 = vld [vmem:[%s5 + $0x78] sm:$0xff]
        %v5421 = vld [vmem:[%s5 + $0x80] sm:$0xff]
        %v5422 = vld [vmem:[%s5 + $0x88] sm:$0xff]
        %v5423 = vld [vmem:[%s5 + $0x90] sm:$0xff]
        %v5424 = vld [vmem:[%s5 + $0x98] sm:$0xff]
        %v5426 = vsel %vm1345, %v5415, 0
        %v5429 = vsel %vm1345, %v5416, 0
        %v5432 = vsel %vm1345, %v5417, 0
        %v5435 = vsel %vm1345, %v5418, 0
        %v5438 = vsel %vm1345, %v5419, 0
        %v5441 = vsel %vm1345, %v5420, 0
        %v5444 = vsel %vm1345, %v5421, 0
        %v5447 = vsel %vm1345, %v5422, 0
        %v5450 = vsel %vm1345, %v5423, 0
        %v5453 = vsel %vm1345, %v5424, 0
        %5455 = vmatprep.subr.mxu0 0.0
        %5456 = vmatpush1.msra.mxu0 %v1298
        %5457 = vmatprep.subr.mxu0 0.0
        %5458 = vmatpush1.msra.mxu0 %v1299
        %5459 = vmatprep.subr.mxu0 0.0
        %5460 = vmatpush1.msra.mxu0 %v1300
        %5461 = vmatprep.subr.mxu0 0.0
        %5462 = vmatpush1.msra.mxu0 %v1301
        %5463 = vmatprep.subr.mxu0 0.0
        %5464 = vmatpush1.msra.mxu0 0.0
        %5465 = vmatprep.subr.mxu0 0.0
        %5466 = vmatpush1.msra.mxu0 0.0
        %5467 = vmatprep.subr.mxu0 0.0
        %5468 = vmatpush1.msra.mxu0 0.0
        %5469 = vmatprep.subr.mxu0 0.0
        %5470 = vmatpush1.msra.mxu0 0.0
        %5471 = vmatprep.subr.mxu0 0.0
        %5472 = vmatpush1.msra.mxu0 0.0
        %5473 = vmatprep.subr.mxu0 0.0
        %5474 = vmatpush1.msra.mxu0 0.0
        %5475 = vmatprep.subr.mxu0 0.0
        %5476 = vmatpush1.msra.mxu0 0.0
        %5477 = vmatprep.subr.mxu0 0.0
        %5478 = vmatpush1.msra.mxu0 0.0
        %5479 = vmatprep.subr.mxu0 0.0
        %5480 = vmatpush1.msra.mxu0 0.0
        %5481 = vmatprep.subr.mxu0 0.0
        %5482 = vmatpush1.msra.mxu0 0.0
        %5483 = vmatprep.subr.mxu0 0.0
        %5484 = vmatpush1.msra.mxu0 0.0
        %5485 = vmatprep.subr.mxu0 0.0
        %5486 = vmatpush1.msra.mxu0 0.0
        %5487 = vmatprep.subr.mxu0 0.0
        %5488 = vmatpush1.msra.mxu0 0.0
        %5489 = vmatprep.subr.mxu0 0.0
        %5490 = vmatpush1.msra.mxu0 0.0
        %5491 = vmatprep.subr.mxu0 0.0
        %5492 = vmatpush1.msra.mxu0 0.0
        %5493 = vmatprep.subr.mxu0 0.0
        %5494 = vmatpush1.msra.mxu0 0.0
        %5495 = vmatprep.subr.mxu0 0.0
        %5496 = vmatpush1.msra.mxu0 0.0
        %5497 = vmatprep.subr.mxu0 0.0
        %5498 = vmatpush1.msra.mxu0 0.0
        %5499 = vmatprep.subr.mxu0 0.0
        %5500 = vmatpush1.msra.mxu0 0.0
        %5501 = vmatprep.subr.mxu0 0.0
        %5502 = vmatpush1.msra.mxu0 0.0
        %5503 = vmatprep.subr.mxu0 0.0
        %5504 = vmatpush1.msra.mxu0 0.0
        %5505 = vmatprep.subr.mxu0 0.0
        %5506 = vmatpush1.msra.mxu0 0.0
        %5507 = vmatprep.subr.mxu0 0.0
        %5508 = vmatpush1.msra.mxu0 0.0
        %5509 = vmatprep.subr.mxu0 0.0
        %5510 = vmatpush1.msra.mxu0 0.0
        %5511 = vmatprep.subr.mxu0 0.0
        %5512 = vmatpush1.msra.mxu0 0.0
        %5513 = vmatprep.subr.mxu0 0.0
        %5514 = vmatpush1.msra.mxu0 0.0
        %5515 = vmatprep.subr.mxu0 0.0
        %5516 = vmatpush1.msra.mxu0 0.0
        %5517 = vmatprep.subr.mxu0 0.0
        %5518 = vmatpush1.msra.mxu0 0.0
        %5519 = vmatprep.mubr.f32.mxu0 0.0
        %5520 = vmatmul.mubr.f32.gmra.mrb[0].mxu0 %v5426
        %v5521 = vpop.f32.mrb[0].mxu0
        %v5522 = vadd.f32 %v3106, %v5521
        %v5523 = vpop.f32.mrb[0].mxu0
        %5524 = vmatprep.mubr.f32.mxu0 0.0
        %5525 = vmatmul.mubr.f32.gmra.mrb[0].mxu0 %v5429
        %v5526 = vpop.f32.mrb[0].mxu0
        %v5527 = vadd.f32 %v3106, %v5526
        %v5528 = vpop.f32.mrb[0].mxu0
        %5529 = vmatprep.mubr.f32.mxu0 0.0
        %5530 = vmatmul.mubr.f32.gmra.mrb[0].mxu0 %v5432
        %v5531 = vpop.f32.mrb[0].mxu0
        %v5532 = vadd.f32 %v3106, %v5531
        %v5533 = vpop.f32.mrb[0].mxu0
        %5534 = vmatprep.mubr.f32.mxu0 0.0
        %5535 = vmatmul.mubr.f32.gmra.mrb[0].mxu0 %v5435
        %v5536 = vpop.f32.mrb[0].mxu0
        %v5537 = vadd.f32 %v3106, %v5536
        %v5538 = vpop.f32.mrb[0].mxu0
        %5539 = vmatprep.mubr.f32.mxu0 0.0
        %5540 = vmatmul.mubr.f32.gmra.mrb[0].mxu0 %v5438
        %v5541 = vpop.f32.mrb[0].mxu0
        %v5542 = vadd.f32 %v3106, %v5541
        %v5543 = vpop.f32.mrb[0].mxu0
        %5544 = vmatprep.mubr.f32.mxu0 0.0
        %5545 = vmatmul.mubr.f32.gmra.mrb[0].mxu0 %v5441
        %v5546 = vpop.f32.mrb[0].mxu0
        %v5547 = vadd.f32 %v3106, %v5546
        %v5548 = vpop.f32.mrb[0].mxu0
        %5549 = vmatprep.mubr.f32.mxu0 0.0
        %5550 = vmatmul.mubr.f32.gmra.mrb[0].mxu0 %v5444
        %v5551 = vpop.f32.mrb[0].mxu0
        %v5552 = vadd.f32 %v3106, %v5551
        %v5553 = vpop.f32.mrb[0].mxu0
        %5554 = vmatprep.mubr.f32.mxu0 0.0
        %5555 = vmatmul.mubr.f32.gmra.mrb[0].mxu0 %v5447
        %v5556 = vpop.f32.mrb[0].mxu0
        %v5557 = vadd.f32 %v3106, %v5556
        %v5558 = vpop.f32.mrb[0].mxu0
        %5559 = vmatprep.mubr.f32.mxu0 0.0
        %5560 = vmatmul.mubr.f32.gmra.mrb[0].mxu0 %v5450
        %v5561 = vpop.f32.mrb[0].mxu0
        %v5562 = vadd.f32 %v3106, %v5561
        %v5563 = vpop.f32.mrb[0].mxu0
        %5564 = vmatprep.mubr.f32.mxu0 0.0
        %5565 = vmatmul.mubr.f32.gmra.mrb[0].mxu0 %v5453
        %v5566 = vpop.f32.mrb[0].mxu0
        %v5567 = vadd.f32 %v3106, %v5566
        %v5568 = vpop.f32.mrb[0].mxu0
        %5569 = vdwg.mxu0
        %v5570 = vld [vmem:[%s7 + $0x50] sm:$0xff]
        %v5571 = vld [vmem:[%s7 + $0x58] sm:$0xff]
        %v5572 = vld [vmem:[%s7 + $0x60] sm:$0xff]
        %v5573 = vld [vmem:[%s7 + $0x68] sm:$0xff]
        %v5574 = vld [vmem:[%s7 + $0x70] sm:$0xff]
        %v5575 = vld [vmem:[%s7 + $0x78] sm:$0xff]
        %v5576 = vld [vmem:[%s7 + $0x80] sm:$0xff]
        %v5577 = vld [vmem:[%s7 + $0x88] sm:$0xff]
        %v5578 = vld [vmem:[%s7 + $0x90] sm:$0xff]
        %v5579 = vld [vmem:[%s7 + $0x98] sm:$0xff]
        %5581 = vset.pattern.permute.xlu0 0
        %5582 = vperm.xlu0 %5581, %v5570
        %v5583 = vpop.permute.xlu0 %5582
        %5586 = vset.pattern.permute.xlu0 0
        %5587 = vperm.xlu0 %5586, %v5571
        %v5588 = vpop.permute.xlu0 %5587
        %5591 = vset.pattern.permute.xlu0 0
        %5592 = vperm.xlu0 %5591, %v5572
        %v5593 = vpop.permute.xlu0 %5592
        %5596 = vset.pattern.permute.xlu0 0
        %5597 = vperm.xlu0 %5596, %v5573
        %v5598 = vpop.permute.xlu0 %5597
        %5601 = vset.pattern.permute.xlu0 0
        %5602 = vperm.xlu0 %5601, %v5574
        %v5603 = vpop.permute.xlu0 %5602
        %5606 = vset.pattern.permute.xlu0 0
        %5607 = vperm.xlu0 %5606, %v5575
        %v5608 = vpop.permute.xlu0 %5607
        %5611 = vset.pattern.permute.xlu0 0
        %5612 = vperm.xlu0 %5611, %v5576
        %v5613 = vpop.permute.xlu0 %5612
        %5616 = vset.pattern.permute.xlu0 0
        %5617 = vperm.xlu0 %5616, %v5577
        %v5618 = vpop.permute.xlu0 %5617
        %5621 = vset.pattern.permute.xlu0 0
        %5622 = vperm.xlu0 %5621, %v5578
        %v5623 = vpop.permute.xlu0 %5622
        %5626 = vset.pattern.permute.xlu0 0
        %5627 = vperm.xlu0 %5626, %v5579
        %v5628 = vpop.permute.xlu0 %5627
        %v5630 = vmul.f32 %v5522, %v5583
        %v5631 = vmul.f32 %v5527, %v5588
        %v5632 = vmul.f32 %v5532, %v5593
        %v5633 = vmul.f32 %v5537, %v5598
        %v5634 = vmul.f32 %v5542, %v5603
        %v5635 = vmul.f32 %v5547, %v5608
        %v5636 = vmul.f32 %v5552, %v5613
        %v5637 = vmul.f32 %v5557, %v5618
        %v5638 = vmul.f32 %v5562, %v5623
        %v5639 = vmul.f32 %v5567, %v5628
        %5641 = vrot.lane.b32.xlu0 %v3087, 120
        %v5642 = vpop.permute.xlu0 %5641
        %5644 = vrot.lane.b32.xlu0 %v3087, 112
        %v5645 = vpop.permute.xlu0 %5644
        %5647 = vrot.lane.b32.xlu0 %v3087, 104
        %v5648 = vpop.permute.xlu0 %5647
        %v5650 = vsel %vm3333, %v3087, -inf
        %5651 = vmax.xlane.f32.xlu0 %v5650
        %v5652 = vpop.xlane.xlu0 %5651
        %v5653 = vsel %vm3333, %v5642, -inf
        %5654 = vmax.xlane.f32.xlu0 %v5653
        %v5655 = vpop.xlane.xlu0 %5654
        %v5656 = vsel %vm3333, %v5645, -inf
        %5657 = vmax.xlane.f32.xlu0 %v5656
        %v5658 = vpop.xlane.xlu0 %5657
        %v5659 = vsel %vm3333, %v5648, -inf
        %5660 = vmax.xlane.f32.xlu0 %v5659
        %v5661 = vpop.xlane.xlu0 %5660
        %v5662 = vsub.f32 %v3087, %v5652
        %v5663 = vsub.f32 %v5642, %v5655
        %v5664 = vsub.f32 %v5645, %v5658
        %v5665 = vsub.f32 %v5648, %v5661
        %v5666 = vmul.f32 %v5662, 1.442695
        %v5667 = vpow.pop %v5666
        %v5668 = vmul.f32 %v5663, 1.442695
        %v5669 = vpow.pop %v5668
        %v5670 = vmul.f32 %v5664, 1.442695
        %v5671 = vpow.pop %v5670
        %v5672 = vmul.f32 %v5665, 1.442695
        %v5673 = vpow.pop %v5672
        %5678 = vrot.lane.b32.xlu0 %v5667, 64
        %v5679 = vpop.permute.xlu0 %5678
        %5680 = vrot.lane.b32.xlu0 %v5669, 64
        %v5681 = vpop.permute.xlu0 %5680
        %5682 = vrot.lane.b32.xlu0 %v5671, 64
        %v5683 = vpop.permute.xlu0 %5682
        %5684 = vrot.lane.b32.xlu0 %v5673, 64
        %v5685 = vpop.permute.xlu0 %5684
        %v5690 = vsel %vm1517, %v5679, 0.0
        %5691 = vadd.xlane.f32.xlu0 %v5690
        %v5692 = vpop.xlane.xlu0 %5691
        %v5693 = vsel %vm1517, %v5681, 0.0
        %5694 = vadd.xlane.f32.xlu0 %v5693
        %v5695 = vpop.xlane.xlu0 %5694
        %v5696 = vsel %vm1517, %v5683, 0.0
        %5697 = vadd.xlane.f32.xlu0 %v5696
        %v5698 = vpop.xlane.xlu0 %5697
        %v5699 = vsel %vm1517, %v5685, 0.0
        %5700 = vadd.xlane.f32.xlu0 %v5699
        %v5701 = vpop.xlane.xlu0 %5700
        %v5702 = vrcp.pop %v5692
        %v5703 = vmul.f32 %v5667, %v5702
        %v5704 = vrcp.pop %v5695
        %v5705 = vmul.f32 %v5669, %v5704
        %v5706 = vrcp.pop %v5698
        %v5707 = vmul.f32 %v5671, %v5706
        %v5708 = vrcp.pop %v5701
        %v5709 = vmul.f32 %v5673, %v5708
        %v5710 = vld [vmem:[%s9 + $0x8] sm:$0xff]
        %v5711 = vld [vmem:[%s11 + $0x8] sm:$0xff]
        %v5712 = vmul.f32 %v3087, %v3399
        %v5713 = vmul.f32 %v5642, %v3399
        %v5714 = vmul.f32 %v5645, %v3399
        %v5715 = vmul.f32 %v5648, %v3399
        %v5716 = vadd.f32 %v5710, %v5712
        %v5717 = vadd.f32 %v5710, %v5713
        %v5718 = vadd.f32 %v5710, %v5714
        %v5719 = vadd.f32 %v5710, %v5715
        %v5720 = vmul.f32 %v5716, %v3411
        %v5721 = vmul.f32 %v5717, %v3411
        %v5722 = vmul.f32 %v5718, %v3411
        %v5723 = vmul.f32 %v5719, %v3411
        %v5724 = vsub.f32 %v5720, 0.5
        %v5725 = vsub.f32 %v5721, 0.5
        %v5726 = vsub.f32 %v5722, 0.5
        %v5727 = vsub.f32 %v5723, 0.5
        %v5728 = vmul.f32 %v3087, %v3426
        %v5729 = vmul.f32 %v5642, %v3426
        %v5730 = vmul.f32 %v5645, %v3426
        %v5731 = vmul.f32 %v5648, %v3426
        %5736 = vrot.lane.b32.xlu0 %v5728, 96
        %v5737 = vpop.permute.xlu0 %5736
        %5738 = vrot.lane.b32.xlu0 %v5729, 96
        %v5739 = vpop.permute.xlu0 %5738
        %5740 = vrot.lane.b32.xlu0 %v5730, 96
        %v5741 = vpop.permute.xlu0 %5740
        %5742 = vrot.lane.b32.xlu0 %v5731, 96
        %v5743 = vpop.permute.xlu0 %5742
        %v5748 = vadd.f32 %v5711, %v5737
        %v5749 = vadd.f32 %v5711, %v5739
        %v5750 = vadd.f32 %v5711, %v5741
        %v5751 = vadd.f32 %v5711, %v5743
        %v5752 = vmul.f32 %v5748, %v3455
        %v5753 = vmul.f32 %v5749, %v3455
        %v5754 = vmul.f32 %v5750, %v3455
        %v5755 = vmul.f32 %v5751, %v3455
        %v5756 = vsub.f32 %v5752, 0.5
        %v5757 = vsub.f32 %v5753, 0.5
        %v5758 = vsub.f32 %v5754, 0.5
        %v5759 = vsub.f32 %v5755, 0.5
        %v5760 = vfloor.f32 %v5724
        %v5761 = vfloor.f32 %v5725
        %v5762 = vfloor.f32 %v5726
        %v5763 = vfloor.f32 %v5727
        %v5764 = vfloor.f32 %v5756
        %v5765 = vfloor.f32 %v5757
        %v5766 = vfloor.f32 %v5758
        %v5767 = vfloor.f32 %v5759
        %v5768 = vsub.f32 %v5724, %v5760
        %v5769 = vsub.f32 %v5725, %v5761
        %v5770 = vsub.f32 %v5726, %v5762
        %v5771 = vsub.f32 %v5727, %v5763
        %v5772 = vsub.f32 %v5756, %v5764
        %v5773 = vsub.f32 %v5757, %v5765
        %v5774 = vsub.f32 %v5758, %v5766
        %v5775 = vsub.f32 %v5759, %v5767
        %v5776 = vsub.f32 1.0, %v5768
        %v5777 = vsub.f32 1.0, %v5769
        %v5778 = vsub.f32 1.0, %v5770
        %v5779 = vsub.f32 1.0, %v5771
        %v5780 = vsub.f32 1.0, %v5772
        %v5781 = vsub.f32 1.0, %v5773
        %v5782 = vsub.f32 1.0, %v5774
        %v5783 = vsub.f32 1.0, %v5775
        %v5784 = vmul.f32 %v5776, %v5780
        %v5785 = vmul.f32 %v5777, %v5781
        %v5786 = vmul.f32 %v5778, %v5782
        %v5787 = vmul.f32 %v5779, %v5783
        %v5788 = vadd.f32 %v5760, 1.0
        %v5789 = vadd.f32 %v5761, 1.0
        %v5790 = vadd.f32 %v5762, 1.0
        %v5791 = vadd.f32 %v5763, 1.0
        %v5792 = vmul.f32 %v5768, %v5780
        %v5793 = vmul.f32 %v5769, %v5781
        %v5794 = vmul.f32 %v5770, %v5782
        %v5795 = vmul.f32 %v5771, %v5783
        %v5796 = vadd.f32 %v5764, 1.0
        %v5797 = vadd.f32 %v5765, 1.0
        %v5798 = vadd.f32 %v5766, 1.0
        %v5799 = vadd.f32 %v5767, 1.0
        %v5800 = vmul.f32 %v5776, %v5772
        %v5801 = vmul.f32 %v5777, %v5773
        %v5802 = vmul.f32 %v5778, %v5774
        %v5803 = vmul.f32 %v5779, %v5775
        %v5804 = vmul.f32 %v5768, %v5772
        %v5805 = vmul.f32 %v5769, %v5773
        %v5806 = vmul.f32 %v5770, %v5774
        %v5807 = vmul.f32 %v5771, %v5775
        %vm5808 = vcmp.ge.f32.partialorder %v5760, 0.0
        %vm5809 = vcmp.ge.f32.partialorder %v5761, 0.0
        %vm5810 = vcmp.ge.f32.partialorder %v5762, 0.0
        %vm5811 = vcmp.ge.f32.partialorder %v5763, 0.0
        %vm5812 = vcmp.lt.f32.partialorder %v5760, %v3411
        %vm5813 = vcmp.lt.f32.partialorder %v5761, %v3411
        %vm5814 = vcmp.lt.f32.partialorder %v5762, %v3411
        %vm5815 = vcmp.lt.f32.partialorder %v5763, %v3411
        %vm5816 = vmand %vm5808, %vm5812
        %vm5817 = vmand %vm5809, %vm5813
        %vm5818 = vmand %vm5810, %vm5814
        %vm5819 = vmand %vm5811, %vm5815
        %vm5820 = vcmp.ge.f32.partialorder %v5764, 0.0
        %vm5821 = vcmp.ge.f32.partialorder %v5765, 0.0
        %vm5822 = vcmp.ge.f32.partialorder %v5766, 0.0
        %vm5823 = vcmp.ge.f32.partialorder %v5767, 0.0
        %vm5824 = vmand %vm5816, %vm5820
        %vm5825 = vmand %vm5817, %vm5821
        %vm5826 = vmand %vm5818, %vm5822
        %vm5827 = vmand %vm5819, %vm5823
        %vm5828 = vcmp.lt.f32.partialorder %v5764, %v3455
        %vm5829 = vcmp.lt.f32.partialorder %v5765, %v3455
        %vm5830 = vcmp.lt.f32.partialorder %v5766, %v3455
        %vm5831 = vcmp.lt.f32.partialorder %v5767, %v3455
        %vm5832 = vmand %vm5824, %vm5828
        %vm5833 = vmand %vm5825, %vm5829
        %vm5834 = vmand %vm5826, %vm5830
        %vm5835 = vmand %vm5827, %vm5831
        %v5836 = vsel %vm5832, 1, 0
        %v5837 = vsel %vm5833, 1, 0
        %v5838 = vsel %vm5834, 1, 0
        %v5839 = vsel %vm5835, 1, 0
        %v5840 = vcvt.s32.f32 %v5836
        %v5841 = vcvt.s32.f32 %v5837
        %v5842 = vcvt.s32.f32 %v5838
        %v5843 = vcvt.s32.f32 %v5839
        %v5844 = vmax.f32 %v5760, 0.0
        %v5845 = vmax.f32 %v5761, 0.0
        %v5846 = vmax.f32 %v5762, 0.0
        %v5847 = vmax.f32 %v5763, 0.0
        %v5848 = vmin.f32 %v3556, %v5844
        %v5849 = vmin.f32 %v3556, %v5845
        %v5850 = vmin.f32 %v3556, %v5846
        %v5851 = vmin.f32 %v3556, %v5847
        %v5852 = vcvt.f32.s32.to.zero.pseudo %v5848
        %v5853 = vcvt.f32.s32.to.zero.pseudo %v5849
        %v5854 = vcvt.f32.s32.to.zero.pseudo %v5850
        %v5855 = vcvt.f32.s32.to.zero.pseudo %v5851
        %v5856 = vmax.f32 %v5764, 0.0
        %v5857 = vmax.f32 %v5765, 0.0
        %v5858 = vmax.f32 %v5766, 0.0
        %v5859 = vmax.f32 %v5767, 0.0
        %v5860 = vmin.f32 %v3573, %v5856
        %v5861 = vmin.f32 %v3573, %v5857
        %v5862 = vmin.f32 %v3573, %v5858
        %v5863 = vmin.f32 %v3573, %v5859
        %v5864 = vcvt.f32.s32.to.zero.pseudo %v5860
        %v5865 = vcvt.f32.s32.to.zero.pseudo %v5861
        %v5866 = vcvt.f32.s32.to.zero.pseudo %v5862
        %v5867 = vcvt.f32.s32.to.zero.pseudo %v5863
        %v5868 = vmul.u32 %v5864, %v3585
        %v5869 = vmul.u32 %v5865, %v3585
        %v5870 = vmul.u32 %v5866, %v3585
        %v5871 = vmul.u32 %v5867, %v3585
        %v5872 = vadd.s32 %v3593, %v5868
        %v5873 = vadd.s32 %v3593, %v5869
        %v5874 = vadd.s32 %v3593, %v5870
        %v5875 = vadd.s32 %v3593, %v5871
        %v5876 = vadd.s32 %v5872, %v5852
        %v5877 = vadd.s32 %v5873, %v5853
        %v5878 = vadd.s32 %v5874, %v5854
        %v5879 = vadd.s32 %v5875, %v5855
        %v5880 = vmul.f32 %v5784, %v5840
        %v5881 = vmul.f32 %v5785, %v5841
        %v5882 = vmul.f32 %v5786, %v5842
        %v5883 = vmul.f32 %v5787, %v5843
        %5888 = vrot.lane.b32.xlu0 %v5703, 64
        %v5889 = vpop.permute.xlu0 %5888
        %5890 = vrot.lane.b32.xlu0 %v5705, 64
        %v5891 = vpop.permute.xlu0 %5890
        %5892 = vrot.lane.b32.xlu0 %v5707, 64
        %v5893 = vpop.permute.xlu0 %5892
        %5894 = vrot.lane.b32.xlu0 %v5709, 64
        %v5895 = vpop.permute.xlu0 %5894
        %v5900 = vmul.f32 %v5880, %v5889
        %v5901 = vmul.f32 %v5881, %v5891
        %v5902 = vmul.f32 %v5882, %v5893
        %v5903 = vmul.f32 %v5883, %v5895
        %5904 = vset.pattern.permute.xlu0 0
        %5905 = vperm.xlu0 %5904, %v5876
        %v5906 = vpop.permute.xlu0 %5905
        %5907 = vset.pattern.permute.xlu0 0
        %5908 = vperm.xlu0 %5907, %v5877
        %v5909 = vpop.permute.xlu0 %5908
        %5910 = vset.pattern.permute.xlu0 0
        %5911 = vperm.xlu0 %5910, %v5878
        %v5912 = vpop.permute.xlu0 %5911
        %5913 = vset.pattern.permute.xlu0 0
        %5914 = vperm.xlu0 %5913, %v5879
        %v5915 = vpop.permute.xlu0 %5914
        %vm5916 = vcmp.eq.s32.totalorder %v5906, %v3091
        %vm5917 = vcmp.eq.s32.totalorder %v5909, %v3091
        %vm5918 = vcmp.eq.s32.totalorder %v5912, %v3091
        %vm5919 = vcmp.eq.s32.totalorder %v5915, %v3091
        %v5920 = vsel %vm5916, 1, 0
        %v5921 = vsel %vm5917, 1, 0
        %v5922 = vsel %vm5918, 1, 0
        %v5923 = vsel %vm5919, 1, 0
        %v5924 = vcvt.s32.f32 %v5920
        %v5925 = vcvt.s32.f32 %v5921
        %v5926 = vcvt.s32.f32 %v5922
        %v5927 = vcvt.s32.f32 %v5923
        %5929 = vset.pattern.permute.xlu0 0
        %5930 = vperm.xlu0 %5929, %v5900
        %v5931 = vpop.permute.xlu0 %5930
        %5934 = vset.pattern.permute.xlu0 0
        %5935 = vperm.xlu0 %5934, %v5901
        %v5936 = vpop.permute.xlu0 %5935
        %5939 = vset.pattern.permute.xlu0 0
        %5940 = vperm.xlu0 %5939, %v5902
        %v5941 = vpop.permute.xlu0 %5940
        %5944 = vset.pattern.permute.xlu0 0
        %5945 = vperm.xlu0 %5944, %v5903
        %v5946 = vpop.permute.xlu0 %5945
        %v5948 = vmul.f32 %v5931, %v5924
        %v5949 = vmul.f32 %v5936, %v5925
        %v5950 = vmul.f32 %v5941, %v5926
        %v5951 = vmul.f32 %v5946, %v5927
        %v5952 = vadd.f32 %v5948, 0.0
        %v5953 = vadd.f32 %v5949, 0.0
        %v5954 = vadd.f32 %v5950, 0.0
        %v5955 = vadd.f32 %v5951, 0.0
        %5956 = vset.pattern.permute.xlu0 1
        %5957 = vperm.xlu0 %5956, %v5876
        %v5958 = vpop.permute.xlu0 %5957
        %5959 = vset.pattern.permute.xlu0 1
        %5960 = vperm.xlu0 %5959, %v5877
        %v5961 = vpop.permute.xlu0 %5960
        %5962 = vset.pattern.permute.xlu0 1
        %5963 = vperm.xlu0 %5962, %v5878
        %v5964 = vpop.permute.xlu0 %5963
        %5965 = vset.pattern.permute.xlu0 1
        %5966 = vperm.xlu0 %5965, %v5879
        %v5967 = vpop.permute.xlu0 %5966
        %vm5968 = vcmp.eq.s32.totalorder %v5958, %v3091
        %vm5969 = vcmp.eq.s32.totalorder %v5961, %v3091
        %vm5970 = vcmp.eq.s32.totalorder %v5964, %v3091
        %vm5971 = vcmp.eq.s32.totalorder %v5967, %v3091
        %v5972 = vsel %vm5968, 1, 0
        %v5973 = vsel %vm5969, 1, 0
        %v5974 = vsel %vm5970, 1, 0
        %v5975 = vsel %vm5971, 1, 0
        %v5976 = vcvt.s32.f32 %v5972
        %v5977 = vcvt.s32.f32 %v5973
        %v5978 = vcvt.s32.f32 %v5974
        %v5979 = vcvt.s32.f32 %v5975
        %5980 = vset.pattern.permute.xlu0 1
        %5981 = vperm.xlu0 %5980, %v5900
        %v5982 = vpop.permute.xlu0 %5981
        %5984 = vset.pattern.permute.xlu0 1
        %5985 = vperm.xlu0 %5984, %v5901
        %v5986 = vpop.permute.xlu0 %5985
        %5988 = vset.pattern.permute.xlu0 1
        %5989 = vperm.xlu0 %5988, %v5902
        %v5990 = vpop.permute.xlu0 %5989
        %5992 = vset.pattern.permute.xlu0 1
        %5993 = vperm.xlu0 %5992, %v5903
        %v5994 = vpop.permute.xlu0 %5993
        %v5996 = vmul.f32 %v5982, %v5976
        %v5997 = vmul.f32 %v5986, %v5977
        %v5998 = vmul.f32 %v5990, %v5978
        %v5999 = vmul.f32 %v5994, %v5979
        %v6000 = vadd.f32 %v5952, %v5996
        %v6001 = vadd.f32 %v5953, %v5997
        %v6002 = vadd.f32 %v5954, %v5998
        %v6003 = vadd.f32 %v5955, %v5999
        %6004 = vset.pattern.permute.xlu0 2
        %6005 = vperm.xlu0 %6004, %v5876
        %v6006 = vpop.permute.xlu0 %6005
        %6007 = vset.pattern.permute.xlu0 2
        %6008 = vperm.xlu0 %6007, %v5877
        %v6009 = vpop.permute.xlu0 %6008
        %6010 = vset.pattern.permute.xlu0 2
        %6011 = vperm.xlu0 %6010, %v5878
        %v6012 = vpop.permute.xlu0 %6011
        %6013 = vset.pattern.permute.xlu0 2
        %6014 = vperm.xlu0 %6013, %v5879
        %v6015 = vpop.permute.xlu0 %6014
        %vm6016 = vcmp.eq.s32.totalorder %v6006, %v3091
        %vm6017 = vcmp.eq.s32.totalorder %v6009, %v3091
        %vm6018 = vcmp.eq.s32.totalorder %v6012, %v3091
        %vm6019 = vcmp.eq.s32.totalorder %v6015, %v3091
        %v6020 = vsel %vm6016, 1, 0
        %v6021 = vsel %vm6017, 1, 0
        %v6022 = vsel %vm6018, 1, 0
        %v6023 = vsel %vm6019, 1, 0
        %v6024 = vcvt.s32.f32 %v6020
        %v6025 = vcvt.s32.f32 %v6021
        %v6026 = vcvt.s32.f32 %v6022
        %v6027 = vcvt.s32.f32 %v6023
        %6028 = vset.pattern.permute.xlu0 2
        %6029 = vperm.xlu0 %6028, %v5900
        %v6030 = vpop.permute.xlu0 %6029
        %6032 = vset.pattern.permute.xlu0 2
        %6033 = vperm.xlu0 %6032, %v5901
        %v6034 = vpop.permute.xlu0 %6033
        %6036 = vset.pattern.permute.xlu0 2
        %6037 = vperm.xlu0 %6036, %v5902
        %v6038 = vpop.permute.xlu0 %6037
        %6040 = vset.pattern.permute.xlu0 2
        %6041 = vperm.xlu0 %6040, %v5903
        %v6042 = vpop.permute.xlu0 %6041
        %v6044 = vmul.f32 %v6030, %v6024
        %v6045 = vmul.f32 %v6034, %v6025
        %v6046 = vmul.f32 %v6038, %v6026
        %v6047 = vmul.f32 %v6042, %v6027
        %v6048 = vadd.f32 %v6000, %v6044
        %v6049 = vadd.f32 %v6001, %v6045
        %v6050 = vadd.f32 %v6002, %v6046
        %v6051 = vadd.f32 %v6003, %v6047
        %6052 = vset.pattern.permute.xlu0 3
        %6053 = vperm.xlu0 %6052, %v5876
        %v6054 = vpop.permute.xlu0 %6053
        %6055 = vset.pattern.permute.xlu0 3
        %6056 = vperm.xlu0 %6055, %v5877
        %v6057 = vpop.permute.xlu0 %6056
        %6058 = vset.pattern.permute.xlu0 3
        %6059 = vperm.xlu0 %6058, %v5878
        %v6060 = vpop.permute.xlu0 %6059
        %6061 = vset.pattern.permute.xlu0 3
        %6062 = vperm.xlu0 %6061, %v5879
        %v6063 = vpop.permute.xlu0 %6062
        %vm6064 = vcmp.eq.s32.totalorder %v6054, %v3091
        %vm6065 = vcmp.eq.s32.totalorder %v6057, %v3091
        %vm6066 = vcmp.eq.s32.totalorder %v6060, %v3091
        %vm6067 = vcmp.eq.s32.totalorder %v6063, %v3091
        %v6068 = vsel %vm6064, 1, 0
        %v6069 = vsel %vm6065, 1, 0
        %v6070 = vsel %vm6066, 1, 0
        %v6071 = vsel %vm6067, 1, 0
        %v6072 = vcvt.s32.f32 %v6068
        %v6073 = vcvt.s32.f32 %v6069
        %v6074 = vcvt.s32.f32 %v6070
        %v6075 = vcvt.s32.f32 %v6071
        %6076 = vset.pattern.permute.xlu0 3
        %6077 = vperm.xlu0 %6076, %v5900
        %v6078 = vpop.permute.xlu0 %6077
        %6080 = vset.pattern.permute.xlu0 3
        %6081 = vperm.xlu0 %6080, %v5901
        %v6082 = vpop.permute.xlu0 %6081
        %6084 = vset.pattern.permute.xlu0 3
        %6085 = vperm.xlu0 %6084, %v5902
        %v6086 = vpop.permute.xlu0 %6085
        %6088 = vset.pattern.permute.xlu0 3
        %6089 = vperm.xlu0 %6088, %v5903
        %v6090 = vpop.permute.xlu0 %6089
        %v6092 = vmul.f32 %v6078, %v6072
        %v6093 = vmul.f32 %v6082, %v6073
        %v6094 = vmul.f32 %v6086, %v6074
        %v6095 = vmul.f32 %v6090, %v6075
        %v6096 = vadd.f32 %v6048, %v6092
        %v6097 = vadd.f32 %v6049, %v6093
        %v6098 = vadd.f32 %v6050, %v6094
        %v6099 = vadd.f32 %v6051, %v6095
        %6100 = vset.pattern.permute.xlu0 4
        %6101 = vperm.xlu0 %6100, %v5876
        %v6102 = vpop.permute.xlu0 %6101
        %6103 = vset.pattern.permute.xlu0 4
        %6104 = vperm.xlu0 %6103, %v5877
        %v6105 = vpop.permute.xlu0 %6104
        %6106 = vset.pattern.permute.xlu0 4
        %6107 = vperm.xlu0 %6106, %v5878
        %v6108 = vpop.permute.xlu0 %6107
        %6109 = vset.pattern.permute.xlu0 4
        %6110 = vperm.xlu0 %6109, %v5879
        %v6111 = vpop.permute.xlu0 %6110
        %vm6112 = vcmp.eq.s32.totalorder %v6102, %v3091
        %vm6113 = vcmp.eq.s32.totalorder %v6105, %v3091
        %vm6114 = vcmp.eq.s32.totalorder %v6108, %v3091
        %vm6115 = vcmp.eq.s32.totalorder %v6111, %v3091
        %v6116 = vsel %vm6112, 1, 0
        %v6117 = vsel %vm6113, 1, 0
        %v6118 = vsel %vm6114, 1, 0
        %v6119 = vsel %vm6115, 1, 0
        %v6120 = vcvt.s32.f32 %v6116
        %v6121 = vcvt.s32.f32 %v6117
        %v6122 = vcvt.s32.f32 %v6118
        %v6123 = vcvt.s32.f32 %v6119
        %6124 = vset.pattern.permute.xlu0 4
        %6125 = vperm.xlu0 %6124, %v5900
        %v6126 = vpop.permute.xlu0 %6125
        %6128 = vset.pattern.permute.xlu0 4
        %6129 = vperm.xlu0 %6128, %v5901
        %v6130 = vpop.permute.xlu0 %6129
        %6132 = vset.pattern.permute.xlu0 4
        %6133 = vperm.xlu0 %6132, %v5902
        %v6134 = vpop.permute.xlu0 %6133
        %6136 = vset.pattern.permute.xlu0 4
        %6137 = vperm.xlu0 %6136, %v5903
        %v6138 = vpop.permute.xlu0 %6137
        %v6140 = vmul.f32 %v6126, %v6120
        %v6141 = vmul.f32 %v6130, %v6121
        %v6142 = vmul.f32 %v6134, %v6122
        %v6143 = vmul.f32 %v6138, %v6123
        %v6144 = vadd.f32 %v6096, %v6140
        %v6145 = vadd.f32 %v6097, %v6141
        %v6146 = vadd.f32 %v6098, %v6142
        %v6147 = vadd.f32 %v6099, %v6143
        %6148 = vset.pattern.permute.xlu0 5
        %6149 = vperm.xlu0 %6148, %v5876
        %v6150 = vpop.permute.xlu0 %6149
        %6151 = vset.pattern.permute.xlu0 5
        %6152 = vperm.xlu0 %6151, %v5877
        %v6153 = vpop.permute.xlu0 %6152
        %6154 = vset.pattern.permute.xlu0 5
        %6155 = vperm.xlu0 %6154, %v5878
        %v6156 = vpop.permute.xlu0 %6155
        %6157 = vset.pattern.permute.xlu0 5
        %6158 = vperm.xlu0 %6157, %v5879
        %v6159 = vpop.permute.xlu0 %6158
        %vm6160 = vcmp.eq.s32.totalorder %v6150, %v3091
        %vm6161 = vcmp.eq.s32.totalorder %v6153, %v3091
        %vm6162 = vcmp.eq.s32.totalorder %v6156, %v3091
        %vm6163 = vcmp.eq.s32.totalorder %v6159, %v3091
        %v6164 = vsel %vm6160, 1, 0
        %v6165 = vsel %vm6161, 1, 0
        %v6166 = vsel %vm6162, 1, 0
        %v6167 = vsel %vm6163, 1, 0
        %v6168 = vcvt.s32.f32 %v6164
        %v6169 = vcvt.s32.f32 %v6165
        %v6170 = vcvt.s32.f32 %v6166
        %v6171 = vcvt.s32.f32 %v6167
        %6172 = vset.pattern.permute.xlu0 5
        %6173 = vperm.xlu0 %6172, %v5900
        %v6174 = vpop.permute.xlu0 %6173
        %6176 = vset.pattern.permute.xlu0 5
        %6177 = vperm.xlu0 %6176, %v5901
        %v6178 = vpop.permute.xlu0 %6177
        %6180 = vset.pattern.permute.xlu0 5
        %6181 = vperm.xlu0 %6180, %v5902
        %v6182 = vpop.permute.xlu0 %6181
        %6184 = vset.pattern.permute.xlu0 5
        %6185 = vperm.xlu0 %6184, %v5903
        %v6186 = vpop.permute.xlu0 %6185
        %v6188 = vmul.f32 %v6174, %v6168
        %v6189 = vmul.f32 %v6178, %v6169
        %v6190 = vmul.f32 %v6182, %v6170
        %v6191 = vmul.f32 %v6186, %v6171
        %v6192 = vadd.f32 %v6144, %v6188
        %v6193 = vadd.f32 %v6145, %v6189
        %v6194 = vadd.f32 %v6146, %v6190
        %v6195 = vadd.f32 %v6147, %v6191
        %6196 = vset.pattern.permute.xlu0 6
        %6197 = vperm.xlu0 %6196, %v5876
        %v6198 = vpop.permute.xlu0 %6197
        %6199 = vset.pattern.permute.xlu0 6
        %6200 = vperm.xlu0 %6199, %v5877
        %v6201 = vpop.permute.xlu0 %6200
        %6202 = vset.pattern.permute.xlu0 6
        %6203 = vperm.xlu0 %6202, %v5878
        %v6204 = vpop.permute.xlu0 %6203
        %6205 = vset.pattern.permute.xlu0 6
        %6206 = vperm.xlu0 %6205, %v5879
        %v6207 = vpop.permute.xlu0 %6206
        %vm6208 = vcmp.eq.s32.totalorder %v6198, %v3091
        %vm6209 = vcmp.eq.s32.totalorder %v6201, %v3091
        %vm6210 = vcmp.eq.s32.totalorder %v6204, %v3091
        %vm6211 = vcmp.eq.s32.totalorder %v6207, %v3091
        %v6212 = vsel %vm6208, 1, 0
        %v6213 = vsel %vm6209, 1, 0
        %v6214 = vsel %vm6210, 1, 0
        %v6215 = vsel %vm6211, 1, 0
        %v6216 = vcvt.s32.f32 %v6212
        %v6217 = vcvt.s32.f32 %v6213
        %v6218 = vcvt.s32.f32 %v6214
        %v6219 = vcvt.s32.f32 %v6215
        %6220 = vset.pattern.permute.xlu0 6
        %6221 = vperm.xlu0 %6220, %v5900
        %v6222 = vpop.permute.xlu0 %6221
        %6224 = vset.pattern.permute.xlu0 6
        %6225 = vperm.xlu0 %6224, %v5901
        %v6226 = vpop.permute.xlu0 %6225
        %6228 = vset.pattern.permute.xlu0 6
        %6229 = vperm.xlu0 %6228, %v5902
        %v6230 = vpop.permute.xlu0 %6229
        %6232 = vset.pattern.permute.xlu0 6
        %6233 = vperm.xlu0 %6232, %v5903
        %v6234 = vpop.permute.xlu0 %6233
        %v6236 = vmul.f32 %v6222, %v6216
        %v6237 = vmul.f32 %v6226, %v6217
        %v6238 = vmul.f32 %v6230, %v6218
        %v6239 = vmul.f32 %v6234, %v6219
        %v6240 = vadd.f32 %v6192, %v6236
        %v6241 = vadd.f32 %v6193, %v6237
        %v6242 = vadd.f32 %v6194, %v6238
        %v6243 = vadd.f32 %v6195, %v6239
        %6244 = vset.pattern.permute.xlu0 7
        %6245 = vperm.xlu0 %6244, %v5876
        %v6246 = vpop.permute.xlu0 %6245
        %6247 = vset.pattern.permute.xlu0 7
        %6248 = vperm.xlu0 %6247, %v5877
        %v6249 = vpop.permute.xlu0 %6248
        %6250 = vset.pattern.permute.xlu0 7
        %6251 = vperm.xlu0 %6250, %v5878
        %v6252 = vpop.permute.xlu0 %6251
        %6253 = vset.pattern.permute.xlu0 7
        %6254 = vperm.xlu0 %6253, %v5879
        %v6255 = vpop.permute.xlu0 %6254
        %vm6256 = vcmp.eq.s32.totalorder %v6246, %v3091
        %vm6257 = vcmp.eq.s32.totalorder %v6249, %v3091
        %vm6258 = vcmp.eq.s32.totalorder %v6252, %v3091
        %vm6259 = vcmp.eq.s32.totalorder %v6255, %v3091
        %v6260 = vsel %vm6256, 1, 0
        %v6261 = vsel %vm6257, 1, 0
        %v6262 = vsel %vm6258, 1, 0
        %v6263 = vsel %vm6259, 1, 0
        %v6264 = vcvt.s32.f32 %v6260
        %v6265 = vcvt.s32.f32 %v6261
        %v6266 = vcvt.s32.f32 %v6262
        %v6267 = vcvt.s32.f32 %v6263
        %6268 = vset.pattern.permute.xlu0 7
        %6269 = vperm.xlu0 %6268, %v5900
        %v6270 = vpop.permute.xlu0 %6269
        %6272 = vset.pattern.permute.xlu0 7
        %6273 = vperm.xlu0 %6272, %v5901
        %v6274 = vpop.permute.xlu0 %6273
        %6276 = vset.pattern.permute.xlu0 7
        %6277 = vperm.xlu0 %6276, %v5902
        %v6278 = vpop.permute.xlu0 %6277
        %6280 = vset.pattern.permute.xlu0 7
        %6281 = vperm.xlu0 %6280, %v5903
        %v6282 = vpop.permute.xlu0 %6281
        %v6284 = vmul.f32 %v6270, %v6264
        %v6285 = vmul.f32 %v6274, %v6265
        %v6286 = vmul.f32 %v6278, %v6266
        %v6287 = vmul.f32 %v6282, %v6267
        %v6288 = vadd.f32 %v6240, %v6284
        %v6289 = vadd.f32 %v6241, %v6285
        %v6290 = vadd.f32 %v6242, %v6286
        %v6291 = vadd.f32 %v6243, %v6287
        %vm6292 = vcmp.ge.f32.partialorder %v5788, 0.0
        %vm6293 = vcmp.ge.f32.partialorder %v5789, 0.0
        %vm6294 = vcmp.ge.f32.partialorder %v5790, 0.0
        %vm6295 = vcmp.ge.f32.partialorder %v5791, 0.0
        %vm6296 = vcmp.lt.f32.partialorder %v5788, %v3411
        %vm6297 = vcmp.lt.f32.partialorder %v5789, %v3411
        %vm6298 = vcmp.lt.f32.partialorder %v5790, %v3411
        %vm6299 = vcmp.lt.f32.partialorder %v5791, %v3411
        %vm6300 = vmand %vm6292, %vm6296
        %vm6301 = vmand %vm6293, %vm6297
        %vm6302 = vmand %vm6294, %vm6298
        %vm6303 = vmand %vm6295, %vm6299
        %vm6304 = vmand %vm6300, %vm5820
        %vm6305 = vmand %vm6301, %vm5821
        %vm6306 = vmand %vm6302, %vm5822
        %vm6307 = vmand %vm6303, %vm5823
        %vm6308 = vmand %vm6304, %vm5828
        %vm6309 = vmand %vm6305, %vm5829
        %vm6310 = vmand %vm6306, %vm5830
        %vm6311 = vmand %vm6307, %vm5831
        %v6312 = vsel %vm6308, 1, 0
        %v6313 = vsel %vm6309, 1, 0
        %v6314 = vsel %vm6310, 1, 0
        %v6315 = vsel %vm6311, 1, 0
        %v6316 = vcvt.s32.f32 %v6312
        %v6317 = vcvt.s32.f32 %v6313
        %v6318 = vcvt.s32.f32 %v6314
        %v6319 = vcvt.s32.f32 %v6315
        %v6320 = vmax.f32 %v5788, 0.0
        %v6321 = vmax.f32 %v5789, 0.0
        %v6322 = vmax.f32 %v5790, 0.0
        %v6323 = vmax.f32 %v5791, 0.0
        %v6324 = vmin.f32 %v3556, %v6320
        %v6325 = vmin.f32 %v3556, %v6321
        %v6326 = vmin.f32 %v3556, %v6322
        %v6327 = vmin.f32 %v3556, %v6323
        %v6328 = vcvt.f32.s32.to.zero.pseudo %v6324
        %v6329 = vcvt.f32.s32.to.zero.pseudo %v6325
        %v6330 = vcvt.f32.s32.to.zero.pseudo %v6326
        %v6331 = vcvt.f32.s32.to.zero.pseudo %v6327
        %v6332 = vadd.s32 %v5872, %v6328
        %v6333 = vadd.s32 %v5873, %v6329
        %v6334 = vadd.s32 %v5874, %v6330
        %v6335 = vadd.s32 %v5875, %v6331
        %v6336 = vmul.f32 %v5792, %v6316
        %v6337 = vmul.f32 %v5793, %v6317
        %v6338 = vmul.f32 %v5794, %v6318
        %v6339 = vmul.f32 %v5795, %v6319
        %v6340 = vmul.f32 %v6336, %v5889
        %v6341 = vmul.f32 %v6337, %v5891
        %v6342 = vmul.f32 %v6338, %v5893
        %v6343 = vmul.f32 %v6339, %v5895
        %6344 = vset.pattern.permute.xlu0 0
        %6345 = vperm.xlu0 %6344, %v6332
        %v6346 = vpop.permute.xlu0 %6345
        %6347 = vset.pattern.permute.xlu0 0
        %6348 = vperm.xlu0 %6347, %v6333
        %v6349 = vpop.permute.xlu0 %6348
        %6350 = vset.pattern.permute.xlu0 0
        %6351 = vperm.xlu0 %6350, %v6334
        %v6352 = vpop.permute.xlu0 %6351
        %6353 = vset.pattern.permute.xlu0 0
        %6354 = vperm.xlu0 %6353, %v6335
        %v6355 = vpop.permute.xlu0 %6354
        %vm6356 = vcmp.eq.s32.totalorder %v6346, %v3091
        %vm6357 = vcmp.eq.s32.totalorder %v6349, %v3091
        %vm6358 = vcmp.eq.s32.totalorder %v6352, %v3091
        %vm6359 = vcmp.eq.s32.totalorder %v6355, %v3091
        %v6360 = vsel %vm6356, 1, 0
        %v6361 = vsel %vm6357, 1, 0
        %v6362 = vsel %vm6358, 1, 0
        %v6363 = vsel %vm6359, 1, 0
        %v6364 = vcvt.s32.f32 %v6360
        %v6365 = vcvt.s32.f32 %v6361
        %v6366 = vcvt.s32.f32 %v6362
        %v6367 = vcvt.s32.f32 %v6363
        %6369 = vset.pattern.permute.xlu0 0
        %6370 = vperm.xlu0 %6369, %v6340
        %v6371 = vpop.permute.xlu0 %6370
        %6374 = vset.pattern.permute.xlu0 0
        %6375 = vperm.xlu0 %6374, %v6341
        %v6376 = vpop.permute.xlu0 %6375
        %6379 = vset.pattern.permute.xlu0 0
        %6380 = vperm.xlu0 %6379, %v6342
        %v6381 = vpop.permute.xlu0 %6380
        %6384 = vset.pattern.permute.xlu0 0
        %6385 = vperm.xlu0 %6384, %v6343
        %v6386 = vpop.permute.xlu0 %6385
        %v6388 = vmul.f32 %v6371, %v6364
        %v6389 = vmul.f32 %v6376, %v6365
        %v6390 = vmul.f32 %v6381, %v6366
        %v6391 = vmul.f32 %v6386, %v6367
        %v6392 = vadd.f32 %v6288, %v6388
        %v6393 = vadd.f32 %v6289, %v6389
        %v6394 = vadd.f32 %v6290, %v6390
        %v6395 = vadd.f32 %v6291, %v6391
        %6396 = vset.pattern.permute.xlu0 1
        %6397 = vperm.xlu0 %6396, %v6332
        %v6398 = vpop.permute.xlu0 %6397
        %6399 = vset.pattern.permute.xlu0 1
        %6400 = vperm.xlu0 %6399, %v6333
        %v6401 = vpop.permute.xlu0 %6400
        %6402 = vset.pattern.permute.xlu0 1
        %6403 = vperm.xlu0 %6402, %v6334
        %v6404 = vpop.permute.xlu0 %6403
        %6405 = vset.pattern.permute.xlu0 1
        %6406 = vperm.xlu0 %6405, %v6335
        %v6407 = vpop.permute.xlu0 %6406
        %vm6408 = vcmp.eq.s32.totalorder %v6398, %v3091
        %vm6409 = vcmp.eq.s32.totalorder %v6401, %v3091
        %vm6410 = vcmp.eq.s32.totalorder %v6404, %v3091
        %vm6411 = vcmp.eq.s32.totalorder %v6407, %v3091
        %v6412 = vsel %vm6408, 1, 0
        %v6413 = vsel %vm6409, 1, 0
        %v6414 = vsel %vm6410, 1, 0
        %v6415 = vsel %vm6411, 1, 0
        %v6416 = vcvt.s32.f32 %v6412
        %v6417 = vcvt.s32.f32 %v6413
        %v6418 = vcvt.s32.f32 %v6414
        %v6419 = vcvt.s32.f32 %v6415
        %6420 = vset.pattern.permute.xlu0 1
        %6421 = vperm.xlu0 %6420, %v6340
        %v6422 = vpop.permute.xlu0 %6421
        %6424 = vset.pattern.permute.xlu0 1
        %6425 = vperm.xlu0 %6424, %v6341
        %v6426 = vpop.permute.xlu0 %6425
        %6428 = vset.pattern.permute.xlu0 1
        %6429 = vperm.xlu0 %6428, %v6342
        %v6430 = vpop.permute.xlu0 %6429
        %6432 = vset.pattern.permute.xlu0 1
        %6433 = vperm.xlu0 %6432, %v6343
        %v6434 = vpop.permute.xlu0 %6433
        %v6436 = vmul.f32 %v6422, %v6416
        %v6437 = vmul.f32 %v6426, %v6417
        %v6438 = vmul.f32 %v6430, %v6418
        %v6439 = vmul.f32 %v6434, %v6419
        %v6440 = vadd.f32 %v6392, %v6436
        %v6441 = vadd.f32 %v6393, %v6437
        %v6442 = vadd.f32 %v6394, %v6438
        %v6443 = vadd.f32 %v6395, %v6439
        %6444 = vset.pattern.permute.xlu0 2
        %6445 = vperm.xlu0 %6444, %v6332
        %v6446 = vpop.permute.xlu0 %6445
        %6447 = vset.pattern.permute.xlu0 2
        %6448 = vperm.xlu0 %6447, %v6333
        %v6449 = vpop.permute.xlu0 %6448
        %6450 = vset.pattern.permute.xlu0 2
        %6451 = vperm.xlu0 %6450, %v6334
        %v6452 = vpop.permute.xlu0 %6451
        %6453 = vset.pattern.permute.xlu0 2
        %6454 = vperm.xlu0 %6453, %v6335
        %v6455 = vpop.permute.xlu0 %6454
        %vm6456 = vcmp.eq.s32.totalorder %v6446, %v3091
        %vm6457 = vcmp.eq.s32.totalorder %v6449, %v3091
        %vm6458 = vcmp.eq.s32.totalorder %v6452, %v3091
        %vm6459 = vcmp.eq.s32.totalorder %v6455, %v3091
        %v6460 = vsel %vm6456, 1, 0
        %v6461 = vsel %vm6457, 1, 0
        %v6462 = vsel %vm6458, 1, 0
        %v6463 = vsel %vm6459, 1, 0
        %v6464 = vcvt.s32.f32 %v6460
        %v6465 = vcvt.s32.f32 %v6461
        %v6466 = vcvt.s32.f32 %v6462
        %v6467 = vcvt.s32.f32 %v6463
        %6468 = vset.pattern.permute.xlu0 2
        %6469 = vperm.xlu0 %6468, %v6340
        %v6470 = vpop.permute.xlu0 %6469
        %6472 = vset.pattern.permute.xlu0 2
        %6473 = vperm.xlu0 %6472, %v6341
        %v6474 = vpop.permute.xlu0 %6473
        %6476 = vset.pattern.permute.xlu0 2
        %6477 = vperm.xlu0 %6476, %v6342
        %v6478 = vpop.permute.xlu0 %6477
        %6480 = vset.pattern.permute.xlu0 2
        %6481 = vperm.xlu0 %6480, %v6343
        %v6482 = vpop.permute.xlu0 %6481
        %v6484 = vmul.f32 %v6470, %v6464
        %v6485 = vmul.f32 %v6474, %v6465
        %v6486 = vmul.f32 %v6478, %v6466
        %v6487 = vmul.f32 %v6482, %v6467
        %v6488 = vadd.f32 %v6440, %v6484
        %v6489 = vadd.f32 %v6441, %v6485
        %v6490 = vadd.f32 %v6442, %v6486
        %v6491 = vadd.f32 %v6443, %v6487
        %6492 = vset.pattern.permute.xlu0 3
        %6493 = vperm.xlu0 %6492, %v6332
        %v6494 = vpop.permute.xlu0 %6493
        %6495 = vset.pattern.permute.xlu0 3
        %6496 = vperm.xlu0 %6495, %v6333
        %v6497 = vpop.permute.xlu0 %6496
        %6498 = vset.pattern.permute.xlu0 3
        %6499 = vperm.xlu0 %6498, %v6334
        %v6500 = vpop.permute.xlu0 %6499
        %6501 = vset.pattern.permute.xlu0 3
        %6502 = vperm.xlu0 %6501, %v6335
        %v6503 = vpop.permute.xlu0 %6502
        %vm6504 = vcmp.eq.s32.totalorder %v6494, %v3091
        %vm6505 = vcmp.eq.s32.totalorder %v6497, %v3091
        %vm6506 = vcmp.eq.s32.totalorder %v6500, %v3091
        %vm6507 = vcmp.eq.s32.totalorder %v6503, %v3091
        %v6508 = vsel %vm6504, 1, 0
        %v6509 = vsel %vm6505, 1, 0
        %v6510 = vsel %vm6506, 1, 0
        %v6511 = vsel %vm6507, 1, 0
        %v6512 = vcvt.s32.f32 %v6508
        %v6513 = vcvt.s32.f32 %v6509
        %v6514 = vcvt.s32.f32 %v6510
        %v6515 = vcvt.s32.f32 %v6511
        %6516 = vset.pattern.permute.xlu0 3
        %6517 = vperm.xlu0 %6516, %v6340
        %v6518 = vpop.permute.xlu0 %6517
        %6520 = vset.pattern.permute.xlu0 3
        %6521 = vperm.xlu0 %6520, %v6341
        %v6522 = vpop.permute.xlu0 %6521
        %6524 = vset.pattern.permute.xlu0 3
        %6525 = vperm.xlu0 %6524, %v6342
        %v6526 = vpop.permute.xlu0 %6525
        %6528 = vset.pattern.permute.xlu0 3
        %6529 = vperm.xlu0 %6528, %v6343
        %v6530 = vpop.permute.xlu0 %6529
        %v6532 = vmul.f32 %v6518, %v6512
        %v6533 = vmul.f32 %v6522, %v6513
        %v6534 = vmul.f32 %v6526, %v6514
        %v6535 = vmul.f32 %v6530, %v6515
        %v6536 = vadd.f32 %v6488, %v6532
        %v6537 = vadd.f32 %v6489, %v6533
        %v6538 = vadd.f32 %v6490, %v6534
        %v6539 = vadd.f32 %v6491, %v6535
        %6540 = vset.pattern.permute.xlu0 4
        %6541 = vperm.xlu0 %6540, %v6332
        %v6542 = vpop.permute.xlu0 %6541
        %6543 = vset.pattern.permute.xlu0 4
        %6544 = vperm.xlu0 %6543, %v6333
        %v6545 = vpop.permute.xlu0 %6544
        %6546 = vset.pattern.permute.xlu0 4
        %6547 = vperm.xlu0 %6546, %v6334
        %v6548 = vpop.permute.xlu0 %6547
        %6549 = vset.pattern.permute.xlu0 4
        %6550 = vperm.xlu0 %6549, %v6335
        %v6551 = vpop.permute.xlu0 %6550
        %vm6552 = vcmp.eq.s32.totalorder %v6542, %v3091
        %vm6553 = vcmp.eq.s32.totalorder %v6545, %v3091
        %vm6554 = vcmp.eq.s32.totalorder %v6548, %v3091
        %vm6555 = vcmp.eq.s32.totalorder %v6551, %v3091
        %v6556 = vsel %vm6552, 1, 0
        %v6557 = vsel %vm6553, 1, 0
        %v6558 = vsel %vm6554, 1, 0
        %v6559 = vsel %vm6555, 1, 0
        %v6560 = vcvt.s32.f32 %v6556
        %v6561 = vcvt.s32.f32 %v6557
        %v6562 = vcvt.s32.f32 %v6558
        %v6563 = vcvt.s32.f32 %v6559
        %6564 = vset.pattern.permute.xlu0 4
        %6565 = vperm.xlu0 %6564, %v6340
        %v6566 = vpop.permute.xlu0 %6565
        %6568 = vset.pattern.permute.xlu0 4
        %6569 = vperm.xlu0 %6568, %v6341
        %v6570 = vpop.permute.xlu0 %6569
        %6572 = vset.pattern.permute.xlu0 4
        %6573 = vperm.xlu0 %6572, %v6342
        %v6574 = vpop.permute.xlu0 %6573
        %6576 = vset.pattern.permute.xlu0 4
        %6577 = vperm.xlu0 %6576, %v6343
        %v6578 = vpop.permute.xlu0 %6577
        %v6580 = vmul.f32 %v6566, %v6560
        %v6581 = vmul.f32 %v6570, %v6561
        %v6582 = vmul.f32 %v6574, %v6562
        %v6583 = vmul.f32 %v6578, %v6563
        %v6584 = vadd.f32 %v6536, %v6580
        %v6585 = vadd.f32 %v6537, %v6581
        %v6586 = vadd.f32 %v6538, %v6582
        %v6587 = vadd.f32 %v6539, %v6583
        %6588 = vset.pattern.permute.xlu0 5
        %6589 = vperm.xlu0 %6588, %v6332
        %v6590 = vpop.permute.xlu0 %6589
        %6591 = vset.pattern.permute.xlu0 5
        %6592 = vperm.xlu0 %6591, %v6333
        %v6593 = vpop.permute.xlu0 %6592
        %6594 = vset.pattern.permute.xlu0 5
        %6595 = vperm.xlu0 %6594, %v6334
        %v6596 = vpop.permute.xlu0 %6595
        %6597 = vset.pattern.permute.xlu0 5
        %6598 = vperm.xlu0 %6597, %v6335
        %v6599 = vpop.permute.xlu0 %6598
        %vm6600 = vcmp.eq.s32.totalorder %v6590, %v3091
        %vm6601 = vcmp.eq.s32.totalorder %v6593, %v3091
        %vm6602 = vcmp.eq.s32.totalorder %v6596, %v3091
        %vm6603 = vcmp.eq.s32.totalorder %v6599, %v3091
        %v6604 = vsel %vm6600, 1, 0
        %v6605 = vsel %vm6601, 1, 0
        %v6606 = vsel %vm6602, 1, 0
        %v6607 = vsel %vm6603, 1, 0
        %v6608 = vcvt.s32.f32 %v6604
        %v6609 = vcvt.s32.f32 %v6605
        %v6610 = vcvt.s32.f32 %v6606
        %v6611 = vcvt.s32.f32 %v6607
        %6612 = vset.pattern.permute.xlu0 5
        %6613 = vperm.xlu0 %6612, %v6340
        %v6614 = vpop.permute.xlu0 %6613
        %6616 = vset.pattern.permute.xlu0 5
        %6617 = vperm.xlu0 %6616, %v6341
        %v6618 = vpop.permute.xlu0 %6617
        %6620 = vset.pattern.permute.xlu0 5
        %6621 = vperm.xlu0 %6620, %v6342
        %v6622 = vpop.permute.xlu0 %6621
        %6624 = vset.pattern.permute.xlu0 5
        %6625 = vperm.xlu0 %6624, %v6343
        %v6626 = vpop.permute.xlu0 %6625
        %v6628 = vmul.f32 %v6614, %v6608
        %v6629 = vmul.f32 %v6618, %v6609
        %v6630 = vmul.f32 %v6622, %v6610
        %v6631 = vmul.f32 %v6626, %v6611
        %v6632 = vadd.f32 %v6584, %v6628
        %v6633 = vadd.f32 %v6585, %v6629
        %v6634 = vadd.f32 %v6586, %v6630
        %v6635 = vadd.f32 %v6587, %v6631
        %6636 = vset.pattern.permute.xlu0 6
        %6637 = vperm.xlu0 %6636, %v6332
        %v6638 = vpop.permute.xlu0 %6637
        %6639 = vset.pattern.permute.xlu0 6
        %6640 = vperm.xlu0 %6639, %v6333
        %v6641 = vpop.permute.xlu0 %6640
        %6642 = vset.pattern.permute.xlu0 6
        %6643 = vperm.xlu0 %6642, %v6334
        %v6644 = vpop.permute.xlu0 %6643
        %6645 = vset.pattern.permute.xlu0 6
        %6646 = vperm.xlu0 %6645, %v6335
        %v6647 = vpop.permute.xlu0 %6646
        %vm6648 = vcmp.eq.s32.totalorder %v6638, %v3091
        %vm6649 = vcmp.eq.s32.totalorder %v6641, %v3091
        %vm6650 = vcmp.eq.s32.totalorder %v6644, %v3091
        %vm6651 = vcmp.eq.s32.totalorder %v6647, %v3091
        %v6652 = vsel %vm6648, 1, 0
        %v6653 = vsel %vm6649, 1, 0
        %v6654 = vsel %vm6650, 1, 0
        %v6655 = vsel %vm6651, 1, 0
        %v6656 = vcvt.s32.f32 %v6652
        %v6657 = vcvt.s32.f32 %v6653
        %v6658 = vcvt.s32.f32 %v6654
        %v6659 = vcvt.s32.f32 %v6655
        %6660 = vset.pattern.permute.xlu0 6
        %6661 = vperm.xlu0 %6660, %v6340
        %v6662 = vpop.permute.xlu0 %6661
        %6664 = vset.pattern.permute.xlu0 6
        %6665 = vperm.xlu0 %6664, %v6341
        %v6666 = vpop.permute.xlu0 %6665
        %6668 = vset.pattern.permute.xlu0 6
        %6669 = vperm.xlu0 %6668, %v6342
        %v6670 = vpop.permute.xlu0 %6669
        %6672 = vset.pattern.permute.xlu0 6
        %6673 = vperm.xlu0 %6672, %v6343
        %v6674 = vpop.permute.xlu0 %6673
        %v6676 = vmul.f32 %v6662, %v6656
        %v6677 = vmul.f32 %v6666, %v6657
        %v6678 = vmul.f32 %v6670, %v6658
        %v6679 = vmul.f32 %v6674, %v6659
        %v6680 = vadd.f32 %v6632, %v6676
        %v6681 = vadd.f32 %v6633, %v6677
        %v6682 = vadd.f32 %v6634, %v6678
        %v6683 = vadd.f32 %v6635, %v6679
        %6684 = vset.pattern.permute.xlu0 7
        %6685 = vperm.xlu0 %6684, %v6332
        %v6686 = vpop.permute.xlu0 %6685
        %6687 = vset.pattern.permute.xlu0 7
        %6688 = vperm.xlu0 %6687, %v6333
        %v6689 = vpop.permute.xlu0 %6688
        %6690 = vset.pattern.permute.xlu0 7
        %6691 = vperm.xlu0 %6690, %v6334
        %v6692 = vpop.permute.xlu0 %6691
        %6693 = vset.pattern.permute.xlu0 7
        %6694 = vperm.xlu0 %6693, %v6335
        %v6695 = vpop.permute.xlu0 %6694
        %vm6696 = vcmp.eq.s32.totalorder %v6686, %v3091
        %vm6697 = vcmp.eq.s32.totalorder %v6689, %v3091
        %vm6698 = vcmp.eq.s32.totalorder %v6692, %v3091
        %vm6699 = vcmp.eq.s32.totalorder %v6695, %v3091
        %v6700 = vsel %vm6696, 1, 0
        %v6701 = vsel %vm6697, 1, 0
        %v6702 = vsel %vm6698, 1, 0
        %v6703 = vsel %vm6699, 1, 0
        %v6704 = vcvt.s32.f32 %v6700
        %v6705 = vcvt.s32.f32 %v6701
        %v6706 = vcvt.s32.f32 %v6702
        %v6707 = vcvt.s32.f32 %v6703
        %6708 = vset.pattern.permute.xlu0 7
        %6709 = vperm.xlu0 %6708, %v6340
        %v6710 = vpop.permute.xlu0 %6709
        %6712 = vset.pattern.permute.xlu0 7
        %6713 = vperm.xlu0 %6712, %v6341
        %v6714 = vpop.permute.xlu0 %6713
        %6716 = vset.pattern.permute.xlu0 7
        %6717 = vperm.xlu0 %6716, %v6342
        %v6718 = vpop.permute.xlu0 %6717
        %6720 = vset.pattern.permute.xlu0 7
        %6721 = vperm.xlu0 %6720, %v6343
        %v6722 = vpop.permute.xlu0 %6721
        %v6724 = vmul.f32 %v6710, %v6704
        %v6725 = vmul.f32 %v6714, %v6705
        %v6726 = vmul.f32 %v6718, %v6706
        %v6727 = vmul.f32 %v6722, %v6707
        %v6728 = vadd.f32 %v6680, %v6724
        %v6729 = vadd.f32 %v6681, %v6725
        %v6730 = vadd.f32 %v6682, %v6726
        %v6731 = vadd.f32 %v6683, %v6727
        %vm6732 = vcmp.ge.f32.partialorder %v5796, 0.0
        %vm6733 = vcmp.ge.f32.partialorder %v5797, 0.0
        %vm6734 = vcmp.ge.f32.partialorder %v5798, 0.0
        %vm6735 = vcmp.ge.f32.partialorder %v5799, 0.0
        %vm6736 = vmand %vm5816, %vm6732
        %vm6737 = vmand %vm5817, %vm6733
        %vm6738 = vmand %vm5818, %vm6734
        %vm6739 = vmand %vm5819, %vm6735
        %vm6740 = vcmp.lt.f32.partialorder %v5796, %v3455
        %vm6741 = vcmp.lt.f32.partialorder %v5797, %v3455
        %vm6742 = vcmp.lt.f32.partialorder %v5798, %v3455
        %vm6743 = vcmp.lt.f32.partialorder %v5799, %v3455
        %vm6744 = vmand %vm6736, %vm6740
        %vm6745 = vmand %vm6737, %vm6741
        %vm6746 = vmand %vm6738, %vm6742
        %vm6747 = vmand %vm6739, %vm6743
        %v6748 = vsel %vm6744, 1, 0
        %v6749 = vsel %vm6745, 1, 0
        %v6750 = vsel %vm6746, 1, 0
        %v6751 = vsel %vm6747, 1, 0
        %v6752 = vcvt.s32.f32 %v6748
        %v6753 = vcvt.s32.f32 %v6749
        %v6754 = vcvt.s32.f32 %v6750
        %v6755 = vcvt.s32.f32 %v6751
        %v6756 = vmax.f32 %v5796, 0.0
        %v6757 = vmax.f32 %v5797, 0.0
        %v6758 = vmax.f32 %v5798, 0.0
        %v6759 = vmax.f32 %v5799, 0.0
        %v6760 = vmin.f32 %v3573, %v6756
        %v6761 = vmin.f32 %v3573, %v6757
        %v6762 = vmin.f32 %v3573, %v6758
        %v6763 = vmin.f32 %v3573, %v6759
        %v6764 = vcvt.f32.s32.to.zero.pseudo %v6760
        %v6765 = vcvt.f32.s32.to.zero.pseudo %v6761
        %v6766 = vcvt.f32.s32.to.zero.pseudo %v6762
        %v6767 = vcvt.f32.s32.to.zero.pseudo %v6763
        %v6768 = vmul.u32 %v6764, %v3585
        %v6769 = vmul.u32 %v6765, %v3585
        %v6770 = vmul.u32 %v6766, %v3585
        %v6771 = vmul.u32 %v6767, %v3585
        %v6772 = vadd.s32 %v3593, %v6768
        %v6773 = vadd.s32 %v3593, %v6769
        %v6774 = vadd.s32 %v3593, %v6770
        %v6775 = vadd.s32 %v3593, %v6771
        %v6776 = vadd.s32 %v6772, %v5852
        %v6777 = vadd.s32 %v6773, %v5853
        %v6778 = vadd.s32 %v6774, %v5854
        %v6779 = vadd.s32 %v6775, %v5855
        %v6780 = vmul.f32 %v5800, %v6752
        %v6781 = vmul.f32 %v5801, %v6753
        %v6782 = vmul.f32 %v5802, %v6754
        %v6783 = vmul.f32 %v5803, %v6755
        %v6784 = vmul.f32 %v6780, %v5889
        %v6785 = vmul.f32 %v6781, %v5891
        %v6786 = vmul.f32 %v6782, %v5893
        %v6787 = vmul.f32 %v6783, %v5895
        %6788 = vset.pattern.permute.xlu0 0
        %6789 = vperm.xlu0 %6788, %v6776
        %v6790 = vpop.permute.xlu0 %6789
        %6791 = vset.pattern.permute.xlu0 0
        %6792 = vperm.xlu0 %6791, %v6777
        %v6793 = vpop.permute.xlu0 %6792
        %6794 = vset.pattern.permute.xlu0 0
        %6795 = vperm.xlu0 %6794, %v6778
        %v6796 = vpop.permute.xlu0 %6795
        %6797 = vset.pattern.permute.xlu0 0
        %6798 = vperm.xlu0 %6797, %v6779
        %v6799 = vpop.permute.xlu0 %6798
        %vm6800 = vcmp.eq.s32.totalorder %v6790, %v3091
        %vm6801 = vcmp.eq.s32.totalorder %v6793, %v3091
        %vm6802 = vcmp.eq.s32.totalorder %v6796, %v3091
        %vm6803 = vcmp.eq.s32.totalorder %v6799, %v3091
        %v6804 = vsel %vm6800, 1, 0
        %v6805 = vsel %vm6801, 1, 0
        %v6806 = vsel %vm6802, 1, 0
        %v6807 = vsel %vm6803, 1, 0
        %v6808 = vcvt.s32.f32 %v6804
        %v6809 = vcvt.s32.f32 %v6805
        %v6810 = vcvt.s32.f32 %v6806
        %v6811 = vcvt.s32.f32 %v6807
        %6813 = vset.pattern.permute.xlu0 0
        %6814 = vperm.xlu0 %6813, %v6784
        %v6815 = vpop.permute.xlu0 %6814
        %6818 = vset.pattern.permute.xlu0 0
        %6819 = vperm.xlu0 %6818, %v6785
        %v6820 = vpop.permute.xlu0 %6819
        %6823 = vset.pattern.permute.xlu0 0
        %6824 = vperm.xlu0 %6823, %v6786
        %v6825 = vpop.permute.xlu0 %6824
        %6828 = vset.pattern.permute.xlu0 0
        %6829 = vperm.xlu0 %6828, %v6787
        %v6830 = vpop.permute.xlu0 %6829
        %v6832 = vmul.f32 %v6815, %v6808
        %v6833 = vmul.f32 %v6820, %v6809
        %v6834 = vmul.f32 %v6825, %v6810
        %v6835 = vmul.f32 %v6830, %v6811
        %v6836 = vadd.f32 %v6728, %v6832
        %v6837 = vadd.f32 %v6729, %v6833
        %v6838 = vadd.f32 %v6730, %v6834
        %v6839 = vadd.f32 %v6731, %v6835
        %6840 = vset.pattern.permute.xlu0 1
        %6841 = vperm.xlu0 %6840, %v6776
        %v6842 = vpop.permute.xlu0 %6841
        %6843 = vset.pattern.permute.xlu0 1
        %6844 = vperm.xlu0 %6843, %v6777
        %v6845 = vpop.permute.xlu0 %6844
        %6846 = vset.pattern.permute.xlu0 1
        %6847 = vperm.xlu0 %6846, %v6778
        %v6848 = vpop.permute.xlu0 %6847
        %6849 = vset.pattern.permute.xlu0 1
        %6850 = vperm.xlu0 %6849, %v6779
        %v6851 = vpop.permute.xlu0 %6850
        %vm6852 = vcmp.eq.s32.totalorder %v6842, %v3091
        %vm6853 = vcmp.eq.s32.totalorder %v6845, %v3091
        %vm6854 = vcmp.eq.s32.totalorder %v6848, %v3091
        %vm6855 = vcmp.eq.s32.totalorder %v6851, %v3091
        %v6856 = vsel %vm6852, 1, 0
        %v6857 = vsel %vm6853, 1, 0
        %v6858 = vsel %vm6854, 1, 0
        %v6859 = vsel %vm6855, 1, 0
        %v6860 = vcvt.s32.f32 %v6856
        %v6861 = vcvt.s32.f32 %v6857
        %v6862 = vcvt.s32.f32 %v6858
        %v6863 = vcvt.s32.f32 %v6859
        %6864 = vset.pattern.permute.xlu0 1
        %6865 = vperm.xlu0 %6864, %v6784
        %v6866 = vpop.permute.xlu0 %6865
        %6868 = vset.pattern.permute.xlu0 1
        %6869 = vperm.xlu0 %6868, %v6785
        %v6870 = vpop.permute.xlu0 %6869
        %6872 = vset.pattern.permute.xlu0 1
        %6873 = vperm.xlu0 %6872, %v6786
        %v6874 = vpop.permute.xlu0 %6873
        %6876 = vset.pattern.permute.xlu0 1
        %6877 = vperm.xlu0 %6876, %v6787
        %v6878 = vpop.permute.xlu0 %6877
        %v6880 = vmul.f32 %v6866, %v6860
        %v6881 = vmul.f32 %v6870, %v6861
        %v6882 = vmul.f32 %v6874, %v6862
        %v6883 = vmul.f32 %v6878, %v6863
        %v6884 = vadd.f32 %v6836, %v6880
        %v6885 = vadd.f32 %v6837, %v6881
        %v6886 = vadd.f32 %v6838, %v6882
        %v6887 = vadd.f32 %v6839, %v6883
        %6888 = vset.pattern.permute.xlu0 2
        %6889 = vperm.xlu0 %6888, %v6776
        %v6890 = vpop.permute.xlu0 %6889
        %6891 = vset.pattern.permute.xlu0 2
        %6892 = vperm.xlu0 %6891, %v6777
        %v6893 = vpop.permute.xlu0 %6892
        %6894 = vset.pattern.permute.xlu0 2
        %6895 = vperm.xlu0 %6894, %v6778
        %v6896 = vpop.permute.xlu0 %6895
        %6897 = vset.pattern.permute.xlu0 2
        %6898 = vperm.xlu0 %6897, %v6779
        %v6899 = vpop.permute.xlu0 %6898
        %vm6900 = vcmp.eq.s32.totalorder %v6890, %v3091
        %vm6901 = vcmp.eq.s32.totalorder %v6893, %v3091
        %vm6902 = vcmp.eq.s32.totalorder %v6896, %v3091
        %vm6903 = vcmp.eq.s32.totalorder %v6899, %v3091
        %v6904 = vsel %vm6900, 1, 0
        %v6905 = vsel %vm6901, 1, 0
        %v6906 = vsel %vm6902, 1, 0
        %v6907 = vsel %vm6903, 1, 0
        %v6908 = vcvt.s32.f32 %v6904
        %v6909 = vcvt.s32.f32 %v6905
        %v6910 = vcvt.s32.f32 %v6906
        %v6911 = vcvt.s32.f32 %v6907
        %6912 = vset.pattern.permute.xlu0 2
        %6913 = vperm.xlu0 %6912, %v6784
        %v6914 = vpop.permute.xlu0 %6913
        %6916 = vset.pattern.permute.xlu0 2
        %6917 = vperm.xlu0 %6916, %v6785
        %v6918 = vpop.permute.xlu0 %6917
        %6920 = vset.pattern.permute.xlu0 2
        %6921 = vperm.xlu0 %6920, %v6786
        %v6922 = vpop.permute.xlu0 %6921
        %6924 = vset.pattern.permute.xlu0 2
        %6925 = vperm.xlu0 %6924, %v6787
        %v6926 = vpop.permute.xlu0 %6925
        %v6928 = vmul.f32 %v6914, %v6908
        %v6929 = vmul.f32 %v6918, %v6909
        %v6930 = vmul.f32 %v6922, %v6910
        %v6931 = vmul.f32 %v6926, %v6911
        %v6932 = vadd.f32 %v6884, %v6928
        %v6933 = vadd.f32 %v6885, %v6929
        %v6934 = vadd.f32 %v6886, %v6930
        %v6935 = vadd.f32 %v6887, %v6931
        %6936 = vset.pattern.permute.xlu0 3
        %6937 = vperm.xlu0 %6936, %v6776
        %v6938 = vpop.permute.xlu0 %6937
        %6939 = vset.pattern.permute.xlu0 3
        %6940 = vperm.xlu0 %6939, %v6777
        %v6941 = vpop.permute.xlu0 %6940
        %6942 = vset.pattern.permute.xlu0 3
        %6943 = vperm.xlu0 %6942, %v6778
        %v6944 = vpop.permute.xlu0 %6943
        %6945 = vset.pattern.permute.xlu0 3
        %6946 = vperm.xlu0 %6945, %v6779
        %v6947 = vpop.permute.xlu0 %6946
        %vm6948 = vcmp.eq.s32.totalorder %v6938, %v3091
        %vm6949 = vcmp.eq.s32.totalorder %v6941, %v3091
        %vm6950 = vcmp.eq.s32.totalorder %v6944, %v3091
        %vm6951 = vcmp.eq.s32.totalorder %v6947, %v3091
        %v6952 = vsel %vm6948, 1, 0
        %v6953 = vsel %vm6949, 1, 0
        %v6954 = vsel %vm6950, 1, 0
        %v6955 = vsel %vm6951, 1, 0
        %v6956 = vcvt.s32.f32 %v6952
        %v6957 = vcvt.s32.f32 %v6953
        %v6958 = vcvt.s32.f32 %v6954
        %v6959 = vcvt.s32.f32 %v6955
        %6960 = vset.pattern.permute.xlu0 3
        %6961 = vperm.xlu0 %6960, %v6784
        %v6962 = vpop.permute.xlu0 %6961
        %6964 = vset.pattern.permute.xlu0 3
        %6965 = vperm.xlu0 %6964, %v6785
        %v6966 = vpop.permute.xlu0 %6965
        %6968 = vset.pattern.permute.xlu0 3
        %6969 = vperm.xlu0 %6968, %v6786
        %v6970 = vpop.permute.xlu0 %6969
        %6972 = vset.pattern.permute.xlu0 3
        %6973 = vperm.xlu0 %6972, %v6787
        %v6974 = vpop.permute.xlu0 %6973
        %v6976 = vmul.f32 %v6962, %v6956
        %v6977 = vmul.f32 %v6966, %v6957
        %v6978 = vmul.f32 %v6970, %v6958
        %v6979 = vmul.f32 %v6974, %v6959
        %v6980 = vadd.f32 %v6932, %v6976
        %v6981 = vadd.f32 %v6933, %v6977
        %v6982 = vadd.f32 %v6934, %v6978
        %v6983 = vadd.f32 %v6935, %v6979
        %6984 = vset.pattern.permute.xlu0 4
        %6985 = vperm.xlu0 %6984, %v6776
        %v6986 = vpop.permute.xlu0 %6985
        %6987 = vset.pattern.permute.xlu0 4
        %6988 = vperm.xlu0 %6987, %v6777
        %v6989 = vpop.permute.xlu0 %6988
        %6990 = vset.pattern.permute.xlu0 4
        %6991 = vperm.xlu0 %6990, %v6778
        %v6992 = vpop.permute.xlu0 %6991
        %6993 = vset.pattern.permute.xlu0 4
        %6994 = vperm.xlu0 %6993, %v6779
        %v6995 = vpop.permute.xlu0 %6994
        %vm6996 = vcmp.eq.s32.totalorder %v6986, %v3091
        %vm6997 = vcmp.eq.s32.totalorder %v6989, %v3091
        %vm6998 = vcmp.eq.s32.totalorder %v6992, %v3091
        %vm6999 = vcmp.eq.s32.totalorder %v6995, %v3091
        %v7000 = vsel %vm6996, 1, 0
        %v7001 = vsel %vm6997, 1, 0
        %v7002 = vsel %vm6998, 1, 0
        %v7003 = vsel %vm6999, 1, 0
        %v7004 = vcvt.s32.f32 %v7000
        %v7005 = vcvt.s32.f32 %v7001
        %v7006 = vcvt.s32.f32 %v7002
        %v7007 = vcvt.s32.f32 %v7003
        %7008 = vset.pattern.permute.xlu0 4
        %7009 = vperm.xlu0 %7008, %v6784
        %v7010 = vpop.permute.xlu0 %7009
        %7012 = vset.pattern.permute.xlu0 4
        %7013 = vperm.xlu0 %7012, %v6785
        %v7014 = vpop.permute.xlu0 %7013
        %7016 = vset.pattern.permute.xlu0 4
        %7017 = vperm.xlu0 %7016, %v6786
        %v7018 = vpop.permute.xlu0 %7017
        %7020 = vset.pattern.permute.xlu0 4
        %7021 = vperm.xlu0 %7020, %v6787
        %v7022 = vpop.permute.xlu0 %7021
        %v7024 = vmul.f32 %v7010, %v7004
        %v7025 = vmul.f32 %v7014, %v7005
        %v7026 = vmul.f32 %v7018, %v7006
        %v7027 = vmul.f32 %v7022, %v7007
        %v7028 = vadd.f32 %v6980, %v7024
        %v7029 = vadd.f32 %v6981, %v7025
        %v7030 = vadd.f32 %v6982, %v7026
        %v7031 = vadd.f32 %v6983, %v7027
        %7032 = vset.pattern.permute.xlu0 5
        %7033 = vperm.xlu0 %7032, %v6776
        %v7034 = vpop.permute.xlu0 %7033
        %7035 = vset.pattern.permute.xlu0 5
        %7036 = vperm.xlu0 %7035, %v6777
        %v7037 = vpop.permute.xlu0 %7036
        %7038 = vset.pattern.permute.xlu0 5
        %7039 = vperm.xlu0 %7038, %v6778
        %v7040 = vpop.permute.xlu0 %7039
        %7041 = vset.pattern.permute.xlu0 5
        %7042 = vperm.xlu0 %7041, %v6779
        %v7043 = vpop.permute.xlu0 %7042
        %vm7044 = vcmp.eq.s32.totalorder %v7034, %v3091
        %vm7045 = vcmp.eq.s32.totalorder %v7037, %v3091
        %vm7046 = vcmp.eq.s32.totalorder %v7040, %v3091
        %vm7047 = vcmp.eq.s32.totalorder %v7043, %v3091
        %v7048 = vsel %vm7044, 1, 0
        %v7049 = vsel %vm7045, 1, 0
        %v7050 = vsel %vm7046, 1, 0
        %v7051 = vsel %vm7047, 1, 0
        %v7052 = vcvt.s32.f32 %v7048
        %v7053 = vcvt.s32.f32 %v7049
        %v7054 = vcvt.s32.f32 %v7050
        %v7055 = vcvt.s32.f32 %v7051
        %7056 = vset.pattern.permute.xlu0 5
        %7057 = vperm.xlu0 %7056, %v6784
        %v7058 = vpop.permute.xlu0 %7057
        %7060 = vset.pattern.permute.xlu0 5
        %7061 = vperm.xlu0 %7060, %v6785
        %v7062 = vpop.permute.xlu0 %7061
        %7064 = vset.pattern.permute.xlu0 5
        %7065 = vperm.xlu0 %7064, %v6786
        %v7066 = vpop.permute.xlu0 %7065
        %7068 = vset.pattern.permute.xlu0 5
        %7069 = vperm.xlu0 %7068, %v6787
        %v7070 = vpop.permute.xlu0 %7069
        %v7072 = vmul.f32 %v7058, %v7052
        %v7073 = vmul.f32 %v7062, %v7053
        %v7074 = vmul.f32 %v7066, %v7054
        %v7075 = vmul.f32 %v7070, %v7055
        %v7076 = vadd.f32 %v7028, %v7072
        %v7077 = vadd.f32 %v7029, %v7073
        %v7078 = vadd.f32 %v7030, %v7074
        %v7079 = vadd.f32 %v7031, %v7075
        %7080 = vset.pattern.permute.xlu0 6
        %7081 = vperm.xlu0 %7080, %v6776
        %v7082 = vpop.permute.xlu0 %7081
        %7083 = vset.pattern.permute.xlu0 6
        %7084 = vperm.xlu0 %7083, %v6777
        %v7085 = vpop.permute.xlu0 %7084
        %7086 = vset.pattern.permute.xlu0 6
        %7087 = vperm.xlu0 %7086, %v6778
        %v7088 = vpop.permute.xlu0 %7087
        %7089 = vset.pattern.permute.xlu0 6
        %7090 = vperm.xlu0 %7089, %v6779
        %v7091 = vpop.permute.xlu0 %7090
        %vm7092 = vcmp.eq.s32.totalorder %v7082, %v3091
        %vm7093 = vcmp.eq.s32.totalorder %v7085, %v3091
        %vm7094 = vcmp.eq.s32.totalorder %v7088, %v3091
        %vm7095 = vcmp.eq.s32.totalorder %v7091, %v3091
        %v7096 = vsel %vm7092, 1, 0
        %v7097 = vsel %vm7093, 1, 0
        %v7098 = vsel %vm7094, 1, 0
        %v7099 = vsel %vm7095, 1, 0
        %v7100 = vcvt.s32.f32 %v7096
        %v7101 = vcvt.s32.f32 %v7097
        %v7102 = vcvt.s32.f32 %v7098
        %v7103 = vcvt.s32.f32 %v7099
        %7104 = vset.pattern.permute.xlu0 6
        %7105 = vperm.xlu0 %7104, %v6784
        %v7106 = vpop.permute.xlu0 %7105
        %7108 = vset.pattern.permute.xlu0 6
        %7109 = vperm.xlu0 %7108, %v6785
        %v7110 = vpop.permute.xlu0 %7109
        %7112 = vset.pattern.permute.xlu0 6
        %7113 = vperm.xlu0 %7112, %v6786
        %v7114 = vpop.permute.xlu0 %7113
        %7116 = vset.pattern.permute.xlu0 6
        %7117 = vperm.xlu0 %7116, %v6787
        %v7118 = vpop.permute.xlu0 %7117
        %v7120 = vmul.f32 %v7106, %v7100
        %v7121 = vmul.f32 %v7110, %v7101
        %v7122 = vmul.f32 %v7114, %v7102
        %v7123 = vmul.f32 %v7118, %v7103
        %v7124 = vadd.f32 %v7076, %v7120
        %v7125 = vadd.f32 %v7077, %v7121
        %v7126 = vadd.f32 %v7078, %v7122
        %v7127 = vadd.f32 %v7079, %v7123
        %7128 = vset.pattern.permute.xlu0 7
        %7129 = vperm.xlu0 %7128, %v6776
        %v7130 = vpop.permute.xlu0 %7129
        %7131 = vset.pattern.permute.xlu0 7
        %7132 = vperm.xlu0 %7131, %v6777
        %v7133 = vpop.permute.xlu0 %7132
        %7134 = vset.pattern.permute.xlu0 7
        %7135 = vperm.xlu0 %7134, %v6778
        %v7136 = vpop.permute.xlu0 %7135
        %7137 = vset.pattern.permute.xlu0 7
        %7138 = vperm.xlu0 %7137, %v6779
        %v7139 = vpop.permute.xlu0 %7138
        %vm7140 = vcmp.eq.s32.totalorder %v7130, %v3091
        %vm7141 = vcmp.eq.s32.totalorder %v7133, %v3091
        %vm7142 = vcmp.eq.s32.totalorder %v7136, %v3091
        %vm7143 = vcmp.eq.s32.totalorder %v7139, %v3091
        %v7144 = vsel %vm7140, 1, 0
        %v7145 = vsel %vm7141, 1, 0
        %v7146 = vsel %vm7142, 1, 0
        %v7147 = vsel %vm7143, 1, 0
        %v7148 = vcvt.s32.f32 %v7144
        %v7149 = vcvt.s32.f32 %v7145
        %v7150 = vcvt.s32.f32 %v7146
        %v7151 = vcvt.s32.f32 %v7147
        %7152 = vset.pattern.permute.xlu0 7
        %7153 = vperm.xlu0 %7152, %v6784
        %v7154 = vpop.permute.xlu0 %7153
        %7156 = vset.pattern.permute.xlu0 7
        %7157 = vperm.xlu0 %7156, %v6785
        %v7158 = vpop.permute.xlu0 %7157
        %7160 = vset.pattern.permute.xlu0 7
        %7161 = vperm.xlu0 %7160, %v6786
        %v7162 = vpop.permute.xlu0 %7161
        %7164 = vset.pattern.permute.xlu0 7
        %7165 = vperm.xlu0 %7164, %v6787
        %v7166 = vpop.permute.xlu0 %7165
        %v7168 = vmul.f32 %v7154, %v7148
        %v7169 = vmul.f32 %v7158, %v7149
        %v7170 = vmul.f32 %v7162, %v7150
        %v7171 = vmul.f32 %v7166, %v7151
        %v7172 = vadd.f32 %v7124, %v7168
        %v7173 = vadd.f32 %v7125, %v7169
        %v7174 = vadd.f32 %v7126, %v7170
        %v7175 = vadd.f32 %v7127, %v7171
        %vm7176 = vmand %vm6300, %vm6732
        %vm7177 = vmand %vm6301, %vm6733
        %vm7178 = vmand %vm6302, %vm6734
        %vm7179 = vmand %vm6303, %vm6735
        %vm7180 = vmand %vm7176, %vm6740
        %vm7181 = vmand %vm7177, %vm6741
        %vm7182 = vmand %vm7178, %vm6742
        %vm7183 = vmand %vm7179, %vm6743
        %v7184 = vsel %vm7180, 1, 0
        %v7185 = vsel %vm7181, 1, 0
        %v7186 = vsel %vm7182, 1, 0
        %v7187 = vsel %vm7183, 1, 0
        %v7188 = vcvt.s32.f32 %v7184
        %v7189 = vcvt.s32.f32 %v7185
        %v7190 = vcvt.s32.f32 %v7186
        %v7191 = vcvt.s32.f32 %v7187
        %v7192 = vadd.s32 %v6772, %v6328
        %v7193 = vadd.s32 %v6773, %v6329
        %v7194 = vadd.s32 %v6774, %v6330
        %v7195 = vadd.s32 %v6775, %v6331
        %v7196 = vmul.f32 %v5804, %v7188
        %v7197 = vmul.f32 %v5805, %v7189
        %v7198 = vmul.f32 %v5806, %v7190
        %v7199 = vmul.f32 %v5807, %v7191
        %v7200 = vmul.f32 %v7196, %v5889
        %v7201 = vmul.f32 %v7197, %v5891
        %v7202 = vmul.f32 %v7198, %v5893
        %v7203 = vmul.f32 %v7199, %v5895
        %7204 = vset.pattern.permute.xlu0 0
        %7205 = vperm.xlu0 %7204, %v7192
        %v7206 = vpop.permute.xlu0 %7205
        %7207 = vset.pattern.permute.xlu0 0
        %7208 = vperm.xlu0 %7207, %v7193
        %v7209 = vpop.permute.xlu0 %7208
        %7210 = vset.pattern.permute.xlu0 0
        %7211 = vperm.xlu0 %7210, %v7194
        %v7212 = vpop.permute.xlu0 %7211
        %7213 = vset.pattern.permute.xlu0 0
        %7214 = vperm.xlu0 %7213, %v7195
        %v7215 = vpop.permute.xlu0 %7214
        %vm7216 = vcmp.eq.s32.totalorder %v7206, %v3091
        %vm7217 = vcmp.eq.s32.totalorder %v7209, %v3091
        %vm7218 = vcmp.eq.s32.totalorder %v7212, %v3091
        %vm7219 = vcmp.eq.s32.totalorder %v7215, %v3091
        %v7220 = vsel %vm7216, 1, 0
        %v7221 = vsel %vm7217, 1, 0
        %v7222 = vsel %vm7218, 1, 0
        %v7223 = vsel %vm7219, 1, 0
        %v7224 = vcvt.s32.f32 %v7220
        %v7225 = vcvt.s32.f32 %v7221
        %v7226 = vcvt.s32.f32 %v7222
        %v7227 = vcvt.s32.f32 %v7223
        %7229 = vset.pattern.permute.xlu0 0
        %7230 = vperm.xlu0 %7229, %v7200
        %v7231 = vpop.permute.xlu0 %7230
        %7234 = vset.pattern.permute.xlu0 0
        %7235 = vperm.xlu0 %7234, %v7201
        %v7236 = vpop.permute.xlu0 %7235
        %7239 = vset.pattern.permute.xlu0 0
        %7240 = vperm.xlu0 %7239, %v7202
        %v7241 = vpop.permute.xlu0 %7240
        %7244 = vset.pattern.permute.xlu0 0
        %7245 = vperm.xlu0 %7244, %v7203
        %v7246 = vpop.permute.xlu0 %7245
        %v7248 = vmul.f32 %v7231, %v7224
        %v7249 = vmul.f32 %v7236, %v7225
        %v7250 = vmul.f32 %v7241, %v7226
        %v7251 = vmul.f32 %v7246, %v7227
        %v7252 = vadd.f32 %v7172, %v7248
        %v7253 = vadd.f32 %v7173, %v7249
        %v7254 = vadd.f32 %v7174, %v7250
        %v7255 = vadd.f32 %v7175, %v7251
        %7256 = vset.pattern.permute.xlu0 1
        %7257 = vperm.xlu0 %7256, %v7192
        %v7258 = vpop.permute.xlu0 %7257
        %7259 = vset.pattern.permute.xlu0 1
        %7260 = vperm.xlu0 %7259, %v7193
        %v7261 = vpop.permute.xlu0 %7260
        %7262 = vset.pattern.permute.xlu0 1
        %7263 = vperm.xlu0 %7262, %v7194
        %v7264 = vpop.permute.xlu0 %7263
        %7265 = vset.pattern.permute.xlu0 1
        %7266 = vperm.xlu0 %7265, %v7195
        %v7267 = vpop.permute.xlu0 %7266
        %vm7268 = vcmp.eq.s32.totalorder %v7258, %v3091
        %vm7269 = vcmp.eq.s32.totalorder %v7261, %v3091
        %vm7270 = vcmp.eq.s32.totalorder %v7264, %v3091
        %vm7271 = vcmp.eq.s32.totalorder %v7267, %v3091
        %v7272 = vsel %vm7268, 1, 0
        %v7273 = vsel %vm7269, 1, 0
        %v7274 = vsel %vm7270, 1, 0
        %v7275 = vsel %vm7271, 1, 0
        %v7276 = vcvt.s32.f32 %v7272
        %v7277 = vcvt.s32.f32 %v7273
        %v7278 = vcvt.s32.f32 %v7274
        %v7279 = vcvt.s32.f32 %v7275
        %7280 = vset.pattern.permute.xlu0 1
        %7281 = vperm.xlu0 %7280, %v7200
        %v7282 = vpop.permute.xlu0 %7281
        %7284 = vset.pattern.permute.xlu0 1
        %7285 = vperm.xlu0 %7284, %v7201
        %v7286 = vpop.permute.xlu0 %7285
        %7288 = vset.pattern.permute.xlu0 1
        %7289 = vperm.xlu0 %7288, %v7202
        %v7290 = vpop.permute.xlu0 %7289
        %7292 = vset.pattern.permute.xlu0 1
        %7293 = vperm.xlu0 %7292, %v7203
        %v7294 = vpop.permute.xlu0 %7293
        %v7296 = vmul.f32 %v7282, %v7276
        %v7297 = vmul.f32 %v7286, %v7277
        %v7298 = vmul.f32 %v7290, %v7278
        %v7299 = vmul.f32 %v7294, %v7279
        %v7300 = vadd.f32 %v7252, %v7296
        %v7301 = vadd.f32 %v7253, %v7297
        %v7302 = vadd.f32 %v7254, %v7298
        %v7303 = vadd.f32 %v7255, %v7299
        %7304 = vset.pattern.permute.xlu0 2
        %7305 = vperm.xlu0 %7304, %v7192
        %v7306 = vpop.permute.xlu0 %7305
        %7307 = vset.pattern.permute.xlu0 2
        %7308 = vperm.xlu0 %7307, %v7193
        %v7309 = vpop.permute.xlu0 %7308
        %7310 = vset.pattern.permute.xlu0 2
        %7311 = vperm.xlu0 %7310, %v7194
        %v7312 = vpop.permute.xlu0 %7311
        %7313 = vset.pattern.permute.xlu0 2
        %7314 = vperm.xlu0 %7313, %v7195
        %v7315 = vpop.permute.xlu0 %7314
        %vm7316 = vcmp.eq.s32.totalorder %v7306, %v3091
        %vm7317 = vcmp.eq.s32.totalorder %v7309, %v3091
        %vm7318 = vcmp.eq.s32.totalorder %v7312, %v3091
        %vm7319 = vcmp.eq.s32.totalorder %v7315, %v3091
        %v7320 = vsel %vm7316, 1, 0
        %v7321 = vsel %vm7317, 1, 0
        %v7322 = vsel %vm7318, 1, 0
        %v7323 = vsel %vm7319, 1, 0
        %v7324 = vcvt.s32.f32 %v7320
        %v7325 = vcvt.s32.f32 %v7321
        %v7326 = vcvt.s32.f32 %v7322
        %v7327 = vcvt.s32.f32 %v7323
        %7328 = vset.pattern.permute.xlu0 2
        %7329 = vperm.xlu0 %7328, %v7200
        %v7330 = vpop.permute.xlu0 %7329
        %7332 = vset.pattern.permute.xlu0 2
        %7333 = vperm.xlu0 %7332, %v7201
        %v7334 = vpop.permute.xlu0 %7333
        %7336 = vset.pattern.permute.xlu0 2
        %7337 = vperm.xlu0 %7336, %v7202
        %v7338 = vpop.permute.xlu0 %7337
        %7340 = vset.pattern.permute.xlu0 2
        %7341 = vperm.xlu0 %7340, %v7203
        %v7342 = vpop.permute.xlu0 %7341
        %v7344 = vmul.f32 %v7330, %v7324
        %v7345 = vmul.f32 %v7334, %v7325
        %v7346 = vmul.f32 %v7338, %v7326
        %v7347 = vmul.f32 %v7342, %v7327
        %v7348 = vadd.f32 %v7300, %v7344
        %v7349 = vadd.f32 %v7301, %v7345
        %v7350 = vadd.f32 %v7302, %v7346
        %v7351 = vadd.f32 %v7303, %v7347
        %7352 = vset.pattern.permute.xlu0 3
        %7353 = vperm.xlu0 %7352, %v7192
        %v7354 = vpop.permute.xlu0 %7353
        %7355 = vset.pattern.permute.xlu0 3
        %7356 = vperm.xlu0 %7355, %v7193
        %v7357 = vpop.permute.xlu0 %7356
        %7358 = vset.pattern.permute.xlu0 3
        %7359 = vperm.xlu0 %7358, %v7194
        %v7360 = vpop.permute.xlu0 %7359
        %7361 = vset.pattern.permute.xlu0 3
        %7362 = vperm.xlu0 %7361, %v7195
        %v7363 = vpop.permute.xlu0 %7362
        %vm7364 = vcmp.eq.s32.totalorder %v7354, %v3091
        %vm7365 = vcmp.eq.s32.totalorder %v7357, %v3091
        %vm7366 = vcmp.eq.s32.totalorder %v7360, %v3091
        %vm7367 = vcmp.eq.s32.totalorder %v7363, %v3091
        %v7368 = vsel %vm7364, 1, 0
        %v7369 = vsel %vm7365, 1, 0
        %v7370 = vsel %vm7366, 1, 0
        %v7371 = vsel %vm7367, 1, 0
        %v7372 = vcvt.s32.f32 %v7368
        %v7373 = vcvt.s32.f32 %v7369
        %v7374 = vcvt.s32.f32 %v7370
        %v7375 = vcvt.s32.f32 %v7371
        %7376 = vset.pattern.permute.xlu0 3
        %7377 = vperm.xlu0 %7376, %v7200
        %v7378 = vpop.permute.xlu0 %7377
        %7380 = vset.pattern.permute.xlu0 3
        %7381 = vperm.xlu0 %7380, %v7201
        %v7382 = vpop.permute.xlu0 %7381
        %7384 = vset.pattern.permute.xlu0 3
        %7385 = vperm.xlu0 %7384, %v7202
        %v7386 = vpop.permute.xlu0 %7385
        %7388 = vset.pattern.permute.xlu0 3
        %7389 = vperm.xlu0 %7388, %v7203
        %v7390 = vpop.permute.xlu0 %7389
        %v7392 = vmul.f32 %v7378, %v7372
        %v7393 = vmul.f32 %v7382, %v7373
        %v7394 = vmul.f32 %v7386, %v7374
        %v7395 = vmul.f32 %v7390, %v7375
        %v7396 = vadd.f32 %v7348, %v7392
        %v7397 = vadd.f32 %v7349, %v7393
        %v7398 = vadd.f32 %v7350, %v7394
        %v7399 = vadd.f32 %v7351, %v7395
        %7400 = vset.pattern.permute.xlu0 4
        %7401 = vperm.xlu0 %7400, %v7192
        %v7402 = vpop.permute.xlu0 %7401
        %7403 = vset.pattern.permute.xlu0 4
        %7404 = vperm.xlu0 %7403, %v7193
        %v7405 = vpop.permute.xlu0 %7404
        %7406 = vset.pattern.permute.xlu0 4
        %7407 = vperm.xlu0 %7406, %v7194
        %v7408 = vpop.permute.xlu0 %7407
        %7409 = vset.pattern.permute.xlu0 4
        %7410 = vperm.xlu0 %7409, %v7195
        %v7411 = vpop.permute.xlu0 %7410
        %vm7412 = vcmp.eq.s32.totalorder %v7402, %v3091
        %vm7413 = vcmp.eq.s32.totalorder %v7405, %v3091
        %vm7414 = vcmp.eq.s32.totalorder %v7408, %v3091
        %vm7415 = vcmp.eq.s32.totalorder %v7411, %v3091
        %v7416 = vsel %vm7412, 1, 0
        %v7417 = vsel %vm7413, 1, 0
        %v7418 = vsel %vm7414, 1, 0
        %v7419 = vsel %vm7415, 1, 0
        %v7420 = vcvt.s32.f32 %v7416
        %v7421 = vcvt.s32.f32 %v7417
        %v7422 = vcvt.s32.f32 %v7418
        %v7423 = vcvt.s32.f32 %v7419
        %7424 = vset.pattern.permute.xlu0 4
        %7425 = vperm.xlu0 %7424, %v7200
        %v7426 = vpop.permute.xlu0 %7425
        %7428 = vset.pattern.permute.xlu0 4
        %7429 = vperm.xlu0 %7428, %v7201
        %v7430 = vpop.permute.xlu0 %7429
        %7432 = vset.pattern.permute.xlu0 4
        %7433 = vperm.xlu0 %7432, %v7202
        %v7434 = vpop.permute.xlu0 %7433
        %7436 = vset.pattern.permute.xlu0 4
        %7437 = vperm.xlu0 %7436, %v7203
        %v7438 = vpop.permute.xlu0 %7437
        %v7440 = vmul.f32 %v7426, %v7420
        %v7441 = vmul.f32 %v7430, %v7421
        %v7442 = vmul.f32 %v7434, %v7422
        %v7443 = vmul.f32 %v7438, %v7423
        %v7444 = vadd.f32 %v7396, %v7440
        %v7445 = vadd.f32 %v7397, %v7441
        %v7446 = vadd.f32 %v7398, %v7442
        %v7447 = vadd.f32 %v7399, %v7443
        %7448 = vset.pattern.permute.xlu0 5
        %7449 = vperm.xlu0 %7448, %v7192
        %v7450 = vpop.permute.xlu0 %7449
        %7451 = vset.pattern.permute.xlu0 5
        %7452 = vperm.xlu0 %7451, %v7193
        %v7453 = vpop.permute.xlu0 %7452
        %7454 = vset.pattern.permute.xlu0 5
        %7455 = vperm.xlu0 %7454, %v7194
        %v7456 = vpop.permute.xlu0 %7455
        %7457 = vset.pattern.permute.xlu0 5
        %7458 = vperm.xlu0 %7457, %v7195
        %v7459 = vpop.permute.xlu0 %7458
        %vm7460 = vcmp.eq.s32.totalorder %v7450, %v3091
        %vm7461 = vcmp.eq.s32.totalorder %v7453, %v3091
        %vm7462 = vcmp.eq.s32.totalorder %v7456, %v3091
        %vm7463 = vcmp.eq.s32.totalorder %v7459, %v3091
        %v7464 = vsel %vm7460, 1, 0
        %v7465 = vsel %vm7461, 1, 0
        %v7466 = vsel %vm7462, 1, 0
        %v7467 = vsel %vm7463, 1, 0
        %v7468 = vcvt.s32.f32 %v7464
        %v7469 = vcvt.s32.f32 %v7465
        %v7470 = vcvt.s32.f32 %v7466
        %v7471 = vcvt.s32.f32 %v7467
        %7472 = vset.pattern.permute.xlu0 5
        %7473 = vperm.xlu0 %7472, %v7200
        %v7474 = vpop.permute.xlu0 %7473
        %7476 = vset.pattern.permute.xlu0 5
        %7477 = vperm.xlu0 %7476, %v7201
        %v7478 = vpop.permute.xlu0 %7477
        %7480 = vset.pattern.permute.xlu0 5
        %7481 = vperm.xlu0 %7480, %v7202
        %v7482 = vpop.permute.xlu0 %7481
        %7484 = vset.pattern.permute.xlu0 5
        %7485 = vperm.xlu0 %7484, %v7203
        %v7486 = vpop.permute.xlu0 %7485
        %v7488 = vmul.f32 %v7474, %v7468
        %v7489 = vmul.f32 %v7478, %v7469
        %v7490 = vmul.f32 %v7482, %v7470
        %v7491 = vmul.f32 %v7486, %v7471
        %v7492 = vadd.f32 %v7444, %v7488
        %v7493 = vadd.f32 %v7445, %v7489
        %v7494 = vadd.f32 %v7446, %v7490
        %v7495 = vadd.f32 %v7447, %v7491
        %7496 = vset.pattern.permute.xlu0 6
        %7497 = vperm.xlu0 %7496, %v7192
        %v7498 = vpop.permute.xlu0 %7497
        %7499 = vset.pattern.permute.xlu0 6
        %7500 = vperm.xlu0 %7499, %v7193
        %v7501 = vpop.permute.xlu0 %7500
        %7502 = vset.pattern.permute.xlu0 6
        %7503 = vperm.xlu0 %7502, %v7194
        %v7504 = vpop.permute.xlu0 %7503
        %7505 = vset.pattern.permute.xlu0 6
        %7506 = vperm.xlu0 %7505, %v7195
        %v7507 = vpop.permute.xlu0 %7506
        %vm7508 = vcmp.eq.s32.totalorder %v7498, %v3091
        %vm7509 = vcmp.eq.s32.totalorder %v7501, %v3091
        %vm7510 = vcmp.eq.s32.totalorder %v7504, %v3091
        %vm7511 = vcmp.eq.s32.totalorder %v7507, %v3091
        %v7512 = vsel %vm7508, 1, 0
        %v7513 = vsel %vm7509, 1, 0
        %v7514 = vsel %vm7510, 1, 0
        %v7515 = vsel %vm7511, 1, 0
        %v7516 = vcvt.s32.f32 %v7512
        %v7517 = vcvt.s32.f32 %v7513
        %v7518 = vcvt.s32.f32 %v7514
        %v7519 = vcvt.s32.f32 %v7515
        %7520 = vset.pattern.permute.xlu0 6
        %7521 = vperm.xlu0 %7520, %v7200
        %v7522 = vpop.permute.xlu0 %7521
        %7524 = vset.pattern.permute.xlu0 6
        %7525 = vperm.xlu0 %7524, %v7201
        %v7526 = vpop.permute.xlu0 %7525
        %7528 = vset.pattern.permute.xlu0 6
        %7529 = vperm.xlu0 %7528, %v7202
        %v7530 = vpop.permute.xlu0 %7529
        %7532 = vset.pattern.permute.xlu0 6
        %7533 = vperm.xlu0 %7532, %v7203
        %v7534 = vpop.permute.xlu0 %7533
        %v7536 = vmul.f32 %v7522, %v7516
        %v7537 = vmul.f32 %v7526, %v7517
        %v7538 = vmul.f32 %v7530, %v7518
        %v7539 = vmul.f32 %v7534, %v7519
        %v7540 = vadd.f32 %v7492, %v7536
        %v7541 = vadd.f32 %v7493, %v7537
        %v7542 = vadd.f32 %v7494, %v7538
        %v7543 = vadd.f32 %v7495, %v7539
        %7544 = vset.pattern.permute.xlu0 7
        %7545 = vperm.xlu0 %7544, %v7192
        %v7546 = vpop.permute.xlu0 %7545
        %7547 = vset.pattern.permute.xlu0 7
        %7548 = vperm.xlu0 %7547, %v7193
        %v7549 = vpop.permute.xlu0 %7548
        %7550 = vset.pattern.permute.xlu0 7
        %7551 = vperm.xlu0 %7550, %v7194
        %v7552 = vpop.permute.xlu0 %7551
        %7553 = vset.pattern.permute.xlu0 7
        %7554 = vperm.xlu0 %7553, %v7195
        %v7555 = vpop.permute.xlu0 %7554
        %vm7556 = vcmp.eq.s32.totalorder %v7546, %v3091
        %vm7557 = vcmp.eq.s32.totalorder %v7549, %v3091
        %vm7558 = vcmp.eq.s32.totalorder %v7552, %v3091
        %vm7559 = vcmp.eq.s32.totalorder %v7555, %v3091
        %v7560 = vsel %vm7556, 1, 0
        %v7561 = vsel %vm7557, 1, 0
        %v7562 = vsel %vm7558, 1, 0
        %v7563 = vsel %vm7559, 1, 0
        %v7564 = vcvt.s32.f32 %v7560
        %v7565 = vcvt.s32.f32 %v7561
        %v7566 = vcvt.s32.f32 %v7562
        %v7567 = vcvt.s32.f32 %v7563
        %7568 = vset.pattern.permute.xlu0 7
        %7569 = vperm.xlu0 %7568, %v7200
        %v7570 = vpop.permute.xlu0 %7569
        %7572 = vset.pattern.permute.xlu0 7
        %7573 = vperm.xlu0 %7572, %v7201
        %v7574 = vpop.permute.xlu0 %7573
        %7576 = vset.pattern.permute.xlu0 7
        %7577 = vperm.xlu0 %7576, %v7202
        %v7578 = vpop.permute.xlu0 %7577
        %7580 = vset.pattern.permute.xlu0 7
        %7581 = vperm.xlu0 %7580, %v7203
        %v7582 = vpop.permute.xlu0 %7581
        %v7584 = vmul.f32 %v7570, %v7564
        %v7585 = vmul.f32 %v7574, %v7565
        %v7586 = vmul.f32 %v7578, %v7566
        %v7587 = vmul.f32 %v7582, %v7567
        %v7588 = vadd.f32 %v7540, %v7584
        %v7589 = vadd.f32 %v7541, %v7585
        %v7590 = vadd.f32 %v7542, %v7586
        %v7591 = vadd.f32 %v7543, %v7587
        %v7593 = vsel %vm5314, %v7588, 0
        %v7596 = vsel %vm5314, %v7589, 0
        %v7599 = vsel %vm5314, %v7590, 0
        %v7602 = vsel %vm5314, %v7591, 0
        %7604 = vmatprep.subr.mxu0 0.0
        %7605 = vmatpush1.msra.mxu0 %v5630
        %7606 = vmatprep.subr.mxu0 0.0
        %7607 = vmatpush1.msra.mxu0 %v5631
        %7608 = vmatprep.subr.mxu0 0.0
        %7609 = vmatpush1.msra.mxu0 %v5632
        %7610 = vmatprep.subr.mxu0 0.0
        %7611 = vmatpush1.msra.mxu0 %v5633
        %7612 = vmatprep.subr.mxu0 0.0
        %7613 = vmatpush1.msra.mxu0 %v5634
        %7614 = vmatprep.subr.mxu0 0.0
        %7615 = vmatpush1.msra.mxu0 %v5635
        %7616 = vmatprep.subr.mxu0 0.0
        %7617 = vmatpush1.msra.mxu0 %v5636
        %7618 = vmatprep.subr.mxu0 0.0
        %7619 = vmatpush1.msra.mxu0 %v5637
        %7620 = vmatprep.subr.mxu0 0.0
        %7621 = vmatpush1.msra.mxu0 %v5638
        %7622 = vmatprep.subr.mxu0 0.0
        %7623 = vmatpush1.msra.mxu0 %v5639
        %7624 = vmatprep.subr.mxu0 0.0
        %7625 = vmatpush1.msra.mxu0 0.0
        %7626 = vmatprep.subr.mxu0 0.0
        %7627 = vmatpush1.msra.mxu0 0.0
        %7628 = vmatprep.subr.mxu0 0.0
        %7629 = vmatpush1.msra.mxu0 0.0
        %7630 = vmatprep.subr.mxu0 0.0
        %7631 = vmatpush1.msra.mxu0 0.0
        %7632 = vmatprep.subr.mxu0 0.0
        %7633 = vmatpush1.msra.mxu0 0.0
        %7634 = vmatprep.subr.mxu0 0.0
        %7635 = vmatpush1.msra.mxu0 0.0
        %7636 = vmatprep.subr.mxu0 0.0
        %7637 = vmatpush1.msra.mxu0 0.0
        %7638 = vmatprep.subr.mxu0 0.0
        %7639 = vmatpush1.msra.mxu0 0.0
        %7640 = vmatprep.subr.mxu0 0.0
        %7641 = vmatpush1.msra.mxu0 0.0
        %7642 = vmatprep.subr.mxu0 0.0
        %7643 = vmatpush1.msra.mxu0 0.0
        %7644 = vmatprep.subr.mxu0 0.0
        %7645 = vmatpush1.msra.mxu0 0.0
        %7646 = vmatprep.subr.mxu0 0.0
        %7647 = vmatpush1.msra.mxu0 0.0
        %7648 = vmatprep.subr.mxu0 0.0
        %7649 = vmatpush1.msra.mxu0 0.0
        %7650 = vmatprep.subr.mxu0 0.0
        %7651 = vmatpush1.msra.mxu0 0.0
        %7652 = vmatprep.subr.mxu0 0.0
        %7653 = vmatpush1.msra.mxu0 0.0
        %7654 = vmatprep.subr.mxu0 0.0
        %7655 = vmatpush1.msra.mxu0 0.0
        %7656 = vmatprep.subr.mxu0 0.0
        %7657 = vmatpush1.msra.mxu0 0.0
        %7658 = vmatprep.subr.mxu0 0.0
        %7659 = vmatpush1.msra.mxu0 0.0
        %7660 = vmatprep.subr.mxu0 0.0
        %7661 = vmatpush1.msra.mxu0 0.0
        %7662 = vmatprep.subr.mxu0 0.0
        %7663 = vmatpush1.msra.mxu0 0.0
        %7664 = vmatprep.subr.mxu0 0.0
        %7665 = vmatpush1.msra.mxu0 0.0
        %7666 = vmatprep.subr.mxu0 0.0
        %7667 = vmatpush1.msra.mxu0 0.0
        %7668 = vmatprep.mubr.f32.mxu0 0.0
        %7669 = vmatmul.mubr.f32.gmra.mrb[0].mxu0 %v7593
        %v7670 = vpop.f32.mrb[0].mxu0
        %v7671 = vadd.f32 0.0, %v7670
        %v7672 = vpop.f32.mrb[0].mxu0
        %7673 = vmatprep.mubr.f32.mxu0 0.0
        %7674 = vmatmul.mubr.f32.gmra.mrb[0].mxu0 %v7596
        %v7675 = vpop.f32.mrb[0].mxu0
        %v7676 = vadd.f32 0.0, %v7675
        %v7677 = vpop.f32.mrb[0].mxu0
        %7678 = vmatprep.mubr.f32.mxu0 0.0
        %7679 = vmatmul.mubr.f32.gmra.mrb[0].mxu0 %v7599
        %v7680 = vpop.f32.mrb[0].mxu0
        %v7681 = vadd.f32 0.0, %v7680
        %v7682 = vpop.f32.mrb[0].mxu0
        %7683 = vmatprep.mubr.f32.mxu0 0.0
        %7684 = vmatmul.mubr.f32.gmra.mrb[0].mxu0 %v7602
        %v7685 = vpop.f32.mrb[0].mxu0
        %v7686 = vadd.f32 0.0, %v7685
        %v7687 = vpop.f32.mrb[0].mxu0
        %7688 = vdwg.mxu0
        %v7689 = vsel %vm1517, %v7671, %v7676
        %v7690 = vsel %vm2189, %v7689, %v7681
        %v7691 = vsel %vm2191, %v7690, %v7686
        %v7693 = vlaneseq
        %v7694 = vshrl.u32 %v7693, 7
        %v7695 = vsub.s32 0, %v7694
        %v7696 = vrot.slane %v1312, %v7695
        %v7699 = vsel %vm1345, %v5414, 0
        %v7702 = vsel %vm1345, %v7691, 0
        %7704 = vmatprep.subr.mxu0 0.0
        %7705 = vmatpush1.msra.mxu0 %v1308
        %7706 = vmatprep.subr.mxu0 0.0
        %7707 = vmatpush1.msra.mxu0 %v1309
        %7708 = vmatprep.subr.mxu0 0.0
        %7709 = vmatpush1.msra.mxu0 %v1310
        %7710 = vmatprep.subr.mxu0 0.0
        %7711 = vmatpush1.msra.mxu0 %v1311
        %7712 = vmatprep.subr.mxu0 0.0
        %7713 = vmatpush1.msra.mxu0 0.0
        %7714 = vmatprep.subr.mxu0 0.0
        %7715 = vmatpush1.msra.mxu0 0.0
        %7716 = vmatprep.subr.mxu0 0.0
        %7717 = vmatpush1.msra.mxu0 0.0
        %7718 = vmatprep.subr.mxu0 0.0
        %7719 = vmatpush1.msra.mxu0 0.0
        %7720 = vmatprep.subr.mxu0 0.0
        %7721 = vmatpush1.msra.mxu0 0.0
        %7722 = vmatprep.subr.mxu0 0.0
        %7723 = vmatpush1.msra.mxu0 0.0
        %7724 = vmatprep.subr.mxu0 0.0
        %7725 = vmatpush1.msra.mxu0 0.0
        %7726 = vmatprep.subr.mxu0 0.0
        %7727 = vmatpush1.msra.mxu0 0.0
        %7728 = vmatprep.subr.mxu0 0.0
        %7729 = vmatpush1.msra.mxu0 0.0
        %7730 = vmatprep.subr.mxu0 0.0
        %7731 = vmatpush1.msra.mxu0 0.0
        %7732 = vmatprep.subr.mxu0 0.0
        %7733 = vmatpush1.msra.mxu0 0.0
        %7734 = vmatprep.subr.mxu0 0.0
        %7735 = vmatpush1.msra.mxu0 0.0
        %7736 = vmatprep.subr.mxu0 0.0
        %7737 = vmatpush1.msra.mxu0 0.0
        %7738 = vmatprep.subr.mxu0 0.0
        %7739 = vmatpush1.msra.mxu0 0.0
        %7740 = vmatprep.subr.mxu0 0.0
        %7741 = vmatpush1.msra.mxu0 0.0
        %7742 = vmatprep.subr.mxu0 0.0
        %7743 = vmatpush1.msra.mxu0 0.0
        %7744 = vmatprep.subr.mxu0 0.0
        %7745 = vmatpush1.msra.mxu0 0.0
        %7746 = vmatprep.subr.mxu0 0.0
        %7747 = vmatpush1.msra.mxu0 0.0
        %7748 = vmatprep.subr.mxu0 0.0
        %7749 = vmatpush1.msra.mxu0 0.0
        %7750 = vmatprep.subr.mxu0 0.0
        %7751 = vmatpush1.msra.mxu0 0.0
        %7752 = vmatprep.subr.mxu0 0.0
        %7753 = vmatpush1.msra.mxu0 0.0
        %7754 = vmatprep.subr.mxu0 0.0
        %7755 = vmatpush1.msra.mxu0 0.0
        %7756 = vmatprep.subr.mxu0 0.0
        %7757 = vmatpush1.msra.mxu0 0.0
        %7758 = vmatprep.subr.mxu0 0.0
        %7759 = vmatpush1.msra.mxu0 0.0
        %7760 = vmatprep.subr.mxu0 0.0
        %7761 = vmatpush1.msra.mxu0 0.0
        %7762 = vmatprep.subr.mxu0 0.0
        %7763 = vmatpush1.msra.mxu0 0.0
        %7764 = vmatprep.subr.mxu0 0.0
        %7765 = vmatpush1.msra.mxu0 0.0
        %7766 = vmatprep.subr.mxu0 0.0
        %7767 = vmatpush1.msra.mxu0 0.0
        %7768 = vmatprep.mubr.f32.mxu0 0.0
        %7769 = vmatmul.mubr.f32.gmra.mrb[0].mxu0 %v7699
        %v7770 = vpop.f32.mrb[0].mxu0
        %v7771 = vadd.f32 %v7696, %v7770
        %v7772 = vpop.f32.mrb[0].mxu0
        %7773 = vmatprep.mubr.f32.mxu0 0.0
        %7774 = vmatmul.mubr.f32.gmra.mrb[0].mxu0 %v7702
        %v7775 = vpop.f32.mrb[0].mxu0
        %v7776 = vadd.f32 %v7696, %v7775
        %v7777 = vpop.f32.mrb[0].mxu0
        %7778 = vdwg.mxu0
        %v7779 = vadd.f32 %v2999, %v7771
        %v7780 = vadd.f32 %v3000, %v7776
        %v7781 = vsel %vm1345, %v7779, 0.0
        %7782 = vadd.xlane.f32.xlu0 %v7781
        %v7783 = vpop.xlane.xlu0 %7782
        %v7784 = vsel %vm1345, %v7780, 0.0
        %7785 = vadd.xlane.f32.xlu0 %v7784
        %v7786 = vpop.xlane.xlu0 %7785
        %v7787 = vmul.f32 %v7783, %v2964
        %v7788 = vmul.f32 %v7786, %v2964
        %v7789 = vsub.f32 %v7779, %v7787
        %v7790 = vsub.f32 %v7780, %v7788
        %v7791 = vmul.f32 %v7789, %v7789
        %v7792 = vmul.f32 %v7790, %v7790
        %v7793 = vsel %vm1345, %v7791, 0.0
        %7794 = vadd.xlane.f32.xlu0 %v7793
        %v7795 = vpop.xlane.xlu0 %7794
        %v7796 = vsel %vm1345, %v7792, 0.0
        %7797 = vadd.xlane.f32.xlu0 %v7796
        %v7798 = vpop.xlane.xlu0 %7797
        %v7799 = vmul.f32 %v7795, %v2964
        %v7800 = vmul.f32 %v7798, %v2964
        %v7801 = vadd.f32 %v7799, 1e-05
        %v7802 = vadd.f32 %v7800, 1e-05
        %v7803 = vrsqrt.pop %v7801
        %v7804 = vrsqrt.pop %v7802
        %v7805 = vmul.f32 %v7789, %v7803
        %v7806 = vmul.f32 %v7790, %v7804
        %v7808 = vlaneseq
        %v7809 = vshrl.u32 %v7808, 7
        %v7810 = vsub.s32 0, %v7809
        %v7811 = vrot.slane %v1313, %v7810
        %v7813 = vmul.f32 %v7805, %v7811
        %v7814 = vmul.f32 %v7806, %v7811
        %v7816 = vlaneseq
        %v7817 = vshrl.u32 %v7816, 7
        %v7818 = vsub.s32 0, %v7817
        %v7819 = vrot.slane %v1314, %v7818
        %v7821 = vadd.f32 %v7813, %v7819
        %v7822 = vadd.f32 %v7814, %v7819
        %v7824 = vlaneseq
        %v7825 = vshrl.u32 %v7824, 7
        %v7826 = vsub.s32 0, %v7825
        %v7827 = vrot.slane %v1319, %v7826
        %v7830 = vsel %vm1345, %v7821, 0
        %v7833 = vsel %vm1345, %v7822, 0
        %7835 = vmatprep.subr.mxu0 0.0
        %7836 = vmatpush1.msra.mxu0 %v1315
        %7837 = vmatprep.subr.mxu0 0.0
        %7838 = vmatpush1.msra.mxu0 %v1316
        %7839 = vmatprep.subr.mxu0 0.0
        %7840 = vmatpush1.msra.mxu0 %v1317
        %7841 = vmatprep.subr.mxu0 0.0
        %7842 = vmatpush1.msra.mxu0 %v1318
        %7843 = vmatprep.subr.mxu0 0.0
        %7844 = vmatpush1.msra.mxu0 0.0
        %7845 = vmatprep.subr.mxu0 0.0
        %7846 = vmatpush1.msra.mxu0 0.0
        %7847 = vmatprep.subr.mxu0 0.0
        %7848 = vmatpush1.msra.mxu0 0.0
        %7849 = vmatprep.subr.mxu0 0.0
        %7850 = vmatpush1.msra.mxu0 0.0
        %7851 = vmatprep.subr.mxu0 0.0
        %7852 = vmatpush1.msra.mxu0 0.0
        %7853 = vmatprep.subr.mxu0 0.0
        %7854 = vmatpush1.msra.mxu0 0.0
        %7855 = vmatprep.subr.mxu0 0.0
        %7856 = vmatpush1.msra.mxu0 0.0
        %7857 = vmatprep.subr.mxu0 0.0
        %7858 = vmatpush1.msra.mxu0 0.0
        %7859 = vmatprep.subr.mxu0 0.0
        %7860 = vmatpush1.msra.mxu0 0.0
        %7861 = vmatprep.subr.mxu0 0.0
        %7862 = vmatpush1.msra.mxu0 0.0
        %7863 = vmatprep.subr.mxu0 0.0
        %7864 = vmatpush1.msra.mxu0 0.0
        %7865 = vmatprep.subr.mxu0 0.0
        %7866 = vmatpush1.msra.mxu0 0.0
        %7867 = vmatprep.subr.mxu0 0.0
        %7868 = vmatpush1.msra.mxu0 0.0
        %7869 = vmatprep.subr.mxu0 0.0
        %7870 = vmatpush1.msra.mxu0 0.0
        %7871 = vmatprep.subr.mxu0 0.0
        %7872 = vmatpush1.msra.mxu0 0.0
        %7873 = vmatprep.subr.mxu0 0.0
        %7874 = vmatpush1.msra.mxu0 0.0
        %7875 = vmatprep.subr.mxu0 0.0
        %7876 = vmatpush1.msra.mxu0 0.0
        %7877 = vmatprep.subr.mxu0 0.0
        %7878 = vmatpush1.msra.mxu0 0.0
        %7879 = vmatprep.subr.mxu0 0.0
        %7880 = vmatpush1.msra.mxu0 0.0
        %7881 = vmatprep.subr.mxu0 0.0
        %7882 = vmatpush1.msra.mxu0 0.0
        %7883 = vmatprep.subr.mxu0 0.0
        %7884 = vmatpush1.msra.mxu0 0.0
        %7885 = vmatprep.subr.mxu0 0.0
        %7886 = vmatpush1.msra.mxu0 0.0
        %7887 = vmatprep.subr.mxu0 0.0
        %7888 = vmatpush1.msra.mxu0 0.0
        %7889 = vmatprep.subr.mxu0 0.0
        %7890 = vmatpush1.msra.mxu0 0.0
        %7891 = vmatprep.subr.mxu0 0.0
        %7892 = vmatpush1.msra.mxu0 0.0
        %7893 = vmatprep.subr.mxu0 0.0
        %7894 = vmatpush1.msra.mxu0 0.0
        %7895 = vmatprep.subr.mxu0 0.0
        %7896 = vmatpush1.msra.mxu0 0.0
        %7897 = vmatprep.subr.mxu0 0.0
        %7898 = vmatpush1.msra.mxu0 0.0
        %7899 = vmatprep.mubr.f32.mxu0 0.0
        %7900 = vmatmul.mubr.f32.gmra.mrb[0].mxu0 %v7830
        %v7901 = vpop.f32.mrb[0].mxu0
        %v7902 = vadd.f32 %v7827, %v7901
        %v7903 = vpop.f32.mrb[0].mxu0
        %7904 = vmatprep.mubr.f32.mxu0 0.0
        %7905 = vmatmul.mubr.f32.gmra.mrb[0].mxu0 %v7833
        %v7906 = vpop.f32.mrb[0].mxu0
        %v7907 = vadd.f32 %v7827, %v7906
        %v7908 = vpop.f32.mrb[0].mxu0
        %7909 = vdwg.mxu0
        %v7910 = vmax.f32 %v7902, 0.0
        %v7911 = vmax.f32 %v7907, 0.0
        %v7913 = vlaneseq
        %v7914 = vshrl.u32 %v7913, 7
        %v7915 = vsub.s32 0, %v7914
        %v7916 = vrot.slane %v1328, %v7915
        %vm7918 = vcmask 523264
        %v7920 = vsel %vm7918, %v7910, 0
        %v7923 = vsel %vm7918, %v7911, 0
        %7925 = vmatprep.subr.mxu0 0.0
        %7926 = vmatpush1.msra.mxu0 %v1320
        %7927 = vmatprep.subr.mxu0 0.0
        %7928 = vmatpush1.msra.mxu0 %v1321
        %7929 = vmatprep.subr.mxu0 0.0
        %7930 = vmatpush1.msra.mxu0 %v1322
        %7931 = vmatprep.subr.mxu0 0.0
        %7932 = vmatpush1.msra.mxu0 %v1323
        %7933 = vmatprep.subr.mxu0 0.0
        %7934 = vmatpush1.msra.mxu0 %v1324
        %7935 = vmatprep.subr.mxu0 0.0
        %7936 = vmatpush1.msra.mxu0 %v1325
        %7937 = vmatprep.subr.mxu0 0.0
        %7938 = vmatpush1.msra.mxu0 %v1326
        %7939 = vmatprep.subr.mxu0 0.0
        %7940 = vmatpush1.msra.mxu0 %v1327
        %7941 = vmatprep.subr.mxu0 0.0
        %7942 = vmatpush1.msra.mxu0 0.0
        %7943 = vmatprep.subr.mxu0 0.0
        %7944 = vmatpush1.msra.mxu0 0.0
        %7945 = vmatprep.subr.mxu0 0.0
        %7946 = vmatpush1.msra.mxu0 0.0
        %7947 = vmatprep.subr.mxu0 0.0
        %7948 = vmatpush1.msra.mxu0 0.0
        %7949 = vmatprep.subr.mxu0 0.0
        %7950 = vmatpush1.msra.mxu0 0.0
        %7951 = vmatprep.subr.mxu0 0.0
        %7952 = vmatpush1.msra.mxu0 0.0
        %7953 = vmatprep.subr.mxu0 0.0
        %7954 = vmatpush1.msra.mxu0 0.0
        %7955 = vmatprep.subr.mxu0 0.0
        %7956 = vmatpush1.msra.mxu0 0.0
        %7957 = vmatprep.subr.mxu0 0.0
        %7958 = vmatpush1.msra.mxu0 0.0
        %7959 = vmatprep.subr.mxu0 0.0
        %7960 = vmatpush1.msra.mxu0 0.0
        %7961 = vmatprep.subr.mxu0 0.0
        %7962 = vmatpush1.msra.mxu0 0.0
        %7963 = vmatprep.subr.mxu0 0.0
        %7964 = vmatpush1.msra.mxu0 0.0
        %7965 = vmatprep.subr.mxu0 0.0
        %7966 = vmatpush1.msra.mxu0 0.0
        %7967 = vmatprep.subr.mxu0 0.0
        %7968 = vmatpush1.msra.mxu0 0.0
        %7969 = vmatprep.subr.mxu0 0.0
        %7970 = vmatpush1.msra.mxu0 0.0
        %7971 = vmatprep.subr.mxu0 0.0
        %7972 = vmatpush1.msra.mxu0 0.0
        %7973 = vmatprep.subr.mxu0 0.0
        %7974 = vmatpush1.msra.mxu0 0.0
        %7975 = vmatprep.subr.mxu0 0.0
        %7976 = vmatpush1.msra.mxu0 0.0
        %7977 = vmatprep.subr.mxu0 0.0
        %7978 = vmatpush1.msra.mxu0 0.0
        %7979 = vmatprep.subr.mxu0 0.0
        %7980 = vmatpush1.msra.mxu0 0.0
        %7981 = vmatprep.subr.mxu0 0.0
        %7982 = vmatpush1.msra.mxu0 0.0
        %7983 = vmatprep.subr.mxu0 0.0
        %7984 = vmatpush1.msra.mxu0 0.0
        %7985 = vmatprep.subr.mxu0 0.0
        %7986 = vmatpush1.msra.mxu0 0.0
        %7987 = vmatprep.subr.mxu0 0.0
        %7988 = vmatpush1.msra.mxu0 0.0
        %7989 = vmatprep.mubr.f32.mxu0 0.0
        %7990 = vmatmul.mubr.f32.gmra.mrb[0].mxu0 %v7920
        %v7991 = vpop.f32.mrb[0].mxu0
        %v7992 = vadd.f32 %v7916, %v7991
        %v7993 = vpop.f32.mrb[0].mxu0
        %7994 = vmatprep.mubr.f32.mxu0 0.0
        %7995 = vmatmul.mubr.f32.gmra.mrb[0].mxu0 %v7923
        %v7996 = vpop.f32.mrb[0].mxu0
        %v7997 = vadd.f32 %v7916, %v7996
        %v7998 = vpop.f32.mrb[0].mxu0
        %7999 = vdwg.mxu0
        %v8000 = vadd.f32 %v7821, %v7992
        %v8001 = vadd.f32 %v7822, %v7997
        %v8002 = vsel %vm1345, %v8000, 0.0
        %8003 = vadd.xlane.f32.xlu0 %v8002
        %v8004 = vpop.xlane.xlu0 %8003
        %v8005 = vsel %vm1345, %v8001, 0.0
        %8006 = vadd.xlane.f32.xlu0 %v8005
        %v8007 = vpop.xlane.xlu0 %8006
        %v8008 = vmul.f32 %v8004, %v2964
        %v8009 = vmul.f32 %v8007, %v2964
        %v8010 = vsub.f32 %v8000, %v8008
        %v8011 = vsub.f32 %v8001, %v8009
        %v8012 = vmul.f32 %v8010, %v8010
        %v8013 = vmul.f32 %v8011, %v8011
        %v8014 = vsel %vm1345, %v8012, 0.0
        %8015 = vadd.xlane.f32.xlu0 %v8014
        %v8016 = vpop.xlane.xlu0 %8015
        %v8017 = vsel %vm1345, %v8013, 0.0
        %8018 = vadd.xlane.f32.xlu0 %v8017
        %v8019 = vpop.xlane.xlu0 %8018
        %v8020 = vmul.f32 %v8016, %v2964
        %v8021 = vmul.f32 %v8019, %v2964
        %v8022 = vadd.f32 %v8020, 1e-05
        %v8023 = vadd.f32 %v8021, 1e-05
        %v8024 = vrsqrt.pop %v8022
        %v8025 = vrsqrt.pop %v8023
        %v8026 = vmul.f32 %v8010, %v8024
        %v8027 = vmul.f32 %v8011, %v8025
        %v8029 = vlaneseq
        %v8030 = vshrl.u32 %v8029, 7
        %v8031 = vsub.s32 0, %v8030
        %v8032 = vrot.slane %v1329, %v8031
        %v8034 = vmul.f32 %v8026, %v8032
        %v8035 = vmul.f32 %v8027, %v8032
        %v8037 = vlaneseq
        %v8038 = vshrl.u32 %v8037, 7
        %v8039 = vsub.s32 0, %v8038
        %v8040 = vrot.slane %v1330, %v8039
        %v8042 = vadd.f32 %v8034, %v8040
        %v8043 = vadd.f32 %v8035, %v8040
        %8044 = vst.msk [vmem:[#allocation2] sm:$0xff] %vm1345, %v8042
        %8045 = vst.msk [vmem:[#allocation2 + $0x8] sm:$0xff] %vm1345, %v8043
        %8046 = vst.msk [vmem:[#allocation6] sm:$0xff] %vm1345, %v8042
        %8047 = vst.msk [vmem:[#allocation6 + $0x8] sm:$0xff] %vm1345, %v8043
        // Predicated region
        $region149: #{tpu_custom_call.1} parent=139 // pred_check
          %p8048 = pneg %p827
        $region150: #{tpu_custom_call.1} parent=139 // pred_check_branch
          %8050 = sbr.rel (%p8048) target = $region152
        $region151: #{tpu_custom_call.1} parent=139 // pred_region
          %s8052 = ssub.s32 256, 256
          %8053 = vsyncadd [#allocation5], %s8052
          %s8054 = sshll.u32 [#allocation6], 4
          %s8055 = int_to_ptr.vmem [resolvable:$true] %s8054
          %8060 = dma.vmem_to_hbm [thread:$0]  %s8055, 256, %s61, [#allocation5], 128, 128, 8
        $region152: #{tpu_custom_call.1} parent=139 // pred_fallthru
          _
        // Predicated region
        $region153: #{tpu_custom_call.1} parent=139 // pred_check
          %p8061 = pneg %p827
        $region154: #{tpu_custom_call.1} parent=139 // pred_check_branch
          %8063 = sbr.rel (%p8061) target = $region156
        $region155: #{tpu_custom_call.1} parent=139 // pred_region
          %8064 = dma.done [#allocation5], 256
        $region156: #{tpu_custom_call.1} parent=139 // pred_fallthru
          _
      $region140: #{tpu_custom_call.1} parent=5 // pred_fallthru
        _
      %p8065 = scmp.le.s32.totalorder 2, %s69
      // Predicated region
      $region157: #{tpu_custom_call.1} parent=5 // pred_check
        %p8066 = pneg %p8065
      $region158: #{tpu_custom_call.1} parent=5 // pred_check_branch
        %8068 = sbr.rel (%p8066) target = $region160
      $region159: #{tpu_custom_call.1} parent=5 // pred_region
        %s8069 = ssub.s32 %s69, 2
      $region160: #{tpu_custom_call.1} parent=5 // pred_fallthru
        _
    $region6: #{tpu_custom_call.1} parent=1 // loop_footer
      %s73 = sadd.s32 1, %s69
    $region7: #{tpu_custom_call.1} parent=1 // loop_footer_branch
      %68 = sbr.rel target = $region3
    $region8: #{tpu_custom_call.1} parent=1 // loop_exit
      _
    %8070 = vsyncpa [#allocation4], 1
    %s8071 = scalar_lea.sflag [#allocation4], 1
    %8072 = vsyncpa %s8071, 1
    %8073 = vsyncpa [#allocation5], 1
    %s8074 = scalar_lea.sflag [#allocation5], 1
    %8075 = vsyncpa %s8074, 1

</llo_original>
